<compile_context>
chip_gen: v7x
topology: tpu7x:2x2x1
jax: 0.10.0
libtpu: 0.0.40
codegen_flags: <defaults>
</compile_context>

<pallas_src>
import functools

import jax
import jax.numpy as jnp
from jax import lax
from jax.experimental import pallas as pl
from jax.experimental.pallas import tpu as pltpu

LANE = 128          # TPU lane width: channel dims are zero-padded to a multiple
BN_EPS = 1e-5


def _round_up(x, m):
    return ((x + m - 1) // m) * m


def _pick_row_tile(h, pool):
    # 8 output rows / grid step keeps M = 8*W MXU-friendly while the f32
    # accumulator stays small; sweep 8..32 for production shapes.
    for th in (8, 4, 2):
        if h % th == 0:
            return th
    return h


# ----------------------------------------------------------------------------
# Pallas kernels
# ----------------------------------------------------------------------------
def conv3x3_bn_relu(x, w, scale, shift, *, pool=False):
    """Fused 3x3 'same' conv + folded BN + ReLU (+ optional 2x2/2 maxpool).

    x:     (N, H, W, Cin)   compute dtype (bf16), Cin % 128 == 0
    w:     (3, 3, Cin, Cout) compute dtype,       Cout % 128 == 0
    scale/shift: (Cout,) f32 (conv bias + inference BN folded in)
    """
    N, H, W, Cin = x.shape
    Cout = w.shape[-1]
    assert Cin % LANE == 0 and Cout % LANE == 0
    if pool:
        assert H % 2 == 0 and W % 2 == 0

    TH = _pick_row_tile(H, pool)
    n_rows = H // TH
    H_out = H // 2 if pool else H
    W_out = W // 2 if pool else W
    TH_out = TH // 2 if pool else TH

    xp = jnp.pad(x, ((0, 0), (1, 1), (1, 1), (0, 0)))      # zero pad, 'same'
    w9 = w.reshape(9, Cin, Cout)
    sc2 = scale.reshape(1, Cout).astype(jnp.float32)
    sh2 = shift.reshape(1, Cout).astype(jnp.float32)

    def kernel(xp_ref, w_ref, sc_ref, sh_ref, o_ref, acc_ref):
        r0 = pl.program_id(1) * TH                # first output row of this tile
        # 9 shifted (TH*W, Cin) @ (Cin, Cout) bf16 MXU matmuls, f32 accumulation
        # in VMEM scratch.  First tap assigns -> no zero-fill / no spills.
        for t in range(9):
            kh, kw = divmod(t, 3)
            patch = xp_ref[0, pl.ds(r0 + kh, TH), pl.ds(kw, W), :]   # (TH, W, Cin)
            # W % 8 == 0 and Cin % 128 == 0 -> tile-aligned (cheap) collapse.
            contrib = jnp.dot(patch.reshape(TH * W, Cin), w_ref[t],
                              preferred_element_type=jnp.float32)
            if t == 0:
                acc_ref[...] = contrib
            else:
                acc_ref[...] += contrib
        y = jnp.maximum(acc_ref[...] * sc_ref[0] + sh_ref[0], 0.0)   # BN + ReLU (f32)
        if pool:
            # Fused 2x2/2 maxpool: H-pairs via a tile-aligned reshape + index,
            # W-pairs as per-output-column maxima with lane-dense column stores.
            y4 = y.reshape(TH // 2, 2, W, Cout)
            yh = jnp.maximum(y4[:, 0], y4[:, 1])                     # (TH//2, W, Cout)
            for j in range(W // 2):
                col = jnp.maximum(yh[:, 2 * j, :], yh[:, 2 * j + 1, :])
                o_ref[0, :, j, :] = col.astype(o_ref.dtype)
        else:
            o_ref[0] = y.reshape(TH, W, Cout).astype(o_ref.dtype)

    return pl.pallas_call(
        kernel,
        out_shape=jax.ShapeDtypeStruct((N, H_out, W_out, Cout), x.dtype),
        grid=(N, n_rows),
        in_specs=[
            # Full padded image stays resident across the row-tile axis (block
            # index independent of i); only the accumulator/output are row-tiled.
            pl.BlockSpec((1, H + 2, W + 2, Cin), lambda n, i: (n, 0, 0, 0)),
            pl.BlockSpec((9, Cin, Cout), lambda n, i: (0, 0, 0)),
            pl.BlockSpec((1, Cout), lambda n, i: (0, 0)),
            pl.BlockSpec((1, Cout), lambda n, i: (0, 0)),
        ],
        out_specs=pl.BlockSpec((1, TH_out, W_out, Cout),
                               lambda n, i: (n, i, 0, 0)),
        scratch_shapes=[pltpu.VMEM((TH * W, Cout), jnp.float32)],
        compiler_params=pltpu.CompilerParams(
            dimension_semantics=("parallel", "arbitrary"),
            vmem_limit_bytes=64 * 1024 * 1024),
    )(xp, w9, sc2, sh2)


def maxpool2x2(x):
    """Standalone 2x2 stride-2 max pool (only used when 'M' does not follow a
    conv). No strided ref loads; value-level reshape + per-column maxima."""
    N, H, W, C = x.shape
    Ho, Wo = H // 2, W // 2

    def kernel(x_ref, o_ref):
        xv = x_ref[0]                                   # (H, W, C)
        x4 = xv.reshape(Ho, 2, W, C)                    # leading-dim split (free)
        xh = jnp.maximum(x4[:, 0], x4[:, 1])            # (Ho, W, C)
        for j in range(Wo):
            o_ref[0, :, j, :] = jnp.maximum(xh[:, 2 * j, :], xh[:, 2 * j + 1, :])

    return pl.pallas_call(
        kernel,
        out_shape=jax.ShapeDtypeStruct((N, Ho, Wo, C), x.dtype),
        grid=(N,),
        in_specs=[pl.BlockSpec((1, H, W, C), lambda n: (n, 0, 0, 0))],
        out_specs=pl.BlockSpec((1, Ho, Wo, C), lambda n: (n, 0, 0, 0)),
        compiler_params=pltpu.CompilerParams(
            dimension_semantics=("parallel",)),
    )(x)


def adaptive_avg_pool_7x7(x):
    """nn.AdaptiveAvgPool2d((7, 7)) semantics. x: (N, H, W, C) -> (N, 7, 7, C) f32."""
    N, H, W, C = x.shape
    OH = OW = 7
    if H == OH and W == OW:                     # standard 224-input VGG: identity
        return x.astype(jnp.float32)

    def kernel(x_ref, o_ref):
        for oh in range(OH):
            hs = (oh * H) // OH
            he = -(-((oh + 1) * H) // OH)       # ceil div
            for ow in range(OW):
                ws = (ow * W) // OW
                we = -(-((ow + 1) * W) // OW)
                win = x_ref[0, pl.ds(hs, he - hs), pl.ds(ws, we - ws), :]
                o_ref[0, oh, ow, :] = (
                    jnp.sum(win.astype(jnp.float32), axis=(0, 1))
                    * (1.0 / float((he - hs) * (we - ws))))

    return pl.pallas_call(
        kernel,
        out_shape=jax.ShapeDtypeStruct((N, OH, OW, C), jnp.float32),
        grid=(N,),
        in_specs=[pl.BlockSpec((1, H, W, C), lambda n: (n, 0, 0, 0))],
        out_specs=pl.BlockSpec((1, OH, OW, C), lambda n: (n, 0, 0, 0)),
        compiler_params=pltpu.CompilerParams(
            dimension_semantics=("parallel",)),
    )(x)


# ----------------------------------------------------------------------------
# Deterministic parameters (VGG._make_layers + BatchNorm2d, inference-folded)
# ----------------------------------------------------------------------------
def make_params(key, layers_cfg, in_channels=3):
    params = []
    cin = in_channels
    for v in layers_cfg:
        if v == "M":
            continue
        cout = int(v)
        key, kw, kg, kb, km, kv = jax.random.split(key, 6)
        # kaiming_normal_(mode='fan_out', nonlinearity='relu')
        std = (2.0 / (cout * 3 * 3)) ** 0.5
        w = jax.random.normal(kw, (3, 3, cin, cout), jnp.float32) * std
        conv_b = jnp.zeros((cout,), jnp.float32)                 # constant_(bias, 0)
        gamma = 1.0 + 0.1 * jax.random.normal(kg, (cout,), jnp.float32)
        beta = 0.1 * jax.random.normal(kb, (cout,), jnp.float32)
        r_mean = 0.1 * jax.random.normal(km, (cout,), jnp.float32)
        r_var = jnp.abs(jax.random.normal(kv, (cout,), jnp.float32)) + 0.5
        scale = gamma / jnp.sqrt(r_var + BN_EPS)                 # fold conv bias + BN
        shift = (conv_b - r_mean) * scale + beta
        params.append((w, scale, shift))
        cin = cout
    return params


# ----------------------------------------------------------------------------
# VGG forward (Pallas) + pure-JAX reference
# ----------------------------------------------------------------------------
def vgg_forward_pallas(x_nchw, params, layers_cfg, compute_dtype=jnp.bfloat16):
    x = jnp.transpose(x_nchw, (0, 2, 3, 1))                      # NCHW -> NHWC
    c_real = x.shape[-1]
    x = jnp.pad(x, ((0, 0), (0, 0), (0, 0), (0, _round_up(c_real, LANE) - c_real)))
    x = x.astype(compute_dtype)

    n_cfg = len(layers_cfg)
    pi = 0
    i = 0
    while i < n_cfg:
        v = layers_cfg[i]
        if v == "M":
            x = maxpool2x2(x)            # only if an 'M' does not follow a conv
            i += 1
            continue
        w, scale, shift = params[pi]
        pi += 1
        cin_r, cout_r = w.shape[2], w.shape[3]
        cin_p = x.shape[-1]
        cout_p = _round_up(cout_r, LANE)
        # Zero lane-padding: padded output channels are exactly 0 after ReLU
        # (scale = shift = 0) and are sliced away at the end.
        wp = jnp.zeros((3, 3, cin_p, cout_p), compute_dtype)
        wp = wp.at[:, :, :cin_r, :cout_r].set(w.astype(compute_dtype))
        sc = jnp.zeros((cout_p,), jnp.float32).at[:cout_r].set(scale)
        sh = jnp.zeros((cout_p,), jnp.float32).at[:cout_r].set(shift)
        pool = (i + 1 < n_cfg) and layers_cfg[i + 1] == "M"      # fuse conv + maxpool
        x = conv3x3_bn_relu(x, wp, sc, sh, pool=pool)
        c_real = cout_r
        i += 2 if pool else 1

    x = adaptive_avg_pool_7x7(x)                                  # (N, 7, 7, Cpad) f32
    x = x[:, :, :, :c_real]                                       # drop lane padding
    x = jnp.transpose(x, (0, 3, 1, 2))                            # back to NCHW
    return x.reshape(x.shape[0], -1)                              # flatten(x, 1)


def vgg_forward_reference(x_nchw, params, layers_cfg, compute_dtype=jnp.bfloat16):
    """Pure-JAX reference with the same bf16-activation / f32-accumulate numerics."""
    x = jnp.transpose(x_nchw, (0, 2, 3, 1)).astype(compute_dtype)
    pi = 0
    for v in layers_cfg:
        if v == "M":
            N, H, W, C = x.shape
            x = x.reshape(N, H // 2, 2, W // 2, 2, C).max(axis=(2, 4))
        else:
            w, scale, shift = params[pi]
            pi += 1
            y = lax.conv_general_dilated(
                x, w.astype(compute_dtype), window_strides=(1, 1), padding="SAME",
                dimension_numbers=("NHWC", "HWIO", "NHWC"),
                preferred_element_type=jnp.float32)
            x = jnp.maximum(y * scale + shift, 0.0).astype(compute_dtype)
    x32 = x.astype(jnp.float32)
    N, H, W, C = x32.shape
    rows = []
    for oh in range(7):
        hs = (oh * H) // 7
        he = -(-((oh + 1) * H) // 7)
        cols = []
        for ow in range(7):
            ws = (ow * W) // 7
            we = -(-((ow + 1) * W) // 7)
            win = x32[:, hs:he, ws:we, :]
            cols.append(jnp.sum(win, axis=(1, 2))
                        * (1.0 / float((he - hs) * (we - ws))))
        rows.append(jnp.stack(cols, axis=1))
    p = jnp.stack(rows, axis=1)                                   # (N, 7, 7, C)
    return jnp.transpose(p, (0, 3, 1, 2)).reshape(N, -1)


if __name__ == "__main__":
    # Small VGG-style config (same structure as VGG._make_layers).
    layers_cfg = [8, "M", 16, "M"]

    key = jax.random.PRNGKey(0)
    key_x, key_p = jax.random.split(key)

    x = jax.random.normal(key_x, (2, 3, 16, 16), jnp.float32)     # NCHW like torch
    params = make_params(key_p, layers_cfg)

    fwd = jax.jit(functools.partial(
        vgg_forward_pallas, params=params, layers_cfg=layers_cfg))
    out = jax.block_until_ready(fwd(x))

    ref = jax.block_until_ready(vgg_forward_reference(x, params, layers_cfg))

    assert out.shape == (2, 16 * 7 * 7), out.shape
    max_err = float(jnp.max(jnp.abs(out - ref)))
    # bf16 activations/weights with f32 accumulation on both paths.
    assert jnp.allclose(out, ref, atol=5e-2, rtol=5e-2), max_err

    print("KERNEL_OK")
</pallas_src>

<mosaic_0001>
module attributes {stable_mosaic.version = 11 : i64} {
  func.func @kernel(%arg0: i32, %arg1: i32, %arg2: memref<1x18x18x128xbf16, #tpu.memory_space<vmem>>, %arg3: memref<9x128x128xbf16, #tpu.memory_space<vmem>>, %arg4: memref<1x128xf32, #tpu.memory_space<vmem>>, %arg5: memref<1x128xf32, #tpu.memory_space<vmem>>, %arg6: memref<1x4x8x128xbf16, #tpu.memory_space<vmem>>, %arg7: memref<128x128xf32, #tpu.memory_space<vmem>>) attributes {dimension_semantics = [#tpu.dimension_semantics<parallel>, #tpu.dimension_semantics<arbitrary>], iteration_bounds = array<i64: 2, 2>, scalar_prefetch = 0 : i64, scratch_operands = 1 : i64, tpu.core_type = #tpu.core_type<tc>, window_params = [{transform_indices = @transform_0, window_bounds = array<i64: 1, 18, 18, 128>}, {pipeline_mode = #tpu.pipeline_mode<synchronous>, transform_indices = @transform_1, window_bounds = array<i64: 9, 128, 128>}, {pipeline_mode = #tpu.pipeline_mode<synchronous>, transform_indices = @transform_2, window_bounds = array<i64: 1, 128>}, {pipeline_mode = #tpu.pipeline_mode<synchronous>, transform_indices = @transform_3, window_bounds = array<i64: 1, 128>}, {transform_indices = @transform_4, window_bounds = array<i64: 1, 4, 8, 128>}]} {
    %c8_i32 = arith.constant 8 : i32
    %0 = arith.muli %arg1, %c8_i32 : i32
    %c0_i32 = arith.constant 0 : i32
    %1 = arith.addi %0, %c0_i32 : i32
    %c0 = arith.constant 0 : index
    %2 = arith.index_cast %1 : i32 to index
    %c0_0 = arith.constant 0 : index
    %c0_1 = arith.constant 0 : index
    %3 = vector.load %arg2[%c0, %2, %c0_0, %c0_1] : memref<1x18x18x128xbf16, #tpu.memory_space<vmem>>, vector<1x8x16x128xbf16>
    %4 = vector.shape_cast %3 : vector<1x8x16x128xbf16> to vector<8x16x128xbf16>
    %5 = vector.shape_cast %4 : vector<8x16x128xbf16> to vector<128x128xbf16>
    %c0_2 = arith.constant 0 : index
    %c0_3 = arith.constant 0 : index
    %c0_4 = arith.constant 0 : index
    %6 = vector.load %arg3[%c0_2, %c0_3, %c0_4] : memref<9x128x128xbf16, #tpu.memory_space<vmem>>, vector<1x128x128xbf16>
    %7 = vector.shape_cast %6 : vector<1x128x128xbf16> to vector<128x128xbf16>
    %cst = arith.constant dense<0.000000e+00> : vector<128x128xf32>
    %8 = tpu.matmul %5, %7, %cst {dimension_numbers = #tpu.dot_dimension_numbers<[1], [0], [0], [1], [0, 0, 1, 1], [], []>} : vector<128x128xbf16>, vector<128x128xbf16>, vector<128x128xf32> -> vector<128x128xf32>
    %c0_5 = arith.constant 0 : index
    %c0_6 = arith.constant 0 : index
    %9 = vector.load %arg7[%c0_5, %c0_6] : memref<128x128xf32, #tpu.memory_space<vmem>>, vector<128x128xf32>
    tpu.vector_store %arg7[%c0_5, %c0_6], %8 {strides = array<i32>} : memref<128x128xf32, #tpu.memory_space<vmem>>, vector<128x128xf32>,
    %c0_i32_7 = arith.constant 0 : i32
    %10 = arith.addi %0, %c0_i32_7 : i32
    %c0_8 = arith.constant 0 : index
    %11 = arith.index_cast %10 : i32 to index
    %c1 = arith.constant 1 : index
    %c0_9 = arith.constant 0 : index
    %12 = vector.load %arg2[%c0_8, %11, %c1, %c0_9] : memref<1x18x18x128xbf16, #tpu.memory_space<vmem>>, vector<1x8x16x128xbf16>
    %13 = vector.shape_cast %12 : vector<1x8x16x128xbf16> to vector<8x16x128xbf16>
    %14 = vector.shape_cast %13 : vector<8x16x128xbf16> to vector<128x128xbf16>
    %c1_10 = arith.constant 1 : index
    %c0_11 = arith.constant 0 : index
    %c0_12 = arith.constant 0 : index
    %15 = vector.load %arg3[%c1_10, %c0_11, %c0_12] : memref<9x128x128xbf16, #tpu.memory_space<vmem>>, vector<1x128x128xbf16>
    %16 = vector.shape_cast %15 : vector<1x128x128xbf16> to vector<128x128xbf16>
    %cst_13 = arith.constant dense<0.000000e+00> : vector<128x128xf32>
    %17 = tpu.matmul %14, %16, %cst_13 {dimension_numbers = #tpu.dot_dimension_numbers<[1], [0], [0], [1], [0, 0, 1, 1], [], []>} : vector<128x128xbf16>, vector<128x128xbf16>, vector<128x128xf32> -> vector<128x128xf32>
    %c0_14 = arith.constant 0 : index
    %c0_15 = arith.constant 0 : index
    %18 = vector.load %arg7[%c0_14, %c0_15] : memref<128x128xf32, #tpu.memory_space<vmem>>, vector<128x128xf32>
    %19 = arith.addf %18, %17 : vector<128x128xf32>
    %c0_16 = arith.constant 0 : index
    %c0_17 = arith.constant 0 : index
    %20 = vector.load %arg7[%c0_16, %c0_17] : memref<128x128xf32, #tpu.memory_space<vmem>>, vector<128x128xf32>
    tpu.vector_store %arg7[%c0_16, %c0_17], %19 {strides = array<i32>} : memref<128x128xf32, #tpu.memory_space<vmem>>, vector<128x128xf32>,
    %c0_i32_18 = arith.constant 0 : i32
    %21 = arith.addi %0, %c0_i32_18 : i32
    %c0_19 = arith.constant 0 : index
    %22 = arith.index_cast %21 : i32 to index
    %c2 = arith.constant 2 : index
    %c0_20 = arith.constant 0 : index
    %23 = vector.load %arg2[%c0_19, %22, %c2, %c0_20] : memref<1x18x18x128xbf16, #tpu.memory_space<vmem>>, vector<1x8x16x128xbf16>
    %24 = vector.shape_cast %23 : vector<1x8x16x128xbf16> to vector<8x16x128xbf16>
    %25 = vector.shape_cast %24 : vector<8x16x128xbf16> to vector<128x128xbf16>
    %c2_21 = arith.constant 2 : index
    %c0_22 = arith.constant 0 : index
    %c0_23 = arith.constant 0 : index
    %26 = vector.load %arg3[%c2_21, %c0_22, %c0_23] : memref<9x128x128xbf16, #tpu.memory_space<vmem>>, vector<1x128x128xbf16>
    %27 = vector.shape_cast %26 : vector<1x128x128xbf16> to vector<128x128xbf16>
    %cst_24 = arith.constant dense<0.000000e+00> : vector<128x128xf32>
    %28 = tpu.matmul %25, %27, %cst_24 {dimension_numbers = #tpu.dot_dimension_numbers<[1], [0], [0], [1], [0, 0, 1, 1], [], []>} : vector<128x128xbf16>, vector<128x128xbf16>, vector<128x128xf32> -> vector<128x128xf32>
    %c0_25 = arith.constant 0 : index
    %c0_26 = arith.constant 0 : index
    %29 = vector.load %arg7[%c0_25, %c0_26] : memref<128x128xf32, #tpu.memory_space<vmem>>, vector<128x128xf32>
    %30 = arith.addf %29, %28 : vector<128x128xf32>
    %c0_27 = arith.constant 0 : index
    %c0_28 = arith.constant 0 : index
    %31 = vector.load %arg7[%c0_27, %c0_28] : memref<128x128xf32, #tpu.memory_space<vmem>>, vector<128x128xf32>
    tpu.vector_store %arg7[%c0_27, %c0_28], %30 {strides = array<i32>} : memref<128x128xf32, #tpu.memory_space<vmem>>, vector<128x128xf32>,
    %c1_i32 = arith.constant 1 : i32
    %32 = arith.addi %0, %c1_i32 : i32
    %c0_29 = arith.constant 0 : index
    %33 = arith.index_cast %32 : i32 to index
    %c0_30 = arith.constant 0 : index
    %c0_31 = arith.constant 0 : index
    %34 = vector.load %arg2[%c0_29, %33, %c0_30, %c0_31] : memref<1x18x18x128xbf16, #tpu.memory_space<vmem>>, vector<1x8x16x128xbf16>
    %35 = vector.shape_cast %34 : vector<1x8x16x128xbf16> to vector<8x16x128xbf16>
    %36 = vector.shape_cast %35 : vector<8x16x128xbf16> to vector<128x128xbf16>
    %c3 = arith.constant 3 : index
    %c0_32 = arith.constant 0 : index
    %c0_33 = arith.constant 0 : index
    %37 = vector.load %arg3[%c3, %c0_32, %c0_33] : memref<9x128x128xbf16, #tpu.memory_space<vmem>>, vector<1x128x128xbf16>
    %38 = vector.shape_cast %37 : vector<1x128x128xbf16> to vector<128x128xbf16>
    %cst_34 = arith.constant dense<0.000000e+00> : vector<128x128xf32>
    %39 = tpu.matmul %36, %38, %cst_34 {dimension_numbers = #tpu.dot_dimension_numbers<[1], [0], [0], [1], [0, 0, 1, 1], [], []>} : vector<128x128xbf16>, vector<128x128xbf16>, vector<128x128xf32> -> vector<128x128xf32>
    %c0_35 = arith.constant 0 : index
    %c0_36 = arith.constant 0 : index
    %40 = vector.load %arg7[%c0_35, %c0_36] : memref<128x128xf32, #tpu.memory_space<vmem>>, vector<128x128xf32>
    %41 = arith.addf %40, %39 : vector<128x128xf32>
    %c0_37 = arith.constant 0 : index
    %c0_38 = arith.constant 0 : index
    %42 = vector.load %arg7[%c0_37, %c0_38] : memref<128x128xf32, #tpu.memory_space<vmem>>, vector<128x128xf32>
    tpu.vector_store %arg7[%c0_37, %c0_38], %41 {strides = array<i32>} : memref<128x128xf32, #tpu.memory_space<vmem>>, vector<128x128xf32>,
    %c1_i32_39 = arith.constant 1 : i32
    %43 = arith.addi %0, %c1_i32_39 : i32
    %c0_40 = arith.constant 0 : index
    %44 = arith.index_cast %43 : i32 to index
    %c1_41 = arith.constant 1 : index
    %c0_42 = arith.constant 0 : index
    %45 = vector.load %arg2[%c0_40, %44, %c1_41, %c0_42] : memref<1x18x18x128xbf16, #tpu.memory_space<vmem>>, vector<1x8x16x128xbf16>
    %46 = vector.shape_cast %45 : vector<1x8x16x128xbf16> to vector<8x16x128xbf16>
    %47 = vector.shape_cast %46 : vector<8x16x128xbf16> to vector<128x128xbf16>
    %c4 = arith.constant 4 : index
    %c0_43 = arith.constant 0 : index
    %c0_44 = arith.constant 0 : index
    %48 = vector.load %arg3[%c4, %c0_43, %c0_44] : memref<9x128x128xbf16, #tpu.memory_space<vmem>>, vector<1x128x128xbf16>
    %49 = vector.shape_cast %48 : vector<1x128x128xbf16> to vector<128x128xbf16>
    %cst_45 = arith.constant dense<0.000000e+00> : vector<128x128xf32>
    %50 = tpu.matmul %47, %49, %cst_45 {dimension_numbers = #tpu.dot_dimension_numbers<[1], [0], [0], [1], [0, 0, 1, 1], [], []>} : vector<128x128xbf16>, vector<128x128xbf16>, vector<128x128xf32> -> vector<128x128xf32>
    %c0_46 = arith.constant 0 : index
    %c0_47 = arith.constant 0 : index
    %51 = vector.load %arg7[%c0_46, %c0_47] : memref<128x128xf32, #tpu.memory_space<vmem>>, vector<128x128xf32>
    %52 = arith.addf %51, %50 : vector<128x128xf32>
    %c0_48 = arith.constant 0 : index
    %c0_49 = arith.constant 0 : index
    %53 = vector.load %arg7[%c0_48, %c0_49] : memref<128x128xf32, #tpu.memory_space<vmem>>, vector<128x128xf32>
    tpu.vector_store %arg7[%c0_48, %c0_49], %52 {strides = array<i32>} : memref<128x128xf32, #tpu.memory_space<vmem>>, vector<128x128xf32>,
    %c1_i32_50 = arith.constant 1 : i32
    %54 = arith.addi %0, %c1_i32_50 : i32
    %c0_51 = arith.constant 0 : index
    %55 = arith.index_cast %54 : i32 to index
    %c2_52 = arith.constant 2 : index
    %c0_53 = arith.constant 0 : index
    %56 = vector.load %arg2[%c0_51, %55, %c2_52, %c0_53] : memref<1x18x18x128xbf16, #tpu.memory_space<vmem>>, vector<1x8x16x128xbf16>
    %57 = vector.shape_cast %56 : vector<1x8x16x128xbf16> to vector<8x16x128xbf16>
    %58 = vector.shape_cast %57 : vector<8x16x128xbf16> to vector<128x128xbf16>
    %c5 = arith.constant 5 : index
    %c0_54 = arith.constant 0 : index
    %c0_55 = arith.constant 0 : index
    %59 = vector.load %arg3[%c5, %c0_54, %c0_55] : memref<9x128x128xbf16, #tpu.memory_space<vmem>>, vector<1x128x128xbf16>
    %60 = vector.shape_cast %59 : vector<1x128x128xbf16> to vector<128x128xbf16>
    %cst_56 = arith.constant dense<0.000000e+00> : vector<128x128xf32>
    %61 = tpu.matmul %58, %60, %cst_56 {dimension_numbers = #tpu.dot_dimension_numbers<[1], [0], [0], [1], [0, 0, 1, 1], [], []>} : vector<128x128xbf16>, vector<128x128xbf16>, vector<128x128xf32> -> vector<128x128xf32>
    %c0_57 = arith.constant 0 : index
    %c0_58 = arith.constant 0 : index
    %62 = vector.load %arg7[%c0_57, %c0_58] : memref<128x128xf32, #tpu.memory_space<vmem>>, vector<128x128xf32>
    %63 = arith.addf %62, %61 : vector<128x128xf32>
    %c0_59 = arith.constant 0 : index
    %c0_60 = arith.constant 0 : index
    %64 = vector.load %arg7[%c0_59, %c0_60] : memref<128x128xf32, #tpu.memory_space<vmem>>, vector<128x128xf32>
    tpu.vector_store %arg7[%c0_59, %c0_60], %63 {strides = array<i32>} : memref<128x128xf32, #tpu.memory_space<vmem>>, vector<128x128xf32>,
    %c2_i32 = arith.constant 2 : i32
    %65 = arith.addi %0, %c2_i32 : i32
    %c0_61 = arith.constant 0 : index
    %66 = arith.index_cast %65 : i32 to index
    %c0_62 = arith.constant 0 : index
    %c0_63 = arith.constant 0 : index
    %67 = vector.load %arg2[%c0_61, %66, %c0_62, %c0_63] : memref<1x18x18x128xbf16, #tpu.memory_space<vmem>>, vector<1x8x16x128xbf16>
    %68 = vector.shape_cast %67 : vector<1x8x16x128xbf16> to vector<8x16x128xbf16>
    %69 = vector.shape_cast %68 : vector<8x16x128xbf16> to vector<128x128xbf16>
    %c6 = arith.constant 6 : index
    %c0_64 = arith.constant 0 : index
    %c0_65 = arith.constant 0 : index
    %70 = vector.load %arg3[%c6, %c0_64, %c0_65] : memref<9x128x128xbf16, #tpu.memory_space<vmem>>, vector<1x128x128xbf16>
    %71 = vector.shape_cast %70 : vector<1x128x128xbf16> to vector<128x128xbf16>
    %cst_66 = arith.constant dense<0.000000e+00> : vector<128x128xf32>
    %72 = tpu.matmul %69, %71, %cst_66 {dimension_numbers = #tpu.dot_dimension_numbers<[1], [0], [0], [1], [0, 0, 1, 1], [], []>} : vector<128x128xbf16>, vector<128x128xbf16>, vector<128x128xf32> -> vector<128x128xf32>
    %c0_67 = arith.constant 0 : index
    %c0_68 = arith.constant 0 : index
    %73 = vector.load %arg7[%c0_67, %c0_68] : memref<128x128xf32, #tpu.memory_space<vmem>>, vector<128x128xf32>
    %74 = arith.addf %73, %72 : vector<128x128xf32>
    %c0_69 = arith.constant 0 : index
    %c0_70 = arith.constant 0 : index
    %75 = vector.load %arg7[%c0_69, %c0_70] : memref<128x128xf32, #tpu.memory_space<vmem>>, vector<128x128xf32>
    tpu.vector_store %arg7[%c0_69, %c0_70], %74 {strides = array<i32>} : memref<128x128xf32, #tpu.memory_space<vmem>>, vector<128x128xf32>,
    %c2_i32_71 = arith.constant 2 : i32
    %76 = arith.addi %0, %c2_i32_71 : i32
    %c0_72 = arith.constant 0 : index
    %77 = arith.index_cast %76 : i32 to index
    %c1_73 = arith.constant 1 : index
    %c0_74 = arith.constant 0 : index
    %78 = vector.load %arg2[%c0_72, %77, %c1_73, %c0_74] : memref<1x18x18x128xbf16, #tpu.memory_space<vmem>>, vector<1x8x16x128xbf16>
    %79 = vector.shape_cast %78 : vector<1x8x16x128xbf16> to vector<8x16x128xbf16>
    %80 = vector.shape_cast %79 : vector<8x16x128xbf16> to vector<128x128xbf16>
    %c7 = arith.constant 7 : index
    %c0_75 = arith.constant 0 : index
    %c0_76 = arith.constant 0 : index
    %81 = vector.load %arg3[%c7, %c0_75, %c0_76] : memref<9x128x128xbf16, #tpu.memory_space<vmem>>, vector<1x128x128xbf16>
    %82 = vector.shape_cast %81 : vector<1x128x128xbf16> to vector<128x128xbf16>
    %cst_77 = arith.constant dense<0.000000e+00> : vector<128x128xf32>
    %83 = tpu.matmul %80, %82, %cst_77 {dimension_numbers = #tpu.dot_dimension_numbers<[1], [0], [0], [1], [0, 0, 1, 1], [], []>} : vector<128x128xbf16>, vector<128x128xbf16>, vector<128x128xf32> -> vector<128x128xf32>
    %c0_78 = arith.constant 0 : index
    %c0_79 = arith.constant 0 : index
    %84 = vector.load %arg7[%c0_78, %c0_79] : memref<128x128xf32, #tpu.memory_space<vmem>>, vector<128x128xf32>
    %85 = arith.addf %84, %83 : vector<128x128xf32>
    %c0_80 = arith.constant 0 : index
    %c0_81 = arith.constant 0 : index
    %86 = vector.load %arg7[%c0_80, %c0_81] : memref<128x128xf32, #tpu.memory_space<vmem>>, vector<128x128xf32>
    tpu.vector_store %arg7[%c0_80, %c0_81], %85 {strides = array<i32>} : memref<128x128xf32, #tpu.memory_space<vmem>>, vector<128x128xf32>,
    %c2_i32_82 = arith.constant 2 : i32
    %87 = arith.addi %0, %c2_i32_82 : i32
    %c0_83 = arith.constant 0 : index
    %88 = arith.index_cast %87 : i32 to index
    %c2_84 = arith.constant 2 : index
    %c0_85 = arith.constant 0 : index
    %89 = vector.load %arg2[%c0_83, %88, %c2_84, %c0_85] : memref<1x18x18x128xbf16, #tpu.memory_space<vmem>>, vector<1x8x16x128xbf16>
    %90 = vector.shape_cast %89 : vector<1x8x16x128xbf16> to vector<8x16x128xbf16>
    %91 = vector.shape_cast %90 : vector<8x16x128xbf16> to vector<128x128xbf16>
    %c8 = arith.constant 8 : index
    %c0_86 = arith.constant 0 : index
    %c0_87 = arith.constant 0 : index
    %92 = vector.load %arg3[%c8, %c0_86, %c0_87] : memref<9x128x128xbf16, #tpu.memory_space<vmem>>, vector<1x128x128xbf16>
    %93 = vector.shape_cast %92 : vector<1x128x128xbf16> to vector<128x128xbf16>
    %cst_88 = arith.constant dense<0.000000e+00> : vector<128x128xf32>
    %94 = tpu.matmul %91, %93, %cst_88 {dimension_numbers = #tpu.dot_dimension_numbers<[1], [0], [0], [1], [0, 0, 1, 1], [], []>} : vector<128x128xbf16>, vector<128x128xbf16>, vector<128x128xf32> -> vector<128x128xf32>
    %c0_89 = arith.constant 0 : index
    %c0_90 = arith.constant 0 : index
    %95 = vector.load %arg7[%c0_89, %c0_90] : memref<128x128xf32, #tpu.memory_space<vmem>>, vector<128x128xf32>
    %96 = arith.addf %95, %94 : vector<128x128xf32>
    %c0_91 = arith.constant 0 : index
    %c0_92 = arith.constant 0 : index
    %97 = vector.load %arg7[%c0_91, %c0_92] : memref<128x128xf32, #tpu.memory_space<vmem>>, vector<128x128xf32>
    tpu.vector_store %arg7[%c0_91, %c0_92], %96 {strides = array<i32>} : memref<128x128xf32, #tpu.memory_space<vmem>>, vector<128x128xf32>,
    %c0_93 = arith.constant 0 : index
    %c0_94 = arith.constant 0 : index
    %98 = vector.load %arg7[%c0_93, %c0_94] : memref<128x128xf32, #tpu.memory_space<vmem>>, vector<128x128xf32>
    %c0_95 = arith.constant 0 : index
    %c0_96 = arith.constant 0 : index
    %99 = vector.load %arg4[%c0_95, %c0_96] : memref<1x128xf32, #tpu.memory_space<vmem>>, vector<1x128xf32>
    %100 = vector.shape_cast %99 : vector<1x128xf32> to vector<128xf32>
    %101 = vector.shape_cast %100 : vector<128xf32> to vector<1x128xf32>
    %102 = vector.broadcast %101 : vector<1x128xf32> to vector<128x128xf32>
    %103 = arith.mulf %98, %102 : vector<128x128xf32>
    %c0_97 = arith.constant 0 : index
    %c0_98 = arith.constant 0 : index
    %104 = vector.load %arg5[%c0_97, %c0_98] : memref<1x128xf32, #tpu.memory_space<vmem>>, vector<1x128xf32>
    %105 = vector.shape_cast %104 : vector<1x128xf32> to vector<128xf32>
    %106 = vector.shape_cast %105 : vector<128xf32> to vector<1x128xf32>
    %107 = vector.broadcast %106 : vector<1x128xf32> to vector<128x128xf32>
    %108 = arith.addf %103, %107 : vector<128x128xf32>
    %cst_99 = arith.constant 0.000000e+00 : f32
    %109 = vector.broadcast %cst_99 : f32 to vector<128x128xf32>
    %110 = arith.maximumf %108, %109 : vector<128x128xf32>
    %111 = vector.shape_cast %110 : vector<128x128xf32> to vector<4x2x16x128xf32>
    %112 = vector.extract_strided_slice %111 {offsets = [0, 0, 0, 0], sizes = [4, 1, 16, 128], strides = [1, 1, 1, 1]} : vector<4x2x16x128xf32> to vector<4x1x16x128xf32>
    %113 = vector.shape_cast %112 : vector<4x1x16x128xf32> to vector<4x16x128xf32>
    %114 = vector.extract_strided_slice %111 {offsets = [0, 1, 0, 0], sizes = [4, 1, 16, 128], strides = [1, 1, 1, 1]} : vector<4x2x16x128xf32> to vector<4x1x16x128xf32>
    %115 = vector.shape_cast %114 : vector<4x1x16x128xf32> to vector<4x16x128xf32>
    %116 = arith.maximumf %113, %115 : vector<4x16x128xf32>
    %117 = vector.extract_strided_slice %116 {offsets = [0, 0, 0], sizes = [4, 1, 128], strides = [1, 1, 1]} : vector<4x16x128xf32> to vector<4x1x128xf32>
    %118 = vector.shape_cast %117 : vector<4x1x128xf32> to vector<4x128xf32>
    %119 = vector.extract_strided_slice %116 {offsets = [0, 1, 0], sizes = [4, 1, 128], strides = [1, 1, 1]} : vector<4x16x128xf32> to vector<4x1x128xf32>
    %120 = vector.shape_cast %119 : vector<4x1x128xf32> to vector<4x128xf32>
    %121 = arith.maximumf %118, %120 : vector<4x128xf32>
    %122 = arith.truncf %121 : vector<4x128xf32> to vector<4x128xbf16>
    %c0_100 = arith.constant 0 : index
    %c0_101 = arith.constant 0 : index
    %c0_102 = arith.constant 0 : index
    %c0_103 = arith.constant 0 : index
    %123 = vector.load %arg6[%c0_100, %c0_101, %c0_102, %c0_103] : memref<1x4x8x128xbf16, #tpu.memory_space<vmem>>, vector<1x4x1x128xbf16>
    %124 = vector.shape_cast %123 : vector<1x4x1x128xbf16> to vector<4x128xbf16>
    %125 = vector.shape_cast %122 : vector<4x128xbf16> to vector<1x4x1x128xbf16>
    tpu.vector_store %arg6[%c0_100, %c0_101, %c0_102, %c0_103], %125 {strides = array<i32>} : memref<1x4x8x128xbf16, #tpu.memory_space<vmem>>, vector<1x4x1x128xbf16>,
    %126 = vector.extract_strided_slice %116 {offsets = [0, 2, 0], sizes = [4, 1, 128], strides = [1, 1, 1]} : vector<4x16x128xf32> to vector<4x1x128xf32>
    %127 = vector.shape_cast %126 : vector<4x1x128xf32> to vector<4x128xf32>
    %128 = vector.extract_strided_slice %116 {offsets = [0, 3, 0], sizes = [4, 1, 128], strides = [1, 1, 1]} : vector<4x16x128xf32> to vector<4x1x128xf32>
    %129 = vector.shape_cast %128 : vector<4x1x128xf32> to vector<4x128xf32>
    %130 = arith.maximumf %127, %129 : vector<4x128xf32>
    %131 = arith.truncf %130 : vector<4x128xf32> to vector<4x128xbf16>
    %c0_104 = arith.constant 0 : index
    %c0_105 = arith.constant 0 : index
    %c1_106 = arith.constant 1 : index
    %c0_107 = arith.constant 0 : index
    %132 = vector.load %arg6[%c0_104, %c0_105, %c1_106, %c0_107] : memref<1x4x8x128xbf16, #tpu.memory_space<vmem>>, vector<1x4x1x128xbf16>
    %133 = vector.shape_cast %132 : vector<1x4x1x128xbf16> to vector<4x128xbf16>
    %134 = vector.shape_cast %131 : vector<4x128xbf16> to vector<1x4x1x128xbf16>
    tpu.vector_store %arg6[%c0_104, %c0_105, %c1_106, %c0_107], %134 {strides = array<i32>} : memref<1x4x8x128xbf16, #tpu.memory_space<vmem>>, vector<1x4x1x128xbf16>,
    %135 = vector.extract_strided_slice %116 {offsets = [0, 4, 0], sizes = [4, 1, 128], strides = [1, 1, 1]} : vector<4x16x128xf32> to vector<4x1x128xf32>
    %136 = vector.shape_cast %135 : vector<4x1x128xf32> to vector<4x128xf32>
    %137 = vector.extract_strided_slice %116 {offsets = [0, 5, 0], sizes = [4, 1, 128], strides = [1, 1, 1]} : vector<4x16x128xf32> to vector<4x1x128xf32>
    %138 = vector.shape_cast %137 : vector<4x1x128xf32> to vector<4x128xf32>
    %139 = arith.maximumf %136, %138 : vector<4x128xf32>
    %140 = arith.truncf %139 : vector<4x128xf32> to vector<4x128xbf16>
    %c0_108 = arith.constant 0 : index
    %c0_109 = arith.constant 0 : index
    %c2_110 = arith.constant 2 : index
    %c0_111 = arith.constant 0 : index
    %141 = vector.load %arg6[%c0_108, %c0_109, %c2_110, %c0_111] : memref<1x4x8x128xbf16, #tpu.memory_space<vmem>>, vector<1x4x1x128xbf16>
    %142 = vector.shape_cast %141 : vector<1x4x1x128xbf16> to vector<4x128xbf16>
    %143 = vector.shape_cast %140 : vector<4x128xbf16> to vector<1x4x1x128xbf16>
    tpu.vector_store %arg6[%c0_108, %c0_109, %c2_110, %c0_111], %143 {strides = array<i32>} : memref<1x4x8x128xbf16, #tpu.memory_space<vmem>>, vector<1x4x1x128xbf16>,
    %144 = vector.extract_strided_slice %116 {offsets = [0, 6, 0], sizes = [4, 1, 128], strides = [1, 1, 1]} : vector<4x16x128xf32> to vector<4x1x128xf32>
    %145 = vector.shape_cast %144 : vector<4x1x128xf32> to vector<4x128xf32>
    %146 = vector.extract_strided_slice %116 {offsets = [0, 7, 0], sizes = [4, 1, 128], strides = [1, 1, 1]} : vector<4x16x128xf32> to vector<4x1x128xf32>
    %147 = vector.shape_cast %146 : vector<4x1x128xf32> to vector<4x128xf32>
    %148 = arith.maximumf %145, %147 : vector<4x128xf32>
    %149 = arith.truncf %148 : vector<4x128xf32> to vector<4x128xbf16>
    %c0_112 = arith.constant 0 : index
    %c0_113 = arith.constant 0 : index
    %c3_114 = arith.constant 3 : index
    %c0_115 = arith.constant 0 : index
    %150 = vector.load %arg6[%c0_112, %c0_113, %c3_114, %c0_115] : memref<1x4x8x128xbf16, #tpu.memory_space<vmem>>, vector<1x4x1x128xbf16>
    %151 = vector.shape_cast %150 : vector<1x4x1x128xbf16> to vector<4x128xbf16>
    %152 = vector.shape_cast %149 : vector<4x128xbf16> to vector<1x4x1x128xbf16>
    tpu.vector_store %arg6[%c0_112, %c0_113, %c3_114, %c0_115], %152 {strides = array<i32>} : memref<1x4x8x128xbf16, #tpu.memory_space<vmem>>, vector<1x4x1x128xbf16>,
    %153 = vector.extract_strided_slice %116 {offsets = [0, 8, 0], sizes = [4, 1, 128], strides = [1, 1, 1]} : vector<4x16x128xf32> to vector<4x1x128xf32>
    %154 = vector.shape_cast %153 : vector<4x1x128xf32> to vector<4x128xf32>
    %155 = vector.extract_strided_slice %116 {offsets = [0, 9, 0], sizes = [4, 1, 128], strides = [1, 1, 1]} : vector<4x16x128xf32> to vector<4x1x128xf32>
    %156 = vector.shape_cast %155 : vector<4x1x128xf32> to vector<4x128xf32>
    %157 = arith.maximumf %154, %156 : vector<4x128xf32>
    %158 = arith.truncf %157 : vector<4x128xf32> to vector<4x128xbf16>
    %c0_116 = arith.constant 0 : index
    %c0_117 = arith.constant 0 : index
    %c4_118 = arith.constant 4 : index
    %c0_119 = arith.constant 0 : index
    %159 = vector.load %arg6[%c0_116, %c0_117, %c4_118, %c0_119] : memref<1x4x8x128xbf16, #tpu.memory_space<vmem>>, vector<1x4x1x128xbf16>
    %160 = vector.shape_cast %159 : vector<1x4x1x128xbf16> to vector<4x128xbf16>
    %161 = vector.shape_cast %158 : vector<4x128xbf16> to vector<1x4x1x128xbf16>
    tpu.vector_store %arg6[%c0_116, %c0_117, %c4_118, %c0_119], %161 {strides = array<i32>} : memref<1x4x8x128xbf16, #tpu.memory_space<vmem>>, vector<1x4x1x128xbf16>,
    %162 = vector.extract_strided_slice %116 {offsets = [0, 10, 0], sizes = [4, 1, 128], strides = [1, 1, 1]} : vector<4x16x128xf32> to vector<4x1x128xf32>
    %163 = vector.shape_cast %162 : vector<4x1x128xf32> to vector<4x128xf32>
    %164 = vector.extract_strided_slice %116 {offsets = [0, 11, 0], sizes = [4, 1, 128], strides = [1, 1, 1]} : vector<4x16x128xf32> to vector<4x1x128xf32>
    %165 = vector.shape_cast %164 : vector<4x1x128xf32> to vector<4x128xf32>
    %166 = arith.maximumf %163, %165 : vector<4x128xf32>
    %167 = arith.truncf %166 : vector<4x128xf32> to vector<4x128xbf16>
    %c0_120 = arith.constant 0 : index
    %c0_121 = arith.constant 0 : index
    %c5_122 = arith.constant 5 : index
    %c0_123 = arith.constant 0 : index
    %168 = vector.load %arg6[%c0_120, %c0_121, %c5_122, %c0_123] : memref<1x4x8x128xbf16, #tpu.memory_space<vmem>>, vector<1x4x1x128xbf16>
    %169 = vector.shape_cast %168 : vector<1x4x1x128xbf16> to vector<4x128xbf16>
    %170 = vector.shape_cast %167 : vector<4x128xbf16> to vector<1x4x1x128xbf16>
    tpu.vector_store %arg6[%c0_120, %c0_121, %c5_122, %c0_123], %170 {strides = array<i32>} : memref<1x4x8x128xbf16, #tpu.memory_space<vmem>>, vector<1x4x1x128xbf16>,
    %171 = vector.extract_strided_slice %116 {offsets = [0, 12, 0], sizes = [4, 1, 128], strides = [1, 1, 1]} : vector<4x16x128xf32> to vector<4x1x128xf32>
    %172 = vector.shape_cast %171 : vector<4x1x128xf32> to vector<4x128xf32>
    %173 = vector.extract_strided_slice %116 {offsets = [0, 13, 0], sizes = [4, 1, 128], strides = [1, 1, 1]} : vector<4x16x128xf32> to vector<4x1x128xf32>
    %174 = vector.shape_cast %173 : vector<4x1x128xf32> to vector<4x128xf32>
    %175 = arith.maximumf %172, %174 : vector<4x128xf32>
    %176 = arith.truncf %175 : vector<4x128xf32> to vector<4x128xbf16>
    %c0_124 = arith.constant 0 : index
    %c0_125 = arith.constant 0 : index
    %c6_126 = arith.constant 6 : index
    %c0_127 = arith.constant 0 : index
    %177 = vector.load %arg6[%c0_124, %c0_125, %c6_126, %c0_127] : memref<1x4x8x128xbf16, #tpu.memory_space<vmem>>, vector<1x4x1x128xbf16>
    %178 = vector.shape_cast %177 : vector<1x4x1x128xbf16> to vector<4x128xbf16>
    %179 = vector.shape_cast %176 : vector<4x128xbf16> to vector<1x4x1x128xbf16>
    tpu.vector_store %arg6[%c0_124, %c0_125, %c6_126, %c0_127], %179 {strides = array<i32>} : memref<1x4x8x128xbf16, #tpu.memory_space<vmem>>, vector<1x4x1x128xbf16>,
    %180 = vector.extract_strided_slice %116 {offsets = [0, 14, 0], sizes = [4, 1, 128], strides = [1, 1, 1]} : vector<4x16x128xf32> to vector<4x1x128xf32>
    %181 = vector.shape_cast %180 : vector<4x1x128xf32> to vector<4x128xf32>
    %182 = vector.extract_strided_slice %116 {offsets = [0, 15, 0], sizes = [4, 1, 128], strides = [1, 1, 1]} : vector<4x16x128xf32> to vector<4x1x128xf32>
    %183 = vector.shape_cast %182 : vector<4x1x128xf32> to vector<4x128xf32>
    %184 = arith.maximumf %181, %183 : vector<4x128xf32>
    %185 = arith.truncf %184 : vector<4x128xf32> to vector<4x128xbf16>
    %c0_128 = arith.constant 0 : index
    %c0_129 = arith.constant 0 : index
    %c7_130 = arith.constant 7 : index
    %c0_131 = arith.constant 0 : index
    %186 = vector.load %arg6[%c0_128, %c0_129, %c7_130, %c0_131] : memref<1x4x8x128xbf16, #tpu.memory_space<vmem>>, vector<1x4x1x128xbf16>
    %187 = vector.shape_cast %186 : vector<1x4x1x128xbf16> to vector<4x128xbf16>
    %188 = vector.shape_cast %185 : vector<4x128xbf16> to vector<1x4x1x128xbf16>
    tpu.vector_store %arg6[%c0_128, %c0_129, %c7_130, %c0_131], %188 {strides = array<i32>} : memref<1x4x8x128xbf16, #tpu.memory_space<vmem>>, vector<1x4x1x128xbf16>,
    return
  }
  func.func @transform_0(%arg0: i32, %arg1: i32) -> (i32, i32, i32, i32) {
    %c0_i32 = arith.constant 0 : i32
    %c0_i32_0 = arith.constant 0 : i32
    %c0_i32_1 = arith.constant 0 : i32
    %c0_i32_2 = arith.constant 0 : i32
    return %arg0, %c0_i32, %c0_i32_0, %c0_i32_1 : i32, i32, i32, i32
  }
  func.func @transform_1(%arg0: i32, %arg1: i32) -> (i32, i32, i32) {
    %c0_i32 = arith.constant 0 : i32
    %c0_i32_0 = arith.constant 0 : i32
    %c0_i32_1 = arith.constant 0 : i32
    %c0_i32_2 = arith.constant 0 : i32
    return %c0_i32, %c0_i32_0, %c0_i32_1 : i32, i32, i32
  }
  func.func @transform_2(%arg0: i32, %arg1: i32) -> (i32, i32) {
    %c0_i32 = arith.constant 0 : i32
    %c0_i32_0 = arith.constant 0 : i32
    %c0_i32_1 = arith.constant 0 : i32
    return %c0_i32, %c0_i32_0 : i32, i32
  }
  func.func @transform_3(%arg0: i32, %arg1: i32) -> (i32, i32) {
    %c0_i32 = arith.constant 0 : i32
    %c0_i32_0 = arith.constant 0 : i32
    %c0_i32_1 = arith.constant 0 : i32
    return %c0_i32, %c0_i32_0 : i32, i32
  }
  func.func @transform_4(%arg0: i32, %arg1: i32) -> (i32, i32, i32, i32) {
    %c0_i32 = arith.constant 0 : i32
    %c0_i32_0 = arith.constant 0 : i32
    %c0_i32_1 = arith.constant 0 : i32
    return %arg0, %arg1, %c0_i32, %c0_i32_0 : i32, i32, i32, i32
  }
}

module attributes {stable_mosaic.version = 11 : i64} {
  func.func @kernel(%arg0: i32, %arg1: i32, %arg2: memref<1x10x10x128xbf16, #tpu.memory_space<vmem>>, %arg3: memref<9x128x128xbf16, #tpu.memory_space<vmem>>, %arg4: memref<1x128xf32, #tpu.memory_space<vmem>>, %arg5: memref<1x128xf32, #tpu.memory_space<vmem>>, %arg6: memref<1x4x4x128xbf16, #tpu.memory_space<vmem>>, %arg7: memref<64x128xf32, #tpu.memory_space<vmem>>) attributes {dimension_semantics = [#tpu.dimension_semantics<parallel>, #tpu.dimension_semantics<arbitrary>], iteration_bounds = array<i64: 2, 1>, scalar_prefetch = 0 : i64, scratch_operands = 1 : i64, tpu.core_type = #tpu.core_type<tc>, window_params = [{transform_indices = @transform_0, window_bounds = array<i64: 1, 10, 10, 128>}, {pipeline_mode = #tpu.pipeline_mode<synchronous>, transform_indices = @transform_1, window_bounds = array<i64: 9, 128, 128>}, {pipeline_mode = #tpu.pipeline_mode<synchronous>, transform_indices = @transform_2, window_bounds = array<i64: 1, 128>}, {pipeline_mode = #tpu.pipeline_mode<synchronous>, transform_indices = @transform_3, window_bounds = array<i64: 1, 128>}, {transform_indices = @transform_4, window_bounds = array<i64: 1, 4, 4, 128>}]} {
    %c8_i32 = arith.constant 8 : i32
    %0 = arith.muli %arg1, %c8_i32 : i32
    %c0_i32 = arith.constant 0 : i32
    %1 = arith.addi %0, %c0_i32 : i32
    %c0 = arith.constant 0 : index
    %2 = arith.index_cast %1 : i32 to index
    %c0_0 = arith.constant 0 : index
    %c0_1 = arith.constant 0 : index
    %3 = vector.load %arg2[%c0, %2, %c0_0, %c0_1] : memref<1x10x10x128xbf16, #tpu.memory_space<vmem>>, vector<1x8x8x128xbf16>
    %4 = vector.shape_cast %3 : vector<1x8x8x128xbf16> to vector<8x8x128xbf16>
    %5 = vector.shape_cast %4 : vector<8x8x128xbf16> to vector<64x128xbf16>
    %c0_2 = arith.constant 0 : index
    %c0_3 = arith.constant 0 : index
    %c0_4 = arith.constant 0 : index
    %6 = vector.load %arg3[%c0_2, %c0_3, %c0_4] : memref<9x128x128xbf16, #tpu.memory_space<vmem>>, vector<1x128x128xbf16>
    %7 = vector.shape_cast %6 : vector<1x128x128xbf16> to vector<128x128xbf16>
    %cst = arith.constant dense<0.000000e+00> : vector<64x128xf32>
    %8 = tpu.matmul %5, %7, %cst {dimension_numbers = #tpu.dot_dimension_numbers<[1], [0], [0], [1], [0, 0, 1, 1], [], []>} : vector<64x128xbf16>, vector<128x128xbf16>, vector<64x128xf32> -> vector<64x128xf32>
    %c0_5 = arith.constant 0 : index
    %c0_6 = arith.constant 0 : index
    %9 = vector.load %arg7[%c0_5, %c0_6] : memref<64x128xf32, #tpu.memory_space<vmem>>, vector<64x128xf32>
    tpu.vector_store %arg7[%c0_5, %c0_6], %8 {strides = array<i32>} : memref<64x128xf32, #tpu.memory_space<vmem>>, vector<64x128xf32>,
    %c0_i32_7 = arith.constant 0 : i32
    %10 = arith.addi %0, %c0_i32_7 : i32
    %c0_8 = arith.constant 0 : index
    %11 = arith.index_cast %10 : i32 to index
    %c1 = arith.constant 1 : index
    %c0_9 = arith.constant 0 : index
    %12 = vector.load %arg2[%c0_8, %11, %c1, %c0_9] : memref<1x10x10x128xbf16, #tpu.memory_space<vmem>>, vector<1x8x8x128xbf16>
    %13 = vector.shape_cast %12 : vector<1x8x8x128xbf16> to vector<8x8x128xbf16>
    %14 = vector.shape_cast %13 : vector<8x8x128xbf16> to vector<64x128xbf16>
    %c1_10 = arith.constant 1 : index
    %c0_11 = arith.constant 0 : index
    %c0_12 = arith.constant 0 : index
    %15 = vector.load %arg3[%c1_10, %c0_11, %c0_12] : memref<9x128x128xbf16, #tpu.memory_space<vmem>>, vector<1x128x128xbf16>
    %16 = vector.shape_cast %15 : vector<1x128x128xbf16> to vector<128x128xbf16>
    %cst_13 = arith.constant dense<0.000000e+00> : vector<64x128xf32>
    %17 = tpu.matmul %14, %16, %cst_13 {dimension_numbers = #tpu.dot_dimension_numbers<[1], [0], [0], [1], [0, 0, 1, 1], [], []>} : vector<64x128xbf16>, vector<128x128xbf16>, vector<64x128xf32> -> vector<64x128xf32>
    %c0_14 = arith.constant 0 : index
    %c0_15 = arith.constant 0 : index
    %18 = vector.load %arg7[%c0_14, %c0_15] : memref<64x128xf32, #tpu.memory_space<vmem>>, vector<64x128xf32>
    %19 = arith.addf %18, %17 : vector<64x128xf32>
    %c0_16 = arith.constant 0 : index
    %c0_17 = arith.constant 0 : index
    %20 = vector.load %arg7[%c0_16, %c0_17] : memref<64x128xf32, #tpu.memory_space<vmem>>, vector<64x128xf32>
    tpu.vector_store %arg7[%c0_16, %c0_17], %19 {strides = array<i32>} : memref<64x128xf32, #tpu.memory_space<vmem>>, vector<64x128xf32>,
    %c0_i32_18 = arith.constant 0 : i32
    %21 = arith.addi %0, %c0_i32_18 : i32
    %c0_19 = arith.constant 0 : index
    %22 = arith.index_cast %21 : i32 to index
    %c2 = arith.constant 2 : index
    %c0_20 = arith.constant 0 : index
    %23 = vector.load %arg2[%c0_19, %22, %c2, %c0_20] : memref<1x10x10x128xbf16, #tpu.memory_space<vmem>>, vector<1x8x8x128xbf16>
    %24 = vector.shape_cast %23 : vector<1x8x8x128xbf16> to vector<8x8x128xbf16>
    %25 = vector.shape_cast %24 : vector<8x8x128xbf16> to vector<64x128xbf16>
    %c2_21 = arith.constant 2 : index
    %c0_22 = arith.constant 0 : index
    %c0_23 = arith.constant 0 : index
    %26 = vector.load %arg3[%c2_21, %c0_22, %c0_23] : memref<9x128x128xbf16, #tpu.memory_space<vmem>>, vector<1x128x128xbf16>
    %27 = vector.shape_cast %26 : vector<1x128x128xbf16> to vector<128x128xbf16>
    %cst_24 = arith.constant dense<0.000000e+00> : vector<64x128xf32>
    %28 = tpu.matmul %25, %27, %cst_24 {dimension_numbers = #tpu.dot_dimension_numbers<[1], [0], [0], [1], [0, 0, 1, 1], [], []>} : vector<64x128xbf16>, vector<128x128xbf16>, vector<64x128xf32> -> vector<64x128xf32>
    %c0_25 = arith.constant 0 : index
    %c0_26 = arith.constant 0 : index
    %29 = vector.load %arg7[%c0_25, %c0_26] : memref<64x128xf32, #tpu.memory_space<vmem>>, vector<64x128xf32>
    %30 = arith.addf %29, %28 : vector<64x128xf32>
    %c0_27 = arith.constant 0 : index
    %c0_28 = arith.constant 0 : index
    %31 = vector.load %arg7[%c0_27, %c0_28] : memref<64x128xf32, #tpu.memory_space<vmem>>, vector<64x128xf32>
    tpu.vector_store %arg7[%c0_27, %c0_28], %30 {strides = array<i32>} : memref<64x128xf32, #tpu.memory_space<vmem>>, vector<64x128xf32>,
    %c1_i32 = arith.constant 1 : i32
    %32 = arith.addi %0, %c1_i32 : i32
    %c0_29 = arith.constant 0 : index
    %33 = arith.index_cast %32 : i32 to index
    %c0_30 = arith.constant 0 : index
    %c0_31 = arith.constant 0 : index
    %34 = vector.load %arg2[%c0_29, %33, %c0_30, %c0_31] : memref<1x10x10x128xbf16, #tpu.memory_space<vmem>>, vector<1x8x8x128xbf16>
    %35 = vector.shape_cast %34 : vector<1x8x8x128xbf16> to vector<8x8x128xbf16>
    %36 = vector.shape_cast %35 : vector<8x8x128xbf16> to vector<64x128xbf16>
    %c3 = arith.constant 3 : index
    %c0_32 = arith.constant 0 : index
    %c0_33 = arith.constant 0 : index
    %37 = vector.load %arg3[%c3, %c0_32, %c0_33] : memref<9x128x128xbf16, #tpu.memory_space<vmem>>, vector<1x128x128xbf16>
    %38 = vector.shape_cast %37 : vector<1x128x128xbf16> to vector<128x128xbf16>
    %cst_34 = arith.constant dense<0.000000e+00> : vector<64x128xf32>
    %39 = tpu.matmul %36, %38, %cst_34 {dimension_numbers = #tpu.dot_dimension_numbers<[1], [0], [0], [1], [0, 0, 1, 1], [], []>} : vector<64x128xbf16>, vector<128x128xbf16>, vector<64x128xf32> -> vector<64x128xf32>
    %c0_35 = arith.constant 0 : index
    %c0_36 = arith.constant 0 : index
    %40 = vector.load %arg7[%c0_35, %c0_36] : memref<64x128xf32, #tpu.memory_space<vmem>>, vector<64x128xf32>
    %41 = arith.addf %40, %39 : vector<64x128xf32>
    %c0_37 = arith.constant 0 : index
    %c0_38 = arith.constant 0 : index
    %42 = vector.load %arg7[%c0_37, %c0_38] : memref<64x128xf32, #tpu.memory_space<vmem>>, vector<64x128xf32>
    tpu.vector_store %arg7[%c0_37, %c0_38], %41 {strides = array<i32>} : memref<64x128xf32, #tpu.memory_space<vmem>>, vector<64x128xf32>,
    %c1_i32_39 = arith.constant 1 : i32
    %43 = arith.addi %0, %c1_i32_39 : i32
    %c0_40 = arith.constant 0 : index
    %44 = arith.index_cast %43 : i32 to index
    %c1_41 = arith.constant 1 : index
    %c0_42 = arith.constant 0 : index
    %45 = vector.load %arg2[%c0_40, %44, %c1_41, %c0_42] : memref<1x10x10x128xbf16, #tpu.memory_space<vmem>>, vector<1x8x8x128xbf16>
    %46 = vector.shape_cast %45 : vector<1x8x8x128xbf16> to vector<8x8x128xbf16>
    %47 = vector.shape_cast %46 : vector<8x8x128xbf16> to vector<64x128xbf16>
    %c4 = arith.constant 4 : index
    %c0_43 = arith.constant 0 : index
    %c0_44 = arith.constant 0 : index
    %48 = vector.load %arg3[%c4, %c0_43, %c0_44] : memref<9x128x128xbf16, #tpu.memory_space<vmem>>, vector<1x128x128xbf16>
    %49 = vector.shape_cast %48 : vector<1x128x128xbf16> to vector<128x128xbf16>
    %cst_45 = arith.constant dense<0.000000e+00> : vector<64x128xf32>
    %50 = tpu.matmul %47, %49, %cst_45 {dimension_numbers = #tpu.dot_dimension_numbers<[1], [0], [0], [1], [0, 0, 1, 1], [], []>} : vector<64x128xbf16>, vector<128x128xbf16>, vector<64x128xf32> -> vector<64x128xf32>
    %c0_46 = arith.constant 0 : index
    %c0_47 = arith.constant 0 : index
    %51 = vector.load %arg7[%c0_46, %c0_47] : memref<64x128xf32, #tpu.memory_space<vmem>>, vector<64x128xf32>
    %52 = arith.addf %51, %50 : vector<64x128xf32>
    %c0_48 = arith.constant 0 : index
    %c0_49 = arith.constant 0 : index
    %53 = vector.load %arg7[%c0_48, %c0_49] : memref<64x128xf32, #tpu.memory_space<vmem>>, vector<64x128xf32>
    tpu.vector_store %arg7[%c0_48, %c0_49], %52 {strides = array<i32>} : memref<64x128xf32, #tpu.memory_space<vmem>>, vector<64x128xf32>,
    %c1_i32_50 = arith.constant 1 : i32
    %54 = arith.addi %0, %c1_i32_50 : i32
    %c0_51 = arith.constant 0 : index
    %55 = arith.index_cast %54 : i32 to index
    %c2_52 = arith.constant 2 : index
    %c0_53 = arith.constant 0 : index
    %56 = vector.load %arg2[%c0_51, %55, %c2_52, %c0_53] : memref<1x10x10x128xbf16, #tpu.memory_space<vmem>>, vector<1x8x8x128xbf16>
    %57 = vector.shape_cast %56 : vector<1x8x8x128xbf16> to vector<8x8x128xbf16>
    %58 = vector.shape_cast %57 : vector<8x8x128xbf16> to vector<64x128xbf16>
    %c5 = arith.constant 5 : index
    %c0_54 = arith.constant 0 : index
    %c0_55 = arith.constant 0 : index
    %59 = vector.load %arg3[%c5, %c0_54, %c0_55] : memref<9x128x128xbf16, #tpu.memory_space<vmem>>, vector<1x128x128xbf16>
    %60 = vector.shape_cast %59 : vector<1x128x128xbf16> to vector<128x128xbf16>
    %cst_56 = arith.constant dense<0.000000e+00> : vector<64x128xf32>
    %61 = tpu.matmul %58, %60, %cst_56 {dimension_numbers = #tpu.dot_dimension_numbers<[1], [0], [0], [1], [0, 0, 1, 1], [], []>} : vector<64x128xbf16>, vector<128x128xbf16>, vector<64x128xf32> -> vector<64x128xf32>
    %c0_57 = arith.constant 0 : index
    %c0_58 = arith.constant 0 : index
    %62 = vector.load %arg7[%c0_57, %c0_58] : memref<64x128xf32, #tpu.memory_space<vmem>>, vector<64x128xf32>
    %63 = arith.addf %62, %61 : vector<64x128xf32>
    %c0_59 = arith.constant 0 : index
    %c0_60 = arith.constant 0 : index
    %64 = vector.load %arg7[%c0_59, %c0_60] : memref<64x128xf32, #tpu.memory_space<vmem>>, vector<64x128xf32>
    tpu.vector_store %arg7[%c0_59, %c0_60], %63 {strides = array<i32>} : memref<64x128xf32, #tpu.memory_space<vmem>>, vector<64x128xf32>,
    %c2_i32 = arith.constant 2 : i32
    %65 = arith.addi %0, %c2_i32 : i32
    %c0_61 = arith.constant 0 : index
    %66 = arith.index_cast %65 : i32 to index
    %c0_62 = arith.constant 0 : index
    %c0_63 = arith.constant 0 : index
    %67 = vector.load %arg2[%c0_61, %66, %c0_62, %c0_63] : memref<1x10x10x128xbf16, #tpu.memory_space<vmem>>, vector<1x8x8x128xbf16>
    %68 = vector.shape_cast %67 : vector<1x8x8x128xbf16> to vector<8x8x128xbf16>
    %69 = vector.shape_cast %68 : vector<8x8x128xbf16> to vector<64x128xbf16>
    %c6 = arith.constant 6 : index
    %c0_64 = arith.constant 0 : index
    %c0_65 = arith.constant 0 : index
    %70 = vector.load %arg3[%c6, %c0_64, %c0_65] : memref<9x128x128xbf16, #tpu.memory_space<vmem>>, vector<1x128x128xbf16>
    %71 = vector.shape_cast %70 : vector<1x128x128xbf16> to vector<128x128xbf16>
    %cst_66 = arith.constant dense<0.000000e+00> : vector<64x128xf32>
    %72 = tpu.matmul %69, %71, %cst_66 {dimension_numbers = #tpu.dot_dimension_numbers<[1], [0], [0], [1], [0, 0, 1, 1], [], []>} : vector<64x128xbf16>, vector<128x128xbf16>, vector<64x128xf32> -> vector<64x128xf32>
    %c0_67 = arith.constant 0 : index
    %c0_68 = arith.constant 0 : index
    %73 = vector.load %arg7[%c0_67, %c0_68] : memref<64x128xf32, #tpu.memory_space<vmem>>, vector<64x128xf32>
    %74 = arith.addf %73, %72 : vector<64x128xf32>
    %c0_69 = arith.constant 0 : index
    %c0_70 = arith.constant 0 : index
    %75 = vector.load %arg7[%c0_69, %c0_70] : memref<64x128xf32, #tpu.memory_space<vmem>>, vector<64x128xf32>
    tpu.vector_store %arg7[%c0_69, %c0_70], %74 {strides = array<i32>} : memref<64x128xf32, #tpu.memory_space<vmem>>, vector<64x128xf32>,
    %c2_i32_71 = arith.constant 2 : i32
    %76 = arith.addi %0, %c2_i32_71 : i32
    %c0_72 = arith.constant 0 : index
    %77 = arith.index_cast %76 : i32 to index
    %c1_73 = arith.constant 1 : index
    %c0_74 = arith.constant 0 : index
    %78 = vector.load %arg2[%c0_72, %77, %c1_73, %c0_74] : memref<1x10x10x128xbf16, #tpu.memory_space<vmem>>, vector<1x8x8x128xbf16>
    %79 = vector.shape_cast %78 : vector<1x8x8x128xbf16> to vector<8x8x128xbf16>
    %80 = vector.shape_cast %79 : vector<8x8x128xbf16> to vector<64x128xbf16>
    %c7 = arith.constant 7 : index
    %c0_75 = arith.constant 0 : index
    %c0_76 = arith.constant 0 : index
    %81 = vector.load %arg3[%c7, %c0_75, %c0_76] : memref<9x128x128xbf16, #tpu.memory_space<vmem>>, vector<1x128x128xbf16>
    %82 = vector.shape_cast %81 : vector<1x128x128xbf16> to vector<128x128xbf16>
    %cst_77 = arith.constant dense<0.000000e+00> : vector<64x128xf32>
    %83 = tpu.matmul %80, %82, %cst_77 {dimension_numbers = #tpu.dot_dimension_numbers<[1], [0], [0], [1], [0, 0, 1, 1], [], []>} : vector<64x128xbf16>, vector<128x128xbf16>, vector<64x128xf32> -> vector<64x128xf32>
    %c0_78 = arith.constant 0 : index
    %c0_79 = arith.constant 0 : index
    %84 = vector.load %arg7[%c0_78, %c0_79] : memref<64x128xf32, #tpu.memory_space<vmem>>, vector<64x128xf32>
    %85 = arith.addf %84, %83 : vector<64x128xf32>
    %c0_80 = arith.constant 0 : index
    %c0_81 = arith.constant 0 : index
    %86 = vector.load %arg7[%c0_80, %c0_81] : memref<64x128xf32, #tpu.memory_space<vmem>>, vector<64x128xf32>
    tpu.vector_store %arg7[%c0_80, %c0_81], %85 {strides = array<i32>} : memref<64x128xf32, #tpu.memory_space<vmem>>, vector<64x128xf32>,
    %c2_i32_82 = arith.constant 2 : i32
    %87 = arith.addi %0, %c2_i32_82 : i32
    %c0_83 = arith.constant 0 : index
    %88 = arith.index_cast %87 : i32 to index
    %c2_84 = arith.constant 2 : index
    %c0_85 = arith.constant 0 : index
    %89 = vector.load %arg2[%c0_83, %88, %c2_84, %c0_85] : memref<1x10x10x128xbf16, #tpu.memory_space<vmem>>, vector<1x8x8x128xbf16>
    %90 = vector.shape_cast %89 : vector<1x8x8x128xbf16> to vector<8x8x128xbf16>
    %91 = vector.shape_cast %90 : vector<8x8x128xbf16> to vector<64x128xbf16>
    %c8 = arith.constant 8 : index
    %c0_86 = arith.constant 0 : index
    %c0_87 = arith.constant 0 : index
    %92 = vector.load %arg3[%c8, %c0_86, %c0_87] : memref<9x128x128xbf16, #tpu.memory_space<vmem>>, vector<1x128x128xbf16>
    %93 = vector.shape_cast %92 : vector<1x128x128xbf16> to vector<128x128xbf16>
    %cst_88 = arith.constant dense<0.000000e+00> : vector<64x128xf32>
    %94 = tpu.matmul %91, %93, %cst_88 {dimension_numbers = #tpu.dot_dimension_numbers<[1], [0], [0], [1], [0, 0, 1, 1], [], []>} : vector<64x128xbf16>, vector<128x128xbf16>, vector<64x128xf32> -> vector<64x128xf32>
    %c0_89 = arith.constant 0 : index
    %c0_90 = arith.constant 0 : index
    %95 = vector.load %arg7[%c0_89, %c0_90] : memref<64x128xf32, #tpu.memory_space<vmem>>, vector<64x128xf32>
    %96 = arith.addf %95, %94 : vector<64x128xf32>
    %c0_91 = arith.constant 0 : index
    %c0_92 = arith.constant 0 : index
    %97 = vector.load %arg7[%c0_91, %c0_92] : memref<64x128xf32, #tpu.memory_space<vmem>>, vector<64x128xf32>
    tpu.vector_store %arg7[%c0_91, %c0_92], %96 {strides = array<i32>} : memref<64x128xf32, #tpu.memory_space<vmem>>, vector<64x128xf32>,
    %c0_93 = arith.constant 0 : index
    %c0_94 = arith.constant 0 : index
    %98 = vector.load %arg7[%c0_93, %c0_94] : memref<64x128xf32, #tpu.memory_space<vmem>>, vector<64x128xf32>
    %c0_95 = arith.constant 0 : index
    %c0_96 = arith.constant 0 : index
    %99 = vector.load %arg4[%c0_95, %c0_96] : memref<1x128xf32, #tpu.memory_space<vmem>>, vector<1x128xf32>
    %100 = vector.shape_cast %99 : vector<1x128xf32> to vector<128xf32>
    %101 = vector.shape_cast %100 : vector<128xf32> to vector<1x128xf32>
    %102 = vector.broadcast %101 : vector<1x128xf32> to vector<64x128xf32>
    %103 = arith.mulf %98, %102 : vector<64x128xf32>
    %c0_97 = arith.constant 0 : index
    %c0_98 = arith.constant 0 : index
    %104 = vector.load %arg5[%c0_97, %c0_98] : memref<1x128xf32, #tpu.memory_space<vmem>>, vector<1x128xf32>
    %105 = vector.shape_cast %104 : vector<1x128xf32> to vector<128xf32>
    %106 = vector.shape_cast %105 : vector<128xf32> to vector<1x128xf32>
    %107 = vector.broadcast %106 : vector<1x128xf32> to vector<64x128xf32>
    %108 = arith.addf %103, %107 : vector<64x128xf32>
    %cst_99 = arith.constant 0.000000e+00 : f32
    %109 = vector.broadcast %cst_99 : f32 to vector<64x128xf32>
    %110 = arith.maximumf %108, %109 : vector<64x128xf32>
    %111 = vector.shape_cast %110 : vector<64x128xf32> to vector<4x2x8x128xf32>
    %112 = vector.extract_strided_slice %111 {offsets = [0, 0, 0, 0], sizes = [4, 1, 8, 128], strides = [1, 1, 1, 1]} : vector<4x2x8x128xf32> to vector<4x1x8x128xf32>
    %113 = vector.shape_cast %112 : vector<4x1x8x128xf32> to vector<4x8x128xf32>
    %114 = vector.extract_strided_slice %111 {offsets = [0, 1, 0, 0], sizes = [4, 1, 8, 128], strides = [1, 1, 1, 1]} : vector<4x2x8x128xf32> to vector<4x1x8x128xf32>
    %115 = vector.shape_cast %114 : vector<4x1x8x128xf32> to vector<4x8x128xf32>
    %116 = arith.maximumf %113, %115 : vector<4x8x128xf32>
    %117 = vector.extract_strided_slice %116 {offsets = [0, 0, 0], sizes = [4, 1, 128], strides = [1, 1, 1]} : vector<4x8x128xf32> to vector<4x1x128xf32>
    %118 = vector.shape_cast %117 : vector<4x1x128xf32> to vector<4x128xf32>
    %119 = vector.extract_strided_slice %116 {offsets = [0, 1, 0], sizes = [4, 1, 128], strides = [1, 1, 1]} : vector<4x8x128xf32> to vector<4x1x128xf32>
    %120 = vector.shape_cast %119 : vector<4x1x128xf32> to vector<4x128xf32>
    %121 = arith.maximumf %118, %120 : vector<4x128xf32>
    %122 = arith.truncf %121 : vector<4x128xf32> to vector<4x128xbf16>
    %c0_100 = arith.constant 0 : index
    %c0_101 = arith.constant 0 : index
    %c0_102 = arith.constant 0 : index
    %c0_103 = arith.constant 0 : index
    %123 = vector.load %arg6[%c0_100, %c0_101, %c0_102, %c0_103] : memref<1x4x4x128xbf16, #tpu.memory_space<vmem>>, vector<1x4x1x128xbf16>
    %124 = vector.shape_cast %123 : vector<1x4x1x128xbf16> to vector<4x128xbf16>
    %125 = vector.shape_cast %122 : vector<4x128xbf16> to vector<1x4x1x128xbf16>
    tpu.vector_store %arg6[%c0_100, %c0_101, %c0_102, %c0_103], %125 {strides = array<i32>} : memref<1x4x4x128xbf16, #tpu.memory_space<vmem>>, vector<1x4x1x128xbf16>,
    %126 = vector.extract_strided_slice %116 {offsets = [0, 2, 0], sizes = [4, 1, 128], strides = [1, 1, 1]} : vector<4x8x128xf32> to vector<4x1x128xf32>
    %127 = vector.shape_cast %126 : vector<4x1x128xf32> to vector<4x128xf32>
    %128 = vector.extract_strided_slice %116 {offsets = [0, 3, 0], sizes = [4, 1, 128], strides = [1, 1, 1]} : vector<4x8x128xf32> to vector<4x1x128xf32>
    %129 = vector.shape_cast %128 : vector<4x1x128xf32> to vector<4x128xf32>
    %130 = arith.maximumf %127, %129 : vector<4x128xf32>
    %131 = arith.truncf %130 : vector<4x128xf32> to vector<4x128xbf16>
    %c0_104 = arith.constant 0 : index
    %c0_105 = arith.constant 0 : index
    %c1_106 = arith.constant 1 : index
    %c0_107 = arith.constant 0 : index
    %132 = vector.load %arg6[%c0_104, %c0_105, %c1_106, %c0_107] : memref<1x4x4x128xbf16, #tpu.memory_space<vmem>>, vector<1x4x1x128xbf16>
    %133 = vector.shape_cast %132 : vector<1x4x1x128xbf16> to vector<4x128xbf16>
    %134 = vector.shape_cast %131 : vector<4x128xbf16> to vector<1x4x1x128xbf16>
    tpu.vector_store %arg6[%c0_104, %c0_105, %c1_106, %c0_107], %134 {strides = array<i32>} : memref<1x4x4x128xbf16, #tpu.memory_space<vmem>>, vector<1x4x1x128xbf16>,
    %135 = vector.extract_strided_slice %116 {offsets = [0, 4, 0], sizes = [4, 1, 128], strides = [1, 1, 1]} : vector<4x8x128xf32> to vector<4x1x128xf32>
    %136 = vector.shape_cast %135 : vector<4x1x128xf32> to vector<4x128xf32>
    %137 = vector.extract_strided_slice %116 {offsets = [0, 5, 0], sizes = [4, 1, 128], strides = [1, 1, 1]} : vector<4x8x128xf32> to vector<4x1x128xf32>
    %138 = vector.shape_cast %137 : vector<4x1x128xf32> to vector<4x128xf32>
    %139 = arith.maximumf %136, %138 : vector<4x128xf32>
    %140 = arith.truncf %139 : vector<4x128xf32> to vector<4x128xbf16>
    %c0_108 = arith.constant 0 : index
    %c0_109 = arith.constant 0 : index
    %c2_110 = arith.constant 2 : index
    %c0_111 = arith.constant 0 : index
    %141 = vector.load %arg6[%c0_108, %c0_109, %c2_110, %c0_111] : memref<1x4x4x128xbf16, #tpu.memory_space<vmem>>, vector<1x4x1x128xbf16>
    %142 = vector.shape_cast %141 : vector<1x4x1x128xbf16> to vector<4x128xbf16>
    %143 = vector.shape_cast %140 : vector<4x128xbf16> to vector<1x4x1x128xbf16>
    tpu.vector_store %arg6[%c0_108, %c0_109, %c2_110, %c0_111], %143 {strides = array<i32>} : memref<1x4x4x128xbf16, #tpu.memory_space<vmem>>, vector<1x4x1x128xbf16>,
    %144 = vector.extract_strided_slice %116 {offsets = [0, 6, 0], sizes = [4, 1, 128], strides = [1, 1, 1]} : vector<4x8x128xf32> to vector<4x1x128xf32>
    %145 = vector.shape_cast %144 : vector<4x1x128xf32> to vector<4x128xf32>
    %146 = vector.extract_strided_slice %116 {offsets = [0, 7, 0], sizes = [4, 1, 128], strides = [1, 1, 1]} : vector<4x8x128xf32> to vector<4x1x128xf32>
    %147 = vector.shape_cast %146 : vector<4x1x128xf32> to vector<4x128xf32>
    %148 = arith.maximumf %145, %147 : vector<4x128xf32>
    %149 = arith.truncf %148 : vector<4x128xf32> to vector<4x128xbf16>
    %c0_112 = arith.constant 0 : index
    %c0_113 = arith.constant 0 : index
    %c3_114 = arith.constant 3 : index
    %c0_115 = arith.constant 0 : index
    %150 = vector.load %arg6[%c0_112, %c0_113, %c3_114, %c0_115] : memref<1x4x4x128xbf16, #tpu.memory_space<vmem>>, vector<1x4x1x128xbf16>
    %151 = vector.shape_cast %150 : vector<1x4x1x128xbf16> to vector<4x128xbf16>
    %152 = vector.shape_cast %149 : vector<4x128xbf16> to vector<1x4x1x128xbf16>
    tpu.vector_store %arg6[%c0_112, %c0_113, %c3_114, %c0_115], %152 {strides = array<i32>} : memref<1x4x4x128xbf16, #tpu.memory_space<vmem>>, vector<1x4x1x128xbf16>,
    return
  }
  func.func @transform_0(%arg0: i32, %arg1: i32) -> (i32, i32, i32, i32) {
    %c0_i32 = arith.constant 0 : i32
    %c0_i32_0 = arith.constant 0 : i32
    %c0_i32_1 = arith.constant 0 : i32
    %c0_i32_2 = arith.constant 0 : i32
    return %arg0, %c0_i32, %c0_i32_0, %c0_i32_1 : i32, i32, i32, i32
  }
  func.func @transform_1(%arg0: i32, %arg1: i32) -> (i32, i32, i32) {
    %c0_i32 = arith.constant 0 : i32
    %c0_i32_0 = arith.constant 0 : i32
    %c0_i32_1 = arith.constant 0 : i32
    %c0_i32_2 = arith.constant 0 : i32
    return %c0_i32, %c0_i32_0, %c0_i32_1 : i32, i32, i32
  }
  func.func @transform_2(%arg0: i32, %arg1: i32) -> (i32, i32) {
    %c0_i32 = arith.constant 0 : i32
    %c0_i32_0 = arith.constant 0 : i32
    %c0_i32_1 = arith.constant 0 : i32
    return %c0_i32, %c0_i32_0 : i32, i32
  }
  func.func @transform_3(%arg0: i32, %arg1: i32) -> (i32, i32) {
    %c0_i32 = arith.constant 0 : i32
    %c0_i32_0 = arith.constant 0 : i32
    %c0_i32_1 = arith.constant 0 : i32
    return %c0_i32, %c0_i32_0 : i32, i32
  }
  func.func @transform_4(%arg0: i32, %arg1: i32) -> (i32, i32, i32, i32) {
    %c0_i32 = arith.constant 0 : i32
    %c0_i32_0 = arith.constant 0 : i32
    %c0_i32_1 = arith.constant 0 : i32
    return %arg0, %arg1, %c0_i32, %c0_i32_0 : i32, i32, i32, i32
  }
}

module attributes {stable_mosaic.version = 11 : i64} {
  func.func @kernel(%arg0: i32, %arg1: memref<1x4x4x128xbf16, #tpu.memory_space<vmem>>, %arg2: memref<1x7x7x128xf32, #tpu.memory_space<vmem>>) attributes {dimension_semantics = [#tpu.dimension_semantics<parallel>], iteration_bounds = array<i64: 2>, scalar_prefetch = 0 : i64, scratch_operands = 0 : i64, tpu.core_type = #tpu.core_type<tc>, window_params = [{transform_indices = @transform_0, window_bounds = array<i64: 1, 4, 4, 128>}, {transform_indices = @transform_1, window_bounds = array<i64: 1, 7, 7, 128>}]} {
    %c0 = arith.constant 0 : index
    %c0_0 = arith.constant 0 : index
    %c0_1 = arith.constant 0 : index
    %c0_2 = arith.constant 0 : index
    %0 = vector.load %arg1[%c0, %c0_0, %c0_1, %c0_2] : memref<1x4x4x128xbf16, #tpu.memory_space<vmem>>, vector<1x1x1x128xbf16>
    %1 = vector.shape_cast %0 : vector<1x1x1x128xbf16> to vector<1x1x128xbf16>
    %2 = arith.extf %1 : vector<1x1x128xbf16> to vector<1x1x128xf32>
    %cst = arith.constant dense<0.000000e+00> : vector<128xf32>
    %3 = vector.multi_reduction <add>, %2, %cst [0, 1] : vector<1x1x128xf32> to vector<128xf32>
    %cst_3 = arith.constant 1.000000e+00 : f32
    %4 = vector.broadcast %cst_3 : f32 to vector<128xf32>
    %5 = arith.mulf %3, %4 : vector<128xf32>
    %c0_4 = arith.constant 0 : index
    %c0_5 = arith.constant 0 : index
    %c0_6 = arith.constant 0 : index
    %c0_7 = arith.constant 0 : index
    %6 = vector.load %arg2[%c0_4, %c0_5, %c0_6, %c0_7] : memref<1x7x7x128xf32, #tpu.memory_space<vmem>>, vector<1x1x1x128xf32>
    %7 = vector.shape_cast %6 : vector<1x1x1x128xf32> to vector<128xf32>
    %8 = vector.shape_cast %5 : vector<128xf32> to vector<1x1x1x128xf32>
    tpu.vector_store %arg2[%c0_4, %c0_5, %c0_6, %c0_7], %8 {strides = array<i32>} : memref<1x7x7x128xf32, #tpu.memory_space<vmem>>, vector<1x1x1x128xf32>,
    %c0_8 = arith.constant 0 : index
    %c0_9 = arith.constant 0 : index
    %c0_10 = arith.constant 0 : index
    %c0_11 = arith.constant 0 : index
    %9 = vector.load %arg1[%c0_8, %c0_9, %c0_10, %c0_11] : memref<1x4x4x128xbf16, #tpu.memory_space<vmem>>, vector<1x1x2x128xbf16>
    %10 = vector.shape_cast %9 : vector<1x1x2x128xbf16> to vector<1x2x128xbf16>
    %11 = arith.extf %10 : vector<1x2x128xbf16> to vector<1x2x128xf32>
    %cst_12 = arith.constant dense<0.000000e+00> : vector<128xf32>
    %12 = vector.multi_reduction <add>, %11, %cst_12 [0, 1] : vector<1x2x128xf32> to vector<128xf32>
    %cst_13 = arith.constant 5.000000e-01 : f32
    %13 = vector.broadcast %cst_13 : f32 to vector<128xf32>
    %14 = arith.mulf %12, %13 : vector<128xf32>
    %c0_14 = arith.constant 0 : index
    %c0_15 = arith.constant 0 : index
    %c1 = arith.constant 1 : index
    %c0_16 = arith.constant 0 : index
    %15 = vector.load %arg2[%c0_14, %c0_15, %c1, %c0_16] : memref<1x7x7x128xf32, #tpu.memory_space<vmem>>, vector<1x1x1x128xf32>
    %16 = vector.shape_cast %15 : vector<1x1x1x128xf32> to vector<128xf32>
    %17 = vector.shape_cast %14 : vector<128xf32> to vector<1x1x1x128xf32>
    tpu.vector_store %arg2[%c0_14, %c0_15, %c1, %c0_16], %17 {strides = array<i32>} : memref<1x7x7x128xf32, #tpu.memory_space<vmem>>, vector<1x1x1x128xf32>,
    %c0_17 = arith.constant 0 : index
    %c0_18 = arith.constant 0 : index
    %c1_19 = arith.constant 1 : index
    %c0_20 = arith.constant 0 : index
    %18 = vector.load %arg1[%c0_17, %c0_18, %c1_19, %c0_20] : memref<1x4x4x128xbf16, #tpu.memory_space<vmem>>, vector<1x1x1x128xbf16>
    %19 = vector.shape_cast %18 : vector<1x1x1x128xbf16> to vector<1x1x128xbf16>
    %20 = arith.extf %19 : vector<1x1x128xbf16> to vector<1x1x128xf32>
    %cst_21 = arith.constant dense<0.000000e+00> : vector<128xf32>
    %21 = vector.multi_reduction <add>, %20, %cst_21 [0, 1] : vector<1x1x128xf32> to vector<128xf32>
    %cst_22 = arith.constant 1.000000e+00 : f32
    %22 = vector.broadcast %cst_22 : f32 to vector<128xf32>
    %23 = arith.mulf %21, %22 : vector<128xf32>
    %c0_23 = arith.constant 0 : index
    %c0_24 = arith.constant 0 : index
    %c2 = arith.constant 2 : index
    %c0_25 = arith.constant 0 : index
    %24 = vector.load %arg2[%c0_23, %c0_24, %c2, %c0_25] : memref<1x7x7x128xf32, #tpu.memory_space<vmem>>, vector<1x1x1x128xf32>
    %25 = vector.shape_cast %24 : vector<1x1x1x128xf32> to vector<128xf32>
    %26 = vector.shape_cast %23 : vector<128xf32> to vector<1x1x1x128xf32>
    tpu.vector_store %arg2[%c0_23, %c0_24, %c2, %c0_25], %26 {strides = array<i32>} : memref<1x7x7x128xf32, #tpu.memory_space<vmem>>, vector<1x1x1x128xf32>,
    %c0_26 = arith.constant 0 : index
    %c0_27 = arith.constant 0 : index
    %c1_28 = arith.constant 1 : index
    %c0_29 = arith.constant 0 : index
    %27 = vector.load %arg1[%c0_26, %c0_27, %c1_28, %c0_29] : memref<1x4x4x128xbf16, #tpu.memory_space<vmem>>, vector<1x1x2x128xbf16>
    %28 = vector.shape_cast %27 : vector<1x1x2x128xbf16> to vector<1x2x128xbf16>
    %29 = arith.extf %28 : vector<1x2x128xbf16> to vector<1x2x128xf32>
    %cst_30 = arith.constant dense<0.000000e+00> : vector<128xf32>
    %30 = vector.multi_reduction <add>, %29, %cst_30 [0, 1] : vector<1x2x128xf32> to vector<128xf32>
    %cst_31 = arith.constant 5.000000e-01 : f32
    %31 = vector.broadcast %cst_31 : f32 to vector<128xf32>
    %32 = arith.mulf %30, %31 : vector<128xf32>
    %c0_32 = arith.constant 0 : index
    %c0_33 = arith.constant 0 : index
    %c3 = arith.constant 3 : index
    %c0_34 = arith.constant 0 : index
    %33 = vector.load %arg2[%c0_32, %c0_33, %c3, %c0_34] : memref<1x7x7x128xf32, #tpu.memory_space<vmem>>, vector<1x1x1x128xf32>
    %34 = vector.shape_cast %33 : vector<1x1x1x128xf32> to vector<128xf32>
    %35 = vector.shape_cast %32 : vector<128xf32> to vector<1x1x1x128xf32>
    tpu.vector_store %arg2[%c0_32, %c0_33, %c3, %c0_34], %35 {strides = array<i32>} : memref<1x7x7x128xf32, #tpu.memory_space<vmem>>, vector<1x1x1x128xf32>,
    %c0_35 = arith.constant 0 : index
    %c0_36 = arith.constant 0 : index
    %c2_37 = arith.constant 2 : index
    %c0_38 = arith.constant 0 : index
    %36 = vector.load %arg1[%c0_35, %c0_36, %c2_37, %c0_38] : memref<1x4x4x128xbf16, #tpu.memory_space<vmem>>, vector<1x1x1x128xbf16>
    %37 = vector.shape_cast %36 : vector<1x1x1x128xbf16> to vector<1x1x128xbf16>
    %38 = arith.extf %37 : vector<1x1x128xbf16> to vector<1x1x128xf32>
    %cst_39 = arith.constant dense<0.000000e+00> : vector<128xf32>
    %39 = vector.multi_reduction <add>, %38, %cst_39 [0, 1] : vector<1x1x128xf32> to vector<128xf32>
    %cst_40 = arith.constant 1.000000e+00 : f32
    %40 = vector.broadcast %cst_40 : f32 to vector<128xf32>
    %41 = arith.mulf %39, %40 : vector<128xf32>
    %c0_41 = arith.constant 0 : index
    %c0_42 = arith.constant 0 : index
    %c4 = arith.constant 4 : index
    %c0_43 = arith.constant 0 : index
    %42 = vector.load %arg2[%c0_41, %c0_42, %c4, %c0_43] : memref<1x7x7x128xf32, #tpu.memory_space<vmem>>, vector<1x1x1x128xf32>
    %43 = vector.shape_cast %42 : vector<1x1x1x128xf32> to vector<128xf32>
    %44 = vector.shape_cast %41 : vector<128xf32> to vector<1x1x1x128xf32>
    tpu.vector_store %arg2[%c0_41, %c0_42, %c4, %c0_43], %44 {strides = array<i32>} : memref<1x7x7x128xf32, #tpu.memory_space<vmem>>, vector<1x1x1x128xf32>,
    %c0_44 = arith.constant 0 : index
    %c0_45 = arith.constant 0 : index
    %c2_46 = arith.constant 2 : index
    %c0_47 = arith.constant 0 : index
    %45 = vector.load %arg1[%c0_44, %c0_45, %c2_46, %c0_47] : memref<1x4x4x128xbf16, #tpu.memory_space<vmem>>, vector<1x1x2x128xbf16>
    %46 = vector.shape_cast %45 : vector<1x1x2x128xbf16> to vector<1x2x128xbf16>
    %47 = arith.extf %46 : vector<1x2x128xbf16> to vector<1x2x128xf32>
    %cst_48 = arith.constant dense<0.000000e+00> : vector<128xf32>
    %48 = vector.multi_reduction <add>, %47, %cst_48 [0, 1] : vector<1x2x128xf32> to vector<128xf32>
    %cst_49 = arith.constant 5.000000e-01 : f32
    %49 = vector.broadcast %cst_49 : f32 to vector<128xf32>
    %50 = arith.mulf %48, %49 : vector<128xf32>
    %c0_50 = arith.constant 0 : index
    %c0_51 = arith.constant 0 : index
    %c5 = arith.constant 5 : index
    %c0_52 = arith.constant 0 : index
    %51 = vector.load %arg2[%c0_50, %c0_51, %c5, %c0_52] : memref<1x7x7x128xf32, #tpu.memory_space<vmem>>, vector<1x1x1x128xf32>
    %52 = vector.shape_cast %51 : vector<1x1x1x128xf32> to vector<128xf32>
    %53 = vector.shape_cast %50 : vector<128xf32> to vector<1x1x1x128xf32>
    tpu.vector_store %arg2[%c0_50, %c0_51, %c5, %c0_52], %53 {strides = array<i32>} : memref<1x7x7x128xf32, #tpu.memory_space<vmem>>, vector<1x1x1x128xf32>,
    %c0_53 = arith.constant 0 : index
    %c0_54 = arith.constant 0 : index
    %c3_55 = arith.constant 3 : index
    %c0_56 = arith.constant 0 : index
    %54 = vector.load %arg1[%c0_53, %c0_54, %c3_55, %c0_56] : memref<1x4x4x128xbf16, #tpu.memory_space<vmem>>, vector<1x1x1x128xbf16>
    %55 = vector.shape_cast %54 : vector<1x1x1x128xbf16> to vector<1x1x128xbf16>
    %56 = arith.extf %55 : vector<1x1x128xbf16> to vector<1x1x128xf32>
    %cst_57 = arith.constant dense<0.000000e+00> : vector<128xf32>
    %57 = vector.multi_reduction <add>, %56, %cst_57 [0, 1] : vector<1x1x128xf32> to vector<128xf32>
    %cst_58 = arith.constant 1.000000e+00 : f32
    %58 = vector.broadcast %cst_58 : f32 to vector<128xf32>
    %59 = arith.mulf %57, %58 : vector<128xf32>
    %c0_59 = arith.constant 0 : index
    %c0_60 = arith.constant 0 : index
    %c6 = arith.constant 6 : index
    %c0_61 = arith.constant 0 : index
    %60 = vector.load %arg2[%c0_59, %c0_60, %c6, %c0_61] : memref<1x7x7x128xf32, #tpu.memory_space<vmem>>, vector<1x1x1x128xf32>
    %61 = vector.shape_cast %60 : vector<1x1x1x128xf32> to vector<128xf32>
    %62 = vector.shape_cast %59 : vector<128xf32> to vector<1x1x1x128xf32>
    tpu.vector_store %arg2[%c0_59, %c0_60, %c6, %c0_61], %62 {strides = array<i32>} : memref<1x7x7x128xf32, #tpu.memory_space<vmem>>, vector<1x1x1x128xf32>,
    %c0_62 = arith.constant 0 : index
    %c0_63 = arith.constant 0 : index
    %c0_64 = arith.constant 0 : index
    %c0_65 = arith.constant 0 : index
    %63 = vector.load %arg1[%c0_62, %c0_63, %c0_64, %c0_65] : memref<1x4x4x128xbf16, #tpu.memory_space<vmem>>, vector<1x2x1x128xbf16>
    %64 = vector.shape_cast %63 : vector<1x2x1x128xbf16> to vector<2x1x128xbf16>
    %65 = arith.extf %64 : vector<2x1x128xbf16> to vector<2x1x128xf32>
    %cst_66 = arith.constant dense<0.000000e+00> : vector<128xf32>
    %66 = vector.multi_reduction <add>, %65, %cst_66 [0, 1] : vector<2x1x128xf32> to vector<128xf32>
    %cst_67 = arith.constant 5.000000e-01 : f32
    %67 = vector.broadcast %cst_67 : f32 to vector<128xf32>
    %68 = arith.mulf %66, %67 : vector<128xf32>
    %c0_68 = arith.constant 0 : index
    %c1_69 = arith.constant 1 : index
    %c0_70 = arith.constant 0 : index
    %c0_71 = arith.constant 0 : index
    %69 = vector.load %arg2[%c0_68, %c1_69, %c0_70, %c0_71] : memref<1x7x7x128xf32, #tpu.memory_space<vmem>>, vector<1x1x1x128xf32>
    %70 = vector.shape_cast %69 : vector<1x1x1x128xf32> to vector<128xf32>
    %71 = vector.shape_cast %68 : vector<128xf32> to vector<1x1x1x128xf32>
    tpu.vector_store %arg2[%c0_68, %c1_69, %c0_70, %c0_71], %71 {strides = array<i32>} : memref<1x7x7x128xf32, #tpu.memory_space<vmem>>, vector<1x1x1x128xf32>,
    %c0_72 = arith.constant 0 : index
    %c0_73 = arith.constant 0 : index
    %c0_74 = arith.constant 0 : index
    %c0_75 = arith.constant 0 : index
    %72 = vector.load %arg1[%c0_72, %c0_73, %c0_74, %c0_75] : memref<1x4x4x128xbf16, #tpu.memory_space<vmem>>, vector<1x2x2x128xbf16>
    %73 = vector.shape_cast %72 : vector<1x2x2x128xbf16> to vector<2x2x128xbf16>
    %74 = arith.extf %73 : vector<2x2x128xbf16> to vector<2x2x128xf32>
    %cst_76 = arith.constant dense<0.000000e+00> : vector<128xf32>
    %75 = vector.multi_reduction <add>, %74, %cst_76 [0, 1] : vector<2x2x128xf32> to vector<128xf32>
    %cst_77 = arith.constant 2.500000e-01 : f32
    %76 = vector.broadcast %cst_77 : f32 to vector<128xf32>
    %77 = arith.mulf %75, %76 : vector<128xf32>
    %c0_78 = arith.constant 0 : index
    %c1_79 = arith.constant 1 : index
    %c1_80 = arith.constant 1 : index
    %c0_81 = arith.constant 0 : index
    %78 = vector.load %arg2[%c0_78, %c1_79, %c1_80, %c0_81] : memref<1x7x7x128xf32, #tpu.memory_space<vmem>>, vector<1x1x1x128xf32>
    %79 = vector.shape_cast %78 : vector<1x1x1x128xf32> to vector<128xf32>
    %80 = vector.shape_cast %77 : vector<128xf32> to vector<1x1x1x128xf32>
    tpu.vector_store %arg2[%c0_78, %c1_79, %c1_80, %c0_81], %80 {strides = array<i32>} : memref<1x7x7x128xf32, #tpu.memory_space<vmem>>, vector<1x1x1x128xf32>,
    %c0_82 = arith.constant 0 : index
    %c0_83 = arith.constant 0 : index
    %c1_84 = arith.constant 1 : index
    %c0_85 = arith.constant 0 : index
    %81 = vector.load %arg1[%c0_82, %c0_83, %c1_84, %c0_85] : memref<1x4x4x128xbf16, #tpu.memory_space<vmem>>, vector<1x2x1x128xbf16>
    %82 = vector.shape_cast %81 : vector<1x2x1x128xbf16> to vector<2x1x128xbf16>
    %83 = arith.extf %82 : vector<2x1x128xbf16> to vector<2x1x128xf32>
    %cst_86 = arith.constant dense<0.000000e+00> : vector<128xf32>
    %84 = vector.multi_reduction <add>, %83, %cst_86 [0, 1] : vector<2x1x128xf32> to vector<128xf32>
    %cst_87 = arith.constant 5.000000e-01 : f32
    %85 = vector.broadcast %cst_87 : f32 to vector<128xf32>
    %86 = arith.mulf %84, %85 : vector<128xf32>
    %c0_88 = arith.constant 0 : index
    %c1_89 = arith.constant 1 : index
    %c2_90 = arith.constant 2 : index
    %c0_91 = arith.constant 0 : index
    %87 = vector.load %arg2[%c0_88, %c1_89, %c2_90, %c0_91] : memref<1x7x7x128xf32, #tpu.memory_space<vmem>>, vector<1x1x1x128xf32>
    %88 = vector.shape_cast %87 : vector<1x1x1x128xf32> to vector<128xf32>
    %89 = vector.shape_cast %86 : vector<128xf32> to vector<1x1x1x128xf32>
    tpu.vector_store %arg2[%c0_88, %c1_89, %c2_90, %c0_91], %89 {strides = array<i32>} : memref<1x7x7x128xf32, #tpu.memory_space<vmem>>, vector<1x1x1x128xf32>,
    %c0_92 = arith.constant 0 : index
    %c0_93 = arith.constant 0 : index
    %c1_94 = arith.constant 1 : index
    %c0_95 = arith.constant 0 : index
    %90 = vector.load %arg1[%c0_92, %c0_93, %c1_94, %c0_95] : memref<1x4x4x128xbf16, #tpu.memory_space<vmem>>, vector<1x2x2x128xbf16>
    %91 = vector.shape_cast %90 : vector<1x2x2x128xbf16> to vector<2x2x128xbf16>
    %92 = arith.extf %91 : vector<2x2x128xbf16> to vector<2x2x128xf32>
    %cst_96 = arith.constant dense<0.000000e+00> : vector<128xf32>
    %93 = vector.multi_reduction <add>, %92, %cst_96 [0, 1] : vector<2x2x128xf32> to vector<128xf32>
    %cst_97 = arith.constant 2.500000e-01 : f32
    %94 = vector.broadcast %cst_97 : f32 to vector<128xf32>
    %95 = arith.mulf %93, %94 : vector<128xf32>
    %c0_98 = arith.constant 0 : index
    %c1_99 = arith.constant 1 : index
    %c3_100 = arith.constant 3 : index
    %c0_101 = arith.constant 0 : index
    %96 = vector.load %arg2[%c0_98, %c1_99, %c3_100, %c0_101] : memref<1x7x7x128xf32, #tpu.memory_space<vmem>>, vector<1x1x1x128xf32>
    %97 = vector.shape_cast %96 : vector<1x1x1x128xf32> to vector<128xf32>
    %98 = vector.shape_cast %95 : vector<128xf32> to vector<1x1x1x128xf32>
    tpu.vector_store %arg2[%c0_98, %c1_99, %c3_100, %c0_101], %98 {strides = array<i32>} : memref<1x7x7x128xf32, #tpu.memory_space<vmem>>, vector<1x1x1x128xf32>,
    %c0_102 = arith.constant 0 : index
    %c0_103 = arith.constant 0 : index
    %c2_104 = arith.constant 2 : index
    %c0_105 = arith.constant 0 : index
    %99 = vector.load %arg1[%c0_102, %c0_103, %c2_104, %c0_105] : memref<1x4x4x128xbf16, #tpu.memory_space<vmem>>, vector<1x2x1x128xbf16>
    %100 = vector.shape_cast %99 : vector<1x2x1x128xbf16> to vector<2x1x128xbf16>
    %101 = arith.extf %100 : vector<2x1x128xbf16> to vector<2x1x128xf32>
    %cst_106 = arith.constant dense<0.000000e+00> : vector<128xf32>
    %102 = vector.multi_reduction <add>, %101, %cst_106 [0, 1] : vector<2x1x128xf32> to vector<128xf32>
    %cst_107 = arith.constant 5.000000e-01 : f32
    %103 = vector.broadcast %cst_107 : f32 to vector<128xf32>
    %104 = arith.mulf %102, %103 : vector<128xf32>
    %c0_108 = arith.constant 0 : index
    %c1_109 = arith.constant 1 : index
    %c4_110 = arith.constant 4 : index
    %c0_111 = arith.constant 0 : index
    %105 = vector.load %arg2[%c0_108, %c1_109, %c4_110, %c0_111] : memref<1x7x7x128xf32, #tpu.memory_space<vmem>>, vector<1x1x1x128xf32>
    %106 = vector.shape_cast %105 : vector<1x1x1x128xf32> to vector<128xf32>
    %107 = vector.shape_cast %104 : vector<128xf32> to vector<1x1x1x128xf32>
    tpu.vector_store %arg2[%c0_108, %c1_109, %c4_110, %c0_111], %107 {strides = array<i32>} : memref<1x7x7x128xf32, #tpu.memory_space<vmem>>, vector<1x1x1x128xf32>,
    %c0_112 = arith.constant 0 : index
    %c0_113 = arith.constant 0 : index
    %c2_114 = arith.constant 2 : index
    %c0_115 = arith.constant 0 : index
    %108 = vector.load %arg1[%c0_112, %c0_113, %c2_114, %c0_115] : memref<1x4x4x128xbf16, #tpu.memory_space<vmem>>, vector<1x2x2x128xbf16>
    %109 = vector.shape_cast %108 : vector<1x2x2x128xbf16> to vector<2x2x128xbf16>
    %110 = arith.extf %109 : vector<2x2x128xbf16> to vector<2x2x128xf32>
    %cst_116 = arith.constant dense<0.000000e+00> : vector<128xf32>
    %111 = vector.multi_reduction <add>, %110, %cst_116 [0, 1] : vector<2x2x128xf32> to vector<128xf32>
    %cst_117 = arith.constant 2.500000e-01 : f32
    %112 = vector.broadcast %cst_117 : f32 to vector<128xf32>
    %113 = arith.mulf %111, %112 : vector<128xf32>
    %c0_118 = arith.constant 0 : index
    %c1_119 = arith.constant 1 : index
    %c5_120 = arith.constant 5 : index
    %c0_121 = arith.constant 0 : index
    %114 = vector.load %arg2[%c0_118, %c1_119, %c5_120, %c0_121] : memref<1x7x7x128xf32, #tpu.memory_space<vmem>>, vector<1x1x1x128xf32>
    %115 = vector.shape_cast %114 : vector<1x1x1x128xf32> to vector<128xf32>
    %116 = vector.shape_cast %113 : vector<128xf32> to vector<1x1x1x128xf32>
    tpu.vector_store %arg2[%c0_118, %c1_119, %c5_120, %c0_121], %116 {strides = array<i32>} : memref<1x7x7x128xf32, #tpu.memory_space<vmem>>, vector<1x1x1x128xf32>,
    %c0_122 = arith.constant 0 : index
    %c0_123 = arith.constant 0 : index
    %c3_124 = arith.constant 3 : index
    %c0_125 = arith.constant 0 : index
    %117 = vector.load %arg1[%c0_122, %c0_123, %c3_124, %c0_125] : memref<1x4x4x128xbf16, #tpu.memory_space<vmem>>, vector<1x2x1x128xbf16>
    %118 = vector.shape_cast %117 : vector<1x2x1x128xbf16> to vector<2x1x128xbf16>
    %119 = arith.extf %118 : vector<2x1x128xbf16> to vector<2x1x128xf32>
    %cst_126 = arith.constant dense<0.000000e+00> : vector<128xf32>
    %120 = vector.multi_reduction <add>, %119, %cst_126 [0, 1] : vector<2x1x128xf32> to vector<128xf32>
    %cst_127 = arith.constant 5.000000e-01 : f32
    %121 = vector.broadcast %cst_127 : f32 to vector<128xf32>
    %122 = arith.mulf %120, %121 : vector<128xf32>
    %c0_128 = arith.constant 0 : index
    %c1_129 = arith.constant 1 : index
    %c6_130 = arith.constant 6 : index
    %c0_131 = arith.constant 0 : index
    %123 = vector.load %arg2[%c0_128, %c1_129, %c6_130, %c0_131] : memref<1x7x7x128xf32, #tpu.memory_space<vmem>>, vector<1x1x1x128xf32>
    %124 = vector.shape_cast %123 : vector<1x1x1x128xf32> to vector<128xf32>
    %125 = vector.shape_cast %122 : vector<128xf32> to vector<1x1x1x128xf32>
    tpu.vector_store %arg2[%c0_128, %c1_129, %c6_130, %c0_131], %125 {strides = array<i32>} : memref<1x7x7x128xf32, #tpu.memory_space<vmem>>, vector<1x1x1x128xf32>,
    %c0_132 = arith.constant 0 : index
    %c1_133 = arith.constant 1 : index
    %c0_134 = arith.constant 0 : index
    %c0_135 = arith.constant 0 : index
    %126 = vector.load %arg1[%c0_132, %c1_133, %c0_134, %c0_135] : memref<1x4x4x128xbf16, #tpu.memory_space<vmem>>, vector<1x1x1x128xbf16>
    %127 = vector.shape_cast %126 : vector<1x1x1x128xbf16> to vector<1x1x128xbf16>
    %128 = arith.extf %127 : vector<1x1x128xbf16> to vector<1x1x128xf32>
    %cst_136 = arith.constant dense<0.000000e+00> : vector<128xf32>
    %129 = vector.multi_reduction <add>, %128, %cst_136 [0, 1] : vector<1x1x128xf32> to vector<128xf32>
    %cst_137 = arith.constant 1.000000e+00 : f32
    %130 = vector.broadcast %cst_137 : f32 to vector<128xf32>
    %131 = arith.mulf %129, %130 : vector<128xf32>
    %c0_138 = arith.constant 0 : index
    %c2_139 = arith.constant 2 : index
    %c0_140 = arith.constant 0 : index
    %c0_141 = arith.constant 0 : index
    %132 = vector.load %arg2[%c0_138, %c2_139, %c0_140, %c0_141] : memref<1x7x7x128xf32, #tpu.memory_space<vmem>>, vector<1x1x1x128xf32>
    %133 = vector.shape_cast %132 : vector<1x1x1x128xf32> to vector<128xf32>
    %134 = vector.shape_cast %131 : vector<128xf32> to vector<1x1x1x128xf32>
    tpu.vector_store %arg2[%c0_138, %c2_139, %c0_140, %c0_141], %134 {strides = array<i32>} : memref<1x7x7x128xf32, #tpu.memory_space<vmem>>, vector<1x1x1x128xf32>,
    %c0_142 = arith.constant 0 : index
    %c1_143 = arith.constant 1 : index
    %c0_144 = arith.constant 0 : index
    %c0_145 = arith.constant 0 : index
    %135 = vector.load %arg1[%c0_142, %c1_143, %c0_144, %c0_145] : memref<1x4x4x128xbf16, #tpu.memory_space<vmem>>, vector<1x1x2x128xbf16>
    %136 = vector.shape_cast %135 : vector<1x1x2x128xbf16> to vector<1x2x128xbf16>
    %137 = arith.extf %136 : vector<1x2x128xbf16> to vector<1x2x128xf32>
    %cst_146 = arith.constant dense<0.000000e+00> : vector<128xf32>
    %138 = vector.multi_reduction <add>, %137, %cst_146 [0, 1] : vector<1x2x128xf32> to vector<128xf32>
    %cst_147 = arith.constant 5.000000e-01 : f32
    %139 = vector.broadcast %cst_147 : f32 to vector<128xf32>
    %140 = arith.mulf %138, %139 : vector<128xf32>
    %c0_148 = arith.constant 0 : index
    %c2_149 = arith.constant 2 : index
    %c1_150 = arith.constant 1 : index
    %c0_151 = arith.constant 0 : index
    %141 = vector.load %arg2[%c0_148, %c2_149, %c1_150, %c0_151] : memref<1x7x7x128xf32, #tpu.memory_space<vmem>>, vector<1x1x1x128xf32>
    %142 = vector.shape_cast %141 : vector<1x1x1x128xf32> to vector<128xf32>
    %143 = vector.shape_cast %140 : vector<128xf32> to vector<1x1x1x128xf32>
    tpu.vector_store %arg2[%c0_148, %c2_149, %c1_150, %c0_151], %143 {strides = array<i32>} : memref<1x7x7x128xf32, #tpu.memory_space<vmem>>, vector<1x1x1x128xf32>,
    %c0_152 = arith.constant 0 : index
    %c1_153 = arith.constant 1 : index
    %c1_154 = arith.constant 1 : index
    %c0_155 = arith.constant 0 : index
    %144 = vector.load %arg1[%c0_152, %c1_153, %c1_154, %c0_155] : memref<1x4x4x128xbf16, #tpu.memory_space<vmem>>, vector<1x1x1x128xbf16>
    %145 = vector.shape_cast %144 : vector<1x1x1x128xbf16> to vector<1x1x128xbf16>
    %146 = arith.extf %145 : vector<1x1x128xbf16> to vector<1x1x128xf32>
    %cst_156 = arith.constant dense<0.000000e+00> : vector<128xf32>
    %147 = vector.multi_reduction <add>, %146, %cst_156 [0, 1] : vector<1x1x128xf32> to vector<128xf32>
    %cst_157 = arith.constant 1.000000e+00 : f32
    %148 = vector.broadcast %cst_157 : f32 to vector<128xf32>
    %149 = arith.mulf %147, %148 : vector<128xf32>
    %c0_158 = arith.constant 0 : index
    %c2_159 = arith.constant 2 : index
    %c2_160 = arith.constant 2 : index
    %c0_161 = arith.constant 0 : index
    %150 = vector.load %arg2[%c0_158, %c2_159, %c2_160, %c0_161] : memref<1x7x7x128xf32, #tpu.memory_space<vmem>>, vector<1x1x1x128xf32>
    %151 = vector.shape_cast %150 : vector<1x1x1x128xf32> to vector<128xf32>
    %152 = vector.shape_cast %149 : vector<128xf32> to vector<1x1x1x128xf32>
    tpu.vector_store %arg2[%c0_158, %c2_159, %c2_160, %c0_161], %152 {strides = array<i32>} : memref<1x7x7x128xf32, #tpu.memory_space<vmem>>, vector<1x1x1x128xf32>,
    %c0_162 = arith.constant 0 : index
    %c1_163 = arith.constant 1 : index
    %c1_164 = arith.constant 1 : index
    %c0_165 = arith.constant 0 : index
    %153 = vector.load %arg1[%c0_162, %c1_163, %c1_164, %c0_165] : memref<1x4x4x128xbf16, #tpu.memory_space<vmem>>, vector<1x1x2x128xbf16>
    %154 = vector.shape_cast %153 : vector<1x1x2x128xbf16> to vector<1x2x128xbf16>
    %155 = arith.extf %154 : vector<1x2x128xbf16> to vector<1x2x128xf32>
    %cst_166 = arith.constant dense<0.000000e+00> : vector<128xf32>
    %156 = vector.multi_reduction <add>, %155, %cst_166 [0, 1] : vector<1x2x128xf32> to vector<128xf32>
    %cst_167 = arith.constant 5.000000e-01 : f32
    %157 = vector.broadcast %cst_167 : f32 to vector<128xf32>
    %158 = arith.mulf %156, %157 : vector<128xf32>
    %c0_168 = arith.constant 0 : index
    %c2_169 = arith.constant 2 : index
    %c3_170 = arith.constant 3 : index
    %c0_171 = arith.constant 0 : index
    %159 = vector.load %arg2[%c0_168, %c2_169, %c3_170, %c0_171] : memref<1x7x7x128xf32, #tpu.memory_space<vmem>>, vector<1x1x1x128xf32>
    %160 = vector.shape_cast %159 : vector<1x1x1x128xf32> to vector<128xf32>
    %161 = vector.shape_cast %158 : vector<128xf32> to vector<1x1x1x128xf32>
    tpu.vector_store %arg2[%c0_168, %c2_169, %c3_170, %c0_171], %161 {strides = array<i32>} : memref<1x7x7x128xf32, #tpu.memory_space<vmem>>, vector<1x1x1x128xf32>,
    %c0_172 = arith.constant 0 : index
    %c1_173 = arith.constant 1 : index
    %c2_174 = arith.constant 2 : index
    %c0_175 = arith.constant 0 : index
    %162 = vector.load %arg1[%c0_172, %c1_173, %c2_174, %c0_175] : memref<1x4x4x128xbf16, #tpu.memory_space<vmem>>, vector<1x1x1x128xbf16>
    %163 = vector.shape_cast %162 : vector<1x1x1x128xbf16> to vector<1x1x128xbf16>
    %164 = arith.extf %163 : vector<1x1x128xbf16> to vector<1x1x128xf32>
    %cst_176 = arith.constant dense<0.000000e+00> : vector<128xf32>
    %165 = vector.multi_reduction <add>, %164, %cst_176 [0, 1] : vector<1x1x128xf32> to vector<128xf32>
    %cst_177 = arith.constant 1.000000e+00 : f32
    %166 = vector.broadcast %cst_177 : f32 to vector<128xf32>
    %167 = arith.mulf %165, %166 : vector<128xf32>
    %c0_178 = arith.constant 0 : index
    %c2_179 = arith.constant 2 : index
    %c4_180 = arith.constant 4 : index
    %c0_181 = arith.constant 0 : index
    %168 = vector.load %arg2[%c0_178, %c2_179, %c4_180, %c0_181] : memref<1x7x7x128xf32, #tpu.memory_space<vmem>>, vector<1x1x1x128xf32>
    %169 = vector.shape_cast %168 : vector<1x1x1x128xf32> to vector<128xf32>
    %170 = vector.shape_cast %167 : vector<128xf32> to vector<1x1x1x128xf32>
    tpu.vector_store %arg2[%c0_178, %c2_179, %c4_180, %c0_181], %170 {strides = array<i32>} : memref<1x7x7x128xf32, #tpu.memory_space<vmem>>, vector<1x1x1x128xf32>,
    %c0_182 = arith.constant 0 : index
    %c1_183 = arith.constant 1 : index
    %c2_184 = arith.constant 2 : index
    %c0_185 = arith.constant 0 : index
    %171 = vector.load %arg1[%c0_182, %c1_183, %c2_184, %c0_185] : memref<1x4x4x128xbf16, #tpu.memory_space<vmem>>, vector<1x1x2x128xbf16>
    %172 = vector.shape_cast %171 : vector<1x1x2x128xbf16> to vector<1x2x128xbf16>
    %173 = arith.extf %172 : vector<1x2x128xbf16> to vector<1x2x128xf32>
    %cst_186 = arith.constant dense<0.000000e+00> : vector<128xf32>
    %174 = vector.multi_reduction <add>, %173, %cst_186 [0, 1] : vector<1x2x128xf32> to vector<128xf32>
    %cst_187 = arith.constant 5.000000e-01 : f32
    %175 = vector.broadcast %cst_187 : f32 to vector<128xf32>
    %176 = arith.mulf %174, %175 : vector<128xf32>
    %c0_188 = arith.constant 0 : index
    %c2_189 = arith.constant 2 : index
    %c5_190 = arith.constant 5 : index
    %c0_191 = arith.constant 0 : index
    %177 = vector.load %arg2[%c0_188, %c2_189, %c5_190, %c0_191] : memref<1x7x7x128xf32, #tpu.memory_space<vmem>>, vector<1x1x1x128xf32>
    %178 = vector.shape_cast %177 : vector<1x1x1x128xf32> to vector<128xf32>
    %179 = vector.shape_cast %176 : vector<128xf32> to vector<1x1x1x128xf32>
    tpu.vector_store %arg2[%c0_188, %c2_189, %c5_190, %c0_191], %179 {strides = array<i32>} : memref<1x7x7x128xf32, #tpu.memory_space<vmem>>, vector<1x1x1x128xf32>,
    %c0_192 = arith.constant 0 : index
    %c1_193 = arith.constant 1 : index
    %c3_194 = arith.constant 3 : index
    %c0_195 = arith.constant 0 : index
    %180 = vector.load %arg1[%c0_192, %c1_193, %c3_194, %c0_195] : memref<1x4x4x128xbf16, #tpu.memory_space<vmem>>, vector<1x1x1x128xbf16>
    %181 = vector.shape_cast %180 : vector<1x1x1x128xbf16> to vector<1x1x128xbf16>
    %182 = arith.extf %181 : vector<1x1x128xbf16> to vector<1x1x128xf32>
    %cst_196 = arith.constant dense<0.000000e+00> : vector<128xf32>
    %183 = vector.multi_reduction <add>, %182, %cst_196 [0, 1] : vector<1x1x128xf32> to vector<128xf32>
    %cst_197 = arith.constant 1.000000e+00 : f32
    %184 = vector.broadcast %cst_197 : f32 to vector<128xf32>
    %185 = arith.mulf %183, %184 : vector<128xf32>
    %c0_198 = arith.constant 0 : index
    %c2_199 = arith.constant 2 : index
    %c6_200 = arith.constant 6 : index
    %c0_201 = arith.constant 0 : index
    %186 = vector.load %arg2[%c0_198, %c2_199, %c6_200, %c0_201] : memref<1x7x7x128xf32, #tpu.memory_space<vmem>>, vector<1x1x1x128xf32>
    %187 = vector.shape_cast %186 : vector<1x1x1x128xf32> to vector<128xf32>
    %188 = vector.shape_cast %185 : vector<128xf32> to vector<1x1x1x128xf32>
    tpu.vector_store %arg2[%c0_198, %c2_199, %c6_200, %c0_201], %188 {strides = array<i32>} : memref<1x7x7x128xf32, #tpu.memory_space<vmem>>, vector<1x1x1x128xf32>,
    %c0_202 = arith.constant 0 : index
    %c1_203 = arith.constant 1 : index
    %c0_204 = arith.constant 0 : index
    %c0_205 = arith.constant 0 : index
    %189 = vector.load %arg1[%c0_202, %c1_203, %c0_204, %c0_205] : memref<1x4x4x128xbf16, #tpu.memory_space<vmem>>, vector<1x2x1x128xbf16>
    %190 = vector.shape_cast %189 : vector<1x2x1x128xbf16> to vector<2x1x128xbf16>
    %191 = arith.extf %190 : vector<2x1x128xbf16> to vector<2x1x128xf32>
    %cst_206 = arith.constant dense<0.000000e+00> : vector<128xf32>
    %192 = vector.multi_reduction <add>, %191, %cst_206 [0, 1] : vector<2x1x128xf32> to vector<128xf32>
    %cst_207 = arith.constant 5.000000e-01 : f32
    %193 = vector.broadcast %cst_207 : f32 to vector<128xf32>
    %194 = arith.mulf %192, %193 : vector<128xf32>
    %c0_208 = arith.constant 0 : index
    %c3_209 = arith.constant 3 : index
    %c0_210 = arith.constant 0 : index
    %c0_211 = arith.constant 0 : index
    %195 = vector.load %arg2[%c0_208, %c3_209, %c0_210, %c0_211] : memref<1x7x7x128xf32, #tpu.memory_space<vmem>>, vector<1x1x1x128xf32>
    %196 = vector.shape_cast %195 : vector<1x1x1x128xf32> to vector<128xf32>
    %197 = vector.shape_cast %194 : vector<128xf32> to vector<1x1x1x128xf32>
    tpu.vector_store %arg2[%c0_208, %c3_209, %c0_210, %c0_211], %197 {strides = array<i32>} : memref<1x7x7x128xf32, #tpu.memory_space<vmem>>, vector<1x1x1x128xf32>,
    %c0_212 = arith.constant 0 : index
    %c1_213 = arith.constant 1 : index
    %c0_214 = arith.constant 0 : index
    %c0_215 = arith.constant 0 : index
    %198 = vector.load %arg1[%c0_212, %c1_213, %c0_214, %c0_215] : memref<1x4x4x128xbf16, #tpu.memory_space<vmem>>, vector<1x2x2x128xbf16>
    %199 = vector.shape_cast %198 : vector<1x2x2x128xbf16> to vector<2x2x128xbf16>
    %200 = arith.extf %199 : vector<2x2x128xbf16> to vector<2x2x128xf32>
    %cst_216 = arith.constant dense<0.000000e+00> : vector<128xf32>
    %201 = vector.multi_reduction <add>, %200, %cst_216 [0, 1] : vector<2x2x128xf32> to vector<128xf32>
    %cst_217 = arith.constant 2.500000e-01 : f32
    %202 = vector.broadcast %cst_217 : f32 to vector<128xf32>
    %203 = arith.mulf %201, %202 : vector<128xf32>
    %c0_218 = arith.constant 0 : index
    %c3_219 = arith.constant 3 : index
    %c1_220 = arith.constant 1 : index
    %c0_221 = arith.constant 0 : index
    %204 = vector.load %arg2[%c0_218, %c3_219, %c1_220, %c0_221] : memref<1x7x7x128xf32, #tpu.memory_space<vmem>>, vector<1x1x1x128xf32>
    %205 = vector.shape_cast %204 : vector<1x1x1x128xf32> to vector<128xf32>
    %206 = vector.shape_cast %203 : vector<128xf32> to vector<1x1x1x128xf32>
    tpu.vector_store %arg2[%c0_218, %c3_219, %c1_220, %c0_221], %206 {strides = array<i32>} : memref<1x7x7x128xf32, #tpu.memory_space<vmem>>, vector<1x1x1x128xf32>,
    %c0_222 = arith.constant 0 : index
    %c1_223 = arith.constant 1 : index
    %c1_224 = arith.constant 1 : index
    %c0_225 = arith.constant 0 : index
    %207 = vector.load %arg1[%c0_222, %c1_223, %c1_224, %c0_225] : memref<1x4x4x128xbf16, #tpu.memory_space<vmem>>, vector<1x2x1x128xbf16>
    %208 = vector.shape_cast %207 : vector<1x2x1x128xbf16> to vector<2x1x128xbf16>
    %209 = arith.extf %208 : vector<2x1x128xbf16> to vector<2x1x128xf32>
    %cst_226 = arith.constant dense<0.000000e+00> : vector<128xf32>
    %210 = vector.multi_reduction <add>, %209, %cst_226 [0, 1] : vector<2x1x128xf32> to vector<128xf32>
    %cst_227 = arith.constant 5.000000e-01 : f32
    %211 = vector.broadcast %cst_227 : f32 to vector<128xf32>
    %212 = arith.mulf %210, %211 : vector<128xf32>
    %c0_228 = arith.constant 0 : index
    %c3_229 = arith.constant 3 : index
    %c2_230 = arith.constant 2 : index
    %c0_231 = arith.constant 0 : index
    %213 = vector.load %arg2[%c0_228, %c3_229, %c2_230, %c0_231] : memref<1x7x7x128xf32, #tpu.memory_space<vmem>>, vector<1x1x1x128xf32>
    %214 = vector.shape_cast %213 : vector<1x1x1x128xf32> to vector<128xf32>
    %215 = vector.shape_cast %212 : vector<128xf32> to vector<1x1x1x128xf32>
    tpu.vector_store %arg2[%c0_228, %c3_229, %c2_230, %c0_231], %215 {strides = array<i32>} : memref<1x7x7x128xf32, #tpu.memory_space<vmem>>, vector<1x1x1x128xf32>,
    %c0_232 = arith.constant 0 : index
    %c1_233 = arith.constant 1 : index
    %c1_234 = arith.constant 1 : index
    %c0_235 = arith.constant 0 : index
    %216 = vector.load %arg1[%c0_232, %c1_233, %c1_234, %c0_235] : memref<1x4x4x128xbf16, #tpu.memory_space<vmem>>, vector<1x2x2x128xbf16>
    %217 = vector.shape_cast %216 : vector<1x2x2x128xbf16> to vector<2x2x128xbf16>
    %218 = arith.extf %217 : vector<2x2x128xbf16> to vector<2x2x128xf32>
    %cst_236 = arith.constant dense<0.000000e+00> : vector<128xf32>
    %219 = vector.multi_reduction <add>, %218, %cst_236 [0, 1] : vector<2x2x128xf32> to vector<128xf32>
    %cst_237 = arith.constant 2.500000e-01 : f32
    %220 = vector.broadcast %cst_237 : f32 to vector<128xf32>
    %221 = arith.mulf %219, %220 : vector<128xf32>
    %c0_238 = arith.constant 0 : index
    %c3_239 = arith.constant 3 : index
    %c3_240 = arith.constant 3 : index
    %c0_241 = arith.constant 0 : index
    %222 = vector.load %arg2[%c0_238, %c3_239, %c3_240, %c0_241] : memref<1x7x7x128xf32, #tpu.memory_space<vmem>>, vector<1x1x1x128xf32>
    %223 = vector.shape_cast %222 : vector<1x1x1x128xf32> to vector<128xf32>
    %224 = vector.shape_cast %221 : vector<128xf32> to vector<1x1x1x128xf32>
    tpu.vector_store %arg2[%c0_238, %c3_239, %c3_240, %c0_241], %224 {strides = array<i32>} : memref<1x7x7x128xf32, #tpu.memory_space<vmem>>, vector<1x1x1x128xf32>,
    %c0_242 = arith.constant 0 : index
    %c1_243 = arith.constant 1 : index
    %c2_244 = arith.constant 2 : index
    %c0_245 = arith.constant 0 : index
    %225 = vector.load %arg1[%c0_242, %c1_243, %c2_244, %c0_245] : memref<1x4x4x128xbf16, #tpu.memory_space<vmem>>, vector<1x2x1x128xbf16>
    %226 = vector.shape_cast %225 : vector<1x2x1x128xbf16> to vector<2x1x128xbf16>
    %227 = arith.extf %226 : vector<2x1x128xbf16> to vector<2x1x128xf32>
    %cst_246 = arith.constant dense<0.000000e+00> : vector<128xf32>
    %228 = vector.multi_reduction <add>, %227, %cst_246 [0, 1] : vector<2x1x128xf32> to vector<128xf32>
    %cst_247 = arith.constant 5.000000e-01 : f32
    %229 = vector.broadcast %cst_247 : f32 to vector<128xf32>
    %230 = arith.mulf %228, %229 : vector<128xf32>
    %c0_248 = arith.constant 0 : index
    %c3_249 = arith.constant 3 : index
    %c4_250 = arith.constant 4 : index
    %c0_251 = arith.constant 0 : index
    %231 = vector.load %arg2[%c0_248, %c3_249, %c4_250, %c0_251] : memref<1x7x7x128xf32, #tpu.memory_space<vmem>>, vector<1x1x1x128xf32>
    %232 = vector.shape_cast %231 : vector<1x1x1x128xf32> to vector<128xf32>
    %233 = vector.shape_cast %230 : vector<128xf32> to vector<1x1x1x128xf32>
    tpu.vector_store %arg2[%c0_248, %c3_249, %c4_250, %c0_251], %233 {strides = array<i32>} : memref<1x7x7x128xf32, #tpu.memory_space<vmem>>, vector<1x1x1x128xf32>,
    %c0_252 = arith.constant 0 : index
    %c1_253 = arith.constant 1 : index
    %c2_254 = arith.constant 2 : index
    %c0_255 = arith.constant 0 : index
    %234 = vector.load %arg1[%c0_252, %c1_253, %c2_254, %c0_255] : memref<1x4x4x128xbf16, #tpu.memory_space<vmem>>, vector<1x2x2x128xbf16>
    %235 = vector.shape_cast %234 : vector<1x2x2x128xbf16> to vector<2x2x128xbf16>
    %236 = arith.extf %235 : vector<2x2x128xbf16> to vector<2x2x128xf32>
    %cst_256 = arith.constant dense<0.000000e+00> : vector<128xf32>
    %237 = vector.multi_reduction <add>, %236, %cst_256 [0, 1] : vector<2x2x128xf32> to vector<128xf32>
    %cst_257 = arith.constant 2.500000e-01 : f32
    %238 = vector.broadcast %cst_257 : f32 to vector<128xf32>
    %239 = arith.mulf %237, %238 : vector<128xf32>
    %c0_258 = arith.constant 0 : index
    %c3_259 = arith.constant 3 : index
    %c5_260 = arith.constant 5 : index
    %c0_261 = arith.constant 0 : index
    %240 = vector.load %arg2[%c0_258, %c3_259, %c5_260, %c0_261] : memref<1x7x7x128xf32, #tpu.memory_space<vmem>>, vector<1x1x1x128xf32>
    %241 = vector.shape_cast %240 : vector<1x1x1x128xf32> to vector<128xf32>
    %242 = vector.shape_cast %239 : vector<128xf32> to vector<1x1x1x128xf32>
    tpu.vector_store %arg2[%c0_258, %c3_259, %c5_260, %c0_261], %242 {strides = array<i32>} : memref<1x7x7x128xf32, #tpu.memory_space<vmem>>, vector<1x1x1x128xf32>,
    %c0_262 = arith.constant 0 : index
    %c1_263 = arith.constant 1 : index
    %c3_264 = arith.constant 3 : index
    %c0_265 = arith.constant 0 : index
    %243 = vector.load %arg1[%c0_262, %c1_263, %c3_264, %c0_265] : memref<1x4x4x128xbf16, #tpu.memory_space<vmem>>, vector<1x2x1x128xbf16>
    %244 = vector.shape_cast %243 : vector<1x2x1x128xbf16> to vector<2x1x128xbf16>
    %245 = arith.extf %244 : vector<2x1x128xbf16> to vector<2x1x128xf32>
    %cst_266 = arith.constant dense<0.000000e+00> : vector<128xf32>
    %246 = vector.multi_reduction <add>, %245, %cst_266 [0, 1] : vector<2x1x128xf32> to vector<128xf32>
    %cst_267 = arith.constant 5.000000e-01 : f32
    %247 = vector.broadcast %cst_267 : f32 to vector<128xf32>
    %248 = arith.mulf %246, %247 : vector<128xf32>
    %c0_268 = arith.constant 0 : index
    %c3_269 = arith.constant 3 : index
    %c6_270 = arith.constant 6 : index
    %c0_271 = arith.constant 0 : index
    %249 = vector.load %arg2[%c0_268, %c3_269, %c6_270, %c0_271] : memref<1x7x7x128xf32, #tpu.memory_space<vmem>>, vector<1x1x1x128xf32>
    %250 = vector.shape_cast %249 : vector<1x1x1x128xf32> to vector<128xf32>
    %251 = vector.shape_cast %248 : vector<128xf32> to vector<1x1x1x128xf32>
    tpu.vector_store %arg2[%c0_268, %c3_269, %c6_270, %c0_271], %251 {strides = array<i32>} : memref<1x7x7x128xf32, #tpu.memory_space<vmem>>, vector<1x1x1x128xf32>,
    %c0_272 = arith.constant 0 : index
    %c2_273 = arith.constant 2 : index
    %c0_274 = arith.constant 0 : index
    %c0_275 = arith.constant 0 : index
    %252 = vector.load %arg1[%c0_272, %c2_273, %c0_274, %c0_275] : memref<1x4x4x128xbf16, #tpu.memory_space<vmem>>, vector<1x1x1x128xbf16>
    %253 = vector.shape_cast %252 : vector<1x1x1x128xbf16> to vector<1x1x128xbf16>
    %254 = arith.extf %253 : vector<1x1x128xbf16> to vector<1x1x128xf32>
    %cst_276 = arith.constant dense<0.000000e+00> : vector<128xf32>
    %255 = vector.multi_reduction <add>, %254, %cst_276 [0, 1] : vector<1x1x128xf32> to vector<128xf32>
    %cst_277 = arith.constant 1.000000e+00 : f32
    %256 = vector.broadcast %cst_277 : f32 to vector<128xf32>
    %257 = arith.mulf %255, %256 : vector<128xf32>
    %c0_278 = arith.constant 0 : index
    %c4_279 = arith.constant 4 : index
    %c0_280 = arith.constant 0 : index
    %c0_281 = arith.constant 0 : index
    %258 = vector.load %arg2[%c0_278, %c4_279, %c0_280, %c0_281] : memref<1x7x7x128xf32, #tpu.memory_space<vmem>>, vector<1x1x1x128xf32>
    %259 = vector.shape_cast %258 : vector<1x1x1x128xf32> to vector<128xf32>
    %260 = vector.shape_cast %257 : vector<128xf32> to vector<1x1x1x128xf32>
    tpu.vector_store %arg2[%c0_278, %c4_279, %c0_280, %c0_281], %260 {strides = array<i32>} : memref<1x7x7x128xf32, #tpu.memory_space<vmem>>, vector<1x1x1x128xf32>,
    %c0_282 = arith.constant 0 : index
    %c2_283 = arith.constant 2 : index
    %c0_284 = arith.constant 0 : index
    %c0_285 = arith.constant 0 : index
    %261 = vector.load %arg1[%c0_282, %c2_283, %c0_284, %c0_285] : memref<1x4x4x128xbf16, #tpu.memory_space<vmem>>, vector<1x1x2x128xbf16>
    %262 = vector.shape_cast %261 : vector<1x1x2x128xbf16> to vector<1x2x128xbf16>
    %263 = arith.extf %262 : vector<1x2x128xbf16> to vector<1x2x128xf32>
    %cst_286 = arith.constant dense<0.000000e+00> : vector<128xf32>
    %264 = vector.multi_reduction <add>, %263, %cst_286 [0, 1] : vector<1x2x128xf32> to vector<128xf32>
    %cst_287 = arith.constant 5.000000e-01 : f32
    %265 = vector.broadcast %cst_287 : f32 to vector<128xf32>
    %266 = arith.mulf %264, %265 : vector<128xf32>
    %c0_288 = arith.constant 0 : index
    %c4_289 = arith.constant 4 : index
    %c1_290 = arith.constant 1 : index
    %c0_291 = arith.constant 0 : index
    %267 = vector.load %arg2[%c0_288, %c4_289, %c1_290, %c0_291] : memref<1x7x7x128xf32, #tpu.memory_space<vmem>>, vector<1x1x1x128xf32>
    %268 = vector.shape_cast %267 : vector<1x1x1x128xf32> to vector<128xf32>
    %269 = vector.shape_cast %266 : vector<128xf32> to vector<1x1x1x128xf32>
    tpu.vector_store %arg2[%c0_288, %c4_289, %c1_290, %c0_291], %269 {strides = array<i32>} : memref<1x7x7x128xf32, #tpu.memory_space<vmem>>, vector<1x1x1x128xf32>,
    %c0_292 = arith.constant 0 : index
    %c2_293 = arith.constant 2 : index
    %c1_294 = arith.constant 1 : index
    %c0_295 = arith.constant 0 : index
    %270 = vector.load %arg1[%c0_292, %c2_293, %c1_294, %c0_295] : memref<1x4x4x128xbf16, #tpu.memory_space<vmem>>, vector<1x1x1x128xbf16>
    %271 = vector.shape_cast %270 : vector<1x1x1x128xbf16> to vector<1x1x128xbf16>
    %272 = arith.extf %271 : vector<1x1x128xbf16> to vector<1x1x128xf32>
    %cst_296 = arith.constant dense<0.000000e+00> : vector<128xf32>
    %273 = vector.multi_reduction <add>, %272, %cst_296 [0, 1] : vector<1x1x128xf32> to vector<128xf32>
    %cst_297 = arith.constant 1.000000e+00 : f32
    %274 = vector.broadcast %cst_297 : f32 to vector<128xf32>
    %275 = arith.mulf %273, %274 : vector<128xf32>
    %c0_298 = arith.constant 0 : index
    %c4_299 = arith.constant 4 : index
    %c2_300 = arith.constant 2 : index
    %c0_301 = arith.constant 0 : index
    %276 = vector.load %arg2[%c0_298, %c4_299, %c2_300, %c0_301] : memref<1x7x7x128xf32, #tpu.memory_space<vmem>>, vector<1x1x1x128xf32>
    %277 = vector.shape_cast %276 : vector<1x1x1x128xf32> to vector<128xf32>
    %278 = vector.shape_cast %275 : vector<128xf32> to vector<1x1x1x128xf32>
    tpu.vector_store %arg2[%c0_298, %c4_299, %c2_300, %c0_301], %278 {strides = array<i32>} : memref<1x7x7x128xf32, #tpu.memory_space<vmem>>, vector<1x1x1x128xf32>,
    %c0_302 = arith.constant 0 : index
    %c2_303 = arith.constant 2 : index
    %c1_304 = arith.constant 1 : index
    %c0_305 = arith.constant 0 : index
    %279 = vector.load %arg1[%c0_302, %c2_303, %c1_304, %c0_305] : memref<1x4x4x128xbf16, #tpu.memory_space<vmem>>, vector<1x1x2x128xbf16>
    %280 = vector.shape_cast %279 : vector<1x1x2x128xbf16> to vector<1x2x128xbf16>
    %281 = arith.extf %280 : vector<1x2x128xbf16> to vector<1x2x128xf32>
    %cst_306 = arith.constant dense<0.000000e+00> : vector<128xf32>
    %282 = vector.multi_reduction <add>, %281, %cst_306 [0, 1] : vector<1x2x128xf32> to vector<128xf32>
    %cst_307 = arith.constant 5.000000e-01 : f32
    %283 = vector.broadcast %cst_307 : f32 to vector<128xf32>
    %284 = arith.mulf %282, %283 : vector<128xf32>
    %c0_308 = arith.constant 0 : index
    %c4_309 = arith.constant 4 : index
    %c3_310 = arith.constant 3 : index
    %c0_311 = arith.constant 0 : index
    %285 = vector.load %arg2[%c0_308, %c4_309, %c3_310, %c0_311] : memref<1x7x7x128xf32, #tpu.memory_space<vmem>>, vector<1x1x1x128xf32>
    %286 = vector.shape_cast %285 : vector<1x1x1x128xf32> to vector<128xf32>
    %287 = vector.shape_cast %284 : vector<128xf32> to vector<1x1x1x128xf32>
    tpu.vector_store %arg2[%c0_308, %c4_309, %c3_310, %c0_311], %287 {strides = array<i32>} : memref<1x7x7x128xf32, #tpu.memory_space<vmem>>, vector<1x1x1x128xf32>,
    %c0_312 = arith.constant 0 : index
    %c2_313 = arith.constant 2 : index
    %c2_314 = arith.constant 2 : index
    %c0_315 = arith.constant 0 : index
    %288 = vector.load %arg1[%c0_312, %c2_313, %c2_314, %c0_315] : memref<1x4x4x128xbf16, #tpu.memory_space<vmem>>, vector<1x1x1x128xbf16>
    %289 = vector.shape_cast %288 : vector<1x1x1x128xbf16> to vector<1x1x128xbf16>
    %290 = arith.extf %289 : vector<1x1x128xbf16> to vector<1x1x128xf32>
    %cst_316 = arith.constant dense<0.000000e+00> : vector<128xf32>
    %291 = vector.multi_reduction <add>, %290, %cst_316 [0, 1] : vector<1x1x128xf32> to vector<128xf32>
    %cst_317 = arith.constant 1.000000e+00 : f32
    %292 = vector.broadcast %cst_317 : f32 to vector<128xf32>
    %293 = arith.mulf %291, %292 : vector<128xf32>
    %c0_318 = arith.constant 0 : index
    %c4_319 = arith.constant 4 : index
    %c4_320 = arith.constant 4 : index
    %c0_321 = arith.constant 0 : index
    %294 = vector.load %arg2[%c0_318, %c4_319, %c4_320, %c0_321] : memref<1x7x7x128xf32, #tpu.memory_space<vmem>>, vector<1x1x1x128xf32>
    %295 = vector.shape_cast %294 : vector<1x1x1x128xf32> to vector<128xf32>
    %296 = vector.shape_cast %293 : vector<128xf32> to vector<1x1x1x128xf32>
    tpu.vector_store %arg2[%c0_318, %c4_319, %c4_320, %c0_321], %296 {strides = array<i32>} : memref<1x7x7x128xf32, #tpu.memory_space<vmem>>, vector<1x1x1x128xf32>,
    %c0_322 = arith.constant 0 : index
    %c2_323 = arith.constant 2 : index
    %c2_324 = arith.constant 2 : index
    %c0_325 = arith.constant 0 : index
    %297 = vector.load %arg1[%c0_322, %c2_323, %c2_324, %c0_325] : memref<1x4x4x128xbf16, #tpu.memory_space<vmem>>, vector<1x1x2x128xbf16>
    %298 = vector.shape_cast %297 : vector<1x1x2x128xbf16> to vector<1x2x128xbf16>
    %299 = arith.extf %298 : vector<1x2x128xbf16> to vector<1x2x128xf32>
    %cst_326 = arith.constant dense<0.000000e+00> : vector<128xf32>
    %300 = vector.multi_reduction <add>, %299, %cst_326 [0, 1] : vector<1x2x128xf32> to vector<128xf32>
    %cst_327 = arith.constant 5.000000e-01 : f32
    %301 = vector.broadcast %cst_327 : f32 to vector<128xf32>
    %302 = arith.mulf %300, %301 : vector<128xf32>
    %c0_328 = arith.constant 0 : index
    %c4_329 = arith.constant 4 : index
    %c5_330 = arith.constant 5 : index
    %c0_331 = arith.constant 0 : index
    %303 = vector.load %arg2[%c0_328, %c4_329, %c5_330, %c0_331] : memref<1x7x7x128xf32, #tpu.memory_space<vmem>>, vector<1x1x1x128xf32>
    %304 = vector.shape_cast %303 : vector<1x1x1x128xf32> to vector<128xf32>
    %305 = vector.shape_cast %302 : vector<128xf32> to vector<1x1x1x128xf32>
    tpu.vector_store %arg2[%c0_328, %c4_329, %c5_330, %c0_331], %305 {strides = array<i32>} : memref<1x7x7x128xf32, #tpu.memory_space<vmem>>, vector<1x1x1x128xf32>,
    %c0_332 = arith.constant 0 : index
    %c2_333 = arith.constant 2 : index
    %c3_334 = arith.constant 3 : index
    %c0_335 = arith.constant 0 : index
    %306 = vector.load %arg1[%c0_332, %c2_333, %c3_334, %c0_335] : memref<1x4x4x128xbf16, #tpu.memory_space<vmem>>, vector<1x1x1x128xbf16>
    %307 = vector.shape_cast %306 : vector<1x1x1x128xbf16> to vector<1x1x128xbf16>
    %308 = arith.extf %307 : vector<1x1x128xbf16> to vector<1x1x128xf32>
    %cst_336 = arith.constant dense<0.000000e+00> : vector<128xf32>
    %309 = vector.multi_reduction <add>, %308, %cst_336 [0, 1] : vector<1x1x128xf32> to vector<128xf32>
    %cst_337 = arith.constant 1.000000e+00 : f32
    %310 = vector.broadcast %cst_337 : f32 to vector<128xf32>
    %311 = arith.mulf %309, %310 : vector<128xf32>
    %c0_338 = arith.constant 0 : index
    %c4_339 = arith.constant 4 : index
    %c6_340 = arith.constant 6 : index
    %c0_341 = arith.constant 0 : index
    %312 = vector.load %arg2[%c0_338, %c4_339, %c6_340, %c0_341] : memref<1x7x7x128xf32, #tpu.memory_space<vmem>>, vector<1x1x1x128xf32>
    %313 = vector.shape_cast %312 : vector<1x1x1x128xf32> to vector<128xf32>
    %314 = vector.shape_cast %311 : vector<128xf32> to vector<1x1x1x128xf32>
    tpu.vector_store %arg2[%c0_338, %c4_339, %c6_340, %c0_341], %314 {strides = array<i32>} : memref<1x7x7x128xf32, #tpu.memory_space<vmem>>, vector<1x1x1x128xf32>,
    %c0_342 = arith.constant 0 : index
    %c2_343 = arith.constant 2 : index
    %c0_344 = arith.constant 0 : index
    %c0_345 = arith.constant 0 : index
    %315 = vector.load %arg1[%c0_342, %c2_343, %c0_344, %c0_345] : memref<1x4x4x128xbf16, #tpu.memory_space<vmem>>, vector<1x2x1x128xbf16>
    %316 = vector.shape_cast %315 : vector<1x2x1x128xbf16> to vector<2x1x128xbf16>
    %317 = arith.extf %316 : vector<2x1x128xbf16> to vector<2x1x128xf32>
    %cst_346 = arith.constant dense<0.000000e+00> : vector<128xf32>
    %318 = vector.multi_reduction <add>, %317, %cst_346 [0, 1] : vector<2x1x128xf32> to vector<128xf32>
    %cst_347 = arith.constant 5.000000e-01 : f32
    %319 = vector.broadcast %cst_347 : f32 to vector<128xf32>
    %320 = arith.mulf %318, %319 : vector<128xf32>
    %c0_348 = arith.constant 0 : index
    %c5_349 = arith.constant 5 : index
    %c0_350 = arith.constant 0 : index
    %c0_351 = arith.constant 0 : index
    %321 = vector.load %arg2[%c0_348, %c5_349, %c0_350, %c0_351] : memref<1x7x7x128xf32, #tpu.memory_space<vmem>>, vector<1x1x1x128xf32>
    %322 = vector.shape_cast %321 : vector<1x1x1x128xf32> to vector<128xf32>
    %323 = vector.shape_cast %320 : vector<128xf32> to vector<1x1x1x128xf32>
    tpu.vector_store %arg2[%c0_348, %c5_349, %c0_350, %c0_351], %323 {strides = array<i32>} : memref<1x7x7x128xf32, #tpu.memory_space<vmem>>, vector<1x1x1x128xf32>,
    %c0_352 = arith.constant 0 : index
    %c2_353 = arith.constant 2 : index
    %c0_354 = arith.constant 0 : index
    %c0_355 = arith.constant 0 : index
    %324 = vector.load %arg1[%c0_352, %c2_353, %c0_354, %c0_355] : memref<1x4x4x128xbf16, #tpu.memory_space<vmem>>, vector<1x2x2x128xbf16>
    %325 = vector.shape_cast %324 : vector<1x2x2x128xbf16> to vector<2x2x128xbf16>
    %326 = arith.extf %325 : vector<2x2x128xbf16> to vector<2x2x128xf32>
    %cst_356 = arith.constant dense<0.000000e+00> : vector<128xf32>
    %327 = vector.multi_reduction <add>, %326, %cst_356 [0, 1] : vector<2x2x128xf32> to vector<128xf32>
    %cst_357 = arith.constant 2.500000e-01 : f32
    %328 = vector.broadcast %cst_357 : f32 to vector<128xf32>
    %329 = arith.mulf %327, %328 : vector<128xf32>
    %c0_358 = arith.constant 0 : index
    %c5_359 = arith.constant 5 : index
    %c1_360 = arith.constant 1 : index
    %c0_361 = arith.constant 0 : index
    %330 = vector.load %arg2[%c0_358, %c5_359, %c1_360, %c0_361] : memref<1x7x7x128xf32, #tpu.memory_space<vmem>>, vector<1x1x1x128xf32>
    %331 = vector.shape_cast %330 : vector<1x1x1x128xf32> to vector<128xf32>
    %332 = vector.shape_cast %329 : vector<128xf32> to vector<1x1x1x128xf32>
    tpu.vector_store %arg2[%c0_358, %c5_359, %c1_360, %c0_361], %332 {strides = array<i32>} : memref<1x7x7x128xf32, #tpu.memory_space<vmem>>, vector<1x1x1x128xf32>,
    %c0_362 = arith.constant 0 : index
    %c2_363 = arith.constant 2 : index
    %c1_364 = arith.constant 1 : index
    %c0_365 = arith.constant 0 : index
    %333 = vector.load %arg1[%c0_362, %c2_363, %c1_364, %c0_365] : memref<1x4x4x128xbf16, #tpu.memory_space<vmem>>, vector<1x2x1x128xbf16>
    %334 = vector.shape_cast %333 : vector<1x2x1x128xbf16> to vector<2x1x128xbf16>
    %335 = arith.extf %334 : vector<2x1x128xbf16> to vector<2x1x128xf32>
    %cst_366 = arith.constant dense<0.000000e+00> : vector<128xf32>
    %336 = vector.multi_reduction <add>, %335, %cst_366 [0, 1] : vector<2x1x128xf32> to vector<128xf32>
    %cst_367 = arith.constant 5.000000e-01 : f32
    %337 = vector.broadcast %cst_367 : f32 to vector<128xf32>
    %338 = arith.mulf %336, %337 : vector<128xf32>
    %c0_368 = arith.constant 0 : index
    %c5_369 = arith.constant 5 : index
    %c2_370 = arith.constant 2 : index
    %c0_371 = arith.constant 0 : index
    %339 = vector.load %arg2[%c0_368, %c5_369, %c2_370, %c0_371] : memref<1x7x7x128xf32, #tpu.memory_space<vmem>>, vector<1x1x1x128xf32>
    %340 = vector.shape_cast %339 : vector<1x1x1x128xf32> to vector<128xf32>
    %341 = vector.shape_cast %338 : vector<128xf32> to vector<1x1x1x128xf32>
    tpu.vector_store %arg2[%c0_368, %c5_369, %c2_370, %c0_371], %341 {strides = array<i32>} : memref<1x7x7x128xf32, #tpu.memory_space<vmem>>, vector<1x1x1x128xf32>,
    %c0_372 = arith.constant 0 : index
    %c2_373 = arith.constant 2 : index
    %c1_374 = arith.constant 1 : index
    %c0_375 = arith.constant 0 : index
    %342 = vector.load %arg1[%c0_372, %c2_373, %c1_374, %c0_375] : memref<1x4x4x128xbf16, #tpu.memory_space<vmem>>, vector<1x2x2x128xbf16>
    %343 = vector.shape_cast %342 : vector<1x2x2x128xbf16> to vector<2x2x128xbf16>
    %344 = arith.extf %343 : vector<2x2x128xbf16> to vector<2x2x128xf32>
    %cst_376 = arith.constant dense<0.000000e+00> : vector<128xf32>
    %345 = vector.multi_reduction <add>, %344, %cst_376 [0, 1] : vector<2x2x128xf32> to vector<128xf32>
    %cst_377 = arith.constant 2.500000e-01 : f32
    %346 = vector.broadcast %cst_377 : f32 to vector<128xf32>
    %347 = arith.mulf %345, %346 : vector<128xf32>
    %c0_378 = arith.constant 0 : index
    %c5_379 = arith.constant 5 : index
    %c3_380 = arith.constant 3 : index
    %c0_381 = arith.constant 0 : index
    %348 = vector.load %arg2[%c0_378, %c5_379, %c3_380, %c0_381] : memref<1x7x7x128xf32, #tpu.memory_space<vmem>>, vector<1x1x1x128xf32>
    %349 = vector.shape_cast %348 : vector<1x1x1x128xf32> to vector<128xf32>
    %350 = vector.shape_cast %347 : vector<128xf32> to vector<1x1x1x128xf32>
    tpu.vector_store %arg2[%c0_378, %c5_379, %c3_380, %c0_381], %350 {strides = array<i32>} : memref<1x7x7x128xf32, #tpu.memory_space<vmem>>, vector<1x1x1x128xf32>,
    %c0_382 = arith.constant 0 : index
    %c2_383 = arith.constant 2 : index
    %c2_384 = arith.constant 2 : index
    %c0_385 = arith.constant 0 : index
    %351 = vector.load %arg1[%c0_382, %c2_383, %c2_384, %c0_385] : memref<1x4x4x128xbf16, #tpu.memory_space<vmem>>, vector<1x2x1x128xbf16>
    %352 = vector.shape_cast %351 : vector<1x2x1x128xbf16> to vector<2x1x128xbf16>
    %353 = arith.extf %352 : vector<2x1x128xbf16> to vector<2x1x128xf32>
    %cst_386 = arith.constant dense<0.000000e+00> : vector<128xf32>
    %354 = vector.multi_reduction <add>, %353, %cst_386 [0, 1] : vector<2x1x128xf32> to vector<128xf32>
    %cst_387 = arith.constant 5.000000e-01 : f32
    %355 = vector.broadcast %cst_387 : f32 to vector<128xf32>
    %356 = arith.mulf %354, %355 : vector<128xf32>
    %c0_388 = arith.constant 0 : index
    %c5_389 = arith.constant 5 : index
    %c4_390 = arith.constant 4 : index
    %c0_391 = arith.constant 0 : index
    %357 = vector.load %arg2[%c0_388, %c5_389, %c4_390, %c0_391] : memref<1x7x7x128xf32, #tpu.memory_space<vmem>>, vector<1x1x1x128xf32>
    %358 = vector.shape_cast %357 : vector<1x1x1x128xf32> to vector<128xf32>
    %359 = vector.shape_cast %356 : vector<128xf32> to vector<1x1x1x128xf32>
    tpu.vector_store %arg2[%c0_388, %c5_389, %c4_390, %c0_391], %359 {strides = array<i32>} : memref<1x7x7x128xf32, #tpu.memory_space<vmem>>, vector<1x1x1x128xf32>,
    %c0_392 = arith.constant 0 : index
    %c2_393 = arith.constant 2 : index
    %c2_394 = arith.constant 2 : index
    %c0_395 = arith.constant 0 : index
    %360 = vector.load %arg1[%c0_392, %c2_393, %c2_394, %c0_395] : memref<1x4x4x128xbf16, #tpu.memory_space<vmem>>, vector<1x2x2x128xbf16>
    %361 = vector.shape_cast %360 : vector<1x2x2x128xbf16> to vector<2x2x128xbf16>
    %362 = arith.extf %361 : vector<2x2x128xbf16> to vector<2x2x128xf32>
    %cst_396 = arith.constant dense<0.000000e+00> : vector<128xf32>
    %363 = vector.multi_reduction <add>, %362, %cst_396 [0, 1] : vector<2x2x128xf32> to vector<128xf32>
    %cst_397 = arith.constant 2.500000e-01 : f32
    %364 = vector.broadcast %cst_397 : f32 to vector<128xf32>
    %365 = arith.mulf %363, %364 : vector<128xf32>
    %c0_398 = arith.constant 0 : index
    %c5_399 = arith.constant 5 : index
    %c5_400 = arith.constant 5 : index
    %c0_401 = arith.constant 0 : index
    %366 = vector.load %arg2[%c0_398, %c5_399, %c5_400, %c0_401] : memref<1x7x7x128xf32, #tpu.memory_space<vmem>>, vector<1x1x1x128xf32>
    %367 = vector.shape_cast %366 : vector<1x1x1x128xf32> to vector<128xf32>
    %368 = vector.shape_cast %365 : vector<128xf32> to vector<1x1x1x128xf32>
    tpu.vector_store %arg2[%c0_398, %c5_399, %c5_400, %c0_401], %368 {strides = array<i32>} : memref<1x7x7x128xf32, #tpu.memory_space<vmem>>, vector<1x1x1x128xf32>,
    %c0_402 = arith.constant 0 : index
    %c2_403 = arith.constant 2 : index
    %c3_404 = arith.constant 3 : index
    %c0_405 = arith.constant 0 : index
    %369 = vector.load %arg1[%c0_402, %c2_403, %c3_404, %c0_405] : memref<1x4x4x128xbf16, #tpu.memory_space<vmem>>, vector<1x2x1x128xbf16>
    %370 = vector.shape_cast %369 : vector<1x2x1x128xbf16> to vector<2x1x128xbf16>
    %371 = arith.extf %370 : vector<2x1x128xbf16> to vector<2x1x128xf32>
    %cst_406 = arith.constant dense<0.000000e+00> : vector<128xf32>
    %372 = vector.multi_reduction <add>, %371, %cst_406 [0, 1] : vector<2x1x128xf32> to vector<128xf32>
    %cst_407 = arith.constant 5.000000e-01 : f32
    %373 = vector.broadcast %cst_407 : f32 to vector<128xf32>
    %374 = arith.mulf %372, %373 : vector<128xf32>
    %c0_408 = arith.constant 0 : index
    %c5_409 = arith.constant 5 : index
    %c6_410 = arith.constant 6 : index
    %c0_411 = arith.constant 0 : index
    %375 = vector.load %arg2[%c0_408, %c5_409, %c6_410, %c0_411] : memref<1x7x7x128xf32, #tpu.memory_space<vmem>>, vector<1x1x1x128xf32>
    %376 = vector.shape_cast %375 : vector<1x1x1x128xf32> to vector<128xf32>
    %377 = vector.shape_cast %374 : vector<128xf32> to vector<1x1x1x128xf32>
    tpu.vector_store %arg2[%c0_408, %c5_409, %c6_410, %c0_411], %377 {strides = array<i32>} : memref<1x7x7x128xf32, #tpu.memory_space<vmem>>, vector<1x1x1x128xf32>,
    %c0_412 = arith.constant 0 : index
    %c3_413 = arith.constant 3 : index
    %c0_414 = arith.constant 0 : index
    %c0_415 = arith.constant 0 : index
    %378 = vector.load %arg1[%c0_412, %c3_413, %c0_414, %c0_415] : memref<1x4x4x128xbf16, #tpu.memory_space<vmem>>, vector<1x1x1x128xbf16>
    %379 = vector.shape_cast %378 : vector<1x1x1x128xbf16> to vector<1x1x128xbf16>
    %380 = arith.extf %379 : vector<1x1x128xbf16> to vector<1x1x128xf32>
    %cst_416 = arith.constant dense<0.000000e+00> : vector<128xf32>
    %381 = vector.multi_reduction <add>, %380, %cst_416 [0, 1] : vector<1x1x128xf32> to vector<128xf32>
    %cst_417 = arith.constant 1.000000e+00 : f32
    %382 = vector.broadcast %cst_417 : f32 to vector<128xf32>
    %383 = arith.mulf %381, %382 : vector<128xf32>
    %c0_418 = arith.constant 0 : index
    %c6_419 = arith.constant 6 : index
    %c0_420 = arith.constant 0 : index
    %c0_421 = arith.constant 0 : index
    %384 = vector.load %arg2[%c0_418, %c6_419, %c0_420, %c0_421] : memref<1x7x7x128xf32, #tpu.memory_space<vmem>>, vector<1x1x1x128xf32>
    %385 = vector.shape_cast %384 : vector<1x1x1x128xf32> to vector<128xf32>
    %386 = vector.shape_cast %383 : vector<128xf32> to vector<1x1x1x128xf32>
    tpu.vector_store %arg2[%c0_418, %c6_419, %c0_420, %c0_421], %386 {strides = array<i32>} : memref<1x7x7x128xf32, #tpu.memory_space<vmem>>, vector<1x1x1x128xf32>,
    %c0_422 = arith.constant 0 : index
    %c3_423 = arith.constant 3 : index
    %c0_424 = arith.constant 0 : index
    %c0_425 = arith.constant 0 : index
    %387 = vector.load %arg1[%c0_422, %c3_423, %c0_424, %c0_425] : memref<1x4x4x128xbf16, #tpu.memory_space<vmem>>, vector<1x1x2x128xbf16>
    %388 = vector.shape_cast %387 : vector<1x1x2x128xbf16> to vector<1x2x128xbf16>
    %389 = arith.extf %388 : vector<1x2x128xbf16> to vector<1x2x128xf32>
    %cst_426 = arith.constant dense<0.000000e+00> : vector<128xf32>
    %390 = vector.multi_reduction <add>, %389, %cst_426 [0, 1] : vector<1x2x128xf32> to vector<128xf32>
    %cst_427 = arith.constant 5.000000e-01 : f32
    %391 = vector.broadcast %cst_427 : f32 to vector<128xf32>
    %392 = arith.mulf %390, %391 : vector<128xf32>
    %c0_428 = arith.constant 0 : index
    %c6_429 = arith.constant 6 : index
    %c1_430 = arith.constant 1 : index
    %c0_431 = arith.constant 0 : index
    %393 = vector.load %arg2[%c0_428, %c6_429, %c1_430, %c0_431] : memref<1x7x7x128xf32, #tpu.memory_space<vmem>>, vector<1x1x1x128xf32>
    %394 = vector.shape_cast %393 : vector<1x1x1x128xf32> to vector<128xf32>
    %395 = vector.shape_cast %392 : vector<128xf32> to vector<1x1x1x128xf32>
    tpu.vector_store %arg2[%c0_428, %c6_429, %c1_430, %c0_431], %395 {strides = array<i32>} : memref<1x7x7x128xf32, #tpu.memory_space<vmem>>, vector<1x1x1x128xf32>,
    %c0_432 = arith.constant 0 : index
    %c3_433 = arith.constant 3 : index
    %c1_434 = arith.constant 1 : index
    %c0_435 = arith.constant 0 : index
    %396 = vector.load %arg1[%c0_432, %c3_433, %c1_434, %c0_435] : memref<1x4x4x128xbf16, #tpu.memory_space<vmem>>, vector<1x1x1x128xbf16>
    %397 = vector.shape_cast %396 : vector<1x1x1x128xbf16> to vector<1x1x128xbf16>
    %398 = arith.extf %397 : vector<1x1x128xbf16> to vector<1x1x128xf32>
    %cst_436 = arith.constant dense<0.000000e+00> : vector<128xf32>
    %399 = vector.multi_reduction <add>, %398, %cst_436 [0, 1] : vector<1x1x128xf32> to vector<128xf32>
    %cst_437 = arith.constant 1.000000e+00 : f32
    %400 = vector.broadcast %cst_437 : f32 to vector<128xf32>
    %401 = arith.mulf %399, %400 : vector<128xf32>
    %c0_438 = arith.constant 0 : index
    %c6_439 = arith.constant 6 : index
    %c2_440 = arith.constant 2 : index
    %c0_441 = arith.constant 0 : index
    %402 = vector.load %arg2[%c0_438, %c6_439, %c2_440, %c0_441] : memref<1x7x7x128xf32, #tpu.memory_space<vmem>>, vector<1x1x1x128xf32>
    %403 = vector.shape_cast %402 : vector<1x1x1x128xf32> to vector<128xf32>
    %404 = vector.shape_cast %401 : vector<128xf32> to vector<1x1x1x128xf32>
    tpu.vector_store %arg2[%c0_438, %c6_439, %c2_440, %c0_441], %404 {strides = array<i32>} : memref<1x7x7x128xf32, #tpu.memory_space<vmem>>, vector<1x1x1x128xf32>,
    %c0_442 = arith.constant 0 : index
    %c3_443 = arith.constant 3 : index
    %c1_444 = arith.constant 1 : index
    %c0_445 = arith.constant 0 : index
    %405 = vector.load %arg1[%c0_442, %c3_443, %c1_444, %c0_445] : memref<1x4x4x128xbf16, #tpu.memory_space<vmem>>, vector<1x1x2x128xbf16>
    %406 = vector.shape_cast %405 : vector<1x1x2x128xbf16> to vector<1x2x128xbf16>
    %407 = arith.extf %406 : vector<1x2x128xbf16> to vector<1x2x128xf32>
    %cst_446 = arith.constant dense<0.000000e+00> : vector<128xf32>
    %408 = vector.multi_reduction <add>, %407, %cst_446 [0, 1] : vector<1x2x128xf32> to vector<128xf32>
    %cst_447 = arith.constant 5.000000e-01 : f32
    %409 = vector.broadcast %cst_447 : f32 to vector<128xf32>
    %410 = arith.mulf %408, %409 : vector<128xf32>
    %c0_448 = arith.constant 0 : index
    %c6_449 = arith.constant 6 : index
    %c3_450 = arith.constant 3 : index
    %c0_451 = arith.constant 0 : index
    %411 = vector.load %arg2[%c0_448, %c6_449, %c3_450, %c0_451] : memref<1x7x7x128xf32, #tpu.memory_space<vmem>>, vector<1x1x1x128xf32>
    %412 = vector.shape_cast %411 : vector<1x1x1x128xf32> to vector<128xf32>
    %413 = vector.shape_cast %410 : vector<128xf32> to vector<1x1x1x128xf32>
    tpu.vector_store %arg2[%c0_448, %c6_449, %c3_450, %c0_451], %413 {strides = array<i32>} : memref<1x7x7x128xf32, #tpu.memory_space<vmem>>, vector<1x1x1x128xf32>,
    %c0_452 = arith.constant 0 : index
    %c3_453 = arith.constant 3 : index
    %c2_454 = arith.constant 2 : index
    %c0_455 = arith.constant 0 : index
    %414 = vector.load %arg1[%c0_452, %c3_453, %c2_454, %c0_455] : memref<1x4x4x128xbf16, #tpu.memory_space<vmem>>, vector<1x1x1x128xbf16>
    %415 = vector.shape_cast %414 : vector<1x1x1x128xbf16> to vector<1x1x128xbf16>
    %416 = arith.extf %415 : vector<1x1x128xbf16> to vector<1x1x128xf32>
    %cst_456 = arith.constant dense<0.000000e+00> : vector<128xf32>
    %417 = vector.multi_reduction <add>, %416, %cst_456 [0, 1] : vector<1x1x128xf32> to vector<128xf32>
    %cst_457 = arith.constant 1.000000e+00 : f32
    %418 = vector.broadcast %cst_457 : f32 to vector<128xf32>
    %419 = arith.mulf %417, %418 : vector<128xf32>
    %c0_458 = arith.constant 0 : index
    %c6_459 = arith.constant 6 : index
    %c4_460 = arith.constant 4 : index
    %c0_461 = arith.constant 0 : index
    %420 = vector.load %arg2[%c0_458, %c6_459, %c4_460, %c0_461] : memref<1x7x7x128xf32, #tpu.memory_space<vmem>>, vector<1x1x1x128xf32>
    %421 = vector.shape_cast %420 : vector<1x1x1x128xf32> to vector<128xf32>
    %422 = vector.shape_cast %419 : vector<128xf32> to vector<1x1x1x128xf32>
    tpu.vector_store %arg2[%c0_458, %c6_459, %c4_460, %c0_461], %422 {strides = array<i32>} : memref<1x7x7x128xf32, #tpu.memory_space<vmem>>, vector<1x1x1x128xf32>,
    %c0_462 = arith.constant 0 : index
    %c3_463 = arith.constant 3 : index
    %c2_464 = arith.constant 2 : index
    %c0_465 = arith.constant 0 : index
    %423 = vector.load %arg1[%c0_462, %c3_463, %c2_464, %c0_465] : memref<1x4x4x128xbf16, #tpu.memory_space<vmem>>, vector<1x1x2x128xbf16>
    %424 = vector.shape_cast %423 : vector<1x1x2x128xbf16> to vector<1x2x128xbf16>
    %425 = arith.extf %424 : vector<1x2x128xbf16> to vector<1x2x128xf32>
    %cst_466 = arith.constant dense<0.000000e+00> : vector<128xf32>
    %426 = vector.multi_reduction <add>, %425, %cst_466 [0, 1] : vector<1x2x128xf32> to vector<128xf32>
    %cst_467 = arith.constant 5.000000e-01 : f32
    %427 = vector.broadcast %cst_467 : f32 to vector<128xf32>
    %428 = arith.mulf %426, %427 : vector<128xf32>
    %c0_468 = arith.constant 0 : index
    %c6_469 = arith.constant 6 : index
    %c5_470 = arith.constant 5 : index
    %c0_471 = arith.constant 0 : index
    %429 = vector.load %arg2[%c0_468, %c6_469, %c5_470, %c0_471] : memref<1x7x7x128xf32, #tpu.memory_space<vmem>>, vector<1x1x1x128xf32>
    %430 = vector.shape_cast %429 : vector<1x1x1x128xf32> to vector<128xf32>
    %431 = vector.shape_cast %428 : vector<128xf32> to vector<1x1x1x128xf32>
    tpu.vector_store %arg2[%c0_468, %c6_469, %c5_470, %c0_471], %431 {strides = array<i32>} : memref<1x7x7x128xf32, #tpu.memory_space<vmem>>, vector<1x1x1x128xf32>,
    %c0_472 = arith.constant 0 : index
    %c3_473 = arith.constant 3 : index
    %c3_474 = arith.constant 3 : index
    %c0_475 = arith.constant 0 : index
    %432 = vector.load %arg1[%c0_472, %c3_473, %c3_474, %c0_475] : memref<1x4x4x128xbf16, #tpu.memory_space<vmem>>, vector<1x1x1x128xbf16>
    %433 = vector.shape_cast %432 : vector<1x1x1x128xbf16> to vector<1x1x128xbf16>
    %434 = arith.extf %433 : vector<1x1x128xbf16> to vector<1x1x128xf32>
    %cst_476 = arith.constant dense<0.000000e+00> : vector<128xf32>
    %435 = vector.multi_reduction <add>, %434, %cst_476 [0, 1] : vector<1x1x128xf32> to vector<128xf32>
    %cst_477 = arith.constant 1.000000e+00 : f32
    %436 = vector.broadcast %cst_477 : f32 to vector<128xf32>
    %437 = arith.mulf %435, %436 : vector<128xf32>
    %c0_478 = arith.constant 0 : index
    %c6_479 = arith.constant 6 : index
    %c6_480 = arith.constant 6 : index
    %c0_481 = arith.constant 0 : index
    %438 = vector.load %arg2[%c0_478, %c6_479, %c6_480, %c0_481] : memref<1x7x7x128xf32, #tpu.memory_space<vmem>>, vector<1x1x1x128xf32>
    %439 = vector.shape_cast %438 : vector<1x1x1x128xf32> to vector<128xf32>
    %440 = vector.shape_cast %437 : vector<128xf32> to vector<1x1x1x128xf32>
    tpu.vector_store %arg2[%c0_478, %c6_479, %c6_480, %c0_481], %440 {strides = array<i32>} : memref<1x7x7x128xf32, #tpu.memory_space<vmem>>, vector<1x1x1x128xf32>,
    return
  }
  func.func @transform_0(%arg0: i32) -> (i32, i32, i32, i32) {
    %c0_i32 = arith.constant 0 : i32
    %c0_i32_0 = arith.constant 0 : i32
    %c0_i32_1 = arith.constant 0 : i32
    %c0_i32_2 = arith.constant 0 : i32
    return %arg0, %c0_i32, %c0_i32_0, %c0_i32_1 : i32, i32, i32, i32
  }
  func.func @transform_1(%arg0: i32) -> (i32, i32, i32, i32) {
    %c0_i32 = arith.constant 0 : i32
    %c0_i32_0 = arith.constant 0 : i32
    %c0_i32_1 = arith.constant 0 : i32
    %c0_i32_2 = arith.constant 0 : i32
    return %arg0, %c0_i32, %c0_i32_0, %c0_i32_1 : i32, i32, i32, i32
  }
}

</mosaic_0001>

<llo_original>
// kernel: vgg_forward_pallas.5
$region0: #{vgg_forward_pallas.5}
  #allocation0 [shape = 'u32[]', space=smem, size = 0x4, offset = 0x4, fixed_abs, tag = 'smem constant byte address 0x4 - core index']
  #allocation1 [shape = 'u32[144,128]{1,0:T(1,128)}', space=vmem, size = 0x12000, scoped, tag = 'internal scratch']
  %s0 = inlined_call_operand.hbm [shape: bf16[2,4,4,128], index: 0, kind: input, shape index: {}]
  %s1 = inlined_call_operand.vmem [shape: f32[2,7,7,128], index: 1, kind: output, shape index: {}]
  %s2 = sld [smem:[#allocation0]]
  $region41: #{vgg_forward_pallas.5} parent=0
    _
  %s4 = ssub.s32 1, %s2
  %s5 = scalar_select 0, %s4, %s2
  $region1: #{vgg_forward_pallas.5} parent=0
    #allocation2 [shape = 'u8[8192]{0}', space=vmem, size = 0x2000, scoped, tag = 'input window, operand 0']
    #allocation3 [shape = 's32[2]{0}', space=sflag, size = 0x8, scoped, tag = 'scoped memory for vgg_forward_pallas.5']
    %6 = vsyncpa [#allocation3], 0
    %s7 = scalar_lea.sflag [#allocation3], 1
    %8 = vsyncpa %s7, 0
    loop: start=0, step=1, limit=4
    $region2: #{vgg_forward_pallas.5} parent=1 // loop_pre_header
      _
    $region3: #{vgg_forward_pallas.5} parent=1 // loop_header
      %s10 = sphi 0, %s14
      %p11 = scmp.ge.s32.totalorder %s10, 4
      %s20 = sphi 0, %s22
      %s23 = sphi 0, %s20
      %s24 = sphi 0, %s23
      %s40 = sphi 0, %s24
      %s46 = sphi 0, %s48
      %s49 = sphi 0, %s46
      %s50 = sphi 0, %s49
      %s66 = sphi 0, %s50
    $region4: #{vgg_forward_pallas.5} parent=1 // loop_header_branch
      %13 = sbr.rel (%p11) target = $region8
    $region5: #{vgg_forward_pallas.5} parent=1 // loop_body
      %s15 = ssub.s32 %s10, 1
      %s16 = ssub.s32 %s10, 2
      %s17 = sadd.s32 %s10, 1
      %s18 = ssub.s32 %s10, %s17
      %p19 = scmp.eq.s32.totalorder %s18, 0
      %s21 = sadd.s32 %s20, 1
      %s22 = scalar_select %p19, %s20, %s21
      %p25 = pneg %p19
      %p26 = scmp.eq.s32.totalorder %s10, 1
      %p27 = por %p25, %p26
      %p28 = scmp.ne.s32.totalorder %s20, %s23
      %p29 = scmp.eq.s32.totalorder %s10, 0
      %p30 = por %p28, %p29
      %p31 = scmp.ne.s32.totalorder %s20, %s23
      %p32 = scmp.eq.s32.totalorder %s15, 1
      %p33 = por %p31, %p32
      %p34 = scmp.ne.s32.totalorder %s23, %s24
      %p35 = scmp.eq.s32.totalorder %s15, 0
      %p36 = por %p34, %p35
      %p37 = scmp.ne.s32.totalorder %s23, %s24
      %p38 = scmp.eq.s32.totalorder %s16, 1
      %p39 = por %p37, %p38
      %p41 = scmp.ne.s32.totalorder %s24, %s40
      %p42 = scmp.eq.s32.totalorder %s16, 0
      %p43 = por %p41, %p42
      %s44 = ssub.s32 %s10, %s17
      %p45 = scmp.eq.s32.totalorder %s44, 0
      %s47 = sadd.s32 %s46, 1
      %s48 = scalar_select %p45, %s46, %s47
      %p51 = pneg %p45
      %p52 = scmp.eq.s32.totalorder %s10, 1
      %p53 = por %p51, %p52
      %p54 = scmp.ne.s32.totalorder %s46, %s49
      %p55 = scmp.eq.s32.totalorder %s10, 0
      %p56 = por %p54, %p55
      %p57 = scmp.ne.s32.totalorder %s46, %s49
      %p58 = scmp.eq.s32.totalorder %s15, 1
      %p59 = por %p57, %p58
      %p60 = scmp.ne.s32.totalorder %s49, %s50
      %p61 = scmp.eq.s32.totalorder %s15, 0
      %p62 = por %p60, %p61
      %p63 = scmp.ne.s32.totalorder %s49, %s50
      %p64 = scmp.eq.s32.totalorder %s16, 1
      %p65 = por %p63, %p64
      %p67 = scmp.ne.s32.totalorder %s50, %s66
      %p68 = scmp.eq.s32.totalorder %s16, 0
      %p69 = por %p67, %p68
      %p70 = scmp.le.s32.totalorder 1, %s10
      %p71 = scmp.lt.s32.totalorder %s10, 3
      %p72 = pnand %p70, %p71
      %p73 = pneg %p72
      // Predicated region
      $region9: #{vgg_forward_pallas.5} parent=5 // pred_check
        _
      $region10: #{vgg_forward_pallas.5} parent=5 // pred_check_branch
        %75 = sbr.rel (%p72) target = $region12
      $region11: #{vgg_forward_pallas.5} parent=5 // pred_region
        %s76 = ssub.s32 %s10, 1
      $region12: #{vgg_forward_pallas.5} parent=5 // pred_fallthru
        _
      %p77 = scmp.lt.s32.totalorder %s10, 2
      // Predicated region
      $region13: #{vgg_forward_pallas.5} parent=5 // pred_check
        %p78 = pneg %p77
      $region14: #{vgg_forward_pallas.5} parent=5 // pred_check_branch
        %80 = sbr.rel (%p78) target = $region16
      $region15: #{vgg_forward_pallas.5} parent=5 // pred_region
        // Predicated region
        $region17: #{vgg_forward_pallas.5} parent=15 // pred_check
          %p81 = pneg %p30
        $region18: #{vgg_forward_pallas.5} parent=15 // pred_check_branch
          %83 = sbr.rel (%p81) target = $region20
        $region19: #{vgg_forward_pallas.5} parent=15 // pred_region
          %s84 = sand.u32 %s20, 1
          %s85 = scalar_lea.sflag [#allocation3], %s84
          %s86 = sand.u32 %s20, 1
          %s87 = smul.addr %s86, 8
          %s88 = scalar_lea.vmem [#allocation2], %s87
          %s90 = ssub.s32 128, 128
          %91 = vsyncadd %s85, %s90
          %s92 = smul.addr %s10, 4
          %s93 = smul.addr %s92, 32
          %s94 = scalar_lea.hbm %s0, %s93
          %s95 = sshll.u32 %s88, 4
          %s96 = int_to_ptr.vmem [resolvable:$true] %s95
          %101 = dma.hbm_to_vmem [thread:$0]  %s94, 128, %s96, %s85, 32, 32, 2
        $region20: #{vgg_forward_pallas.5} parent=15 // pred_fallthru
          _
      $region16: #{vgg_forward_pallas.5} parent=5 // pred_fallthru
        _
      %p102 = scmp.le.s32.totalorder 1, %s10
      %p103 = scmp.lt.s32.totalorder %s10, 3
      %p104 = pnand %p102, %p103
      %p105 = pneg %p104
      // Predicated region
      $region21: #{vgg_forward_pallas.5} parent=5 // pred_check
        _
      $region22: #{vgg_forward_pallas.5} parent=5 // pred_check_branch
        %107 = sbr.rel (%p104) target = $region24
      $region23: #{vgg_forward_pallas.5} parent=5 // pred_region
        %s108 = ssub.s32 %s10, 1
        %s109 = sand.u32 %s23, 1
        %s110 = scalar_lea.sflag [#allocation3], %s109
        %s111 = sand.u32 %s23, 1
        %s112 = smul.addr %s111, 8
        %s113 = scalar_lea.vmem [#allocation2], %s112
        // Predicated region
        $region25: #{vgg_forward_pallas.5} parent=23 // pred_check
          %p114 = pneg %p36
        $region26: #{vgg_forward_pallas.5} parent=23 // pred_check_branch
          %116 = sbr.rel (%p114) target = $region28
        $region27: #{vgg_forward_pallas.5} parent=23 // pred_region
          %117 = dma.done %s110, 128
        $region28: #{vgg_forward_pallas.5} parent=23 // pred_fallthru
          _
        %s118 = sand.u32 %s23, 1
        %s119 = scalar_lea.sflag [#allocation3], %s118
        %s120 = sand.u32 %s23, 1
        %s121 = smul.addr %s120, 8
        %s122 = scalar_lea.vmem [#allocation2], %s121
        %p123 = pneg %p36
        %p124 = pneg %p33
        %p125 = pneg %p62
        %p126 = pneg %p59
        %p127 = scmp.lt.s32.totalorder %s15, 1
        %s128 = scalar_select %p127, %s15, 1
        %s129 = smul.addr %s128, 7
        %s130 = smul.addr %s129, 8
        %s131 = scalar_lea.vmem %s1, %s130
        %p132 = scmp.lt.s32.totalorder %s15, 1
        %s133 = scalar_select %p132, %s15, 1
        %s134 = smul.addr %s133, 7
        %s135 = smul.addr %s134, 8
        %s136 = scalar_lea.vmem %s1, %s135
        %v137 = vld [vmem:[%s113] sm:$0x1]
        %v138 = vunpack.c.l.bf16 %v137
        %v139 = vadd.f32 %v138, 0.0
        %140 = vst [vmem:[%s136] sm:$0x1] %v139
        %v141 = vld [vmem:[%s113] sm:$0x1]
        %v142 = vunpack.c.l.bf16 %v141
        %vm143 = vcmask 1041408
        %v144 = vsel %vm143, %v142, 0.0
        %v145 = vrot.slane %v144, 4
        %v146 = vadd.f32 %v144, %v145
        %v147 = vrot.slane %v146, 2
        %v148 = vadd.f32 %v146, %v147
        %v149 = vrot.slane %v148, 1
        %v150 = vadd.f32 %v148, %v149
        %v151 = vmul.f32 %v150, 0.5
        %152 = vst [vmem:[%s136 + $0x1] sm:$0x1] %v151
        %v153 = vld [vmem:[%s113] sm:$0x1]
        %v154 = vunpack.c.l.bf16 %v153
        %v155 = vadd.f32 %v154, 0.0
        %156 = vst [vmem:[%s136 + $0x1] sm:$0x2] %v155
        %v157 = vld [vmem:[%s113] sm:$0x3]
        %v158 = vunpack.c.l.bf16 %v157
        %v160 = vrot.slane %v158, 1
        %v162 = vsel %vm143, %v160, 0.0
        %v163 = vrot.slane %v162, 4
        %v164 = vadd.f32 %v162, %v163
        %v165 = vrot.slane %v164, 2
        %v166 = vadd.f32 %v164, %v165
        %v167 = vrot.slane %v166, 1
        %v168 = vadd.f32 %v166, %v167
        %v169 = vmul.f32 %v168, 0.5
        %170 = vst [vmem:[%s136 + $0x3] sm:$0x1] %v169
        %v171 = vld [vmem:[%s113] sm:$0x2]
        %v172 = vunpack.c.l.bf16 %v171
        %v173 = vadd.f32 %v172, 0.0
        %174 = vst [vmem:[%s136 + $0x2] sm:$0x4] %v173
        %v175 = vld [vmem:[%s113] sm:$0x2]
        %v176 = vunpack.c.l.bf16 %v175
        %v178 = vrot.slane %v176, 2
        %v180 = vsel %vm143, %v178, 0.0
        %v181 = vrot.slane %v180, 4
        %v182 = vadd.f32 %v180, %v181
        %v183 = vrot.slane %v182, 2
        %v184 = vadd.f32 %v182, %v183
        %v185 = vrot.slane %v184, 1
        %v186 = vadd.f32 %v184, %v185
        %v187 = vmul.f32 %v186, 0.5
        %188 = vst [vmem:[%s136 + $0x5] sm:$0x1] %v187
        %v189 = vld [vmem:[%s113] sm:$0x2]
        %v190 = vunpack.c.l.bf16 %v189
        %v191 = vadd.f32 %v190, 0.0
        %192 = vst [vmem:[%s136 + $0x3] sm:$0x8] %v191
        %v193 = vld [vmem:[%s113] sm:$0x1]
        %v194 = vld [vmem:[%s113 + $0x2] sm:$0x1]
        %v195 = vunpack.c.l.bf16 %v193
        %v196 = vunpack.c.l.bf16 %v194
        %vm197 = vcmask 1040384
        %v198 = vsel %vm197, %v195, 0.0
        %v199 = vsel %vm197, %v196, 0.0
        %v200 = vadd.f32 %v198, %v199
        %v201 = vrot.slane %v200, 4
        %v202 = vadd.f32 %v200, %v201
        %v203 = vrot.slane %v202, 2
        %v204 = vadd.f32 %v202, %v203
        %v205 = vrot.slane %v204, 1
        %v206 = vadd.f32 %v204, %v205
        %v207 = vmul.f32 %v206, 0.5
        %s208 = scalar_lea.vmem %s136, 8
        %209 = vst [vmem:[%s208] sm:$0x1] %v207
        %v210 = vld [vmem:[%s113] sm:$0x1]
        %v211 = vld [vmem:[%s113 + $0x2] sm:$0x1]
        %v212 = vunpack.c.l.bf16 %v210
        %v213 = vunpack.c.l.bf16 %v211
        %v214 = vsel %vm143, %v212, 0.0
        %v215 = vsel %vm143, %v213, 0.0
        %v216 = vadd.f32 %v214, %v215
        %v217 = vrot.slane %v216, 4
        %v218 = vadd.f32 %v216, %v217
        %v219 = vrot.slane %v218, 2
        %v220 = vadd.f32 %v218, %v219
        %v221 = vrot.slane %v220, 1
        %v222 = vadd.f32 %v220, %v221
        %v223 = vmul.f32 %v222, 0.25
        %224 = vst [vmem:[%s208 + $0x1] sm:$0x1] %v223
        %v225 = vld [vmem:[%s113] sm:$0x1]
        %v226 = vld [vmem:[%s113 + $0x2] sm:$0x1]
        %v227 = vunpack.c.l.bf16 %v225
        %v228 = vunpack.c.l.bf16 %v226
        %v231 = vlaneseq
        %v232 = vshrl.u32 %v231, 7
        %v233 = vsub.s32 1, %v232
        %v234 = vrot.slane %v227, %v233
        %v235 = vlaneseq
        %v236 = vshrl.u32 %v235, 7
        %v237 = vsub.s32 1, %v236
        %v238 = vrot.slane %v228, %v237
        %v241 = vsel %vm197, %v234, 0.0
        %v242 = vsel %vm197, %v238, 0.0
        %v243 = vadd.f32 %v241, %v242
        %v244 = vrot.slane %v243, 4
        %v245 = vadd.f32 %v243, %v244
        %v246 = vrot.slane %v245, 2
        %v247 = vadd.f32 %v245, %v246
        %v248 = vrot.slane %v247, 1
        %v249 = vadd.f32 %v247, %v248
        %v250 = vmul.f32 %v249, 0.5
        %251 = vst [vmem:[%s208 + $0x2] sm:$0x1] %v250
        %v252 = vld [vmem:[%s113] sm:$0x3]
        %v253 = vld [vmem:[%s113 + $0x2] sm:$0x3]
        %v254 = vunpack.c.l.bf16 %v252
        %v255 = vunpack.c.l.bf16 %v253
        %v258 = vrot.slane %v254, 1
        %v259 = vrot.slane %v255, 1
        %v262 = vsel %vm143, %v258, 0.0
        %v263 = vsel %vm143, %v259, 0.0
        %v264 = vadd.f32 %v262, %v263
        %v265 = vrot.slane %v264, 4
        %v266 = vadd.f32 %v264, %v265
        %v267 = vrot.slane %v266, 2
        %v268 = vadd.f32 %v266, %v267
        %v269 = vrot.slane %v268, 1
        %v270 = vadd.f32 %v268, %v269
        %v271 = vmul.f32 %v270, 0.25
        %272 = vst [vmem:[%s208 + $0x3] sm:$0x1] %v271
        %v273 = vld [vmem:[%s113] sm:$0x2]
        %v274 = vld [vmem:[%s113 + $0x2] sm:$0x2]
        %v275 = vunpack.c.l.bf16 %v273
        %v276 = vunpack.c.l.bf16 %v274
        %v279 = vlaneseq
        %v280 = vshrl.u32 %v279, 7
        %v281 = vsub.s32 2, %v280
        %v282 = vrot.slane %v275, %v281
        %v283 = vlaneseq
        %v284 = vshrl.u32 %v283, 7
        %v285 = vsub.s32 2, %v284
        %v286 = vrot.slane %v276, %v285
        %v289 = vsel %vm197, %v282, 0.0
        %v290 = vsel %vm197, %v286, 0.0
        %v291 = vadd.f32 %v289, %v290
        %v292 = vrot.slane %v291, 4
        %v293 = vadd.f32 %v291, %v292
        %v294 = vrot.slane %v293, 2
        %v295 = vadd.f32 %v293, %v294
        %v296 = vrot.slane %v295, 1
        %v297 = vadd.f32 %v295, %v296
        %v298 = vmul.f32 %v297, 0.5
        %299 = vst [vmem:[%s208 + $0x4] sm:$0x1] %v298
        %v300 = vld [vmem:[%s113] sm:$0x2]
        %v301 = vld [vmem:[%s113 + $0x2] sm:$0x2]
        %v302 = vunpack.c.l.bf16 %v300
        %v303 = vunpack.c.l.bf16 %v301
        %v306 = vrot.slane %v302, 2
        %v307 = vrot.slane %v303, 2
        %v310 = vsel %vm143, %v306, 0.0
        %v311 = vsel %vm143, %v307, 0.0
        %v312 = vadd.f32 %v310, %v311
        %v313 = vrot.slane %v312, 4
        %v314 = vadd.f32 %v312, %v313
        %v315 = vrot.slane %v314, 2
        %v316 = vadd.f32 %v314, %v315
        %v317 = vrot.slane %v316, 1
        %v318 = vadd.f32 %v316, %v317
        %v319 = vmul.f32 %v318, 0.25
        %320 = vst [vmem:[%s208 + $0x5] sm:$0x1] %v319
        %v321 = vld [vmem:[%s113] sm:$0x2]
        %v322 = vld [vmem:[%s113 + $0x2] sm:$0x2]
        %v323 = vunpack.c.l.bf16 %v321
        %v324 = vunpack.c.l.bf16 %v322
        %v327 = vlaneseq
        %v328 = vshrl.u32 %v327, 7
        %v329 = vsub.s32 3, %v328
        %v330 = vrot.slane %v323, %v329
        %v331 = vlaneseq
        %v332 = vshrl.u32 %v331, 7
        %v333 = vsub.s32 3, %v332
        %v334 = vrot.slane %v324, %v333
        %v337 = vsel %vm197, %v330, 0.0
        %v338 = vsel %vm197, %v334, 0.0
        %v339 = vadd.f32 %v337, %v338
        %v340 = vrot.slane %v339, 4
        %v341 = vadd.f32 %v339, %v340
        %v342 = vrot.slane %v341, 2
        %v343 = vadd.f32 %v341, %v342
        %v344 = vrot.slane %v343, 1
        %v345 = vadd.f32 %v343, %v344
        %v346 = vmul.f32 %v345, 0.5
        %347 = vst [vmem:[%s208 + $0x6] sm:$0x1] %v346
        %s348 = scalar_lea.vmem %s113, 2 [#allocation2]
        %v349 = vld [vmem:[%s348] sm:$0x1]
        %v350 = vunpack.c.l.bf16 %v349
        %v351 = vadd.f32 %v350, 0.0
        %s352 = scalar_lea.vmem %s136, 16
        %353 = vst [vmem:[%s352] sm:$0x1] %v351
        %v354 = vld [vmem:[%s348] sm:$0x1]
        %v355 = vunpack.c.l.bf16 %v354
        %v356 = vsel %vm143, %v355, 0.0
        %v357 = vrot.slane %v356, 4
        %v358 = vadd.f32 %v356, %v357
        %v359 = vrot.slane %v358, 2
        %v360 = vadd.f32 %v358, %v359
        %v361 = vrot.slane %v360, 1
        %v362 = vadd.f32 %v360, %v361
        %v363 = vmul.f32 %v362, 0.5
        %364 = vst [vmem:[%s352 + $0x1] sm:$0x1] %v363
        %v365 = vld [vmem:[%s348] sm:$0x1]
        %v366 = vunpack.c.l.bf16 %v365
        %v367 = vadd.f32 %v366, 0.0
        %368 = vst [vmem:[%s352 + $0x1] sm:$0x2] %v367
        %v369 = vld [vmem:[%s348] sm:$0x3]
        %v370 = vunpack.c.l.bf16 %v369
        %v372 = vrot.slane %v370, 1
        %v374 = vsel %vm143, %v372, 0.0
        %v375 = vrot.slane %v374, 4
        %v376 = vadd.f32 %v374, %v375
        %v377 = vrot.slane %v376, 2
        %v378 = vadd.f32 %v376, %v377
        %v379 = vrot.slane %v378, 1
        %v380 = vadd.f32 %v378, %v379
        %v381 = vmul.f32 %v380, 0.5
        %382 = vst [vmem:[%s352 + $0x3] sm:$0x1] %v381
        %v383 = vld [vmem:[%s348] sm:$0x2]
        %v384 = vunpack.c.l.bf16 %v383
        %v385 = vadd.f32 %v384, 0.0
        %386 = vst [vmem:[%s352 + $0x2] sm:$0x4] %v385
        %v387 = vld [vmem:[%s348] sm:$0x2]
        %v388 = vunpack.c.l.bf16 %v387
        %v390 = vrot.slane %v388, 2
        %v392 = vsel %vm143, %v390, 0.0
        %v393 = vrot.slane %v392, 4
        %v394 = vadd.f32 %v392, %v393
        %v395 = vrot.slane %v394, 2
        %v396 = vadd.f32 %v394, %v395
        %v397 = vrot.slane %v396, 1
        %v398 = vadd.f32 %v396, %v397
        %v399 = vmul.f32 %v398, 0.5
        %400 = vst [vmem:[%s352 + $0x5] sm:$0x1] %v399
        %v401 = vld [vmem:[%s348] sm:$0x2]
        %v402 = vunpack.c.l.bf16 %v401
        %v403 = vadd.f32 %v402, 0.0
        %404 = vst [vmem:[%s352 + $0x3] sm:$0x8] %v403
        %v405 = vld [vmem:[%s348] sm:$0x1]
        %v406 = vld [vmem:[%s348 + $0x2] sm:$0x1]
        %v407 = vunpack.c.l.bf16 %v405
        %v408 = vunpack.c.l.bf16 %v406
        %v409 = vsel %vm197, %v407, 0.0
        %v410 = vsel %vm197, %v408, 0.0
        %v411 = vadd.f32 %v409, %v410
        %v412 = vrot.slane %v411, 4
        %v413 = vadd.f32 %v411, %v412
        %v414 = vrot.slane %v413, 2
        %v415 = vadd.f32 %v413, %v414
        %v416 = vrot.slane %v415, 1
        %v417 = vadd.f32 %v415, %v416
        %v418 = vmul.f32 %v417, 0.5
        %s419 = scalar_lea.vmem %s136, 24
        %420 = vst [vmem:[%s419] sm:$0x1] %v418
        %v421 = vld [vmem:[%s348] sm:$0x1]
        %v422 = vld [vmem:[%s348 + $0x2] sm:$0x1]
        %v423 = vunpack.c.l.bf16 %v421
        %v424 = vunpack.c.l.bf16 %v422
        %v425 = vsel %vm143, %v423, 0.0
        %v426 = vsel %vm143, %v424, 0.0
        %v427 = vadd.f32 %v425, %v426
        %v428 = vrot.slane %v427, 4
        %v429 = vadd.f32 %v427, %v428
        %v430 = vrot.slane %v429, 2
        %v431 = vadd.f32 %v429, %v430
        %v432 = vrot.slane %v431, 1
        %v433 = vadd.f32 %v431, %v432
        %v434 = vmul.f32 %v433, 0.25
        %435 = vst [vmem:[%s419 + $0x1] sm:$0x1] %v434
        %v436 = vld [vmem:[%s348] sm:$0x1]
        %v437 = vld [vmem:[%s348 + $0x2] sm:$0x1]
        %v438 = vunpack.c.l.bf16 %v436
        %v439 = vunpack.c.l.bf16 %v437
        %v442 = vlaneseq
        %v443 = vshrl.u32 %v442, 7
        %v444 = vsub.s32 1, %v443
        %v445 = vrot.slane %v438, %v444
        %v446 = vlaneseq
        %v447 = vshrl.u32 %v446, 7
        %v448 = vsub.s32 1, %v447
        %v449 = vrot.slane %v439, %v448
        %v452 = vsel %vm197, %v445, 0.0
        %v453 = vsel %vm197, %v449, 0.0
        %v454 = vadd.f32 %v452, %v453
        %v455 = vrot.slane %v454, 4
        %v456 = vadd.f32 %v454, %v455
        %v457 = vrot.slane %v456, 2
        %v458 = vadd.f32 %v456, %v457
        %v459 = vrot.slane %v458, 1
        %v460 = vadd.f32 %v458, %v459
        %v461 = vmul.f32 %v460, 0.5
        %462 = vst [vmem:[%s419 + $0x2] sm:$0x1] %v461
        %v463 = vld [vmem:[%s348] sm:$0x3]
        %v464 = vld [vmem:[%s348 + $0x2] sm:$0x3]
        %v465 = vunpack.c.l.bf16 %v463
        %v466 = vunpack.c.l.bf16 %v464
        %v469 = vrot.slane %v465, 1
        %v470 = vrot.slane %v466, 1
        %v473 = vsel %vm143, %v469, 0.0
        %v474 = vsel %vm143, %v470, 0.0
        %v475 = vadd.f32 %v473, %v474
        %v476 = vrot.slane %v475, 4
        %v477 = vadd.f32 %v475, %v476
        %v478 = vrot.slane %v477, 2
        %v479 = vadd.f32 %v477, %v478
        %v480 = vrot.slane %v479, 1
        %v481 = vadd.f32 %v479, %v480
        %v482 = vmul.f32 %v481, 0.25
        %483 = vst [vmem:[%s419 + $0x3] sm:$0x1] %v482
        %v484 = vld [vmem:[%s348] sm:$0x2]
        %v485 = vld [vmem:[%s348 + $0x2] sm:$0x2]
        %v486 = vunpack.c.l.bf16 %v484
        %v487 = vunpack.c.l.bf16 %v485
        %v490 = vlaneseq
        %v491 = vshrl.u32 %v490, 7
        %v492 = vsub.s32 2, %v491
        %v493 = vrot.slane %v486, %v492
        %v494 = vlaneseq
        %v495 = vshrl.u32 %v494, 7
        %v496 = vsub.s32 2, %v495
        %v497 = vrot.slane %v487, %v496
        %v500 = vsel %vm197, %v493, 0.0
        %v501 = vsel %vm197, %v497, 0.0
        %v502 = vadd.f32 %v500, %v501
        %v503 = vrot.slane %v502, 4
        %v504 = vadd.f32 %v502, %v503
        %v505 = vrot.slane %v504, 2
        %v506 = vadd.f32 %v504, %v505
        %v507 = vrot.slane %v506, 1
        %v508 = vadd.f32 %v506, %v507
        %v509 = vmul.f32 %v508, 0.5
        %510 = vst [vmem:[%s419 + $0x4] sm:$0x1] %v509
        %v511 = vld [vmem:[%s348] sm:$0x2]
        %v512 = vld [vmem:[%s348 + $0x2] sm:$0x2]
        %v513 = vunpack.c.l.bf16 %v511
        %v514 = vunpack.c.l.bf16 %v512
        %v517 = vrot.slane %v513, 2
        %v518 = vrot.slane %v514, 2
        %v521 = vsel %vm143, %v517, 0.0
        %v522 = vsel %vm143, %v518, 0.0
        %v523 = vadd.f32 %v521, %v522
        %v524 = vrot.slane %v523, 4
        %v525 = vadd.f32 %v523, %v524
        %v526 = vrot.slane %v525, 2
        %v527 = vadd.f32 %v525, %v526
        %v528 = vrot.slane %v527, 1
        %v529 = vadd.f32 %v527, %v528
        %v530 = vmul.f32 %v529, 0.25
        %531 = vst [vmem:[%s419 + $0x5] sm:$0x1] %v530
        %v532 = vld [vmem:[%s348] sm:$0x2]
        %v533 = vld [vmem:[%s348 + $0x2] sm:$0x2]
        %v534 = vunpack.c.l.bf16 %v532
        %v535 = vunpack.c.l.bf16 %v533
        %v538 = vlaneseq
        %v539 = vshrl.u32 %v538, 7
        %v540 = vsub.s32 3, %v539
        %v541 = vrot.slane %v534, %v540
        %v542 = vlaneseq
        %v543 = vshrl.u32 %v542, 7
        %v544 = vsub.s32 3, %v543
        %v545 = vrot.slane %v535, %v544
        %v548 = vsel %vm197, %v541, 0.0
        %v549 = vsel %vm197, %v545, 0.0
        %v550 = vadd.f32 %v548, %v549
        %v551 = vrot.slane %v550, 4
        %v552 = vadd.f32 %v550, %v551
        %v553 = vrot.slane %v552, 2
        %v554 = vadd.f32 %v552, %v553
        %v555 = vrot.slane %v554, 1
        %v556 = vadd.f32 %v554, %v555
        %v557 = vmul.f32 %v556, 0.5
        %558 = vst [vmem:[%s419 + $0x6] sm:$0x1] %v557
        %s559 = scalar_lea.vmem %s113, 4 [#allocation2]
        %v560 = vld [vmem:[%s559] sm:$0x1]
        %v561 = vunpack.c.l.bf16 %v560
        %v562 = vadd.f32 %v561, 0.0
        %s563 = scalar_lea.vmem %s136, 32
        %564 = vst [vmem:[%s563] sm:$0x1] %v562
        %v565 = vld [vmem:[%s559] sm:$0x1]
        %v566 = vunpack.c.l.bf16 %v565
        %v567 = vsel %vm143, %v566, 0.0
        %v568 = vrot.slane %v567, 4
        %v569 = vadd.f32 %v567, %v568
        %v570 = vrot.slane %v569, 2
        %v571 = vadd.f32 %v569, %v570
        %v572 = vrot.slane %v571, 1
        %v573 = vadd.f32 %v571, %v572
        %v574 = vmul.f32 %v573, 0.5
        %575 = vst [vmem:[%s563 + $0x1] sm:$0x1] %v574
        %v576 = vld [vmem:[%s559] sm:$0x1]
        %v577 = vunpack.c.l.bf16 %v576
        %v578 = vadd.f32 %v577, 0.0
        %579 = vst [vmem:[%s563 + $0x1] sm:$0x2] %v578
        %v580 = vld [vmem:[%s559] sm:$0x3]
        %v581 = vunpack.c.l.bf16 %v580
        %v583 = vrot.slane %v581, 1
        %v585 = vsel %vm143, %v583, 0.0
        %v586 = vrot.slane %v585, 4
        %v587 = vadd.f32 %v585, %v586
        %v588 = vrot.slane %v587, 2
        %v589 = vadd.f32 %v587, %v588
        %v590 = vrot.slane %v589, 1
        %v591 = vadd.f32 %v589, %v590
        %v592 = vmul.f32 %v591, 0.5
        %593 = vst [vmem:[%s563 + $0x3] sm:$0x1] %v592
        %v594 = vld [vmem:[%s559] sm:$0x2]
        %v595 = vunpack.c.l.bf16 %v594
        %v596 = vadd.f32 %v595, 0.0
        %597 = vst [vmem:[%s563 + $0x2] sm:$0x4] %v596
        %v598 = vld [vmem:[%s559] sm:$0x2]
        %v599 = vunpack.c.l.bf16 %v598
        %v601 = vrot.slane %v599, 2
        %v603 = vsel %vm143, %v601, 0.0
        %v604 = vrot.slane %v603, 4
        %v605 = vadd.f32 %v603, %v604
        %v606 = vrot.slane %v605, 2
        %v607 = vadd.f32 %v605, %v606
        %v608 = vrot.slane %v607, 1
        %v609 = vadd.f32 %v607, %v608
        %v610 = vmul.f32 %v609, 0.5
        %611 = vst [vmem:[%s563 + $0x5] sm:$0x1] %v610
        %v612 = vld [vmem:[%s559] sm:$0x2]
        %v613 = vunpack.c.l.bf16 %v612
        %v614 = vadd.f32 %v613, 0.0
        %615 = vst [vmem:[%s563 + $0x3] sm:$0x8] %v614
        %v616 = vld [vmem:[%s559] sm:$0x1]
        %v617 = vld [vmem:[%s559 + $0x2] sm:$0x1]
        %v618 = vunpack.c.l.bf16 %v616
        %v619 = vunpack.c.l.bf16 %v617
        %v620 = vsel %vm197, %v618, 0.0
        %v621 = vsel %vm197, %v619, 0.0
        %v622 = vadd.f32 %v620, %v621
        %v623 = vrot.slane %v622, 4
        %v624 = vadd.f32 %v622, %v623
        %v625 = vrot.slane %v624, 2
        %v626 = vadd.f32 %v624, %v625
        %v627 = vrot.slane %v626, 1
        %v628 = vadd.f32 %v626, %v627
        %v629 = vmul.f32 %v628, 0.5
        %s630 = scalar_lea.vmem %s136, 40
        %631 = vst [vmem:[%s630] sm:$0x1] %v629
        %v632 = vld [vmem:[%s559] sm:$0x1]
        %v633 = vld [vmem:[%s559 + $0x2] sm:$0x1]
        %v634 = vunpack.c.l.bf16 %v632
        %v635 = vunpack.c.l.bf16 %v633
        %v636 = vsel %vm143, %v634, 0.0
        %v637 = vsel %vm143, %v635, 0.0
        %v638 = vadd.f32 %v636, %v637
        %v639 = vrot.slane %v638, 4
        %v640 = vadd.f32 %v638, %v639
        %v641 = vrot.slane %v640, 2
        %v642 = vadd.f32 %v640, %v641
        %v643 = vrot.slane %v642, 1
        %v644 = vadd.f32 %v642, %v643
        %v645 = vmul.f32 %v644, 0.25
        %646 = vst [vmem:[%s630 + $0x1] sm:$0x1] %v645
        %v647 = vld [vmem:[%s559] sm:$0x1]
        %v648 = vld [vmem:[%s559 + $0x2] sm:$0x1]
        %v649 = vunpack.c.l.bf16 %v647
        %v650 = vunpack.c.l.bf16 %v648
        %v653 = vlaneseq
        %v654 = vshrl.u32 %v653, 7
        %v655 = vsub.s32 1, %v654
        %v656 = vrot.slane %v649, %v655
        %v657 = vlaneseq
        %v658 = vshrl.u32 %v657, 7
        %v659 = vsub.s32 1, %v658
        %v660 = vrot.slane %v650, %v659
        %v663 = vsel %vm197, %v656, 0.0
        %v664 = vsel %vm197, %v660, 0.0
        %v665 = vadd.f32 %v663, %v664
        %v666 = vrot.slane %v665, 4
        %v667 = vadd.f32 %v665, %v666
        %v668 = vrot.slane %v667, 2
        %v669 = vadd.f32 %v667, %v668
        %v670 = vrot.slane %v669, 1
        %v671 = vadd.f32 %v669, %v670
        %v672 = vmul.f32 %v671, 0.5
        %673 = vst [vmem:[%s630 + $0x2] sm:$0x1] %v672
        %v674 = vld [vmem:[%s559] sm:$0x3]
        %v675 = vld [vmem:[%s559 + $0x2] sm:$0x3]
        %v676 = vunpack.c.l.bf16 %v674
        %v677 = vunpack.c.l.bf16 %v675
        %v680 = vrot.slane %v676, 1
        %v681 = vrot.slane %v677, 1
        %v684 = vsel %vm143, %v680, 0.0
        %v685 = vsel %vm143, %v681, 0.0
        %v686 = vadd.f32 %v684, %v685
        %v687 = vrot.slane %v686, 4
        %v688 = vadd.f32 %v686, %v687
        %v689 = vrot.slane %v688, 2
        %v690 = vadd.f32 %v688, %v689
        %v691 = vrot.slane %v690, 1
        %v692 = vadd.f32 %v690, %v691
        %v693 = vmul.f32 %v692, 0.25
        %694 = vst [vmem:[%s630 + $0x3] sm:$0x1] %v693
        %v695 = vld [vmem:[%s559] sm:$0x2]
        %v696 = vld [vmem:[%s559 + $0x2] sm:$0x2]
        %v697 = vunpack.c.l.bf16 %v695
        %v698 = vunpack.c.l.bf16 %v696
        %v701 = vlaneseq
        %v702 = vshrl.u32 %v701, 7
        %v703 = vsub.s32 2, %v702
        %v704 = vrot.slane %v697, %v703
        %v705 = vlaneseq
        %v706 = vshrl.u32 %v705, 7
        %v707 = vsub.s32 2, %v706
        %v708 = vrot.slane %v698, %v707
        %v711 = vsel %vm197, %v704, 0.0
        %v712 = vsel %vm197, %v708, 0.0
        %v713 = vadd.f32 %v711, %v712
        %v714 = vrot.slane %v713, 4
        %v715 = vadd.f32 %v713, %v714
        %v716 = vrot.slane %v715, 2
        %v717 = vadd.f32 %v715, %v716
        %v718 = vrot.slane %v717, 1
        %v719 = vadd.f32 %v717, %v718
        %v720 = vmul.f32 %v719, 0.5
        %721 = vst [vmem:[%s630 + $0x4] sm:$0x1] %v720
        %v722 = vld [vmem:[%s559] sm:$0x2]
        %v723 = vld [vmem:[%s559 + $0x2] sm:$0x2]
        %v724 = vunpack.c.l.bf16 %v722
        %v725 = vunpack.c.l.bf16 %v723
        %v728 = vrot.slane %v724, 2
        %v729 = vrot.slane %v725, 2
        %v732 = vsel %vm143, %v728, 0.0
        %v733 = vsel %vm143, %v729, 0.0
        %v734 = vadd.f32 %v732, %v733
        %v735 = vrot.slane %v734, 4
        %v736 = vadd.f32 %v734, %v735
        %v737 = vrot.slane %v736, 2
        %v738 = vadd.f32 %v736, %v737
        %v739 = vrot.slane %v738, 1
        %v740 = vadd.f32 %v738, %v739
        %v741 = vmul.f32 %v740, 0.25
        %742 = vst [vmem:[%s630 + $0x5] sm:$0x1] %v741
        %v743 = vld [vmem:[%s559] sm:$0x2]
        %v744 = vld [vmem:[%s559 + $0x2] sm:$0x2]
        %v745 = vunpack.c.l.bf16 %v743
        %v746 = vunpack.c.l.bf16 %v744
        %v749 = vlaneseq
        %v750 = vshrl.u32 %v749, 7
        %v751 = vsub.s32 3, %v750
        %v752 = vrot.slane %v745, %v751
        %v753 = vlaneseq
        %v754 = vshrl.u32 %v753, 7
        %v755 = vsub.s32 3, %v754
        %v756 = vrot.slane %v746, %v755
        %v759 = vsel %vm197, %v752, 0.0
        %v760 = vsel %vm197, %v756, 0.0
        %v761 = vadd.f32 %v759, %v760
        %v762 = vrot.slane %v761, 4
        %v763 = vadd.f32 %v761, %v762
        %v764 = vrot.slane %v763, 2
        %v765 = vadd.f32 %v763, %v764
        %v766 = vrot.slane %v765, 1
        %v767 = vadd.f32 %v765, %v766
        %v768 = vmul.f32 %v767, 0.5
        %769 = vst [vmem:[%s630 + $0x6] sm:$0x1] %v768
        %s770 = scalar_lea.vmem %s113, 6 [#allocation2]
        %v771 = vld [vmem:[%s770] sm:$0x1]
        %v772 = vunpack.c.l.bf16 %v771
        %v773 = vadd.f32 %v772, 0.0
        %s774 = scalar_lea.vmem %s136, 48
        %775 = vst [vmem:[%s774] sm:$0x1] %v773
        %v776 = vld [vmem:[%s770] sm:$0x1]
        %v777 = vunpack.c.l.bf16 %v776
        %v778 = vsel %vm143, %v777, 0.0
        %v779 = vrot.slane %v778, 4
        %v780 = vadd.f32 %v778, %v779
        %v781 = vrot.slane %v780, 2
        %v782 = vadd.f32 %v780, %v781
        %v783 = vrot.slane %v782, 1
        %v784 = vadd.f32 %v782, %v783
        %v785 = vmul.f32 %v784, 0.5
        %786 = vst [vmem:[%s774 + $0x1] sm:$0x1] %v785
        %v787 = vld [vmem:[%s770] sm:$0x1]
        %v788 = vunpack.c.l.bf16 %v787
        %v789 = vadd.f32 %v788, 0.0
        %790 = vst [vmem:[%s774 + $0x1] sm:$0x2] %v789
        %v791 = vld [vmem:[%s770] sm:$0x3]
        %v792 = vunpack.c.l.bf16 %v791
        %v794 = vrot.slane %v792, 1
        %v796 = vsel %vm143, %v794, 0.0
        %v797 = vrot.slane %v796, 4
        %v798 = vadd.f32 %v796, %v797
        %v799 = vrot.slane %v798, 2
        %v800 = vadd.f32 %v798, %v799
        %v801 = vrot.slane %v800, 1
        %v802 = vadd.f32 %v800, %v801
        %v803 = vmul.f32 %v802, 0.5
        %804 = vst [vmem:[%s774 + $0x3] sm:$0x1] %v803
        %v805 = vld [vmem:[%s770] sm:$0x2]
        %v806 = vunpack.c.l.bf16 %v805
        %v807 = vadd.f32 %v806, 0.0
        %808 = vst [vmem:[%s774 + $0x2] sm:$0x4] %v807
        %v809 = vld [vmem:[%s770] sm:$0x2]
        %v810 = vunpack.c.l.bf16 %v809
        %v812 = vrot.slane %v810, 2
        %v814 = vsel %vm143, %v812, 0.0
        %v815 = vrot.slane %v814, 4
        %v816 = vadd.f32 %v814, %v815
        %v817 = vrot.slane %v816, 2
        %v818 = vadd.f32 %v816, %v817
        %v819 = vrot.slane %v818, 1
        %v820 = vadd.f32 %v818, %v819
        %v821 = vmul.f32 %v820, 0.5
        %822 = vst [vmem:[%s774 + $0x5] sm:$0x1] %v821
        %v823 = vld [vmem:[%s770] sm:$0x2]
        %v824 = vunpack.c.l.bf16 %v823
        %v825 = vadd.f32 %v824, 0.0
        %826 = vst [vmem:[%s774 + $0x3] sm:$0x8] %v825
        %p827 = scmp.lt.s32.totalorder %s15, 1
        %s828 = scalar_select %p827, %s15, 1
        %s829 = smul.addr %s828, 7
        %s830 = smul.addr %s829, 8
        %s831 = scalar_lea.vmem %s1, %s830
        // Predicated region
        $region29: #{vgg_forward_pallas.5} parent=23 // pred_check
          %p832 = pneg %p59
        $region30: #{vgg_forward_pallas.5} parent=23 // pred_check_branch
          %834 = sbr.rel (%p832) target = $region32
        $region31: #{vgg_forward_pallas.5} parent=23 // pred_region
          _
        $region32: #{vgg_forward_pallas.5} parent=23 // pred_fallthru
          _
      $region24: #{vgg_forward_pallas.5} parent=5 // pred_fallthru
        _
      %p835 = scmp.le.s32.totalorder 2, %s10
      // Predicated region
      $region33: #{vgg_forward_pallas.5} parent=5 // pred_check
        %p836 = pneg %p835
      $region34: #{vgg_forward_pallas.5} parent=5 // pred_check_branch
        %838 = sbr.rel (%p836) target = $region36
      $region35: #{vgg_forward_pallas.5} parent=5 // pred_region
        %s839 = ssub.s32 %s10, 2
        // Predicated region
        $region37: #{vgg_forward_pallas.5} parent=35 // pred_check
          %p840 = pneg %p65
        $region38: #{vgg_forward_pallas.5} parent=35 // pred_check_branch
          %842 = sbr.rel (%p840) target = $region40
        $region39: #{vgg_forward_pallas.5} parent=35 // pred_region
          %p843 = scmp.lt.s32.totalorder %s16, 1
          %s844 = scalar_select %p843, %s16, 1
          %s845 = smul.addr %s844, 7
          %s846 = smul.addr %s845, 8
          %s847 = scalar_lea.vmem %s1, %s846
        $region40: #{vgg_forward_pallas.5} parent=35 // pred_fallthru
          _
      $region36: #{vgg_forward_pallas.5} parent=5 // pred_fallthru
        _
    $region6: #{vgg_forward_pallas.5} parent=1 // loop_footer
      %s14 = sadd.s32 1, %s10
    $region7: #{vgg_forward_pallas.5} parent=1 // loop_footer_branch
      %9 = sbr.rel target = $region3
    $region8: #{vgg_forward_pallas.5} parent=1 // loop_exit
      _
    %848 = vsyncpa [#allocation3], 1
    %s849 = scalar_lea.sflag [#allocation3], 1
    %850 = vsyncpa %s849, 1

// kernel: vgg_forward_pallas.4
$region0: #{vgg_forward_pallas.4}
  #allocation0 [shape = 'u32[]', space=smem, size = 0x4, offset = 0x4, fixed_abs, tag = 'smem constant byte address 0x4 - core index']
  #allocation1 [shape = 'u32[144,128]{1,0:T(1,128)}', space=vmem, size = 0x12000, scoped, tag = 'internal scratch']
  #allocation2 [shape = 'f32[64,128]{1,0:T(8,128)}', space=vmem, size = 0x8000, scoped, tag = 'scratch operand']
  %s0 = inlined_call_operand.hbm [shape: bf16[2,10,10,128], index: 0, kind: input, shape index: {}]
  %s1 = inlined_call_operand.hbm [shape: bf16[9,128,128], index: 1, kind: input, shape index: {}]
  %s2 = inlined_call_operand.hbm [shape: f32[1,128], index: 2, kind: input, shape index: {}]
  %s3 = inlined_call_operand.hbm [shape: f32[1,128], index: 3, kind: input, shape index: {}]
  %s4 = inlined_call_operand.hbm [shape: bf16[2,4,4,128], index: 4, kind: output, shape index: {}]
  %s5 = sld [smem:[#allocation0]]
  $region65: #{vgg_forward_pallas.4} parent=0
    _
  %s7 = ssub.s32 1, %s5
  %s8 = scalar_select 0, %s7, %s5
  $region1: #{vgg_forward_pallas.4} parent=0
    #allocation3 [shape = 'u8[81920]{0}', space=vmem, size = 0x14000, scoped, tag = 'input window, operand 0']
    #allocation4 [shape = 's32[2]{0}', space=sflag, size = 0x8, scoped, tag = 'scoped memory for vgg_forward_pallas.4']
    #allocation5 [shape = 's32[2]{0}', space=sflag, size = 0x8, scoped, tag = 'scoped memory for vgg_forward_pallas.4']
    #allocation6 [shape = 'u8[294912]{0}', space=vmem, size = 0x48000, scoped, tag = 'input window, operand 1, single buffered']
    #allocation7 [shape = 's32[1]{0}', space=sflag, size = 0x4, scoped, tag = 'scoped memory for vgg_forward_pallas.4']
    #allocation8 [shape = 'u8[512]{0}', space=vmem, size = 0x400, scoped, tag = 'input window, operand 2, single buffered']
    #allocation9 [shape = 'u8[512]{0}', space=vmem, size = 0x400, scoped, tag = 'input window, operand 3, single buffered']
    #allocation10 [shape = 's32[1]{0}', space=sflag, size = 0x4, scoped, tag = 'scoped memory for vgg_forward_pallas.4']
    #allocation11 [shape = 'u8[8192]{0}', space=vmem, size = 0x2000, scoped, tag = 'output window, operand 0']
    %9 = vsyncpa [#allocation4], 0
    %s10 = scalar_lea.sflag [#allocation4], 1
    %11 = vsyncpa %s10, 0
    %12 = vsyncpa [#allocation7], 0
    %13 = vsyncpa [#allocation10], 0
    %14 = vsyncpa [#allocation5], 0
    %s15 = scalar_lea.sflag [#allocation5], 1
    %16 = vsyncpa %s15, 0
    loop: start=0, step=1, limit=4
    $region2: #{vgg_forward_pallas.4} parent=1 // loop_pre_header
      _
    $region3: #{vgg_forward_pallas.4} parent=1 // loop_header
      %s18 = sphi 0, %s22
      %p19 = scmp.ge.s32.totalorder %s18, 4
      %s25 = sphi 0, %s37
      %s26 = sphi 0, %s33
      %s27 = sphi 0, %s25
      %s28 = sphi 0, %s26
      %s29 = sphi 0, %s27
      %s30 = sphi 0, %s28
      %s40 = sphi 0, %s42
      %s43 = sphi 0, %s40
      %s44 = sphi 0, %s43
      %s60 = sphi 0, %s44
      %s64 = sphi 0, %s64
      %s66 = sphi 0, %s64
      %s67 = sphi 0, %s66
      %s81 = sphi 0, %s67
      %s85 = sphi 0, %s85
      %s87 = sphi 0, %s85
      %s88 = sphi 0, %s87
      %s102 = sphi 0, %s88
      %s106 = sphi 0, %s106
      %s108 = sphi 0, %s106
      %s109 = sphi 0, %s108
      %s123 = sphi 0, %s109
      %s131 = sphi 0, %s133
      %s134 = sphi 0, %s131
      %s135 = sphi 0, %s134
      %s151 = sphi 0, %s135
    $region4: #{vgg_forward_pallas.4} parent=1 // loop_header_branch
      %21 = sbr.rel (%p19) target = $region8
    $region5: #{vgg_forward_pallas.4} parent=1 // loop_body
      %s23 = ssub.s32 %s18, 1
      %s24 = ssub.s32 %s18, 2
      %s31 = sadd.s32 1, %s26
      %p32 = scmp.ge.s32.totalorder %s31, 1
      %s33 = scalar_select %p32, 0, %s31
      %s34 = sadd.s32 1, %s25
      %s35 = scalar_select %p32, %s34, %s25
      %p36 = scmp.ge.s32.totalorder %s35, 2
      %s37 = scalar_select %p36, 0, %s35
      %s38 = ssub.s32 %s25, %s37
      %p39 = scmp.eq.s32.totalorder %s38, 0
      %s41 = sadd.s32 %s40, 1
      %s42 = scalar_select %p39, %s40, %s41
      %p45 = pneg %p39
      %p46 = scmp.eq.s32.totalorder %s18, 1
      %p47 = por %p45, %p46
      %p48 = scmp.ne.s32.totalorder %s40, %s43
      %p49 = scmp.eq.s32.totalorder %s18, 0
      %p50 = por %p48, %p49
      %p51 = scmp.ne.s32.totalorder %s40, %s43
      %p52 = scmp.eq.s32.totalorder %s23, 1
      %p53 = por %p51, %p52
      %p54 = scmp.ne.s32.totalorder %s43, %s44
      %p55 = scmp.eq.s32.totalorder %s23, 0
      %p56 = por %p54, %p55
      %p57 = scmp.ne.s32.totalorder %s43, %s44
      %p58 = scmp.eq.s32.totalorder %s24, 1
      %p59 = por %p57, %p58
      %p61 = scmp.ne.s32.totalorder %s44, %s60
      %p62 = scmp.eq.s32.totalorder %s24, 0
      %p63 = por %p61, %p62
      %s65 = sadd.s32 %s64, 1
      %p68 = scmp.eq.s32.totalorder %s18, 1
      %p69 = scmp.ne.s32.totalorder %s64, %s66
      %p70 = scmp.eq.s32.totalorder %s18, 0
      %p71 = por %p69, %p70
      %p72 = scmp.ne.s32.totalorder %s64, %s66
      %p73 = scmp.eq.s32.totalorder %s23, 1
      %p74 = por %p72, %p73
      %p75 = scmp.ne.s32.totalorder %s66, %s67
      %p76 = scmp.eq.s32.totalorder %s23, 0
      %p77 = por %p75, %p76
      %p78 = scmp.ne.s32.totalorder %s66, %s67
      %p79 = scmp.eq.s32.totalorder %s24, 1
      %p80 = por %p78, %p79
      %p82 = scmp.ne.s32.totalorder %s67, %s81
      %p83 = scmp.eq.s32.totalorder %s24, 0
      %p84 = por %p82, %p83
      %s86 = sadd.s32 %s85, 1
      %p89 = scmp.eq.s32.totalorder %s18, 1
      %p90 = scmp.ne.s32.totalorder %s85, %s87
      %p91 = scmp.eq.s32.totalorder %s18, 0
      %p92 = por %p90, %p91
      %p93 = scmp.ne.s32.totalorder %s85, %s87
      %p94 = scmp.eq.s32.totalorder %s23, 1
      %p95 = por %p93, %p94
      %p96 = scmp.ne.s32.totalorder %s87, %s88
      %p97 = scmp.eq.s32.totalorder %s23, 0
      %p98 = por %p96, %p97
      %p99 = scmp.ne.s32.totalorder %s87, %s88
      %p100 = scmp.eq.s32.totalorder %s24, 1
      %p101 = por %p99, %p100
      %p103 = scmp.ne.s32.totalorder %s88, %s102
      %p104 = scmp.eq.s32.totalorder %s24, 0
      %p105 = por %p103, %p104
      %s107 = sadd.s32 %s106, 1
      %p110 = scmp.eq.s32.totalorder %s18, 1
      %p111 = scmp.ne.s32.totalorder %s106, %s108
      %p112 = scmp.eq.s32.totalorder %s18, 0
      %p113 = por %p111, %p112
      %p114 = scmp.ne.s32.totalorder %s106, %s108
      %p115 = scmp.eq.s32.totalorder %s23, 1
      %p116 = por %p114, %p115
      %p117 = scmp.ne.s32.totalorder %s108, %s109
      %p118 = scmp.eq.s32.totalorder %s23, 0
      %p119 = por %p117, %p118
      %p120 = scmp.ne.s32.totalorder %s108, %s109
      %p121 = scmp.eq.s32.totalorder %s24, 1
      %p122 = por %p120, %p121
      %p124 = scmp.ne.s32.totalorder %s109, %s123
      %p125 = scmp.eq.s32.totalorder %s24, 0
      %p126 = por %p124, %p125
      %s127 = ssub.s32 %s25, %s37
      %s128 = ssub.s32 %s26, %s33
      %s129 = sor.u32 %s127, %s128
      %p130 = scmp.eq.s32.totalorder %s129, 0
      %s132 = sadd.s32 %s131, 1
      %s133 = scalar_select %p130, %s131, %s132
      %p136 = pneg %p130
      %p137 = scmp.eq.s32.totalorder %s18, 1
      %p138 = por %p136, %p137
      %p139 = scmp.ne.s32.totalorder %s131, %s134
      %p140 = scmp.eq.s32.totalorder %s18, 0
      %p141 = por %p139, %p140
      %p142 = scmp.ne.s32.totalorder %s131, %s134
      %p143 = scmp.eq.s32.totalorder %s23, 1
      %p144 = por %p142, %p143
      %p145 = scmp.ne.s32.totalorder %s134, %s135
      %p146 = scmp.eq.s32.totalorder %s23, 0
      %p147 = por %p145, %p146
      %p148 = scmp.ne.s32.totalorder %s134, %s135
      %p149 = scmp.eq.s32.totalorder %s24, 1
      %p150 = por %p148, %p149
      %p152 = scmp.ne.s32.totalorder %s135, %s151
      %p153 = scmp.eq.s32.totalorder %s24, 0
      %p154 = por %p152, %p153
      %p155 = scmp.le.s32.totalorder 1, %s18
      %p156 = scmp.lt.s32.totalorder %s18, 3
      %p157 = pnand %p155, %p156
      %p158 = pneg %p157
      // Predicated region
      $region9: #{vgg_forward_pallas.4} parent=5 // pred_check
        _
      $region10: #{vgg_forward_pallas.4} parent=5 // pred_check_branch
        %160 = sbr.rel (%p157) target = $region12
      $region11: #{vgg_forward_pallas.4} parent=5 // pred_region
        %s161 = ssub.s32 %s18, 1
        // Predicated region
        $region13: #{vgg_forward_pallas.4} parent=11 // pred_check
          %p162 = pneg %p77
        $region14: #{vgg_forward_pallas.4} parent=11 // pred_check_branch
          %164 = sbr.rel (%p162) target = $region16
        $region15: #{vgg_forward_pallas.4} parent=11 // pred_region
          %s166 = ssub.s32 9216, 9216
          %167 = vsyncadd [#allocation7], %s166
          %s168 = sshll.u32 [#allocation6], 4
          %s169 = int_to_ptr.vmem [resolvable:$true] %s168
          %174 = dma.hbm_to_vmem [thread:$0]  %s1, 9216, %s169, [#allocation7], 64, 64, 4
        $region16: #{vgg_forward_pallas.4} parent=11 // pred_fallthru
          _
        // Predicated region
        $region17: #{vgg_forward_pallas.4} parent=11 // pred_check
          %p175 = pneg %p98
        $region18: #{vgg_forward_pallas.4} parent=11 // pred_check_branch
          %177 = sbr.rel (%p175) target = $region20
        $region19: #{vgg_forward_pallas.4} parent=11 // pred_region
          %s179 = ssub.s32 16, 16
          %180 = vsyncadd [#allocation7], %s179
          %s182 = sshll.u32 [#allocation8], 4
          %s183 = int_to_ptr.vmem [resolvable:$true] %s182
          %185 = dma.hbm_to_vmem [thread:$0]  %s2, 16, %s183, [#allocation7]
        $region20: #{vgg_forward_pallas.4} parent=11 // pred_fallthru
          _
        // Predicated region
        $region21: #{vgg_forward_pallas.4} parent=11 // pred_check
          %p186 = pneg %p119
        $region22: #{vgg_forward_pallas.4} parent=11 // pred_check_branch
          %188 = sbr.rel (%p186) target = $region24
        $region23: #{vgg_forward_pallas.4} parent=11 // pred_region
          %s190 = ssub.s32 16, 16
          %191 = vsyncadd [#allocation10], %s190
          %s193 = sshll.u32 [#allocation9], 4
          %s194 = int_to_ptr.vmem [resolvable:$true] %s193
          %196 = dma.hbm_to_vmem [thread:$0]  %s3, 16, %s194, [#allocation10]
        $region24: #{vgg_forward_pallas.4} parent=11 // pred_fallthru
          _
      $region12: #{vgg_forward_pallas.4} parent=5 // pred_fallthru
        _
      %p197 = scmp.lt.s32.totalorder %s18, 2
      // Predicated region
      $region25: #{vgg_forward_pallas.4} parent=5 // pred_check
        %p198 = pneg %p197
      $region26: #{vgg_forward_pallas.4} parent=5 // pred_check_branch
        %200 = sbr.rel (%p198) target = $region28
      $region27: #{vgg_forward_pallas.4} parent=5 // pred_region
        // Predicated region
        $region29: #{vgg_forward_pallas.4} parent=27 // pred_check
          %p201 = pneg %p50
        $region30: #{vgg_forward_pallas.4} parent=27 // pred_check_branch
          %203 = sbr.rel (%p201) target = $region32
        $region31: #{vgg_forward_pallas.4} parent=27 // pred_region
          %s204 = sand.u32 %s40, 1
          %s205 = scalar_lea.sflag [#allocation4], %s204
          %s206 = sand.u32 %s40, 1
          %s207 = smul.addr %s206, 80
          %s208 = scalar_lea.vmem [#allocation3], %s207
          %s210 = ssub.s32 1280, 1280
          %211 = vsyncadd %s205, %s210
          %s212 = smul.addr %s25, 20
          %s213 = smul.addr %s212, 64
          %s214 = scalar_lea.hbm %s0, %s213
          %s215 = sshll.u32 %s208, 4
          %s216 = int_to_ptr.vmem [resolvable:$true] %s215
          %221 = dma.hbm_to_vmem [thread:$0]  %s214, 1280, %s216, %s205, 64, 64, 4
        $region32: #{vgg_forward_pallas.4} parent=27 // pred_fallthru
          _
      $region28: #{vgg_forward_pallas.4} parent=5 // pred_fallthru
        _
      %p222 = scmp.le.s32.totalorder 1, %s18
      %p223 = scmp.lt.s32.totalorder %s18, 3
      %p224 = pnand %p222, %p223
      %p225 = pneg %p224
      // Predicated region
      $region33: #{vgg_forward_pallas.4} parent=5 // pred_check
        _
      $region34: #{vgg_forward_pallas.4} parent=5 // pred_check_branch
        %227 = sbr.rel (%p224) target = $region36
      $region35: #{vgg_forward_pallas.4} parent=5 // pred_region
        %s228 = ssub.s32 %s18, 1
        %s229 = sand.u32 %s43, 1
        %s230 = scalar_lea.sflag [#allocation4], %s229
        %s231 = sand.u32 %s43, 1
        %s232 = smul.addr %s231, 80
        %s233 = scalar_lea.vmem [#allocation3], %s232
        // Predicated region
        $region37: #{vgg_forward_pallas.4} parent=35 // pred_check
          %p234 = pneg %p56
        $region38: #{vgg_forward_pallas.4} parent=35 // pred_check_branch
          %236 = sbr.rel (%p234) target = $region40
        $region39: #{vgg_forward_pallas.4} parent=35 // pred_region
          %237 = dma.done %s230, 1280
        $region40: #{vgg_forward_pallas.4} parent=35 // pred_fallthru
          _
        // Predicated region
        $region41: #{vgg_forward_pallas.4} parent=35 // pred_check
          %p238 = pneg %p77
        $region42: #{vgg_forward_pallas.4} parent=35 // pred_check_branch
          %240 = sbr.rel (%p238) target = $region44
        $region43: #{vgg_forward_pallas.4} parent=35 // pred_region
          %241 = dma.done [#allocation7], 9216
        $region44: #{vgg_forward_pallas.4} parent=35 // pred_fallthru
          _
        // Predicated region
        $region45: #{vgg_forward_pallas.4} parent=35 // pred_check
          %p242 = pneg %p98
        $region46: #{vgg_forward_pallas.4} parent=35 // pred_check_branch
          %244 = sbr.rel (%p242) target = $region48
        $region47: #{vgg_forward_pallas.4} parent=35 // pred_region
          %245 = dma.done [#allocation7], 16
        $region48: #{vgg_forward_pallas.4} parent=35 // pred_fallthru
          _
        // Predicated region
        $region49: #{vgg_forward_pallas.4} parent=35 // pred_check
          %p246 = pneg %p119
        $region50: #{vgg_forward_pallas.4} parent=35 // pred_check_branch
          %248 = sbr.rel (%p246) target = $region52
        $region51: #{vgg_forward_pallas.4} parent=35 // pred_region
          %249 = dma.done [#allocation10], 16
        $region52: #{vgg_forward_pallas.4} parent=35 // pred_fallthru
          _
        %s250 = sand.u32 %s43, 1
        %s251 = scalar_lea.sflag [#allocation4], %s250
        %s252 = sand.u32 %s43, 1
        %s253 = smul.addr %s252, 80
        %s254 = scalar_lea.vmem [#allocation3], %s253
        %p255 = pneg %p56
        %p256 = pneg %p53
        %p257 = pneg %p77
        %p258 = pneg %p74
        %p259 = pneg %p98
        %p260 = pneg %p95
        %p261 = pneg %p119
        %p262 = pneg %p116
        %p263 = pneg %p147
        %p264 = pneg %p144
        %s265 = sand.u32 %s134, 1
        %s266 = scalar_lea.sflag [#allocation5], %s265
        %s267 = sand.u32 %s134, 1
        %s268 = smul.addr %s267, 8
        %s269 = scalar_lea.vmem [#allocation11], %s268
        %s270 = smul.u32 4, %s28
        %s272 = smul.u32 %s28, 8
        %s273 = smul.u32 %s272, 2
        %s274 = smul.addr %s273, 4
        %s275 = scalar_lea.vmem %s233, %s274 [#allocation3]
        %v276 = vld [vmem:[%s275] sm:$0xf]
        %v277 = vld [vmem:[%s275 + $0x8] sm:$0xf]
        %v278 = vld [vmem:[%s275 + $0x10] sm:$0xf]
        %v279 = vld [vmem:[%s275 + $0x18] sm:$0xf]
        %v280 = vld [vmem:[%s275 + $0x20] sm:$0xf]
        %v281 = vld [vmem:[%s275 + $0x28] sm:$0xf]
        %v282 = vld [vmem:[%s275 + $0x30] sm:$0xf]
        %v283 = vld [vmem:[%s275 + $0x38] sm:$0xf]
        %v284 = vld [vmem:[#allocation6] sm:$0xf]
        %v285 = vld [vmem:[#allocation6 + $0x4] sm:$0xf]
        %v286 = vld [vmem:[#allocation6 + $0x8] sm:$0xf]
        %v287 = vld [vmem:[#allocation6 + $0xc] sm:$0xf]
        %v288 = vld [vmem:[#allocation6 + $0x10] sm:$0xf]
        %v289 = vld [vmem:[#allocation6 + $0x14] sm:$0xf]
        %v290 = vld [vmem:[#allocation6 + $0x18] sm:$0xf]
        %v291 = vld [vmem:[#allocation6 + $0x1c] sm:$0xf]
        %v292 = vld [vmem:[#allocation6 + $0x20] sm:$0xf]
        %v293 = vld [vmem:[#allocation6 + $0x24] sm:$0xf]
        %v294 = vld [vmem:[#allocation6 + $0x28] sm:$0xf]
        %v295 = vld [vmem:[#allocation6 + $0x2c] sm:$0xf]
        %v296 = vld [vmem:[#allocation6 + $0x30] sm:$0xf]
        %v297 = vld [vmem:[#allocation6 + $0x34] sm:$0xf]
        %v298 = vld [vmem:[#allocation6 + $0x38] sm:$0xf]
        %v299 = vld [vmem:[#allocation6 + $0x3c] sm:$0xf]
        %v308 = vunpack.c.l.b16 %v276
        %v309 = vunpack.c.l.b16 %v277
        %v310 = vunpack.c.l.b16 %v278
        %v311 = vunpack.c.l.b16 %v279
        %v312 = vunpack.c.l.b16 %v280
        %v313 = vunpack.c.l.b16 %v281
        %v314 = vunpack.c.l.b16 %v282
        %v315 = vunpack.c.l.b16 %v283
        %v316 = vpack.c.b16 %v309, %v308
        %v317 = vpack.c.b16 %v311, %v310
        %v318 = vpack.c.b16 %v313, %v312
        %v319 = vpack.c.b16 %v315, %v314
        %v340 = vunpack.c.l.b16 %v284
        %v341 = vunpack.c.l.b16 %v285
        %v342 = vunpack.c.l.b16 %v286
        %v343 = vunpack.c.l.b16 %v287
        %v344 = vunpack.c.l.b16 %v288
        %v345 = vunpack.c.l.b16 %v289
        %v346 = vunpack.c.l.b16 %v290
        %v347 = vunpack.c.l.b16 %v291
        %v348 = vunpack.c.l.b16 %v292
        %v349 = vunpack.c.l.b16 %v293
        %v350 = vunpack.c.l.b16 %v294
        %v351 = vunpack.c.l.b16 %v295
        %v352 = vunpack.c.l.b16 %v296
        %v353 = vunpack.c.l.b16 %v297
        %v354 = vunpack.c.l.b16 %v298
        %v355 = vunpack.c.l.b16 %v299
        %v356 = vpack.c.b16 %v341, %v340
        %v357 = vpack.c.b16 %v343, %v342
        %v358 = vpack.c.b16 %v345, %v344
        %v359 = vpack.c.b16 %v347, %v346
        %v360 = vpack.c.b16 %v349, %v348
        %v361 = vpack.c.b16 %v351, %v350
        %v362 = vpack.c.b16 %v353, %v352
        %v363 = vpack.c.b16 %v355, %v354
        %372 = vmatprep.subr.bf16.mxu0 0
        %373 = vmatpush1.bf16.msra.mxu0 %v356
        %374 = vmatprep.subr.bf16.mxu0 0
        %375 = vmatpush1.bf16.msra.mxu0 %v357
        %376 = vmatprep.subr.bf16.mxu0 0
        %377 = vmatpush1.bf16.msra.mxu0 %v358
        %378 = vmatprep.subr.bf16.mxu0 0
        %379 = vmatpush1.bf16.msra.mxu0 %v359
        %380 = vmatprep.subr.bf16.mxu0 0
        %381 = vmatpush1.bf16.msra.mxu0 %v360
        %382 = vmatprep.subr.bf16.mxu0 0
        %383 = vmatpush1.bf16.msra.mxu0 %v361
        %384 = vmatprep.subr.bf16.mxu0 0
        %385 = vmatpush1.bf16.msra.mxu0 %v362
        %386 = vmatprep.subr.bf16.mxu0 0
        %387 = vmatpush1.bf16.msra.mxu0 %v363
        %388 = vmatprep.subr.bf16.mxu0 0
        %389 = vmatpush1.bf16.msra.mxu0 0
        %390 = vmatprep.subr.bf16.mxu0 0
        %391 = vmatpush1.bf16.msra.mxu0 0
        %392 = vmatprep.subr.bf16.mxu0 0
        %393 = vmatpush1.bf16.msra.mxu0 0
        %394 = vmatprep.subr.bf16.mxu0 0
        %395 = vmatpush1.bf16.msra.mxu0 0
        %396 = vmatprep.subr.bf16.mxu0 0
        %397 = vmatpush1.bf16.msra.mxu0 0
        %398 = vmatprep.subr.bf16.mxu0 0
        %399 = vmatpush1.bf16.msra.mxu0 0
        %400 = vmatprep.subr.bf16.mxu0 0
        %401 = vmatpush1.bf16.msra.mxu0 0
        %402 = vmatprep.subr.bf16.mxu0 0
        %403 = vmatpush1.bf16.msra.mxu0 0
        %404 = vmatprep.mubr.bf16.mxu0 0
        %405 = vmatmul.mubr.bf16.gmra.mrb[0].mxu0 %v316
        %v406 = vpop.f32.mrb[0].mxu0
        %v407 = vadd.f32 0.0, %v406
        %v408 = vpop.f32.mrb[0].mxu0
        %v409 = vpop.f32.mrb[0].mxu0
        %v410 = vadd.f32 0.0, %v409
        %v411 = vpop.f32.mrb[0].mxu0
        %412 = vmatprep.mubr.bf16.mxu0 0
        %413 = vmatmul.mubr.bf16.gmra.mrb[0].mxu0 %v317
        %v414 = vpop.f32.mrb[0].mxu0
        %v415 = vadd.f32 0.0, %v414
        %v416 = vpop.f32.mrb[0].mxu0
        %v417 = vpop.f32.mrb[0].mxu0
        %v418 = vadd.f32 0.0, %v417
        %v419 = vpop.f32.mrb[0].mxu0
        %420 = vmatprep.mubr.bf16.mxu0 0
        %421 = vmatmul.mubr.bf16.gmra.mrb[0].mxu0 %v318
        %v422 = vpop.f32.mrb[0].mxu0
        %v423 = vadd.f32 0.0, %v422
        %v424 = vpop.f32.mrb[0].mxu0
        %v425 = vpop.f32.mrb[0].mxu0
        %v426 = vadd.f32 0.0, %v425
        %v427 = vpop.f32.mrb[0].mxu0
        %428 = vmatprep.mubr.bf16.mxu0 0
        %429 = vmatmul.mubr.bf16.gmra.mrb[0].mxu0 %v319
        %v430 = vpop.f32.mrb[0].mxu0
        %v431 = vadd.f32 0.0, %v430
        %v432 = vpop.f32.mrb[0].mxu0
        %v433 = vpop.f32.mrb[0].mxu0
        %v434 = vadd.f32 0.0, %v433
        %v435 = vpop.f32.mrb[0].mxu0
        %436 = vdwg.mxu0
        %437 = vst [vmem:[#allocation2] sm:$0xff] %v407
        %438 = vst [vmem:[#allocation2 + $0x8] sm:$0xff] %v410
        %439 = vst [vmem:[#allocation2 + $0x10] sm:$0xff] %v415
        %440 = vst [vmem:[#allocation2 + $0x18] sm:$0xff] %v418
        %441 = vst [vmem:[#allocation2 + $0x20] sm:$0xff] %v423
        %442 = vst [vmem:[#allocation2 + $0x28] sm:$0xff] %v426
        %443 = vst [vmem:[#allocation2 + $0x30] sm:$0xff] %v431
        %444 = vst [vmem:[#allocation2 + $0x38] sm:$0xff] %v434
        %v445 = vld [vmem:[%s275] sm:$0xf]
        %v446 = vld [vmem:[%s275 + $0x4] sm:$0x1]
        %v447 = vld [vmem:[%s275 + $0x8] sm:$0xf]
        %v448 = vld [vmem:[%s275 + $0xc] sm:$0x1]
        %v449 = vld [vmem:[%s275 + $0x10] sm:$0xf]
        %v450 = vld [vmem:[%s275 + $0x14] sm:$0x1]
        %v451 = vld [vmem:[%s275 + $0x18] sm:$0xf]
        %v452 = vld [vmem:[%s275 + $0x1c] sm:$0x1]
        %v453 = vld [vmem:[%s275 + $0x20] sm:$0xf]
        %v454 = vld [vmem:[%s275 + $0x24] sm:$0x1]
        %v455 = vld [vmem:[%s275 + $0x28] sm:$0xf]
        %v456 = vld [vmem:[%s275 + $0x2c] sm:$0x1]
        %v457 = vld [vmem:[%s275 + $0x30] sm:$0xf]
        %v458 = vld [vmem:[%s275 + $0x34] sm:$0x1]
        %v459 = vld [vmem:[%s275 + $0x38] sm:$0xf]
        %v460 = vld [vmem:[%s275 + $0x3c] sm:$0x1]
        %vm461 = vsmask.f32 3328
        %vm462 = vsmask.f32 7440
        %vm463 = vmor %vm461, %vm462
        %v465 = vshrl.u32 %v445, 16
        %v467 = vrot.slane %v465, 4
        %v468 = vshll.u32 %v445, 16
        %v470 = vrot.slane %v468, 5
        %v471 = vor.u32 %v467, %v470
        %v472 = vrot.slane %v471, 4
        %v474 = vshll.u32 %v446, 16
        %v476 = vrot.slane %v474, 5
        %v477 = vsel %vm463, %v472, %v476
        %v479 = vshrl.u32 %v447, 16
        %v481 = vrot.slane %v479, 4
        %v482 = vshll.u32 %v447, 16
        %v484 = vrot.slane %v482, 5
        %v485 = vor.u32 %v481, %v484
        %v486 = vrot.slane %v485, 4
        %v488 = vshll.u32 %v448, 16
        %v490 = vrot.slane %v488, 5
        %v491 = vsel %vm463, %v486, %v490
        %v493 = vshrl.u32 %v449, 16
        %v495 = vrot.slane %v493, 4
        %v496 = vshll.u32 %v449, 16
        %v498 = vrot.slane %v496, 5
        %v499 = vor.u32 %v495, %v498
        %v500 = vrot.slane %v499, 4
        %v502 = vshll.u32 %v450, 16
        %v504 = vrot.slane %v502, 5
        %v505 = vsel %vm463, %v500, %v504
        %v507 = vshrl.u32 %v451, 16
        %v509 = vrot.slane %v507, 4
        %v510 = vshll.u32 %v451, 16
        %v512 = vrot.slane %v510, 5
        %v513 = vor.u32 %v509, %v512
        %v514 = vrot.slane %v513, 4
        %v516 = vshll.u32 %v452, 16
        %v518 = vrot.slane %v516, 5
        %v519 = vsel %vm463, %v514, %v518
        %v521 = vshrl.u32 %v453, 16
        %v523 = vrot.slane %v521, 4
        %v524 = vshll.u32 %v453, 16
        %v526 = vrot.slane %v524, 5
        %v527 = vor.u32 %v523, %v526
        %v528 = vrot.slane %v527, 4
        %v530 = vshll.u32 %v454, 16
        %v532 = vrot.slane %v530, 5
        %v533 = vsel %vm463, %v528, %v532
        %v535 = vshrl.u32 %v455, 16
        %v537 = vrot.slane %v535, 4
        %v538 = vshll.u32 %v455, 16
        %v540 = vrot.slane %v538, 5
        %v541 = vor.u32 %v537, %v540
        %v542 = vrot.slane %v541, 4
        %v544 = vshll.u32 %v456, 16
        %v546 = vrot.slane %v544, 5
        %v547 = vsel %vm463, %v542, %v546
        %v549 = vshrl.u32 %v457, 16
        %v551 = vrot.slane %v549, 4
        %v552 = vshll.u32 %v457, 16
        %v554 = vrot.slane %v552, 5
        %v555 = vor.u32 %v551, %v554
        %v556 = vrot.slane %v555, 4
        %v558 = vshll.u32 %v458, 16
        %v560 = vrot.slane %v558, 5
        %v561 = vsel %vm463, %v556, %v560
        %v563 = vshrl.u32 %v459, 16
        %v565 = vrot.slane %v563, 4
        %v566 = vshll.u32 %v459, 16
        %v568 = vrot.slane %v566, 5
        %v569 = vor.u32 %v565, %v568
        %v570 = vrot.slane %v569, 4
        %v572 = vshll.u32 %v460, 16
        %v574 = vrot.slane %v572, 5
        %v575 = vsel %vm463, %v570, %v574
        %s576 = scalar_lea.vmem [#allocation6], 64
        %v577 = vld [vmem:[%s576] sm:$0xf]
        %v578 = vld [vmem:[%s576 + $0x4] sm:$0xf]
        %v579 = vld [vmem:[%s576 + $0x8] sm:$0xf]
        %v580 = vld [vmem:[%s576 + $0xc] sm:$0xf]
        %v581 = vld [vmem:[%s576 + $0x10] sm:$0xf]
        %v582 = vld [vmem:[%s576 + $0x14] sm:$0xf]
        %v583 = vld [vmem:[%s576 + $0x18] sm:$0xf]
        %v584 = vld [vmem:[%s576 + $0x1c] sm:$0xf]
        %v585 = vld [vmem:[%s576 + $0x20] sm:$0xf]
        %v586 = vld [vmem:[%s576 + $0x24] sm:$0xf]
        %v587 = vld [vmem:[%s576 + $0x28] sm:$0xf]
        %v588 = vld [vmem:[%s576 + $0x2c] sm:$0xf]
        %v589 = vld [vmem:[%s576 + $0x30] sm:$0xf]
        %v590 = vld [vmem:[%s576 + $0x34] sm:$0xf]
        %v591 = vld [vmem:[%s576 + $0x38] sm:$0xf]
        %v592 = vld [vmem:[%s576 + $0x3c] sm:$0xf]
        %v593 = vunpack.c.l.b16 %v477
        %v594 = vunpack.c.l.b16 %v491
        %v595 = vunpack.c.l.b16 %v505
        %v596 = vunpack.c.l.b16 %v519
        %v597 = vunpack.c.l.b16 %v533
        %v598 = vunpack.c.l.b16 %v547
        %v599 = vunpack.c.l.b16 %v561
        %v600 = vunpack.c.l.b16 %v575
        %v601 = vpack.c.b16 %v594, %v593
        %v602 = vpack.c.b16 %v596, %v595
        %v603 = vpack.c.b16 %v598, %v597
        %v604 = vpack.c.b16 %v600, %v599
        %v625 = vunpack.c.l.b16 %v577
        %v626 = vunpack.c.l.b16 %v578
        %v627 = vunpack.c.l.b16 %v579
        %v628 = vunpack.c.l.b16 %v580
        %v629 = vunpack.c.l.b16 %v581
        %v630 = vunpack.c.l.b16 %v582
        %v631 = vunpack.c.l.b16 %v583
        %v632 = vunpack.c.l.b16 %v584
        %v633 = vunpack.c.l.b16 %v585
        %v634 = vunpack.c.l.b16 %v586
        %v635 = vunpack.c.l.b16 %v587
        %v636 = vunpack.c.l.b16 %v588
        %v637 = vunpack.c.l.b16 %v589
        %v638 = vunpack.c.l.b16 %v590
        %v639 = vunpack.c.l.b16 %v591
        %v640 = vunpack.c.l.b16 %v592
        %v641 = vpack.c.b16 %v626, %v625
        %v642 = vpack.c.b16 %v628, %v627
        %v643 = vpack.c.b16 %v630, %v629
        %v644 = vpack.c.b16 %v632, %v631
        %v645 = vpack.c.b16 %v634, %v633
        %v646 = vpack.c.b16 %v636, %v635
        %v647 = vpack.c.b16 %v638, %v637
        %v648 = vpack.c.b16 %v640, %v639
        %657 = vmatprep.subr.bf16.mxu0 0
        %658 = vmatpush1.bf16.msra.mxu0 %v641
        %659 = vmatprep.subr.bf16.mxu0 0
        %660 = vmatpush1.bf16.msra.mxu0 %v642
        %661 = vmatprep.subr.bf16.mxu0 0
        %662 = vmatpush1.bf16.msra.mxu0 %v643
        %663 = vmatprep.subr.bf16.mxu0 0
        %664 = vmatpush1.bf16.msra.mxu0 %v644
        %665 = vmatprep.subr.bf16.mxu0 0
        %666 = vmatpush1.bf16.msra.mxu0 %v645
        %667 = vmatprep.subr.bf16.mxu0 0
        %668 = vmatpush1.bf16.msra.mxu0 %v646
        %669 = vmatprep.subr.bf16.mxu0 0
        %670 = vmatpush1.bf16.msra.mxu0 %v647
        %671 = vmatprep.subr.bf16.mxu0 0
        %672 = vmatpush1.bf16.msra.mxu0 %v648
        %673 = vmatprep.subr.bf16.mxu0 0
        %674 = vmatpush1.bf16.msra.mxu0 0
        %675 = vmatprep.subr.bf16.mxu0 0
        %676 = vmatpush1.bf16.msra.mxu0 0
        %677 = vmatprep.subr.bf16.mxu0 0
        %678 = vmatpush1.bf16.msra.mxu0 0
        %679 = vmatprep.subr.bf16.mxu0 0
        %680 = vmatpush1.bf16.msra.mxu0 0
        %681 = vmatprep.subr.bf16.mxu0 0
        %682 = vmatpush1.bf16.msra.mxu0 0
        %683 = vmatprep.subr.bf16.mxu0 0
        %684 = vmatpush1.bf16.msra.mxu0 0
        %685 = vmatprep.subr.bf16.mxu0 0
        %686 = vmatpush1.bf16.msra.mxu0 0
        %687 = vmatprep.subr.bf16.mxu0 0
        %688 = vmatpush1.bf16.msra.mxu0 0
        %689 = vmatprep.mubr.bf16.mxu0 0
        %690 = vmatmul.mubr.bf16.gmra.mrb[0].mxu0 %v601
        %v691 = vpop.f32.mrb[0].mxu0
        %v692 = vadd.f32 0.0, %v691
        %v693 = vpop.f32.mrb[0].mxu0
        %v694 = vpop.f32.mrb[0].mxu0
        %v695 = vadd.f32 0.0, %v694
        %v696 = vpop.f32.mrb[0].mxu0
        %697 = vmatprep.mubr.bf16.mxu0 0
        %698 = vmatmul.mubr.bf16.gmra.mrb[0].mxu0 %v602
        %v699 = vpop.f32.mrb[0].mxu0
        %v700 = vadd.f32 0.0, %v699
        %v701 = vpop.f32.mrb[0].mxu0
        %v702 = vpop.f32.mrb[0].mxu0
        %v703 = vadd.f32 0.0, %v702
        %v704 = vpop.f32.mrb[0].mxu0
        %705 = vmatprep.mubr.bf16.mxu0 0
        %706 = vmatmul.mubr.bf16.gmra.mrb[0].mxu0 %v603
        %v707 = vpop.f32.mrb[0].mxu0
        %v708 = vadd.f32 0.0, %v707
        %v709 = vpop.f32.mrb[0].mxu0
        %v710 = vpop.f32.mrb[0].mxu0
        %v711 = vadd.f32 0.0, %v710
        %v712 = vpop.f32.mrb[0].mxu0
        %713 = vmatprep.mubr.bf16.mxu0 0
        %714 = vmatmul.mubr.bf16.gmra.mrb[0].mxu0 %v604
        %v715 = vpop.f32.mrb[0].mxu0
        %v716 = vadd.f32 0.0, %v715
        %v717 = vpop.f32.mrb[0].mxu0
        %v718 = vpop.f32.mrb[0].mxu0
        %v719 = vadd.f32 0.0, %v718
        %v720 = vpop.f32.mrb[0].mxu0
        %721 = vdwg.mxu0
        %v722 = vld [vmem:[#allocation2] sm:$0xff]
        %v723 = vld [vmem:[#allocation2 + $0x8] sm:$0xff]
        %v724 = vld [vmem:[#allocation2 + $0x10] sm:$0xff]
        %v725 = vld [vmem:[#allocation2 + $0x18] sm:$0xff]
        %v726 = vld [vmem:[#allocation2 + $0x20] sm:$0xff]
        %v727 = vld [vmem:[#allocation2 + $0x28] sm:$0xff]
        %v728 = vld [vmem:[#allocation2 + $0x30] sm:$0xff]
        %v729 = vld [vmem:[#allocation2 + $0x38] sm:$0xff]
        %v730 = vadd.f32 %v722, %v692
        %v731 = vadd.f32 %v723, %v695
        %v732 = vadd.f32 %v724, %v700
        %v733 = vadd.f32 %v725, %v703
        %v734 = vadd.f32 %v726, %v708
        %v735 = vadd.f32 %v727, %v711
        %v736 = vadd.f32 %v728, %v716
        %v737 = vadd.f32 %v729, %v719
        %738 = vst [vmem:[#allocation2] sm:$0xff] %v730
        %739 = vst [vmem:[#allocation2 + $0x8] sm:$0xff] %v731
        %740 = vst [vmem:[#allocation2 + $0x10] sm:$0xff] %v732
        %741 = vst [vmem:[#allocation2 + $0x18] sm:$0xff] %v733
        %742 = vst [vmem:[#allocation2 + $0x20] sm:$0xff] %v734
        %743 = vst [vmem:[#allocation2 + $0x28] sm:$0xff] %v735
        %744 = vst [vmem:[#allocation2 + $0x30] sm:$0xff] %v736
        %745 = vst [vmem:[#allocation2 + $0x38] sm:$0xff] %v737
        %v746 = vld [vmem:[%s275] sm:$0xe]
        %v747 = vld [vmem:[%s275 + $0x4] sm:$0x1]
        %v748 = vld [vmem:[%s275 + $0x8] sm:$0xe]
        %v749 = vld [vmem:[%s275 + $0xc] sm:$0x1]
        %v750 = vld [vmem:[%s275 + $0x10] sm:$0xe]
        %v751 = vld [vmem:[%s275 + $0x14] sm:$0x1]
        %v752 = vld [vmem:[%s275 + $0x18] sm:$0xe]
        %v753 = vld [vmem:[%s275 + $0x1c] sm:$0x1]
        %v754 = vld [vmem:[%s275 + $0x20] sm:$0xe]
        %v755 = vld [vmem:[%s275 + $0x24] sm:$0x1]
        %v756 = vld [vmem:[%s275 + $0x28] sm:$0xe]
        %v757 = vld [vmem:[%s275 + $0x2c] sm:$0x1]
        %v758 = vld [vmem:[%s275 + $0x30] sm:$0xe]
        %v759 = vld [vmem:[%s275 + $0x34] sm:$0x1]
        %v760 = vld [vmem:[%s275 + $0x38] sm:$0xe]
        %v761 = vld [vmem:[%s275 + $0x3c] sm:$0x1]
        %vm778 = vcmask 1042432
        %vm779 = vcmask 1046532
        %vm780 = vmor %vm778, %vm779
        %v781 = vrot.slane %v746, 5
        %v782 = vrot.slane %v781, 4
        %v783 = vrot.slane %v747, 5
        %v784 = vsel %vm780, %v782, %v783
        %v785 = vrot.slane %v748, 5
        %v786 = vrot.slane %v785, 4
        %v787 = vrot.slane %v749, 5
        %v788 = vsel %vm780, %v786, %v787
        %v789 = vrot.slane %v750, 5
        %v790 = vrot.slane %v789, 4
        %v791 = vrot.slane %v751, 5
        %v792 = vsel %vm780, %v790, %v791
        %v793 = vrot.slane %v752, 5
        %v794 = vrot.slane %v793, 4
        %v795 = vrot.slane %v753, 5
        %v796 = vsel %vm780, %v794, %v795
        %v797 = vrot.slane %v754, 5
        %v798 = vrot.slane %v797, 4
        %v799 = vrot.slane %v755, 5
        %v800 = vsel %vm780, %v798, %v799
        %v801 = vrot.slane %v756, 5
        %v802 = vrot.slane %v801, 4
        %v803 = vrot.slane %v757, 5
        %v804 = vsel %vm780, %v802, %v803
        %v805 = vrot.slane %v758, 5
        %v806 = vrot.slane %v805, 4
        %v807 = vrot.slane %v759, 5
        %v808 = vsel %vm780, %v806, %v807
        %v809 = vrot.slane %v760, 5
        %v810 = vrot.slane %v809, 4
        %v811 = vrot.slane %v761, 5
        %v812 = vsel %vm780, %v810, %v811
        %s813 = scalar_lea.vmem [#allocation6], 128
        %v814 = vld [vmem:[%s813] sm:$0xf]
        %v815 = vld [vmem:[%s813 + $0x4] sm:$0xf]
        %v816 = vld [vmem:[%s813 + $0x8] sm:$0xf]
        %v817 = vld [vmem:[%s813 + $0xc] sm:$0xf]
        %v818 = vld [vmem:[%s813 + $0x10] sm:$0xf]
        %v819 = vld [vmem:[%s813 + $0x14] sm:$0xf]
        %v820 = vld [vmem:[%s813 + $0x18] sm:$0xf]
        %v821 = vld [vmem:[%s813 + $0x1c] sm:$0xf]
        %v822 = vld [vmem:[%s813 + $0x20] sm:$0xf]
        %v823 = vld [vmem:[%s813 + $0x24] sm:$0xf]
        %v824 = vld [vmem:[%s813 + $0x28] sm:$0xf]
        %v825 = vld [vmem:[%s813 + $0x2c] sm:$0xf]
        %v826 = vld [vmem:[%s813 + $0x30] sm:$0xf]
        %v827 = vld [vmem:[%s813 + $0x34] sm:$0xf]
        %v828 = vld [vmem:[%s813 + $0x38] sm:$0xf]
        %v829 = vld [vmem:[%s813 + $0x3c] sm:$0xf]
        %v830 = vunpack.c.l.b16 %v784
        %v831 = vunpack.c.l.b16 %v788
        %v832 = vunpack.c.l.b16 %v792
        %v833 = vunpack.c.l.b16 %v796
        %v834 = vunpack.c.l.b16 %v800
        %v835 = vunpack.c.l.b16 %v804
        %v836 = vunpack.c.l.b16 %v808
        %v837 = vunpack.c.l.b16 %v812
        %v838 = vpack.c.b16 %v831, %v830
        %v839 = vpack.c.b16 %v833, %v832
        %v840 = vpack.c.b16 %v835, %v834
        %v841 = vpack.c.b16 %v837, %v836
        %v862 = vunpack.c.l.b16 %v814
        %v863 = vunpack.c.l.b16 %v815
        %v864 = vunpack.c.l.b16 %v816
        %v865 = vunpack.c.l.b16 %v817
        %v866 = vunpack.c.l.b16 %v818
        %v867 = vunpack.c.l.b16 %v819
        %v868 = vunpack.c.l.b16 %v820
        %v869 = vunpack.c.l.b16 %v821
        %v870 = vunpack.c.l.b16 %v822
        %v871 = vunpack.c.l.b16 %v823
        %v872 = vunpack.c.l.b16 %v824
        %v873 = vunpack.c.l.b16 %v825
        %v874 = vunpack.c.l.b16 %v826
        %v875 = vunpack.c.l.b16 %v827
        %v876 = vunpack.c.l.b16 %v828
        %v877 = vunpack.c.l.b16 %v829
        %v878 = vpack.c.b16 %v863, %v862
        %v879 = vpack.c.b16 %v865, %v864
        %v880 = vpack.c.b16 %v867, %v866
        %v881 = vpack.c.b16 %v869, %v868
        %v882 = vpack.c.b16 %v871, %v870
        %v883 = vpack.c.b16 %v873, %v872
        %v884 = vpack.c.b16 %v875, %v874
        %v885 = vpack.c.b16 %v877, %v876
        %894 = vmatprep.subr.bf16.mxu0 0
        %895 = vmatpush1.bf16.msra.mxu0 %v878
        %896 = vmatprep.subr.bf16.mxu0 0
        %897 = vmatpush1.bf16.msra.mxu0 %v879
        %898 = vmatprep.subr.bf16.mxu0 0
        %899 = vmatpush1.bf16.msra.mxu0 %v880
        %900 = vmatprep.subr.bf16.mxu0 0
        %901 = vmatpush1.bf16.msra.mxu0 %v881
        %902 = vmatprep.subr.bf16.mxu0 0
        %903 = vmatpush1.bf16.msra.mxu0 %v882
        %904 = vmatprep.subr.bf16.mxu0 0
        %905 = vmatpush1.bf16.msra.mxu0 %v883
        %906 = vmatprep.subr.bf16.mxu0 0
        %907 = vmatpush1.bf16.msra.mxu0 %v884
        %908 = vmatprep.subr.bf16.mxu0 0
        %909 = vmatpush1.bf16.msra.mxu0 %v885
        %910 = vmatprep.subr.bf16.mxu0 0
        %911 = vmatpush1.bf16.msra.mxu0 0
        %912 = vmatprep.subr.bf16.mxu0 0
        %913 = vmatpush1.bf16.msra.mxu0 0
        %914 = vmatprep.subr.bf16.mxu0 0
        %915 = vmatpush1.bf16.msra.mxu0 0
        %916 = vmatprep.subr.bf16.mxu0 0
        %917 = vmatpush1.bf16.msra.mxu0 0
        %918 = vmatprep.subr.bf16.mxu0 0
        %919 = vmatpush1.bf16.msra.mxu0 0
        %920 = vmatprep.subr.bf16.mxu0 0
        %921 = vmatpush1.bf16.msra.mxu0 0
        %922 = vmatprep.subr.bf16.mxu0 0
        %923 = vmatpush1.bf16.msra.mxu0 0
        %924 = vmatprep.subr.bf16.mxu0 0
        %925 = vmatpush1.bf16.msra.mxu0 0
        %926 = vmatprep.mubr.bf16.mxu0 0
        %927 = vmatmul.mubr.bf16.gmra.mrb[0].mxu0 %v838
        %v928 = vpop.f32.mrb[0].mxu0
        %v929 = vadd.f32 0.0, %v928
        %v930 = vpop.f32.mrb[0].mxu0
        %v931 = vpop.f32.mrb[0].mxu0
        %v932 = vadd.f32 0.0, %v931
        %v933 = vpop.f32.mrb[0].mxu0
        %934 = vmatprep.mubr.bf16.mxu0 0
        %935 = vmatmul.mubr.bf16.gmra.mrb[0].mxu0 %v839
        %v936 = vpop.f32.mrb[0].mxu0
        %v937 = vadd.f32 0.0, %v936
        %v938 = vpop.f32.mrb[0].mxu0
        %v939 = vpop.f32.mrb[0].mxu0
        %v940 = vadd.f32 0.0, %v939
        %v941 = vpop.f32.mrb[0].mxu0
        %942 = vmatprep.mubr.bf16.mxu0 0
        %943 = vmatmul.mubr.bf16.gmra.mrb[0].mxu0 %v840
        %v944 = vpop.f32.mrb[0].mxu0
        %v945 = vadd.f32 0.0, %v944
        %v946 = vpop.f32.mrb[0].mxu0
        %v947 = vpop.f32.mrb[0].mxu0
        %v948 = vadd.f32 0.0, %v947
        %v949 = vpop.f32.mrb[0].mxu0
        %950 = vmatprep.mubr.bf16.mxu0 0
        %951 = vmatmul.mubr.bf16.gmra.mrb[0].mxu0 %v841
        %v952 = vpop.f32.mrb[0].mxu0
        %v953 = vadd.f32 0.0, %v952
        %v954 = vpop.f32.mrb[0].mxu0
        %v955 = vpop.f32.mrb[0].mxu0
        %v956 = vadd.f32 0.0, %v955
        %v957 = vpop.f32.mrb[0].mxu0
        %958 = vdwg.mxu0
        %v959 = vld [vmem:[#allocation2] sm:$0xff]
        %v960 = vld [vmem:[#allocation2 + $0x8] sm:$0xff]
        %v961 = vld [vmem:[#allocation2 + $0x10] sm:$0xff]
        %v962 = vld [vmem:[#allocation2 + $0x18] sm:$0xff]
        %v963 = vld [vmem:[#allocation2 + $0x20] sm:$0xff]
        %v964 = vld [vmem:[#allocation2 + $0x28] sm:$0xff]
        %v965 = vld [vmem:[#allocation2 + $0x30] sm:$0xff]
        %v966 = vld [vmem:[#allocation2 + $0x38] sm:$0xff]
        %v967 = vadd.f32 %v959, %v929
        %v968 = vadd.f32 %v960, %v932
        %v969 = vadd.f32 %v961, %v937
        %v970 = vadd.f32 %v962, %v940
        %v971 = vadd.f32 %v963, %v945
        %v972 = vadd.f32 %v964, %v948
        %v973 = vadd.f32 %v965, %v953
        %v974 = vadd.f32 %v966, %v956
        %975 = vst [vmem:[#allocation2] sm:$0xff] %v967
        %976 = vst [vmem:[#allocation2 + $0x8] sm:$0xff] %v968
        %977 = vst [vmem:[#allocation2 + $0x10] sm:$0xff] %v969
        %978 = vst [vmem:[#allocation2 + $0x18] sm:$0xff] %v970
        %979 = vst [vmem:[#allocation2 + $0x20] sm:$0xff] %v971
        %980 = vst [vmem:[#allocation2 + $0x28] sm:$0xff] %v972
        %981 = vst [vmem:[#allocation2 + $0x30] sm:$0xff] %v973
        %982 = vst [vmem:[#allocation2 + $0x38] sm:$0xff] %v974
        %s983 = sadd.s32 %s272, 1
        %s984 = smul.u32 %s983, 2
        %s985 = smul.addr %s984, 4
        %s986 = scalar_lea.vmem %s233, %s985 [#allocation3]
        %v987 = vld [vmem:[%s986] sm:$0xf]
        %v988 = vld [vmem:[%s986 + $0x8] sm:$0xf]
        %v989 = vld [vmem:[%s986 + $0x10] sm:$0xf]
        %v990 = vld [vmem:[%s986 + $0x18] sm:$0xf]
        %v991 = vld [vmem:[%s986 + $0x20] sm:$0xf]
        %v992 = vld [vmem:[%s986 + $0x28] sm:$0xf]
        %v993 = vld [vmem:[%s986 + $0x30] sm:$0xf]
        %v994 = vld [vmem:[%s986 + $0x38] sm:$0xf]
        %s995 = scalar_lea.vmem [#allocation6], 192
        %v996 = vld [vmem:[%s995] sm:$0xf]
        %v997 = vld [vmem:[%s995 + $0x4] sm:$0xf]
        %v998 = vld [vmem:[%s995 + $0x8] sm:$0xf]
        %v999 = vld [vmem:[%s995 + $0xc] sm:$0xf]
        %v1000 = vld [vmem:[%s995 + $0x10] sm:$0xf]
        %v1001 = vld [vmem:[%s995 + $0x14] sm:$0xf]
        %v1002 = vld [vmem:[%s995 + $0x18] sm:$0xf]
        %v1003 = vld [vmem:[%s995 + $0x1c] sm:$0xf]
        %v1004 = vld [vmem:[%s995 + $0x20] sm:$0xf]
        %v1005 = vld [vmem:[%s995 + $0x24] sm:$0xf]
        %v1006 = vld [vmem:[%s995 + $0x28] sm:$0xf]
        %v1007 = vld [vmem:[%s995 + $0x2c] sm:$0xf]
        %v1008 = vld [vmem:[%s995 + $0x30] sm:$0xf]
        %v1009 = vld [vmem:[%s995 + $0x34] sm:$0xf]
        %v1010 = vld [vmem:[%s995 + $0x38] sm:$0xf]
        %v1011 = vld [vmem:[%s995 + $0x3c] sm:$0xf]
        %v1020 = vunpack.c.l.b16 %v987
        %v1021 = vunpack.c.l.b16 %v988
        %v1022 = vunpack.c.l.b16 %v989
        %v1023 = vunpack.c.l.b16 %v990
        %v1024 = vunpack.c.l.b16 %v991
        %v1025 = vunpack.c.l.b16 %v992
        %v1026 = vunpack.c.l.b16 %v993
        %v1027 = vunpack.c.l.b16 %v994
        %v1028 = vpack.c.b16 %v1021, %v1020
        %v1029 = vpack.c.b16 %v1023, %v1022
        %v1030 = vpack.c.b16 %v1025, %v1024
        %v1031 = vpack.c.b16 %v1027, %v1026
        %v1052 = vunpack.c.l.b16 %v996
        %v1053 = vunpack.c.l.b16 %v997
        %v1054 = vunpack.c.l.b16 %v998
        %v1055 = vunpack.c.l.b16 %v999
        %v1056 = vunpack.c.l.b16 %v1000
        %v1057 = vunpack.c.l.b16 %v1001
        %v1058 = vunpack.c.l.b16 %v1002
        %v1059 = vunpack.c.l.b16 %v1003
        %v1060 = vunpack.c.l.b16 %v1004
        %v1061 = vunpack.c.l.b16 %v1005
        %v1062 = vunpack.c.l.b16 %v1006
        %v1063 = vunpack.c.l.b16 %v1007
        %v1064 = vunpack.c.l.b16 %v1008
        %v1065 = vunpack.c.l.b16 %v1009
        %v1066 = vunpack.c.l.b16 %v1010
        %v1067 = vunpack.c.l.b16 %v1011
        %v1068 = vpack.c.b16 %v1053, %v1052
        %v1069 = vpack.c.b16 %v1055, %v1054
        %v1070 = vpack.c.b16 %v1057, %v1056
        %v1071 = vpack.c.b16 %v1059, %v1058
        %v1072 = vpack.c.b16 %v1061, %v1060
        %v1073 = vpack.c.b16 %v1063, %v1062
        %v1074 = vpack.c.b16 %v1065, %v1064
        %v1075 = vpack.c.b16 %v1067, %v1066
        %1084 = vmatprep.subr.bf16.mxu0 0
        %1085 = vmatpush1.bf16.msra.mxu0 %v1068
        %1086 = vmatprep.subr.bf16.mxu0 0
        %1087 = vmatpush1.bf16.msra.mxu0 %v1069
        %1088 = vmatprep.subr.bf16.mxu0 0
        %1089 = vmatpush1.bf16.msra.mxu0 %v1070
        %1090 = vmatprep.subr.bf16.mxu0 0
        %1091 = vmatpush1.bf16.msra.mxu0 %v1071
        %1092 = vmatprep.subr.bf16.mxu0 0
        %1093 = vmatpush1.bf16.msra.mxu0 %v1072
        %1094 = vmatprep.subr.bf16.mxu0 0
        %1095 = vmatpush1.bf16.msra.mxu0 %v1073
        %1096 = vmatprep.subr.bf16.mxu0 0
        %1097 = vmatpush1.bf16.msra.mxu0 %v1074
        %1098 = vmatprep.subr.bf16.mxu0 0
        %1099 = vmatpush1.bf16.msra.mxu0 %v1075
        %1100 = vmatprep.subr.bf16.mxu0 0
        %1101 = vmatpush1.bf16.msra.mxu0 0
        %1102 = vmatprep.subr.bf16.mxu0 0
        %1103 = vmatpush1.bf16.msra.mxu0 0
        %1104 = vmatprep.subr.bf16.mxu0 0
        %1105 = vmatpush1.bf16.msra.mxu0 0
        %1106 = vmatprep.subr.bf16.mxu0 0
        %1107 = vmatpush1.bf16.msra.mxu0 0
        %1108 = vmatprep.subr.bf16.mxu0 0
        %1109 = vmatpush1.bf16.msra.mxu0 0
        %1110 = vmatprep.subr.bf16.mxu0 0
        %1111 = vmatpush1.bf16.msra.mxu0 0
        %1112 = vmatprep.subr.bf16.mxu0 0
        %1113 = vmatpush1.bf16.msra.mxu0 0
        %1114 = vmatprep.subr.bf16.mxu0 0
        %1115 = vmatpush1.bf16.msra.mxu0 0
        %1116 = vmatprep.mubr.bf16.mxu0 0
        %1117 = vmatmul.mubr.bf16.gmra.mrb[0].mxu0 %v1028
        %v1118 = vpop.f32.mrb[0].mxu0
        %v1119 = vadd.f32 0.0, %v1118
        %v1120 = vpop.f32.mrb[0].mxu0
        %v1121 = vpop.f32.mrb[0].mxu0
        %v1122 = vadd.f32 0.0, %v1121
        %v1123 = vpop.f32.mrb[0].mxu0
        %1124 = vmatprep.mubr.bf16.mxu0 0
        %1125 = vmatmul.mubr.bf16.gmra.mrb[0].mxu0 %v1029
        %v1126 = vpop.f32.mrb[0].mxu0
        %v1127 = vadd.f32 0.0, %v1126
        %v1128 = vpop.f32.mrb[0].mxu0
        %v1129 = vpop.f32.mrb[0].mxu0
        %v1130 = vadd.f32 0.0, %v1129
        %v1131 = vpop.f32.mrb[0].mxu0
        %1132 = vmatprep.mubr.bf16.mxu0 0
        %1133 = vmatmul.mubr.bf16.gmra.mrb[0].mxu0 %v1030
        %v1134 = vpop.f32.mrb[0].mxu0
        %v1135 = vadd.f32 0.0, %v1134
        %v1136 = vpop.f32.mrb[0].mxu0
        %v1137 = vpop.f32.mrb[0].mxu0
        %v1138 = vadd.f32 0.0, %v1137
        %v1139 = vpop.f32.mrb[0].mxu0
        %1140 = vmatprep.mubr.bf16.mxu0 0
        %1141 = vmatmul.mubr.bf16.gmra.mrb[0].mxu0 %v1031
        %v1142 = vpop.f32.mrb[0].mxu0
        %v1143 = vadd.f32 0.0, %v1142
        %v1144 = vpop.f32.mrb[0].mxu0
        %v1145 = vpop.f32.mrb[0].mxu0
        %v1146 = vadd.f32 0.0, %v1145
        %v1147 = vpop.f32.mrb[0].mxu0
        %1148 = vdwg.mxu0
        %v1149 = vld [vmem:[#allocation2] sm:$0xff]
        %v1150 = vld [vmem:[#allocation2 + $0x8] sm:$0xff]
        %v1151 = vld [vmem:[#allocation2 + $0x10] sm:$0xff]
        %v1152 = vld [vmem:[#allocation2 + $0x18] sm:$0xff]
        %v1153 = vld [vmem:[#allocation2 + $0x20] sm:$0xff]
        %v1154 = vld [vmem:[#allocation2 + $0x28] sm:$0xff]
        %v1155 = vld [vmem:[#allocation2 + $0x30] sm:$0xff]
        %v1156 = vld [vmem:[#allocation2 + $0x38] sm:$0xff]
        %v1157 = vadd.f32 %v1149, %v1119
        %v1158 = vadd.f32 %v1150, %v1122
        %v1159 = vadd.f32 %v1151, %v1127
        %v1160 = vadd.f32 %v1152, %v1130
        %v1161 = vadd.f32 %v1153, %v1135
        %v1162 = vadd.f32 %v1154, %v1138
        %v1163 = vadd.f32 %v1155, %v1143
        %v1164 = vadd.f32 %v1156, %v1146
        %1165 = vst [vmem:[#allocation2] sm:$0xff] %v1157
        %1166 = vst [vmem:[#allocation2 + $0x8] sm:$0xff] %v1158
        %1167 = vst [vmem:[#allocation2 + $0x10] sm:$0xff] %v1159
        %1168 = vst [vmem:[#allocation2 + $0x18] sm:$0xff] %v1160
        %1169 = vst [vmem:[#allocation2 + $0x20] sm:$0xff] %v1161
        %1170 = vst [vmem:[#allocation2 + $0x28] sm:$0xff] %v1162
        %1171 = vst [vmem:[#allocation2 + $0x30] sm:$0xff] %v1163
        %1172 = vst [vmem:[#allocation2 + $0x38] sm:$0xff] %v1164
        %v1173 = vld [vmem:[%s986] sm:$0xf]
        %v1174 = vld [vmem:[%s986 + $0x4] sm:$0x1]
        %v1175 = vld [vmem:[%s986 + $0x8] sm:$0xf]
        %v1176 = vld [vmem:[%s986 + $0xc] sm:$0x1]
        %v1177 = vld [vmem:[%s986 + $0x10] sm:$0xf]
        %v1178 = vld [vmem:[%s986 + $0x14] sm:$0x1]
        %v1179 = vld [vmem:[%s986 + $0x18] sm:$0xf]
        %v1180 = vld [vmem:[%s986 + $0x1c] sm:$0x1]
        %v1181 = vld [vmem:[%s986 + $0x20] sm:$0xf]
        %v1182 = vld [vmem:[%s986 + $0x24] sm:$0x1]
        %v1183 = vld [vmem:[%s986 + $0x28] sm:$0xf]
        %v1184 = vld [vmem:[%s986 + $0x2c] sm:$0x1]
        %v1185 = vld [vmem:[%s986 + $0x30] sm:$0xf]
        %v1186 = vld [vmem:[%s986 + $0x34] sm:$0x1]
        %v1187 = vld [vmem:[%s986 + $0x38] sm:$0xf]
        %v1188 = vld [vmem:[%s986 + $0x3c] sm:$0x1]
        %v1190 = vshrl.u32 %v1173, 16
        %v1192 = vrot.slane %v1190, 4
        %v1193 = vshll.u32 %v1173, 16
        %v1195 = vrot.slane %v1193, 5
        %v1196 = vor.u32 %v1192, %v1195
        %v1197 = vrot.slane %v1196, 4
        %v1199 = vshll.u32 %v1174, 16
        %v1201 = vrot.slane %v1199, 5
        %v1202 = vsel %vm463, %v1197, %v1201
        %v1204 = vshrl.u32 %v1175, 16
        %v1206 = vrot.slane %v1204, 4
        %v1207 = vshll.u32 %v1175, 16
        %v1209 = vrot.slane %v1207, 5
        %v1210 = vor.u32 %v1206, %v1209
        %v1211 = vrot.slane %v1210, 4
        %v1213 = vshll.u32 %v1176, 16
        %v1215 = vrot.slane %v1213, 5
        %v1216 = vsel %vm463, %v1211, %v1215
        %v1218 = vshrl.u32 %v1177, 16
        %v1220 = vrot.slane %v1218, 4
        %v1221 = vshll.u32 %v1177, 16
        %v1223 = vrot.slane %v1221, 5
        %v1224 = vor.u32 %v1220, %v1223
        %v1225 = vrot.slane %v1224, 4
        %v1227 = vshll.u32 %v1178, 16
        %v1229 = vrot.slane %v1227, 5
        %v1230 = vsel %vm463, %v1225, %v1229
        %v1232 = vshrl.u32 %v1179, 16
        %v1234 = vrot.slane %v1232, 4
        %v1235 = vshll.u32 %v1179, 16
        %v1237 = vrot.slane %v1235, 5
        %v1238 = vor.u32 %v1234, %v1237
        %v1239 = vrot.slane %v1238, 4
        %v1241 = vshll.u32 %v1180, 16
        %v1243 = vrot.slane %v1241, 5
        %v1244 = vsel %vm463, %v1239, %v1243
        %v1246 = vshrl.u32 %v1181, 16
        %v1248 = vrot.slane %v1246, 4
        %v1249 = vshll.u32 %v1181, 16
        %v1251 = vrot.slane %v1249, 5
        %v1252 = vor.u32 %v1248, %v1251
        %v1253 = vrot.slane %v1252, 4
        %v1255 = vshll.u32 %v1182, 16
        %v1257 = vrot.slane %v1255, 5
        %v1258 = vsel %vm463, %v1253, %v1257
        %v1260 = vshrl.u32 %v1183, 16
        %v1262 = vrot.slane %v1260, 4
        %v1263 = vshll.u32 %v1183, 16
        %v1265 = vrot.slane %v1263, 5
        %v1266 = vor.u32 %v1262, %v1265
        %v1267 = vrot.slane %v1266, 4
        %v1269 = vshll.u32 %v1184, 16
        %v1271 = vrot.slane %v1269, 5
        %v1272 = vsel %vm463, %v1267, %v1271
        %v1274 = vshrl.u32 %v1185, 16
        %v1276 = vrot.slane %v1274, 4
        %v1277 = vshll.u32 %v1185, 16
        %v1279 = vrot.slane %v1277, 5
        %v1280 = vor.u32 %v1276, %v1279
        %v1281 = vrot.slane %v1280, 4
        %v1283 = vshll.u32 %v1186, 16
        %v1285 = vrot.slane %v1283, 5
        %v1286 = vsel %vm463, %v1281, %v1285
        %v1288 = vshrl.u32 %v1187, 16
        %v1290 = vrot.slane %v1288, 4
        %v1291 = vshll.u32 %v1187, 16
        %v1293 = vrot.slane %v1291, 5
        %v1294 = vor.u32 %v1290, %v1293
        %v1295 = vrot.slane %v1294, 4
        %v1297 = vshll.u32 %v1188, 16
        %v1299 = vrot.slane %v1297, 5
        %v1300 = vsel %vm463, %v1295, %v1299
        %s1301 = scalar_lea.vmem [#allocation6], 256
        %v1302 = vld [vmem:[%s1301] sm:$0xf]
        %v1303 = vld [vmem:[%s1301 + $0x4] sm:$0xf]
        %v1304 = vld [vmem:[%s1301 + $0x8] sm:$0xf]
        %v1305 = vld [vmem:[%s1301 + $0xc] sm:$0xf]
        %v1306 = vld [vmem:[%s1301 + $0x10] sm:$0xf]
        %v1307 = vld [vmem:[%s1301 + $0x14] sm:$0xf]
        %v1308 = vld [vmem:[%s1301 + $0x18] sm:$0xf]
        %v1309 = vld [vmem:[%s1301 + $0x1c] sm:$0xf]
        %v1310 = vld [vmem:[%s1301 + $0x20] sm:$0xf]
        %v1311 = vld [vmem:[%s1301 + $0x24] sm:$0xf]
        %v1312 = vld [vmem:[%s1301 + $0x28] sm:$0xf]
        %v1313 = vld [vmem:[%s1301 + $0x2c] sm:$0xf]
        %v1314 = vld [vmem:[%s1301 + $0x30] sm:$0xf]
        %v1315 = vld [vmem:[%s1301 + $0x34] sm:$0xf]
        %v1316 = vld [vmem:[%s1301 + $0x38] sm:$0xf]
        %v1317 = vld [vmem:[%s1301 + $0x3c] sm:$0xf]
        %v1318 = vunpack.c.l.b16 %v1202
        %v1319 = vunpack.c.l.b16 %v1216
        %v1320 = vunpack.c.l.b16 %v1230
        %v1321 = vunpack.c.l.b16 %v1244
        %v1322 = vunpack.c.l.b16 %v1258
        %v1323 = vunpack.c.l.b16 %v1272
        %v1324 = vunpack.c.l.b16 %v1286
        %v1325 = vunpack.c.l.b16 %v1300
        %v1326 = vpack.c.b16 %v1319, %v1318
        %v1327 = vpack.c.b16 %v1321, %v1320
        %v1328 = vpack.c.b16 %v1323, %v1322
        %v1329 = vpack.c.b16 %v1325, %v1324
        %v1350 = vunpack.c.l.b16 %v1302
        %v1351 = vunpack.c.l.b16 %v1303
        %v1352 = vunpack.c.l.b16 %v1304
        %v1353 = vunpack.c.l.b16 %v1305
        %v1354 = vunpack.c.l.b16 %v1306
        %v1355 = vunpack.c.l.b16 %v1307
        %v1356 = vunpack.c.l.b16 %v1308
        %v1357 = vunpack.c.l.b16 %v1309
        %v1358 = vunpack.c.l.b16 %v1310
        %v1359 = vunpack.c.l.b16 %v1311
        %v1360 = vunpack.c.l.b16 %v1312
        %v1361 = vunpack.c.l.b16 %v1313
        %v1362 = vunpack.c.l.b16 %v1314
        %v1363 = vunpack.c.l.b16 %v1315
        %v1364 = vunpack.c.l.b16 %v1316
        %v1365 = vunpack.c.l.b16 %v1317
        %v1366 = vpack.c.b16 %v1351, %v1350
        %v1367 = vpack.c.b16 %v1353, %v1352
        %v1368 = vpack.c.b16 %v1355, %v1354
        %v1369 = vpack.c.b16 %v1357, %v1356
        %v1370 = vpack.c.b16 %v1359, %v1358
        %v1371 = vpack.c.b16 %v1361, %v1360
        %v1372 = vpack.c.b16 %v1363, %v1362
        %v1373 = vpack.c.b16 %v1365, %v1364
        %1382 = vmatprep.subr.bf16.mxu0 0
        %1383 = vmatpush1.bf16.msra.mxu0 %v1366
        %1384 = vmatprep.subr.bf16.mxu0 0
        %1385 = vmatpush1.bf16.msra.mxu0 %v1367
        %1386 = vmatprep.subr.bf16.mxu0 0
        %1387 = vmatpush1.bf16.msra.mxu0 %v1368
        %1388 = vmatprep.subr.bf16.mxu0 0
        %1389 = vmatpush1.bf16.msra.mxu0 %v1369
        %1390 = vmatprep.subr.bf16.mxu0 0
        %1391 = vmatpush1.bf16.msra.mxu0 %v1370
        %1392 = vmatprep.subr.bf16.mxu0 0
        %1393 = vmatpush1.bf16.msra.mxu0 %v1371
        %1394 = vmatprep.subr.bf16.mxu0 0
        %1395 = vmatpush1.bf16.msra.mxu0 %v1372
        %1396 = vmatprep.subr.bf16.mxu0 0
        %1397 = vmatpush1.bf16.msra.mxu0 %v1373
        %1398 = vmatprep.subr.bf16.mxu0 0
        %1399 = vmatpush1.bf16.msra.mxu0 0
        %1400 = vmatprep.subr.bf16.mxu0 0
        %1401 = vmatpush1.bf16.msra.mxu0 0
        %1402 = vmatprep.subr.bf16.mxu0 0
        %1403 = vmatpush1.bf16.msra.mxu0 0
        %1404 = vmatprep.subr.bf16.mxu0 0
        %1405 = vmatpush1.bf16.msra.mxu0 0
        %1406 = vmatprep.subr.bf16.mxu0 0
        %1407 = vmatpush1.bf16.msra.mxu0 0
        %1408 = vmatprep.subr.bf16.mxu0 0
        %1409 = vmatpush1.bf16.msra.mxu0 0
        %1410 = vmatprep.subr.bf16.mxu0 0
        %1411 = vmatpush1.bf16.msra.mxu0 0
        %1412 = vmatprep.subr.bf16.mxu0 0
        %1413 = vmatpush1.bf16.msra.mxu0 0
        %1414 = vmatprep.mubr.bf16.mxu0 0
        %1415 = vmatmul.mubr.bf16.gmra.mrb[0].mxu0 %v1326
        %v1416 = vpop.f32.mrb[0].mxu0
        %v1417 = vadd.f32 0.0, %v1416
        %v1418 = vpop.f32.mrb[0].mxu0
        %v1419 = vpop.f32.mrb[0].mxu0
        %v1420 = vadd.f32 0.0, %v1419
        %v1421 = vpop.f32.mrb[0].mxu0
        %1422 = vmatprep.mubr.bf16.mxu0 0
        %1423 = vmatmul.mubr.bf16.gmra.mrb[0].mxu0 %v1327
        %v1424 = vpop.f32.mrb[0].mxu0
        %v1425 = vadd.f32 0.0, %v1424
        %v1426 = vpop.f32.mrb[0].mxu0
        %v1427 = vpop.f32.mrb[0].mxu0
        %v1428 = vadd.f32 0.0, %v1427
        %v1429 = vpop.f32.mrb[0].mxu0
        %1430 = vmatprep.mubr.bf16.mxu0 0
        %1431 = vmatmul.mubr.bf16.gmra.mrb[0].mxu0 %v1328
        %v1432 = vpop.f32.mrb[0].mxu0
        %v1433 = vadd.f32 0.0, %v1432
        %v1434 = vpop.f32.mrb[0].mxu0
        %v1435 = vpop.f32.mrb[0].mxu0
        %v1436 = vadd.f32 0.0, %v1435
        %v1437 = vpop.f32.mrb[0].mxu0
        %1438 = vmatprep.mubr.bf16.mxu0 0
        %1439 = vmatmul.mubr.bf16.gmra.mrb[0].mxu0 %v1329
        %v1440 = vpop.f32.mrb[0].mxu0
        %v1441 = vadd.f32 0.0, %v1440
        %v1442 = vpop.f32.mrb[0].mxu0
        %v1443 = vpop.f32.mrb[0].mxu0
        %v1444 = vadd.f32 0.0, %v1443
        %v1445 = vpop.f32.mrb[0].mxu0
        %1446 = vdwg.mxu0
        %v1447 = vld [vmem:[#allocation2] sm:$0xff]
        %v1448 = vld [vmem:[#allocation2 + $0x8] sm:$0xff]
        %v1449 = vld [vmem:[#allocation2 + $0x10] sm:$0xff]
        %v1450 = vld [vmem:[#allocation2 + $0x18] sm:$0xff]
        %v1451 = vld [vmem:[#allocation2 + $0x20] sm:$0xff]
        %v1452 = vld [vmem:[#allocation2 + $0x28] sm:$0xff]
        %v1453 = vld [vmem:[#allocation2 + $0x30] sm:$0xff]
        %v1454 = vld [vmem:[#allocation2 + $0x38] sm:$0xff]
        %v1455 = vadd.f32 %v1447, %v1417
        %v1456 = vadd.f32 %v1448, %v1420
        %v1457 = vadd.f32 %v1449, %v1425
        %v1458 = vadd.f32 %v1450, %v1428
        %v1459 = vadd.f32 %v1451, %v1433
        %v1460 = vadd.f32 %v1452, %v1436
        %v1461 = vadd.f32 %v1453, %v1441
        %v1462 = vadd.f32 %v1454, %v1444
        %1463 = vst [vmem:[#allocation2] sm:$0xff] %v1455
        %1464 = vst [vmem:[#allocation2 + $0x8] sm:$0xff] %v1456
        %1465 = vst [vmem:[#allocation2 + $0x10] sm:$0xff] %v1457
        %1466 = vst [vmem:[#allocation2 + $0x18] sm:$0xff] %v1458
        %1467 = vst [vmem:[#allocation2 + $0x20] sm:$0xff] %v1459
        %1468 = vst [vmem:[#allocation2 + $0x28] sm:$0xff] %v1460
        %1469 = vst [vmem:[#allocation2 + $0x30] sm:$0xff] %v1461
        %1470 = vst [vmem:[#allocation2 + $0x38] sm:$0xff] %v1462
        %v1471 = vld [vmem:[%s986] sm:$0xe]
        %v1472 = vld [vmem:[%s986 + $0x4] sm:$0x1]
        %v1473 = vld [vmem:[%s986 + $0x8] sm:$0xe]
        %v1474 = vld [vmem:[%s986 + $0xc] sm:$0x1]
        %v1475 = vld [vmem:[%s986 + $0x10] sm:$0xe]
        %v1476 = vld [vmem:[%s986 + $0x14] sm:$0x1]
        %v1477 = vld [vmem:[%s986 + $0x18] sm:$0xe]
        %v1478 = vld [vmem:[%s986 + $0x1c] sm:$0x1]
        %v1479 = vld [vmem:[%s986 + $0x20] sm:$0xe]
        %v1480 = vld [vmem:[%s986 + $0x24] sm:$0x1]
        %v1481 = vld [vmem:[%s986 + $0x28] sm:$0xe]
        %v1482 = vld [vmem:[%s986 + $0x2c] sm:$0x1]
        %v1483 = vld [vmem:[%s986 + $0x30] sm:$0xe]
        %v1484 = vld [vmem:[%s986 + $0x34] sm:$0x1]
        %v1485 = vld [vmem:[%s986 + $0x38] sm:$0xe]
        %v1486 = vld [vmem:[%s986 + $0x3c] sm:$0x1]
        %v1503 = vrot.slane %v1471, 5
        %v1504 = vrot.slane %v1503, 4
        %v1505 = vrot.slane %v1472, 5
        %v1506 = vsel %vm780, %v1504, %v1505
        %v1507 = vrot.slane %v1473, 5
        %v1508 = vrot.slane %v1507, 4
        %v1509 = vrot.slane %v1474, 5
        %v1510 = vsel %vm780, %v1508, %v1509
        %v1511 = vrot.slane %v1475, 5
        %v1512 = vrot.slane %v1511, 4
        %v1513 = vrot.slane %v1476, 5
        %v1514 = vsel %vm780, %v1512, %v1513
        %v1515 = vrot.slane %v1477, 5
        %v1516 = vrot.slane %v1515, 4
        %v1517 = vrot.slane %v1478, 5
        %v1518 = vsel %vm780, %v1516, %v1517
        %v1519 = vrot.slane %v1479, 5
        %v1520 = vrot.slane %v1519, 4
        %v1521 = vrot.slane %v1480, 5
        %v1522 = vsel %vm780, %v1520, %v1521
        %v1523 = vrot.slane %v1481, 5
        %v1524 = vrot.slane %v1523, 4
        %v1525 = vrot.slane %v1482, 5
        %v1526 = vsel %vm780, %v1524, %v1525
        %v1527 = vrot.slane %v1483, 5
        %v1528 = vrot.slane %v1527, 4
        %v1529 = vrot.slane %v1484, 5
        %v1530 = vsel %vm780, %v1528, %v1529
        %v1531 = vrot.slane %v1485, 5
        %v1532 = vrot.slane %v1531, 4
        %v1533 = vrot.slane %v1486, 5
        %v1534 = vsel %vm780, %v1532, %v1533
        %s1535 = scalar_lea.vmem [#allocation6], 320
        %v1536 = vld [vmem:[%s1535] sm:$0xf]
        %v1537 = vld [vmem:[%s1535 + $0x4] sm:$0xf]
        %v1538 = vld [vmem:[%s1535 + $0x8] sm:$0xf]
        %v1539 = vld [vmem:[%s1535 + $0xc] sm:$0xf]
        %v1540 = vld [vmem:[%s1535 + $0x10] sm:$0xf]
        %v1541 = vld [vmem:[%s1535 + $0x14] sm:$0xf]
        %v1542 = vld [vmem:[%s1535 + $0x18] sm:$0xf]
        %v1543 = vld [vmem:[%s1535 + $0x1c] sm:$0xf]
        %v1544 = vld [vmem:[%s1535 + $0x20] sm:$0xf]
        %v1545 = vld [vmem:[%s1535 + $0x24] sm:$0xf]
        %v1546 = vld [vmem:[%s1535 + $0x28] sm:$0xf]
        %v1547 = vld [vmem:[%s1535 + $0x2c] sm:$0xf]
        %v1548 = vld [vmem:[%s1535 + $0x30] sm:$0xf]
        %v1549 = vld [vmem:[%s1535 + $0x34] sm:$0xf]
        %v1550 = vld [vmem:[%s1535 + $0x38] sm:$0xf]
        %v1551 = vld [vmem:[%s1535 + $0x3c] sm:$0xf]
        %v1552 = vunpack.c.l.b16 %v1506
        %v1553 = vunpack.c.l.b16 %v1510
        %v1554 = vunpack.c.l.b16 %v1514
        %v1555 = vunpack.c.l.b16 %v1518
        %v1556 = vunpack.c.l.b16 %v1522
        %v1557 = vunpack.c.l.b16 %v1526
        %v1558 = vunpack.c.l.b16 %v1530
        %v1559 = vunpack.c.l.b16 %v1534
        %v1560 = vpack.c.b16 %v1553, %v1552
        %v1561 = vpack.c.b16 %v1555, %v1554
        %v1562 = vpack.c.b16 %v1557, %v1556
        %v1563 = vpack.c.b16 %v1559, %v1558
        %v1584 = vunpack.c.l.b16 %v1536
        %v1585 = vunpack.c.l.b16 %v1537
        %v1586 = vunpack.c.l.b16 %v1538
        %v1587 = vunpack.c.l.b16 %v1539
        %v1588 = vunpack.c.l.b16 %v1540
        %v1589 = vunpack.c.l.b16 %v1541
        %v1590 = vunpack.c.l.b16 %v1542
        %v1591 = vunpack.c.l.b16 %v1543
        %v1592 = vunpack.c.l.b16 %v1544
        %v1593 = vunpack.c.l.b16 %v1545
        %v1594 = vunpack.c.l.b16 %v1546
        %v1595 = vunpack.c.l.b16 %v1547
        %v1596 = vunpack.c.l.b16 %v1548
        %v1597 = vunpack.c.l.b16 %v1549
        %v1598 = vunpack.c.l.b16 %v1550
        %v1599 = vunpack.c.l.b16 %v1551
        %v1600 = vpack.c.b16 %v1585, %v1584
        %v1601 = vpack.c.b16 %v1587, %v1586
        %v1602 = vpack.c.b16 %v1589, %v1588
        %v1603 = vpack.c.b16 %v1591, %v1590
        %v1604 = vpack.c.b16 %v1593, %v1592
        %v1605 = vpack.c.b16 %v1595, %v1594
        %v1606 = vpack.c.b16 %v1597, %v1596
        %v1607 = vpack.c.b16 %v1599, %v1598
        %1616 = vmatprep.subr.bf16.mxu0 0
        %1617 = vmatpush1.bf16.msra.mxu0 %v1600
        %1618 = vmatprep.subr.bf16.mxu0 0
        %1619 = vmatpush1.bf16.msra.mxu0 %v1601
        %1620 = vmatprep.subr.bf16.mxu0 0
        %1621 = vmatpush1.bf16.msra.mxu0 %v1602
        %1622 = vmatprep.subr.bf16.mxu0 0
        %1623 = vmatpush1.bf16.msra.mxu0 %v1603
        %1624 = vmatprep.subr.bf16.mxu0 0
        %1625 = vmatpush1.bf16.msra.mxu0 %v1604
        %1626 = vmatprep.subr.bf16.mxu0 0
        %1627 = vmatpush1.bf16.msra.mxu0 %v1605
        %1628 = vmatprep.subr.bf16.mxu0 0
        %1629 = vmatpush1.bf16.msra.mxu0 %v1606
        %1630 = vmatprep.subr.bf16.mxu0 0
        %1631 = vmatpush1.bf16.msra.mxu0 %v1607
        %1632 = vmatprep.subr.bf16.mxu0 0
        %1633 = vmatpush1.bf16.msra.mxu0 0
        %1634 = vmatprep.subr.bf16.mxu0 0
        %1635 = vmatpush1.bf16.msra.mxu0 0
        %1636 = vmatprep.subr.bf16.mxu0 0
        %1637 = vmatpush1.bf16.msra.mxu0 0
        %1638 = vmatprep.subr.bf16.mxu0 0
        %1639 = vmatpush1.bf16.msra.mxu0 0
        %1640 = vmatprep.subr.bf16.mxu0 0
        %1641 = vmatpush1.bf16.msra.mxu0 0
        %1642 = vmatprep.subr.bf16.mxu0 0
        %1643 = vmatpush1.bf16.msra.mxu0 0
        %1644 = vmatprep.subr.bf16.mxu0 0
        %1645 = vmatpush1.bf16.msra.mxu0 0
        %1646 = vmatprep.subr.bf16.mxu0 0
        %1647 = vmatpush1.bf16.msra.mxu0 0
        %1648 = vmatprep.mubr.bf16.mxu0 0
        %1649 = vmatmul.mubr.bf16.gmra.mrb[0].mxu0 %v1560
        %v1650 = vpop.f32.mrb[0].mxu0
        %v1651 = vadd.f32 0.0, %v1650
        %v1652 = vpop.f32.mrb[0].mxu0
        %v1653 = vpop.f32.mrb[0].mxu0
        %v1654 = vadd.f32 0.0, %v1653
        %v1655 = vpop.f32.mrb[0].mxu0
        %1656 = vmatprep.mubr.bf16.mxu0 0
        %1657 = vmatmul.mubr.bf16.gmra.mrb[0].mxu0 %v1561
        %v1658 = vpop.f32.mrb[0].mxu0
        %v1659 = vadd.f32 0.0, %v1658
        %v1660 = vpop.f32.mrb[0].mxu0
        %v1661 = vpop.f32.mrb[0].mxu0
        %v1662 = vadd.f32 0.0, %v1661
        %v1663 = vpop.f32.mrb[0].mxu0
        %1664 = vmatprep.mubr.bf16.mxu0 0
        %1665 = vmatmul.mubr.bf16.gmra.mrb[0].mxu0 %v1562
        %v1666 = vpop.f32.mrb[0].mxu0
        %v1667 = vadd.f32 0.0, %v1666
        %v1668 = vpop.f32.mrb[0].mxu0
        %v1669 = vpop.f32.mrb[0].mxu0
        %v1670 = vadd.f32 0.0, %v1669
        %v1671 = vpop.f32.mrb[0].mxu0
        %1672 = vmatprep.mubr.bf16.mxu0 0
        %1673 = vmatmul.mubr.bf16.gmra.mrb[0].mxu0 %v1563
        %v1674 = vpop.f32.mrb[0].mxu0
        %v1675 = vadd.f32 0.0, %v1674
        %v1676 = vpop.f32.mrb[0].mxu0
        %v1677 = vpop.f32.mrb[0].mxu0
        %v1678 = vadd.f32 0.0, %v1677
        %v1679 = vpop.f32.mrb[0].mxu0
        %1680 = vdwg.mxu0
        %v1681 = vld [vmem:[#allocation2] sm:$0xff]
        %v1682 = vld [vmem:[#allocation2 + $0x8] sm:$0xff]
        %v1683 = vld [vmem:[#allocation2 + $0x10] sm:$0xff]
        %v1684 = vld [vmem:[#allocation2 + $0x18] sm:$0xff]
        %v1685 = vld [vmem:[#allocation2 + $0x20] sm:$0xff]
        %v1686 = vld [vmem:[#allocation2 + $0x28] sm:$0xff]
        %v1687 = vld [vmem:[#allocation2 + $0x30] sm:$0xff]
        %v1688 = vld [vmem:[#allocation2 + $0x38] sm:$0xff]
        %v1689 = vadd.f32 %v1681, %v1651
        %v1690 = vadd.f32 %v1682, %v1654
        %v1691 = vadd.f32 %v1683, %v1659
        %v1692 = vadd.f32 %v1684, %v1662
        %v1693 = vadd.f32 %v1685, %v1667
        %v1694 = vadd.f32 %v1686, %v1670
        %v1695 = vadd.f32 %v1687, %v1675
        %v1696 = vadd.f32 %v1688, %v1678
        %1697 = vst [vmem:[#allocation2] sm:$0xff] %v1689
        %1698 = vst [vmem:[#allocation2 + $0x8] sm:$0xff] %v1690
        %1699 = vst [vmem:[#allocation2 + $0x10] sm:$0xff] %v1691
        %1700 = vst [vmem:[#allocation2 + $0x18] sm:$0xff] %v1692
        %1701 = vst [vmem:[#allocation2 + $0x20] sm:$0xff] %v1693
        %1702 = vst [vmem:[#allocation2 + $0x28] sm:$0xff] %v1694
        %1703 = vst [vmem:[#allocation2 + $0x30] sm:$0xff] %v1695
        %1704 = vst [vmem:[#allocation2 + $0x38] sm:$0xff] %v1696
        %s1705 = sadd.s32 %s272, 2
        %s1706 = smul.u32 %s1705, 2
        %s1707 = smul.addr %s1706, 4
        %s1708 = scalar_lea.vmem %s233, %s1707 [#allocation3]
        %v1709 = vld [vmem:[%s1708] sm:$0xf]
        %v1710 = vld [vmem:[%s1708 + $0x8] sm:$0xf]
        %v1711 = vld [vmem:[%s1708 + $0x10] sm:$0xf]
        %v1712 = vld [vmem:[%s1708 + $0x18] sm:$0xf]
        %v1713 = vld [vmem:[%s1708 + $0x20] sm:$0xf]
        %v1714 = vld [vmem:[%s1708 + $0x28] sm:$0xf]
        %v1715 = vld [vmem:[%s1708 + $0x30] sm:$0xf]
        %v1716 = vld [vmem:[%s1708 + $0x38] sm:$0xf]
        %s1717 = scalar_lea.vmem [#allocation6], 384
        %v1718 = vld [vmem:[%s1717] sm:$0xf]
        %v1719 = vld [vmem:[%s1717 + $0x4] sm:$0xf]
        %v1720 = vld [vmem:[%s1717 + $0x8] sm:$0xf]
        %v1721 = vld [vmem:[%s1717 + $0xc] sm:$0xf]
        %v1722 = vld [vmem:[%s1717 + $0x10] sm:$0xf]
        %v1723 = vld [vmem:[%s1717 + $0x14] sm:$0xf]
        %v1724 = vld [vmem:[%s1717 + $0x18] sm:$0xf]
        %v1725 = vld [vmem:[%s1717 + $0x1c] sm:$0xf]
        %v1726 = vld [vmem:[%s1717 + $0x20] sm:$0xf]
        %v1727 = vld [vmem:[%s1717 + $0x24] sm:$0xf]
        %v1728 = vld [vmem:[%s1717 + $0x28] sm:$0xf]
        %v1729 = vld [vmem:[%s1717 + $0x2c] sm:$0xf]
        %v1730 = vld [vmem:[%s1717 + $0x30] sm:$0xf]
        %v1731 = vld [vmem:[%s1717 + $0x34] sm:$0xf]
        %v1732 = vld [vmem:[%s1717 + $0x38] sm:$0xf]
        %v1733 = vld [vmem:[%s1717 + $0x3c] sm:$0xf]
        %v1742 = vunpack.c.l.b16 %v1709
        %v1743 = vunpack.c.l.b16 %v1710
        %v1744 = vunpack.c.l.b16 %v1711
        %v1745 = vunpack.c.l.b16 %v1712
        %v1746 = vunpack.c.l.b16 %v1713
        %v1747 = vunpack.c.l.b16 %v1714
        %v1748 = vunpack.c.l.b16 %v1715
        %v1749 = vunpack.c.l.b16 %v1716
        %v1750 = vpack.c.b16 %v1743, %v1742
        %v1751 = vpack.c.b16 %v1745, %v1744
        %v1752 = vpack.c.b16 %v1747, %v1746
        %v1753 = vpack.c.b16 %v1749, %v1748
        %v1774 = vunpack.c.l.b16 %v1718
        %v1775 = vunpack.c.l.b16 %v1719
        %v1776 = vunpack.c.l.b16 %v1720
        %v1777 = vunpack.c.l.b16 %v1721
        %v1778 = vunpack.c.l.b16 %v1722
        %v1779 = vunpack.c.l.b16 %v1723
        %v1780 = vunpack.c.l.b16 %v1724
        %v1781 = vunpack.c.l.b16 %v1725
        %v1782 = vunpack.c.l.b16 %v1726
        %v1783 = vunpack.c.l.b16 %v1727
        %v1784 = vunpack.c.l.b16 %v1728
        %v1785 = vunpack.c.l.b16 %v1729
        %v1786 = vunpack.c.l.b16 %v1730
        %v1787 = vunpack.c.l.b16 %v1731
        %v1788 = vunpack.c.l.b16 %v1732
        %v1789 = vunpack.c.l.b16 %v1733
        %v1790 = vpack.c.b16 %v1775, %v1774
        %v1791 = vpack.c.b16 %v1777, %v1776
        %v1792 = vpack.c.b16 %v1779, %v1778
        %v1793 = vpack.c.b16 %v1781, %v1780
        %v1794 = vpack.c.b16 %v1783, %v1782
        %v1795 = vpack.c.b16 %v1785, %v1784
        %v1796 = vpack.c.b16 %v1787, %v1786
        %v1797 = vpack.c.b16 %v1789, %v1788
        %1806 = vmatprep.subr.bf16.mxu0 0
        %1807 = vmatpush1.bf16.msra.mxu0 %v1790
        %1808 = vmatprep.subr.bf16.mxu0 0
        %1809 = vmatpush1.bf16.msra.mxu0 %v1791
        %1810 = vmatprep.subr.bf16.mxu0 0
        %1811 = vmatpush1.bf16.msra.mxu0 %v1792
        %1812 = vmatprep.subr.bf16.mxu0 0
        %1813 = vmatpush1.bf16.msra.mxu0 %v1793
        %1814 = vmatprep.subr.bf16.mxu0 0
        %1815 = vmatpush1.bf16.msra.mxu0 %v1794
        %1816 = vmatprep.subr.bf16.mxu0 0
        %1817 = vmatpush1.bf16.msra.mxu0 %v1795
        %1818 = vmatprep.subr.bf16.mxu0 0
        %1819 = vmatpush1.bf16.msra.mxu0 %v1796
        %1820 = vmatprep.subr.bf16.mxu0 0
        %1821 = vmatpush1.bf16.msra.mxu0 %v1797
        %1822 = vmatprep.subr.bf16.mxu0 0
        %1823 = vmatpush1.bf16.msra.mxu0 0
        %1824 = vmatprep.subr.bf16.mxu0 0
        %1825 = vmatpush1.bf16.msra.mxu0 0
        %1826 = vmatprep.subr.bf16.mxu0 0
        %1827 = vmatpush1.bf16.msra.mxu0 0
        %1828 = vmatprep.subr.bf16.mxu0 0
        %1829 = vmatpush1.bf16.msra.mxu0 0
        %1830 = vmatprep.subr.bf16.mxu0 0
        %1831 = vmatpush1.bf16.msra.mxu0 0
        %1832 = vmatprep.subr.bf16.mxu0 0
        %1833 = vmatpush1.bf16.msra.mxu0 0
        %1834 = vmatprep.subr.bf16.mxu0 0
        %1835 = vmatpush1.bf16.msra.mxu0 0
        %1836 = vmatprep.subr.bf16.mxu0 0
        %1837 = vmatpush1.bf16.msra.mxu0 0
        %1838 = vmatprep.mubr.bf16.mxu0 0
        %1839 = vmatmul.mubr.bf16.gmra.mrb[0].mxu0 %v1750
        %v1840 = vpop.f32.mrb[0].mxu0
        %v1841 = vadd.f32 0.0, %v1840
        %v1842 = vpop.f32.mrb[0].mxu0
        %v1843 = vpop.f32.mrb[0].mxu0
        %v1844 = vadd.f32 0.0, %v1843
        %v1845 = vpop.f32.mrb[0].mxu0
        %1846 = vmatprep.mubr.bf16.mxu0 0
        %1847 = vmatmul.mubr.bf16.gmra.mrb[0].mxu0 %v1751
        %v1848 = vpop.f32.mrb[0].mxu0
        %v1849 = vadd.f32 0.0, %v1848
        %v1850 = vpop.f32.mrb[0].mxu0
        %v1851 = vpop.f32.mrb[0].mxu0
        %v1852 = vadd.f32 0.0, %v1851
        %v1853 = vpop.f32.mrb[0].mxu0
        %1854 = vmatprep.mubr.bf16.mxu0 0
        %1855 = vmatmul.mubr.bf16.gmra.mrb[0].mxu0 %v1752
        %v1856 = vpop.f32.mrb[0].mxu0
        %v1857 = vadd.f32 0.0, %v1856
        %v1858 = vpop.f32.mrb[0].mxu0
        %v1859 = vpop.f32.mrb[0].mxu0
        %v1860 = vadd.f32 0.0, %v1859
        %v1861 = vpop.f32.mrb[0].mxu0
        %1862 = vmatprep.mubr.bf16.mxu0 0
        %1863 = vmatmul.mubr.bf16.gmra.mrb[0].mxu0 %v1753
        %v1864 = vpop.f32.mrb[0].mxu0
        %v1865 = vadd.f32 0.0, %v1864
        %v1866 = vpop.f32.mrb[0].mxu0
        %v1867 = vpop.f32.mrb[0].mxu0
        %v1868 = vadd.f32 0.0, %v1867
        %v1869 = vpop.f32.mrb[0].mxu0
        %1870 = vdwg.mxu0
        %v1871 = vld [vmem:[#allocation2] sm:$0xff]
        %v1872 = vld [vmem:[#allocation2 + $0x8] sm:$0xff]
        %v1873 = vld [vmem:[#allocation2 + $0x10] sm:$0xff]
        %v1874 = vld [vmem:[#allocation2 + $0x18] sm:$0xff]
        %v1875 = vld [vmem:[#allocation2 + $0x20] sm:$0xff]
        %v1876 = vld [vmem:[#allocation2 + $0x28] sm:$0xff]
        %v1877 = vld [vmem:[#allocation2 + $0x30] sm:$0xff]
        %v1878 = vld [vmem:[#allocation2 + $0x38] sm:$0xff]
        %v1879 = vadd.f32 %v1871, %v1841
        %v1880 = vadd.f32 %v1872, %v1844
        %v1881 = vadd.f32 %v1873, %v1849
        %v1882 = vadd.f32 %v1874, %v1852
        %v1883 = vadd.f32 %v1875, %v1857
        %v1884 = vadd.f32 %v1876, %v1860
        %v1885 = vadd.f32 %v1877, %v1865
        %v1886 = vadd.f32 %v1878, %v1868
        %1887 = vst [vmem:[#allocation2] sm:$0xff] %v1879
        %1888 = vst [vmem:[#allocation2 + $0x8] sm:$0xff] %v1880
        %1889 = vst [vmem:[#allocation2 + $0x10] sm:$0xff] %v1881
        %1890 = vst [vmem:[#allocation2 + $0x18] sm:$0xff] %v1882
        %1891 = vst [vmem:[#allocation2 + $0x20] sm:$0xff] %v1883
        %1892 = vst [vmem:[#allocation2 + $0x28] sm:$0xff] %v1884
        %1893 = vst [vmem:[#allocation2 + $0x30] sm:$0xff] %v1885
        %1894 = vst [vmem:[#allocation2 + $0x38] sm:$0xff] %v1886
        %v1895 = vld [vmem:[%s1708] sm:$0xf]
        %v1896 = vld [vmem:[%s1708 + $0x4] sm:$0x1]
        %v1897 = vld [vmem:[%s1708 + $0x8] sm:$0xf]
        %v1898 = vld [vmem:[%s1708 + $0xc] sm:$0x1]
        %v1899 = vld [vmem:[%s1708 + $0x10] sm:$0xf]
        %v1900 = vld [vmem:[%s1708 + $0x14] sm:$0x1]
        %v1901 = vld [vmem:[%s1708 + $0x18] sm:$0xf]
        %v1902 = vld [vmem:[%s1708 + $0x1c] sm:$0x1]
        %v1903 = vld [vmem:[%s1708 + $0x20] sm:$0xf]
        %v1904 = vld [vmem:[%s1708 + $0x24] sm:$0x1]
        %v1905 = vld [vmem:[%s1708 + $0x28] sm:$0xf]
        %v1906 = vld [vmem:[%s1708 + $0x2c] sm:$0x1]
        %v1907 = vld [vmem:[%s1708 + $0x30] sm:$0xf]
        %v1908 = vld [vmem:[%s1708 + $0x34] sm:$0x1]
        %v1909 = vld [vmem:[%s1708 + $0x38] sm:$0xf]
        %v1910 = vld [vmem:[%s1708 + $0x3c] sm:$0x1]
        %v1912 = vshrl.u32 %v1895, 16
        %v1914 = vrot.slane %v1912, 4
        %v1915 = vshll.u32 %v1895, 16
        %v1917 = vrot.slane %v1915, 5
        %v1918 = vor.u32 %v1914, %v1917
        %v1919 = vrot.slane %v1918, 4
        %v1921 = vshll.u32 %v1896, 16
        %v1923 = vrot.slane %v1921, 5
        %v1924 = vsel %vm463, %v1919, %v1923
        %v1926 = vshrl.u32 %v1897, 16
        %v1928 = vrot.slane %v1926, 4
        %v1929 = vshll.u32 %v1897, 16
        %v1931 = vrot.slane %v1929, 5
        %v1932 = vor.u32 %v1928, %v1931
        %v1933 = vrot.slane %v1932, 4
        %v1935 = vshll.u32 %v1898, 16
        %v1937 = vrot.slane %v1935, 5
        %v1938 = vsel %vm463, %v1933, %v1937
        %v1940 = vshrl.u32 %v1899, 16
        %v1942 = vrot.slane %v1940, 4
        %v1943 = vshll.u32 %v1899, 16
        %v1945 = vrot.slane %v1943, 5
        %v1946 = vor.u32 %v1942, %v1945
        %v1947 = vrot.slane %v1946, 4
        %v1949 = vshll.u32 %v1900, 16
        %v1951 = vrot.slane %v1949, 5
        %v1952 = vsel %vm463, %v1947, %v1951
        %v1954 = vshrl.u32 %v1901, 16
        %v1956 = vrot.slane %v1954, 4
        %v1957 = vshll.u32 %v1901, 16
        %v1959 = vrot.slane %v1957, 5
        %v1960 = vor.u32 %v1956, %v1959
        %v1961 = vrot.slane %v1960, 4
        %v1963 = vshll.u32 %v1902, 16
        %v1965 = vrot.slane %v1963, 5
        %v1966 = vsel %vm463, %v1961, %v1965
        %v1968 = vshrl.u32 %v1903, 16
        %v1970 = vrot.slane %v1968, 4
        %v1971 = vshll.u32 %v1903, 16
        %v1973 = vrot.slane %v1971, 5
        %v1974 = vor.u32 %v1970, %v1973
        %v1975 = vrot.slane %v1974, 4
        %v1977 = vshll.u32 %v1904, 16
        %v1979 = vrot.slane %v1977, 5
        %v1980 = vsel %vm463, %v1975, %v1979
        %v1982 = vshrl.u32 %v1905, 16
        %v1984 = vrot.slane %v1982, 4
        %v1985 = vshll.u32 %v1905, 16
        %v1987 = vrot.slane %v1985, 5
        %v1988 = vor.u32 %v1984, %v1987
        %v1989 = vrot.slane %v1988, 4
        %v1991 = vshll.u32 %v1906, 16
        %v1993 = vrot.slane %v1991, 5
        %v1994 = vsel %vm463, %v1989, %v1993
        %v1996 = vshrl.u32 %v1907, 16
        %v1998 = vrot.slane %v1996, 4
        %v1999 = vshll.u32 %v1907, 16
        %v2001 = vrot.slane %v1999, 5
        %v2002 = vor.u32 %v1998, %v2001
        %v2003 = vrot.slane %v2002, 4
        %v2005 = vshll.u32 %v1908, 16
        %v2007 = vrot.slane %v2005, 5
        %v2008 = vsel %vm463, %v2003, %v2007
        %v2010 = vshrl.u32 %v1909, 16
        %v2012 = vrot.slane %v2010, 4
        %v2013 = vshll.u32 %v1909, 16
        %v2015 = vrot.slane %v2013, 5
        %v2016 = vor.u32 %v2012, %v2015
        %v2017 = vrot.slane %v2016, 4
        %v2019 = vshll.u32 %v1910, 16
        %v2021 = vrot.slane %v2019, 5
        %v2022 = vsel %vm463, %v2017, %v2021
        %s2023 = scalar_lea.vmem [#allocation6], 448
        %v2024 = vld [vmem:[%s2023] sm:$0xf]
        %v2025 = vld [vmem:[%s2023 + $0x4] sm:$0xf]
        %v2026 = vld [vmem:[%s2023 + $0x8] sm:$0xf]
        %v2027 = vld [vmem:[%s2023 + $0xc] sm:$0xf]
        %v2028 = vld [vmem:[%s2023 + $0x10] sm:$0xf]
        %v2029 = vld [vmem:[%s2023 + $0x14] sm:$0xf]
        %v2030 = vld [vmem:[%s2023 + $0x18] sm:$0xf]
        %v2031 = vld [vmem:[%s2023 + $0x1c] sm:$0xf]
        %v2032 = vld [vmem:[%s2023 + $0x20] sm:$0xf]
        %v2033 = vld [vmem:[%s2023 + $0x24] sm:$0xf]
        %v2034 = vld [vmem:[%s2023 + $0x28] sm:$0xf]
        %v2035 = vld [vmem:[%s2023 + $0x2c] sm:$0xf]
        %v2036 = vld [vmem:[%s2023 + $0x30] sm:$0xf]
        %v2037 = vld [vmem:[%s2023 + $0x34] sm:$0xf]
        %v2038 = vld [vmem:[%s2023 + $0x38] sm:$0xf]
        %v2039 = vld [vmem:[%s2023 + $0x3c] sm:$0xf]
        %v2040 = vunpack.c.l.b16 %v1924
        %v2041 = vunpack.c.l.b16 %v1938
        %v2042 = vunpack.c.l.b16 %v1952
        %v2043 = vunpack.c.l.b16 %v1966
        %v2044 = vunpack.c.l.b16 %v1980
        %v2045 = vunpack.c.l.b16 %v1994
        %v2046 = vunpack.c.l.b16 %v2008
        %v2047 = vunpack.c.l.b16 %v2022
        %v2048 = vpack.c.b16 %v2041, %v2040
        %v2049 = vpack.c.b16 %v2043, %v2042
        %v2050 = vpack.c.b16 %v2045, %v2044
        %v2051 = vpack.c.b16 %v2047, %v2046
        %v2072 = vunpack.c.l.b16 %v2024
        %v2073 = vunpack.c.l.b16 %v2025
        %v2074 = vunpack.c.l.b16 %v2026
        %v2075 = vunpack.c.l.b16 %v2027
        %v2076 = vunpack.c.l.b16 %v2028
        %v2077 = vunpack.c.l.b16 %v2029
        %v2078 = vunpack.c.l.b16 %v2030
        %v2079 = vunpack.c.l.b16 %v2031
        %v2080 = vunpack.c.l.b16 %v2032
        %v2081 = vunpack.c.l.b16 %v2033
        %v2082 = vunpack.c.l.b16 %v2034
        %v2083 = vunpack.c.l.b16 %v2035
        %v2084 = vunpack.c.l.b16 %v2036
        %v2085 = vunpack.c.l.b16 %v2037
        %v2086 = vunpack.c.l.b16 %v2038
        %v2087 = vunpack.c.l.b16 %v2039
        %v2088 = vpack.c.b16 %v2073, %v2072
        %v2089 = vpack.c.b16 %v2075, %v2074
        %v2090 = vpack.c.b16 %v2077, %v2076
        %v2091 = vpack.c.b16 %v2079, %v2078
        %v2092 = vpack.c.b16 %v2081, %v2080
        %v2093 = vpack.c.b16 %v2083, %v2082
        %v2094 = vpack.c.b16 %v2085, %v2084
        %v2095 = vpack.c.b16 %v2087, %v2086
        %2104 = vmatprep.subr.bf16.mxu0 0
        %2105 = vmatpush1.bf16.msra.mxu0 %v2088
        %2106 = vmatprep.subr.bf16.mxu0 0
        %2107 = vmatpush1.bf16.msra.mxu0 %v2089
        %2108 = vmatprep.subr.bf16.mxu0 0
        %2109 = vmatpush1.bf16.msra.mxu0 %v2090
        %2110 = vmatprep.subr.bf16.mxu0 0
        %2111 = vmatpush1.bf16.msra.mxu0 %v2091
        %2112 = vmatprep.subr.bf16.mxu0 0
        %2113 = vmatpush1.bf16.msra.mxu0 %v2092
        %2114 = vmatprep.subr.bf16.mxu0 0
        %2115 = vmatpush1.bf16.msra.mxu0 %v2093
        %2116 = vmatprep.subr.bf16.mxu0 0
        %2117 = vmatpush1.bf16.msra.mxu0 %v2094
        %2118 = vmatprep.subr.bf16.mxu0 0
        %2119 = vmatpush1.bf16.msra.mxu0 %v2095
        %2120 = vmatprep.subr.bf16.mxu0 0
        %2121 = vmatpush1.bf16.msra.mxu0 0
        %2122 = vmatprep.subr.bf16.mxu0 0
        %2123 = vmatpush1.bf16.msra.mxu0 0
        %2124 = vmatprep.subr.bf16.mxu0 0
        %2125 = vmatpush1.bf16.msra.mxu0 0
        %2126 = vmatprep.subr.bf16.mxu0 0
        %2127 = vmatpush1.bf16.msra.mxu0 0
        %2128 = vmatprep.subr.bf16.mxu0 0
        %2129 = vmatpush1.bf16.msra.mxu0 0
        %2130 = vmatprep.subr.bf16.mxu0 0
        %2131 = vmatpush1.bf16.msra.mxu0 0
        %2132 = vmatprep.subr.bf16.mxu0 0
        %2133 = vmatpush1.bf16.msra.mxu0 0
        %2134 = vmatprep.subr.bf16.mxu0 0
        %2135 = vmatpush1.bf16.msra.mxu0 0
        %2136 = vmatprep.mubr.bf16.mxu0 0
        %2137 = vmatmul.mubr.bf16.gmra.mrb[0].mxu0 %v2048
        %v2138 = vpop.f32.mrb[0].mxu0
        %v2139 = vadd.f32 0.0, %v2138
        %v2140 = vpop.f32.mrb[0].mxu0
        %v2141 = vpop.f32.mrb[0].mxu0
        %v2142 = vadd.f32 0.0, %v2141
        %v2143 = vpop.f32.mrb[0].mxu0
        %2144 = vmatprep.mubr.bf16.mxu0 0
        %2145 = vmatmul.mubr.bf16.gmra.mrb[0].mxu0 %v2049
        %v2146 = vpop.f32.mrb[0].mxu0
        %v2147 = vadd.f32 0.0, %v2146
        %v2148 = vpop.f32.mrb[0].mxu0
        %v2149 = vpop.f32.mrb[0].mxu0
        %v2150 = vadd.f32 0.0, %v2149
        %v2151 = vpop.f32.mrb[0].mxu0
        %2152 = vmatprep.mubr.bf16.mxu0 0
        %2153 = vmatmul.mubr.bf16.gmra.mrb[0].mxu0 %v2050
        %v2154 = vpop.f32.mrb[0].mxu0
        %v2155 = vadd.f32 0.0, %v2154
        %v2156 = vpop.f32.mrb[0].mxu0
        %v2157 = vpop.f32.mrb[0].mxu0
        %v2158 = vadd.f32 0.0, %v2157
        %v2159 = vpop.f32.mrb[0].mxu0
        %2160 = vmatprep.mubr.bf16.mxu0 0
        %2161 = vmatmul.mubr.bf16.gmra.mrb[0].mxu0 %v2051
        %v2162 = vpop.f32.mrb[0].mxu0
        %v2163 = vadd.f32 0.0, %v2162
        %v2164 = vpop.f32.mrb[0].mxu0
        %v2165 = vpop.f32.mrb[0].mxu0
        %v2166 = vadd.f32 0.0, %v2165
        %v2167 = vpop.f32.mrb[0].mxu0
        %2168 = vdwg.mxu0
        %v2169 = vld [vmem:[#allocation2] sm:$0xff]
        %v2170 = vld [vmem:[#allocation2 + $0x8] sm:$0xff]
        %v2171 = vld [vmem:[#allocation2 + $0x10] sm:$0xff]
        %v2172 = vld [vmem:[#allocation2 + $0x18] sm:$0xff]
        %v2173 = vld [vmem:[#allocation2 + $0x20] sm:$0xff]
        %v2174 = vld [vmem:[#allocation2 + $0x28] sm:$0xff]
        %v2175 = vld [vmem:[#allocation2 + $0x30] sm:$0xff]
        %v2176 = vld [vmem:[#allocation2 + $0x38] sm:$0xff]
        %v2177 = vadd.f32 %v2169, %v2139
        %v2178 = vadd.f32 %v2170, %v2142
        %v2179 = vadd.f32 %v2171, %v2147
        %v2180 = vadd.f32 %v2172, %v2150
        %v2181 = vadd.f32 %v2173, %v2155
        %v2182 = vadd.f32 %v2174, %v2158
        %v2183 = vadd.f32 %v2175, %v2163
        %v2184 = vadd.f32 %v2176, %v2166
        %2185 = vst [vmem:[#allocation2] sm:$0xff] %v2177
        %2186 = vst [vmem:[#allocation2 + $0x8] sm:$0xff] %v2178
        %2187 = vst [vmem:[#allocation2 + $0x10] sm:$0xff] %v2179
        %2188 = vst [vmem:[#allocation2 + $0x18] sm:$0xff] %v2180
        %2189 = vst [vmem:[#allocation2 + $0x20] sm:$0xff] %v2181
        %2190 = vst [vmem:[#allocation2 + $0x28] sm:$0xff] %v2182
        %2191 = vst [vmem:[#allocation2 + $0x30] sm:$0xff] %v2183
        %2192 = vst [vmem:[#allocation2 + $0x38] sm:$0xff] %v2184
        %v2193 = vld [vmem:[%s1708] sm:$0xe]
        %v2194 = vld [vmem:[%s1708 + $0x4] sm:$0x1]
        %v2195 = vld [vmem:[%s1708 + $0x8] sm:$0xe]
        %v2196 = vld [vmem:[%s1708 + $0xc] sm:$0x1]
        %v2197 = vld [vmem:[%s1708 + $0x10] sm:$0xe]
        %v2198 = vld [vmem:[%s1708 + $0x14] sm:$0x1]
        %v2199 = vld [vmem:[%s1708 + $0x18] sm:$0xe]
        %v2200 = vld [vmem:[%s1708 + $0x1c] sm:$0x1]
        %v2201 = vld [vmem:[%s1708 + $0x20] sm:$0xe]
        %v2202 = vld [vmem:[%s1708 + $0x24] sm:$0x1]
        %v2203 = vld [vmem:[%s1708 + $0x28] sm:$0xe]
        %v2204 = vld [vmem:[%s1708 + $0x2c] sm:$0x1]
        %v2205 = vld [vmem:[%s1708 + $0x30] sm:$0xe]
        %v2206 = vld [vmem:[%s1708 + $0x34] sm:$0x1]
        %v2207 = vld [vmem:[%s1708 + $0x38] sm:$0xe]
        %v2208 = vld [vmem:[%s1708 + $0x3c] sm:$0x1]
        %v2225 = vrot.slane %v2193, 5
        %v2226 = vrot.slane %v2225, 4
        %v2227 = vrot.slane %v2194, 5
        %v2228 = vsel %vm780, %v2226, %v2227
        %v2229 = vrot.slane %v2195, 5
        %v2230 = vrot.slane %v2229, 4
        %v2231 = vrot.slane %v2196, 5
        %v2232 = vsel %vm780, %v2230, %v2231
        %v2233 = vrot.slane %v2197, 5
        %v2234 = vrot.slane %v2233, 4
        %v2235 = vrot.slane %v2198, 5
        %v2236 = vsel %vm780, %v2234, %v2235
        %v2237 = vrot.slane %v2199, 5
        %v2238 = vrot.slane %v2237, 4
        %v2239 = vrot.slane %v2200, 5
        %v2240 = vsel %vm780, %v2238, %v2239
        %v2241 = vrot.slane %v2201, 5
        %v2242 = vrot.slane %v2241, 4
        %v2243 = vrot.slane %v2202, 5
        %v2244 = vsel %vm780, %v2242, %v2243
        %v2245 = vrot.slane %v2203, 5
        %v2246 = vrot.slane %v2245, 4
        %v2247 = vrot.slane %v2204, 5
        %v2248 = vsel %vm780, %v2246, %v2247
        %v2249 = vrot.slane %v2205, 5
        %v2250 = vrot.slane %v2249, 4
        %v2251 = vrot.slane %v2206, 5
        %v2252 = vsel %vm780, %v2250, %v2251
        %v2253 = vrot.slane %v2207, 5
        %v2254 = vrot.slane %v2253, 4
        %v2255 = vrot.slane %v2208, 5
        %v2256 = vsel %vm780, %v2254, %v2255
        %s2257 = scalar_lea.vmem [#allocation6], 512
        %v2258 = vld [vmem:[%s2257] sm:$0xf]
        %v2259 = vld [vmem:[%s2257 + $0x4] sm:$0xf]
        %v2260 = vld [vmem:[%s2257 + $0x8] sm:$0xf]
        %v2261 = vld [vmem:[%s2257 + $0xc] sm:$0xf]
        %v2262 = vld [vmem:[%s2257 + $0x10] sm:$0xf]
        %v2263 = vld [vmem:[%s2257 + $0x14] sm:$0xf]
        %v2264 = vld [vmem:[%s2257 + $0x18] sm:$0xf]
        %v2265 = vld [vmem:[%s2257 + $0x1c] sm:$0xf]
        %v2266 = vld [vmem:[%s2257 + $0x20] sm:$0xf]
        %v2267 = vld [vmem:[%s2257 + $0x24] sm:$0xf]
        %v2268 = vld [vmem:[%s2257 + $0x28] sm:$0xf]
        %v2269 = vld [vmem:[%s2257 + $0x2c] sm:$0xf]
        %v2270 = vld [vmem:[%s2257 + $0x30] sm:$0xf]
        %v2271 = vld [vmem:[%s2257 + $0x34] sm:$0xf]
        %v2272 = vld [vmem:[%s2257 + $0x38] sm:$0xf]
        %v2273 = vld [vmem:[%s2257 + $0x3c] sm:$0xf]
        %v2274 = vunpack.c.l.b16 %v2228
        %v2275 = vunpack.c.l.b16 %v2232
        %v2276 = vunpack.c.l.b16 %v2236
        %v2277 = vunpack.c.l.b16 %v2240
        %v2278 = vunpack.c.l.b16 %v2244
        %v2279 = vunpack.c.l.b16 %v2248
        %v2280 = vunpack.c.l.b16 %v2252
        %v2281 = vunpack.c.l.b16 %v2256
        %v2282 = vpack.c.b16 %v2275, %v2274
        %v2283 = vpack.c.b16 %v2277, %v2276
        %v2284 = vpack.c.b16 %v2279, %v2278
        %v2285 = vpack.c.b16 %v2281, %v2280
        %v2306 = vunpack.c.l.b16 %v2258
        %v2307 = vunpack.c.l.b16 %v2259
        %v2308 = vunpack.c.l.b16 %v2260
        %v2309 = vunpack.c.l.b16 %v2261
        %v2310 = vunpack.c.l.b16 %v2262
        %v2311 = vunpack.c.l.b16 %v2263
        %v2312 = vunpack.c.l.b16 %v2264
        %v2313 = vunpack.c.l.b16 %v2265
        %v2314 = vunpack.c.l.b16 %v2266
        %v2315 = vunpack.c.l.b16 %v2267
        %v2316 = vunpack.c.l.b16 %v2268
        %v2317 = vunpack.c.l.b16 %v2269
        %v2318 = vunpack.c.l.b16 %v2270
        %v2319 = vunpack.c.l.b16 %v2271
        %v2320 = vunpack.c.l.b16 %v2272
        %v2321 = vunpack.c.l.b16 %v2273
        %v2322 = vpack.c.b16 %v2307, %v2306
        %v2323 = vpack.c.b16 %v2309, %v2308
        %v2324 = vpack.c.b16 %v2311, %v2310
        %v2325 = vpack.c.b16 %v2313, %v2312
        %v2326 = vpack.c.b16 %v2315, %v2314
        %v2327 = vpack.c.b16 %v2317, %v2316
        %v2328 = vpack.c.b16 %v2319, %v2318
        %v2329 = vpack.c.b16 %v2321, %v2320
        %2338 = vmatprep.subr.bf16.mxu0 0
        %2339 = vmatpush1.bf16.msra.mxu0 %v2322
        %2340 = vmatprep.subr.bf16.mxu0 0
        %2341 = vmatpush1.bf16.msra.mxu0 %v2323
        %2342 = vmatprep.subr.bf16.mxu0 0
        %2343 = vmatpush1.bf16.msra.mxu0 %v2324
        %2344 = vmatprep.subr.bf16.mxu0 0
        %2345 = vmatpush1.bf16.msra.mxu0 %v2325
        %2346 = vmatprep.subr.bf16.mxu0 0
        %2347 = vmatpush1.bf16.msra.mxu0 %v2326
        %2348 = vmatprep.subr.bf16.mxu0 0
        %2349 = vmatpush1.bf16.msra.mxu0 %v2327
        %2350 = vmatprep.subr.bf16.mxu0 0
        %2351 = vmatpush1.bf16.msra.mxu0 %v2328
        %2352 = vmatprep.subr.bf16.mxu0 0
        %2353 = vmatpush1.bf16.msra.mxu0 %v2329
        %2354 = vmatprep.subr.bf16.mxu0 0
        %2355 = vmatpush1.bf16.msra.mxu0 0
        %2356 = vmatprep.subr.bf16.mxu0 0
        %2357 = vmatpush1.bf16.msra.mxu0 0
        %2358 = vmatprep.subr.bf16.mxu0 0
        %2359 = vmatpush1.bf16.msra.mxu0 0
        %2360 = vmatprep.subr.bf16.mxu0 0
        %2361 = vmatpush1.bf16.msra.mxu0 0
        %2362 = vmatprep.subr.bf16.mxu0 0
        %2363 = vmatpush1.bf16.msra.mxu0 0
        %2364 = vmatprep.subr.bf16.mxu0 0
        %2365 = vmatpush1.bf16.msra.mxu0 0
        %2366 = vmatprep.subr.bf16.mxu0 0
        %2367 = vmatpush1.bf16.msra.mxu0 0
        %2368 = vmatprep.subr.bf16.mxu0 0
        %2369 = vmatpush1.bf16.msra.mxu0 0
        %2370 = vmatprep.mubr.bf16.mxu0 0
        %2371 = vmatmul.mubr.bf16.gmra.mrb[0].mxu0 %v2282
        %v2372 = vpop.f32.mrb[0].mxu0
        %v2373 = vadd.f32 0.0, %v2372
        %v2374 = vpop.f32.mrb[0].mxu0
        %v2375 = vpop.f32.mrb[0].mxu0
        %v2376 = vadd.f32 0.0, %v2375
        %v2377 = vpop.f32.mrb[0].mxu0
        %2378 = vmatprep.mubr.bf16.mxu0 0
        %2379 = vmatmul.mubr.bf16.gmra.mrb[0].mxu0 %v2283
        %v2380 = vpop.f32.mrb[0].mxu0
        %v2381 = vadd.f32 0.0, %v2380
        %v2382 = vpop.f32.mrb[0].mxu0
        %v2383 = vpop.f32.mrb[0].mxu0
        %v2384 = vadd.f32 0.0, %v2383
        %v2385 = vpop.f32.mrb[0].mxu0
        %2386 = vmatprep.mubr.bf16.mxu0 0
        %2387 = vmatmul.mubr.bf16.gmra.mrb[0].mxu0 %v2284
        %v2388 = vpop.f32.mrb[0].mxu0
        %v2389 = vadd.f32 0.0, %v2388
        %v2390 = vpop.f32.mrb[0].mxu0
        %v2391 = vpop.f32.mrb[0].mxu0
        %v2392 = vadd.f32 0.0, %v2391
        %v2393 = vpop.f32.mrb[0].mxu0
        %2394 = vmatprep.mubr.bf16.mxu0 0
        %2395 = vmatmul.mubr.bf16.gmra.mrb[0].mxu0 %v2285
        %v2396 = vpop.f32.mrb[0].mxu0
        %v2397 = vadd.f32 0.0, %v2396
        %v2398 = vpop.f32.mrb[0].mxu0
        %v2399 = vpop.f32.mrb[0].mxu0
        %v2400 = vadd.f32 0.0, %v2399
        %v2401 = vpop.f32.mrb[0].mxu0
        %2402 = vdwg.mxu0
        %v2403 = vld [vmem:[#allocation2] sm:$0xff]
        %v2404 = vld [vmem:[#allocation2 + $0x8] sm:$0xff]
        %v2405 = vld [vmem:[#allocation2 + $0x10] sm:$0xff]
        %v2406 = vld [vmem:[#allocation2 + $0x18] sm:$0xff]
        %v2407 = vld [vmem:[#allocation2 + $0x20] sm:$0xff]
        %v2408 = vld [vmem:[#allocation2 + $0x28] sm:$0xff]
        %v2409 = vld [vmem:[#allocation2 + $0x30] sm:$0xff]
        %v2410 = vld [vmem:[#allocation2 + $0x38] sm:$0xff]
        %v2411 = vadd.f32 %v2403, %v2373
        %v2412 = vadd.f32 %v2404, %v2376
        %v2413 = vadd.f32 %v2405, %v2381
        %v2414 = vadd.f32 %v2406, %v2384
        %v2415 = vadd.f32 %v2407, %v2389
        %v2416 = vadd.f32 %v2408, %v2392
        %v2417 = vadd.f32 %v2409, %v2397
        %v2418 = vadd.f32 %v2410, %v2400
        %2419 = vst [vmem:[#allocation2] sm:$0xff] %v2411
        %2420 = vst [vmem:[#allocation2 + $0x8] sm:$0xff] %v2412
        %2421 = vst [vmem:[#allocation2 + $0x10] sm:$0xff] %v2413
        %2422 = vst [vmem:[#allocation2 + $0x18] sm:$0xff] %v2414
        %2423 = vst [vmem:[#allocation2 + $0x20] sm:$0xff] %v2415
        %2424 = vst [vmem:[#allocation2 + $0x28] sm:$0xff] %v2416
        %2425 = vst [vmem:[#allocation2 + $0x30] sm:$0xff] %v2417
        %2426 = vst [vmem:[#allocation2 + $0x38] sm:$0xff] %v2418
        %v2427 = vld [vmem:[#allocation2] sm:$0xff]
        %v2428 = vld [vmem:[#allocation2 + $0x8] sm:$0xff]
        %v2429 = vld [vmem:[#allocation2 + $0x10] sm:$0xff]
        %v2430 = vld [vmem:[#allocation2 + $0x18] sm:$0xff]
        %v2431 = vld [vmem:[#allocation2 + $0x20] sm:$0xff]
        %v2432 = vld [vmem:[#allocation2 + $0x28] sm:$0xff]
        %v2433 = vld [vmem:[#allocation2 + $0x30] sm:$0xff]
        %v2434 = vld [vmem:[#allocation2 + $0x38] sm:$0xff]
        %v2435 = vld [vmem:[#allocation8] sm:$0x1]
        %v2437 = vlaneseq
        %v2438 = vshrl.u32 %v2437, 7
        %v2439 = vsub.s32 0, %v2438
        %v2440 = vrot.slane %v2435, %v2439
        %v2442 = vmul.f32 %v2427, %v2440
        %v2443 = vmul.f32 %v2428, %v2440
        %v2444 = vmul.f32 %v2429, %v2440
        %v2445 = vmul.f32 %v2430, %v2440
        %v2446 = vmul.f32 %v2431, %v2440
        %v2447 = vmul.f32 %v2432, %v2440
        %v2448 = vmul.f32 %v2433, %v2440
        %v2449 = vmul.f32 %v2434, %v2440
        %v2450 = vld [vmem:[#allocation9] sm:$0x1]
        %v2452 = vlaneseq
        %v2453 = vshrl.u32 %v2452, 7
        %v2454 = vsub.s32 0, %v2453
        %v2455 = vrot.slane %v2450, %v2454
        %v2457 = vadd.f32 %v2442, %v2455
        %v2458 = vadd.f32 %v2443, %v2455
        %v2459 = vadd.f32 %v2444, %v2455
        %v2460 = vadd.f32 %v2445, %v2455
        %v2461 = vadd.f32 %v2446, %v2455
        %v2462 = vadd.f32 %v2447, %v2455
        %v2463 = vadd.f32 %v2448, %v2455
        %v2464 = vadd.f32 %v2449, %v2455
        %v2465 = vmax.f32 %v2457, 0.0
        %v2466 = vmax.f32 %v2458, 0.0
        %v2467 = vmax.f32 %v2459, 0.0
        %v2468 = vmax.f32 %v2460, 0.0
        %v2469 = vmax.f32 %v2461, 0.0
        %v2470 = vmax.f32 %v2462, 0.0
        %v2471 = vmax.f32 %v2463, 0.0
        %v2472 = vmax.f32 %v2464, 0.0
        %v2473 = vmax.f32 %v2465, %v2466
        %v2474 = vmax.f32 %v2467, %v2468
        %v2475 = vmax.f32 %v2469, %v2470
        %v2476 = vmax.f32 %v2471, %v2472
        %v2481 = vrot.slane %v2473, 1
        %v2482 = vrot.slane %v2474, 1
        %v2483 = vrot.slane %v2475, 1
        %v2484 = vrot.slane %v2476, 1
        %v2489 = vmax.f32 %v2473, %v2481
        %v2490 = vmax.f32 %v2474, %v2482
        %v2491 = vmax.f32 %v2475, %v2483
        %v2492 = vmax.f32 %v2476, %v2484
        %v2493 = vpack.c.bf16 %v2489, %v2489
        %v2494 = vpack.c.bf16 %v2490, %v2490
        %v2495 = vpack.c.bf16 %v2491, %v2491
        %v2496 = vpack.c.bf16 %v2492, %v2492
        %vm2497 = vcmask 1040384
        %vm2498 = vsmask.f32 256
        %vm2499 = vmand %vm2497, %vm2498
        %v2500 = vld [vmem:[%s269] sm:$0x1]
        %v2501 = vsel %vm2499, %v2493, %v2500
        %2502 = vst [vmem:[%s269] sm:$0x1] %v2501
        %v2503 = vld [vmem:[%s269 + $0x2] sm:$0x1]
        %v2504 = vsel %vm2499, %v2494, %v2503
        %2505 = vst [vmem:[%s269 + $0x2] sm:$0x1] %v2504
        %v2506 = vld [vmem:[%s269 + $0x4] sm:$0x1]
        %v2507 = vsel %vm2499, %v2495, %v2506
        %2508 = vst [vmem:[%s269 + $0x4] sm:$0x1] %v2507
        %v2509 = vld [vmem:[%s269 + $0x6] sm:$0x1]
        %v2510 = vsel %vm2499, %v2496, %v2509
        %2511 = vst [vmem:[%s269 + $0x6] sm:$0x1] %v2510
        %v2517 = vunpack.c.l.s4 1983009808
        %v2518 = vunpack.c.0.s8 %v2517
        %v2519 = vlaneseq
        %v2520 = vshrl.u32 %v2519, 7
        %v2521 = vsub.s32 %v2518, %v2520
        %v2522 = vrot.slane %v2493, %v2521
        %v2524 = vunpack.c.l.s4 1983009808
        %v2525 = vunpack.c.0.s8 %v2524
        %v2526 = vlaneseq
        %v2527 = vshrl.u32 %v2526, 7
        %v2528 = vsub.s32 %v2525, %v2527
        %v2529 = vrot.slane %v2494, %v2528
        %v2531 = vunpack.c.l.s4 1983009808
        %v2532 = vunpack.c.0.s8 %v2531
        %v2533 = vlaneseq
        %v2534 = vshrl.u32 %v2533, 7
        %v2535 = vsub.s32 %v2532, %v2534
        %v2536 = vrot.slane %v2495, %v2535
        %v2538 = vunpack.c.l.s4 1983009808
        %v2539 = vunpack.c.0.s8 %v2538
        %v2540 = vlaneseq
        %v2541 = vshrl.u32 %v2540, 7
        %v2542 = vsub.s32 %v2539, %v2541
        %v2543 = vrot.slane %v2496, %v2542
        %v2545 = vshll.u32 %v2522, 16
        %v2547 = vrot.slane %v2545, 7
        %v2548 = vrot.slane %v2547, 2
        %v2550 = vshll.u32 %v2529, 16
        %v2552 = vrot.slane %v2550, 7
        %v2553 = vrot.slane %v2552, 2
        %v2555 = vshll.u32 %v2536, 16
        %v2557 = vrot.slane %v2555, 7
        %v2558 = vrot.slane %v2557, 2
        %v2560 = vshll.u32 %v2543, 16
        %v2562 = vrot.slane %v2560, 7
        %v2563 = vrot.slane %v2562, 2
        %vm2568 = vsmask.f32 7938
        %vm2569 = vmand %vm2497, %vm2568
        %v2570 = vld [vmem:[%s269] sm:$0x1]
        %v2571 = vsel %vm2569, %v2548, %v2570
        %2572 = vst [vmem:[%s269] sm:$0x1] %v2571
        %v2573 = vld [vmem:[%s269 + $0x2] sm:$0x1]
        %v2574 = vsel %vm2569, %v2553, %v2573
        %2575 = vst [vmem:[%s269 + $0x2] sm:$0x1] %v2574
        %v2576 = vld [vmem:[%s269 + $0x4] sm:$0x1]
        %v2577 = vsel %vm2569, %v2558, %v2576
        %2578 = vst [vmem:[%s269 + $0x4] sm:$0x1] %v2577
        %v2579 = vld [vmem:[%s269 + $0x6] sm:$0x1]
        %v2580 = vsel %vm2569, %v2563, %v2579
        %2581 = vst [vmem:[%s269 + $0x6] sm:$0x1] %v2580
        %v2582 = vcombine.high %v2522, %v2522
        %v2583 = vcombine.high %v2529, %v2529
        %v2584 = vcombine.high %v2536, %v2536
        %v2585 = vcombine.high %v2543, %v2543
        %v2586 = vrot.slane %v2582, 7
        %v2587 = vrot.slane %v2583, 7
        %v2588 = vrot.slane %v2584, 7
        %v2589 = vrot.slane %v2585, 7
        %vm2594 = vcmask 1041409
        %vm2595 = vsmask.f32 1280
        %vm2596 = vmand %vm2594, %vm2595
        %v2597 = vld [vmem:[%s269] sm:$0x2]
        %v2598 = vsel %vm2596, %v2586, %v2597
        %2599 = vst [vmem:[%s269] sm:$0x2] %v2598
        %v2600 = vld [vmem:[%s269 + $0x2] sm:$0x2]
        %v2601 = vsel %vm2596, %v2587, %v2600
        %2602 = vst [vmem:[%s269 + $0x2] sm:$0x2] %v2601
        %v2603 = vld [vmem:[%s269 + $0x4] sm:$0x2]
        %v2604 = vsel %vm2596, %v2588, %v2603
        %2605 = vst [vmem:[%s269 + $0x4] sm:$0x2] %v2604
        %v2606 = vld [vmem:[%s269 + $0x6] sm:$0x2]
        %v2607 = vsel %vm2596, %v2589, %v2606
        %2608 = vst [vmem:[%s269 + $0x6] sm:$0x2] %v2607
        %v2610 = vshll.u32 %v2582, 16
        %v2613 = vshll.u32 %v2583, 16
        %v2616 = vshll.u32 %v2584, 16
        %v2619 = vshll.u32 %v2585, 16
        %vm2625 = vsmask.f32 7942
        %vm2626 = vmand %vm2594, %vm2625
        %v2627 = vld [vmem:[%s269] sm:$0x2]
        %v2628 = vsel %vm2626, %v2610, %v2627
        %2629 = vst [vmem:[%s269] sm:$0x2] %v2628
        %v2630 = vld [vmem:[%s269 + $0x2] sm:$0x2]
        %v2631 = vsel %vm2626, %v2613, %v2630
        %2632 = vst [vmem:[%s269 + $0x2] sm:$0x2] %v2631
        %v2633 = vld [vmem:[%s269 + $0x4] sm:$0x2]
        %v2634 = vsel %vm2626, %v2616, %v2633
        %2635 = vst [vmem:[%s269 + $0x4] sm:$0x2] %v2634
        %v2636 = vld [vmem:[%s269 + $0x6] sm:$0x2]
        %v2637 = vsel %vm2626, %v2619, %v2636
        %2638 = vst [vmem:[%s269 + $0x6] sm:$0x2] %v2637
        %s2639 = sand.u32 %s134, 1
        %s2640 = scalar_lea.sflag [#allocation5], %s2639
        %s2641 = sand.u32 %s134, 1
        %s2642 = smul.addr %s2641, 8
        %s2643 = scalar_lea.vmem [#allocation11], %s2642
        // Predicated region
        $region53: #{vgg_forward_pallas.4} parent=35 // pred_check
          %p2644 = pneg %p144
        $region54: #{vgg_forward_pallas.4} parent=35 // pred_check_branch
          %2646 = sbr.rel (%p2644) target = $region56
        $region55: #{vgg_forward_pallas.4} parent=35 // pred_region
          %s2647 = smul.u32 4, %s28
          %s2649 = ssub.s32 128, 128
          %2650 = vsyncadd %s2640, %s2649
          %s2651 = smul.addr %s27, 4
          %s2652 = sadd.s32 %s2647, %s2651
          %s2653 = smul.addr %s2652, 32
          %s2654 = scalar_lea.hbm %s4, %s2653
          %s2655 = sshll.u32 %s2643, 4
          %s2656 = int_to_ptr.vmem [resolvable:$true] %s2655
          %2661 = dma.vmem_to_hbm [thread:$0]  %s2656, 128, %s2654, %s2640, 32, 32, 2
        $region56: #{vgg_forward_pallas.4} parent=35 // pred_fallthru
          _
      $region36: #{vgg_forward_pallas.4} parent=5 // pred_fallthru
        _
      %p2662 = scmp.le.s32.totalorder 2, %s18
      // Predicated region
      $region57: #{vgg_forward_pallas.4} parent=5 // pred_check
        %p2663 = pneg %p2662
      $region58: #{vgg_forward_pallas.4} parent=5 // pred_check_branch
        %2665 = sbr.rel (%p2663) target = $region60
      $region59: #{vgg_forward_pallas.4} parent=5 // pred_region
        %s2666 = ssub.s32 %s18, 2
        // Predicated region
        $region61: #{vgg_forward_pallas.4} parent=59 // pred_check
          %p2667 = pneg %p150
        $region62: #{vgg_forward_pallas.4} parent=59 // pred_check_branch
          %2669 = sbr.rel (%p2667) target = $region64
        $region63: #{vgg_forward_pallas.4} parent=59 // pred_region
          %s2670 = sand.u32 %s135, 1
          %s2671 = scalar_lea.sflag [#allocation5], %s2670
          %s2672 = sand.u32 %s135, 1
          %s2673 = smul.addr %s2672, 8
          %s2674 = scalar_lea.vmem [#allocation11], %s2673
          %2675 = dma.done %s2671, 128
        $region64: #{vgg_forward_pallas.4} parent=59 // pred_fallthru
          _
      $region60: #{vgg_forward_pallas.4} parent=5 // pred_fallthru
        _
    $region6: #{vgg_forward_pallas.4} parent=1 // loop_footer
      %s22 = sadd.s32 1, %s18
    $region7: #{vgg_forward_pallas.4} parent=1 // loop_footer_branch
      %17 = sbr.rel target = $region3
    $region8: #{vgg_forward_pallas.4} parent=1 // loop_exit
      _
    %2676 = vsyncpa [#allocation4], 1
    %s2677 = scalar_lea.sflag [#allocation4], 1
    %2678 = vsyncpa %s2677, 1
    %2679 = vsyncpa [#allocation7], 1
    %2680 = vsyncpa [#allocation10], 1
    %2681 = vsyncpa [#allocation5], 1
    %s2682 = scalar_lea.sflag [#allocation5], 1
    %2683 = vsyncpa %s2682, 1

// kernel: vgg_forward_pallas.3
$region0: #{vgg_forward_pallas.3}
  #allocation0 [shape = 'u32[]', space=smem, size = 0x4, offset = 0x4, fixed_abs, tag = 'smem constant byte address 0x4 - core index']
  #allocation1 [shape = 'u32[144,128]{1,0:T(1,128)}', space=vmem, size = 0x12000, scoped, tag = 'internal scratch']
  #allocation2 [shape = 'f32[128,128]{1,0:T(8,128)}', space=vmem, size = 0x10000, scoped, tag = 'scratch operand']
  %s0 = inlined_call_operand.hbm [shape: bf16[2,18,18,128], index: 0, kind: input, shape index: {}]
  %s1 = inlined_call_operand.hbm [shape: bf16[9,128,128], index: 1, kind: input, shape index: {}]
  %s2 = inlined_call_operand.hbm [shape: f32[1,128], index: 2, kind: input, shape index: {}]
  %s3 = inlined_call_operand.hbm [shape: f32[1,128], index: 3, kind: input, shape index: {}]
  %s4 = inlined_call_operand.hbm [shape: bf16[2,8,8,128], index: 4, kind: output, shape index: {}]
  %s5 = sld [smem:[#allocation0]]
  $region65: #{vgg_forward_pallas.3} parent=0
    _
  %s7 = ssub.s32 1, %s5
  %s8 = scalar_select 0, %s7, %s5
  $region1: #{vgg_forward_pallas.3} parent=0
    #allocation3 [shape = 'u8[221184]{0}', space=vmem, size = 0x36000, scoped, tag = 'input window, operand 0']
    #allocation4 [shape = 's32[2]{0}', space=sflag, size = 0x8, scoped, tag = 'scoped memory for vgg_forward_pallas.3']
    #allocation5 [shape = 's32[2]{0}', space=sflag, size = 0x8, scoped, tag = 'scoped memory for vgg_forward_pallas.3']
    #allocation6 [shape = 'u8[294912]{0}', space=vmem, size = 0x48000, scoped, tag = 'input window, operand 1, single buffered']
    #allocation7 [shape = 's32[1]{0}', space=sflag, size = 0x4, scoped, tag = 'scoped memory for vgg_forward_pallas.3']
    #allocation8 [shape = 'u8[512]{0}', space=vmem, size = 0x400, scoped, tag = 'input window, operand 2, single buffered']
    #allocation9 [shape = 'u8[512]{0}', space=vmem, size = 0x400, scoped, tag = 'input window, operand 3, single buffered']
    #allocation10 [shape = 's32[1]{0}', space=sflag, size = 0x4, scoped, tag = 'scoped memory for vgg_forward_pallas.3']
    #allocation11 [shape = 'u8[16384]{0}', space=vmem, size = 0x4000, scoped, tag = 'output window, operand 0']
    %9 = vsyncpa [#allocation4], 0
    %s10 = scalar_lea.sflag [#allocation4], 1
    %11 = vsyncpa %s10, 0
    %12 = vsyncpa [#allocation7], 0
    %13 = vsyncpa [#allocation10], 0
    %14 = vsyncpa [#allocation5], 0
    %s15 = scalar_lea.sflag [#allocation5], 1
    %16 = vsyncpa %s15, 0
    loop: start=0, step=1, limit=6
    $region2: #{vgg_forward_pallas.3} parent=1 // loop_pre_header
      _
    $region3: #{vgg_forward_pallas.3} parent=1 // loop_header
      %s18 = sphi 0, %s22
      %p19 = scmp.ge.s32.totalorder %s18, 6
      %s25 = sphi 0, %s37
      %s26 = sphi 0, %s33
      %s27 = sphi 0, %s25
      %s28 = sphi 0, %s26
      %s29 = sphi 0, %s27
      %s30 = sphi 0, %s28
      %s40 = sphi 0, %s42
      %s43 = sphi 0, %s40
      %s44 = sphi 0, %s43
      %s60 = sphi 0, %s44
      %s64 = sphi 0, %s64
      %s66 = sphi 0, %s64
      %s67 = sphi 0, %s66
      %s81 = sphi 0, %s67
      %s85 = sphi 0, %s85
      %s87 = sphi 0, %s85
      %s88 = sphi 0, %s87
      %s102 = sphi 0, %s88
      %s106 = sphi 0, %s106
      %s108 = sphi 0, %s106
      %s109 = sphi 0, %s108
      %s123 = sphi 0, %s109
      %s131 = sphi 0, %s133
      %s134 = sphi 0, %s131
      %s135 = sphi 0, %s134
      %s151 = sphi 0, %s135
    $region4: #{vgg_forward_pallas.3} parent=1 // loop_header_branch
      %21 = sbr.rel (%p19) target = $region8
    $region5: #{vgg_forward_pallas.3} parent=1 // loop_body
      %s23 = ssub.s32 %s18, 1
      %s24 = ssub.s32 %s18, 2
      %s31 = sadd.s32 1, %s26
      %p32 = scmp.ge.s32.totalorder %s31, 2
      %s33 = scalar_select %p32, 0, %s31
      %s34 = sadd.s32 1, %s25
      %s35 = scalar_select %p32, %s34, %s25
      %p36 = scmp.ge.s32.totalorder %s35, 2
      %s37 = scalar_select %p36, 0, %s35
      %s38 = ssub.s32 %s25, %s37
      %p39 = scmp.eq.s32.totalorder %s38, 0
      %s41 = sadd.s32 %s40, 1
      %s42 = scalar_select %p39, %s40, %s41
      %p45 = pneg %p39
      %p46 = scmp.eq.s32.totalorder %s18, 3
      %p47 = por %p45, %p46
      %p48 = scmp.ne.s32.totalorder %s40, %s43
      %p49 = scmp.eq.s32.totalorder %s18, 0
      %p50 = por %p48, %p49
      %p51 = scmp.ne.s32.totalorder %s40, %s43
      %p52 = scmp.eq.s32.totalorder %s23, 3
      %p53 = por %p51, %p52
      %p54 = scmp.ne.s32.totalorder %s43, %s44
      %p55 = scmp.eq.s32.totalorder %s23, 0
      %p56 = por %p54, %p55
      %p57 = scmp.ne.s32.totalorder %s43, %s44
      %p58 = scmp.eq.s32.totalorder %s24, 3
      %p59 = por %p57, %p58
      %p61 = scmp.ne.s32.totalorder %s44, %s60
      %p62 = scmp.eq.s32.totalorder %s24, 0
      %p63 = por %p61, %p62
      %s65 = sadd.s32 %s64, 1
      %p68 = scmp.eq.s32.totalorder %s18, 3
      %p69 = scmp.ne.s32.totalorder %s64, %s66
      %p70 = scmp.eq.s32.totalorder %s18, 0
      %p71 = por %p69, %p70
      %p72 = scmp.ne.s32.totalorder %s64, %s66
      %p73 = scmp.eq.s32.totalorder %s23, 3
      %p74 = por %p72, %p73
      %p75 = scmp.ne.s32.totalorder %s66, %s67
      %p76 = scmp.eq.s32.totalorder %s23, 0
      %p77 = por %p75, %p76
      %p78 = scmp.ne.s32.totalorder %s66, %s67
      %p79 = scmp.eq.s32.totalorder %s24, 3
      %p80 = por %p78, %p79
      %p82 = scmp.ne.s32.totalorder %s67, %s81
      %p83 = scmp.eq.s32.totalorder %s24, 0
      %p84 = por %p82, %p83
      %s86 = sadd.s32 %s85, 1
      %p89 = scmp.eq.s32.totalorder %s18, 3
      %p90 = scmp.ne.s32.totalorder %s85, %s87
      %p91 = scmp.eq.s32.totalorder %s18, 0
      %p92 = por %p90, %p91
      %p93 = scmp.ne.s32.totalorder %s85, %s87
      %p94 = scmp.eq.s32.totalorder %s23, 3
      %p95 = por %p93, %p94
      %p96 = scmp.ne.s32.totalorder %s87, %s88
      %p97 = scmp.eq.s32.totalorder %s23, 0
      %p98 = por %p96, %p97
      %p99 = scmp.ne.s32.totalorder %s87, %s88
      %p100 = scmp.eq.s32.totalorder %s24, 3
      %p101 = por %p99, %p100
      %p103 = scmp.ne.s32.totalorder %s88, %s102
      %p104 = scmp.eq.s32.totalorder %s24, 0
      %p105 = por %p103, %p104
      %s107 = sadd.s32 %s106, 1
      %p110 = scmp.eq.s32.totalorder %s18, 3
      %p111 = scmp.ne.s32.totalorder %s106, %s108
      %p112 = scmp.eq.s32.totalorder %s18, 0
      %p113 = por %p111, %p112
      %p114 = scmp.ne.s32.totalorder %s106, %s108
      %p115 = scmp.eq.s32.totalorder %s23, 3
      %p116 = por %p114, %p115
      %p117 = scmp.ne.s32.totalorder %s108, %s109
      %p118 = scmp.eq.s32.totalorder %s23, 0
      %p119 = por %p117, %p118
      %p120 = scmp.ne.s32.totalorder %s108, %s109
      %p121 = scmp.eq.s32.totalorder %s24, 3
      %p122 = por %p120, %p121
      %p124 = scmp.ne.s32.totalorder %s109, %s123
      %p125 = scmp.eq.s32.totalorder %s24, 0
      %p126 = por %p124, %p125
      %s127 = ssub.s32 %s25, %s37
      %s128 = ssub.s32 %s26, %s33
      %s129 = sor.u32 %s127, %s128
      %p130 = scmp.eq.s32.totalorder %s129, 0
      %s132 = sadd.s32 %s131, 1
      %s133 = scalar_select %p130, %s131, %s132
      %p136 = pneg %p130
      %p137 = scmp.eq.s32.totalorder %s18, 3
      %p138 = por %p136, %p137
      %p139 = scmp.ne.s32.totalorder %s131, %s134
      %p140 = scmp.eq.s32.totalorder %s18, 0
      %p141 = por %p139, %p140
      %p142 = scmp.ne.s32.totalorder %s131, %s134
      %p143 = scmp.eq.s32.totalorder %s23, 3
      %p144 = por %p142, %p143
      %p145 = scmp.ne.s32.totalorder %s134, %s135
      %p146 = scmp.eq.s32.totalorder %s23, 0
      %p147 = por %p145, %p146
      %p148 = scmp.ne.s32.totalorder %s134, %s135
      %p149 = scmp.eq.s32.totalorder %s24, 3
      %p150 = por %p148, %p149
      %p152 = scmp.ne.s32.totalorder %s135, %s151
      %p153 = scmp.eq.s32.totalorder %s24, 0
      %p154 = por %p152, %p153
      %p155 = scmp.le.s32.totalorder 1, %s18
      %p156 = scmp.lt.s32.totalorder %s18, 5
      %p157 = pnand %p155, %p156
      %p158 = pneg %p157
      // Predicated region
      $region9: #{vgg_forward_pallas.3} parent=5 // pred_check
        _
      $region10: #{vgg_forward_pallas.3} parent=5 // pred_check_branch
        %160 = sbr.rel (%p157) target = $region12
      $region11: #{vgg_forward_pallas.3} parent=5 // pred_region
        %s161 = ssub.s32 %s18, 1
        // Predicated region
        $region13: #{vgg_forward_pallas.3} parent=11 // pred_check
          %p162 = pneg %p77
        $region14: #{vgg_forward_pallas.3} parent=11 // pred_check_branch
          %164 = sbr.rel (%p162) target = $region16
        $region15: #{vgg_forward_pallas.3} parent=11 // pred_region
          %s166 = ssub.s32 9216, 9216
          %167 = vsyncadd [#allocation7], %s166
          %s168 = sshll.u32 [#allocation6], 4
          %s169 = int_to_ptr.vmem [resolvable:$true] %s168
          %174 = dma.hbm_to_vmem [thread:$0]  %s1, 9216, %s169, [#allocation7], 64, 64, 4
        $region16: #{vgg_forward_pallas.3} parent=11 // pred_fallthru
          _
        // Predicated region
        $region17: #{vgg_forward_pallas.3} parent=11 // pred_check
          %p175 = pneg %p98
        $region18: #{vgg_forward_pallas.3} parent=11 // pred_check_branch
          %177 = sbr.rel (%p175) target = $region20
        $region19: #{vgg_forward_pallas.3} parent=11 // pred_region
          %s179 = ssub.s32 16, 16
          %180 = vsyncadd [#allocation7], %s179
          %s182 = sshll.u32 [#allocation8], 4
          %s183 = int_to_ptr.vmem [resolvable:$true] %s182
          %185 = dma.hbm_to_vmem [thread:$0]  %s2, 16, %s183, [#allocation7]
        $region20: #{vgg_forward_pallas.3} parent=11 // pred_fallthru
          _
        // Predicated region
        $region21: #{vgg_forward_pallas.3} parent=11 // pred_check
          %p186 = pneg %p119
        $region22: #{vgg_forward_pallas.3} parent=11 // pred_check_branch
          %188 = sbr.rel (%p186) target = $region24
        $region23: #{vgg_forward_pallas.3} parent=11 // pred_region
          %s190 = ssub.s32 16, 16
          %191 = vsyncadd [#allocation10], %s190
          %s193 = sshll.u32 [#allocation9], 4
          %s194 = int_to_ptr.vmem [resolvable:$true] %s193
          %196 = dma.hbm_to_vmem [thread:$0]  %s3, 16, %s194, [#allocation10]
        $region24: #{vgg_forward_pallas.3} parent=11 // pred_fallthru
          _
      $region12: #{vgg_forward_pallas.3} parent=5 // pred_fallthru
        _
      %p197 = scmp.lt.s32.totalorder %s18, 4
      // Predicated region
      $region25: #{vgg_forward_pallas.3} parent=5 // pred_check
        %p198 = pneg %p197
      $region26: #{vgg_forward_pallas.3} parent=5 // pred_check_branch
        %200 = sbr.rel (%p198) target = $region28
      $region27: #{vgg_forward_pallas.3} parent=5 // pred_region
        // Predicated region
        $region29: #{vgg_forward_pallas.3} parent=27 // pred_check
          %p201 = pneg %p50
        $region30: #{vgg_forward_pallas.3} parent=27 // pred_check_branch
          %203 = sbr.rel (%p201) target = $region32
        $region31: #{vgg_forward_pallas.3} parent=27 // pred_region
          %s204 = sand.u32 %s40, 1
          %s205 = scalar_lea.sflag [#allocation4], %s204
          %s206 = sand.u32 %s40, 1
          %s207 = smul.addr %s206, 216
          %s208 = scalar_lea.vmem [#allocation3], %s207
          %s210 = ssub.s32 3456, 3456
          %211 = vsyncadd %s205, %s210
          %s212 = smul.addr %s25, 54
          %s213 = smul.addr %s212, 64
          %s214 = scalar_lea.hbm %s0, %s213
          %s215 = sshll.u32 %s208, 4
          %s216 = int_to_ptr.vmem [resolvable:$true] %s215
          %221 = dma.hbm_to_vmem [thread:$0]  %s214, 3456, %s216, %s205, 64, 64, 4
        $region32: #{vgg_forward_pallas.3} parent=27 // pred_fallthru
          _
      $region28: #{vgg_forward_pallas.3} parent=5 // pred_fallthru
        _
      %p222 = scmp.le.s32.totalorder 1, %s18
      %p223 = scmp.lt.s32.totalorder %s18, 5
      %p224 = pnand %p222, %p223
      %p225 = pneg %p224
      // Predicated region
      $region33: #{vgg_forward_pallas.3} parent=5 // pred_check
        _
      $region34: #{vgg_forward_pallas.3} parent=5 // pred_check_branch
        %227 = sbr.rel (%p224) target = $region36
      $region35: #{vgg_forward_pallas.3} parent=5 // pred_region
        %s228 = ssub.s32 %s18, 1
        %s229 = sand.u32 %s43, 1
        %s230 = scalar_lea.sflag [#allocation4], %s229
        %s231 = sand.u32 %s43, 1
        %s232 = smul.addr %s231, 216
        %s233 = scalar_lea.vmem [#allocation3], %s232
        // Predicated region
        $region37: #{vgg_forward_pallas.3} parent=35 // pred_check
          %p234 = pneg %p56
        $region38: #{vgg_forward_pallas.3} parent=35 // pred_check_branch
          %236 = sbr.rel (%p234) target = $region40
        $region39: #{vgg_forward_pallas.3} parent=35 // pred_region
          %237 = dma.done %s230, 3456
        $region40: #{vgg_forward_pallas.3} parent=35 // pred_fallthru
          _
        // Predicated region
        $region41: #{vgg_forward_pallas.3} parent=35 // pred_check
          %p238 = pneg %p77
        $region42: #{vgg_forward_pallas.3} parent=35 // pred_check_branch
          %240 = sbr.rel (%p238) target = $region44
        $region43: #{vgg_forward_pallas.3} parent=35 // pred_region
          %241 = dma.done [#allocation7], 9216
        $region44: #{vgg_forward_pallas.3} parent=35 // pred_fallthru
          _
        // Predicated region
        $region45: #{vgg_forward_pallas.3} parent=35 // pred_check
          %p242 = pneg %p98
        $region46: #{vgg_forward_pallas.3} parent=35 // pred_check_branch
          %244 = sbr.rel (%p242) target = $region48
        $region47: #{vgg_forward_pallas.3} parent=35 // pred_region
          %245 = dma.done [#allocation7], 16
        $region48: #{vgg_forward_pallas.3} parent=35 // pred_fallthru
          _
        // Predicated region
        $region49: #{vgg_forward_pallas.3} parent=35 // pred_check
          %p246 = pneg %p119
        $region50: #{vgg_forward_pallas.3} parent=35 // pred_check_branch
          %248 = sbr.rel (%p246) target = $region52
        $region51: #{vgg_forward_pallas.3} parent=35 // pred_region
          %249 = dma.done [#allocation10], 16
        $region52: #{vgg_forward_pallas.3} parent=35 // pred_fallthru
          _
        %s250 = sand.u32 %s43, 1
        %s251 = scalar_lea.sflag [#allocation4], %s250
        %s252 = sand.u32 %s43, 1
        %s253 = smul.addr %s252, 216
        %s254 = scalar_lea.vmem [#allocation3], %s253
        %p255 = pneg %p56
        %p256 = pneg %p53
        %p257 = pneg %p77
        %p258 = pneg %p74
        %p259 = pneg %p98
        %p260 = pneg %p95
        %p261 = pneg %p119
        %p262 = pneg %p116
        %p263 = pneg %p147
        %p264 = pneg %p144
        %s265 = sand.u32 %s134, 1
        %s266 = scalar_lea.sflag [#allocation5], %s265
        %s267 = sand.u32 %s134, 1
        %s268 = smul.addr %s267, 16
        %s269 = scalar_lea.vmem [#allocation11], %s268
        %s270 = smul.u32 4, %s28
        %s272 = smul.u32 %s28, 8
        %s273 = smul.u32 %s272, 3
        %s274 = smul.addr %s273, 4
        %s275 = scalar_lea.vmem %s233, %s274 [#allocation3]
        %v276 = vld [vmem:[%s275] sm:$0xf]
        %v277 = vld [vmem:[%s275 + $0x4] sm:$0xf]
        %v278 = vld [vmem:[%s275 + $0xc] sm:$0xf]
        %v279 = vld [vmem:[%s275 + $0x10] sm:$0xf]
        %v280 = vld [vmem:[%s275 + $0x18] sm:$0xf]
        %v281 = vld [vmem:[%s275 + $0x1c] sm:$0xf]
        %v282 = vld [vmem:[%s275 + $0x24] sm:$0xf]
        %v283 = vld [vmem:[%s275 + $0x28] sm:$0xf]
        %v284 = vld [vmem:[%s275 + $0x30] sm:$0xf]
        %v285 = vld [vmem:[%s275 + $0x34] sm:$0xf]
        %v286 = vld [vmem:[%s275 + $0x3c] sm:$0xf]
        %v287 = vld [vmem:[%s275 + $0x40] sm:$0xf]
        %v288 = vld [vmem:[%s275 + $0x48] sm:$0xf]
        %v289 = vld [vmem:[%s275 + $0x4c] sm:$0xf]
        %v290 = vld [vmem:[%s275 + $0x54] sm:$0xf]
        %v291 = vld [vmem:[%s275 + $0x58] sm:$0xf]
        %v292 = vld [vmem:[#allocation6] sm:$0xf]
        %v293 = vld [vmem:[#allocation6 + $0x4] sm:$0xf]
        %v294 = vld [vmem:[#allocation6 + $0x8] sm:$0xf]
        %v295 = vld [vmem:[#allocation6 + $0xc] sm:$0xf]
        %v296 = vld [vmem:[#allocation6 + $0x10] sm:$0xf]
        %v297 = vld [vmem:[#allocation6 + $0x14] sm:$0xf]
        %v298 = vld [vmem:[#allocation6 + $0x18] sm:$0xf]
        %v299 = vld [vmem:[#allocation6 + $0x1c] sm:$0xf]
        %v300 = vld [vmem:[#allocation6 + $0x20] sm:$0xf]
        %v301 = vld [vmem:[#allocation6 + $0x24] sm:$0xf]
        %v302 = vld [vmem:[#allocation6 + $0x28] sm:$0xf]
        %v303 = vld [vmem:[#allocation6 + $0x2c] sm:$0xf]
        %v304 = vld [vmem:[#allocation6 + $0x30] sm:$0xf]
        %v305 = vld [vmem:[#allocation6 + $0x34] sm:$0xf]
        %v306 = vld [vmem:[#allocation6 + $0x38] sm:$0xf]
        %v307 = vld [vmem:[#allocation6 + $0x3c] sm:$0xf]
        %v324 = vunpack.c.l.b16 %v276
        %v325 = vunpack.c.l.b16 %v277
        %v326 = vunpack.c.l.b16 %v278
        %v327 = vunpack.c.l.b16 %v279
        %v328 = vunpack.c.l.b16 %v280
        %v329 = vunpack.c.l.b16 %v281
        %v330 = vunpack.c.l.b16 %v282
        %v331 = vunpack.c.l.b16 %v283
        %v332 = vunpack.c.l.b16 %v284
        %v333 = vunpack.c.l.b16 %v285
        %v334 = vunpack.c.l.b16 %v286
        %v335 = vunpack.c.l.b16 %v287
        %v336 = vunpack.c.l.b16 %v288
        %v337 = vunpack.c.l.b16 %v289
        %v338 = vunpack.c.l.b16 %v290
        %v339 = vunpack.c.l.b16 %v291
        %v340 = vpack.c.b16 %v325, %v324
        %v341 = vpack.c.b16 %v327, %v326
        %v342 = vpack.c.b16 %v329, %v328
        %v343 = vpack.c.b16 %v331, %v330
        %v344 = vpack.c.b16 %v333, %v332
        %v345 = vpack.c.b16 %v335, %v334
        %v346 = vpack.c.b16 %v337, %v336
        %v347 = vpack.c.b16 %v339, %v338
        %v372 = vunpack.c.l.b16 %v292
        %v373 = vunpack.c.l.b16 %v293
        %v374 = vunpack.c.l.b16 %v294
        %v375 = vunpack.c.l.b16 %v295
        %v376 = vunpack.c.l.b16 %v296
        %v377 = vunpack.c.l.b16 %v297
        %v378 = vunpack.c.l.b16 %v298
        %v379 = vunpack.c.l.b16 %v299
        %v380 = vunpack.c.l.b16 %v300
        %v381 = vunpack.c.l.b16 %v301
        %v382 = vunpack.c.l.b16 %v302
        %v383 = vunpack.c.l.b16 %v303
        %v384 = vunpack.c.l.b16 %v304
        %v385 = vunpack.c.l.b16 %v305
        %v386 = vunpack.c.l.b16 %v306
        %v387 = vunpack.c.l.b16 %v307
        %v388 = vpack.c.b16 %v373, %v372
        %v389 = vpack.c.b16 %v375, %v374
        %v390 = vpack.c.b16 %v377, %v376
        %v391 = vpack.c.b16 %v379, %v378
        %v392 = vpack.c.b16 %v381, %v380
        %v393 = vpack.c.b16 %v383, %v382
        %v394 = vpack.c.b16 %v385, %v384
        %v395 = vpack.c.b16 %v387, %v386
        %404 = vmatprep.subr.bf16.mxu0 0
        %405 = vmatpush1.bf16.msra.mxu0 %v388
        %406 = vmatprep.subr.bf16.mxu0 0
        %407 = vmatpush1.bf16.msra.mxu0 %v389
        %408 = vmatprep.subr.bf16.mxu0 0
        %409 = vmatpush1.bf16.msra.mxu0 %v390
        %410 = vmatprep.subr.bf16.mxu0 0
        %411 = vmatpush1.bf16.msra.mxu0 %v391
        %412 = vmatprep.subr.bf16.mxu0 0
        %413 = vmatpush1.bf16.msra.mxu0 %v392
        %414 = vmatprep.subr.bf16.mxu0 0
        %415 = vmatpush1.bf16.msra.mxu0 %v393
        %416 = vmatprep.subr.bf16.mxu0 0
        %417 = vmatpush1.bf16.msra.mxu0 %v394
        %418 = vmatprep.subr.bf16.mxu0 0
        %419 = vmatpush1.bf16.msra.mxu0 %v395
        %420 = vmatprep.subr.bf16.mxu0 0
        %421 = vmatpush1.bf16.msra.mxu0 0
        %422 = vmatprep.subr.bf16.mxu0 0
        %423 = vmatpush1.bf16.msra.mxu0 0
        %424 = vmatprep.subr.bf16.mxu0 0
        %425 = vmatpush1.bf16.msra.mxu0 0
        %426 = vmatprep.subr.bf16.mxu0 0
        %427 = vmatpush1.bf16.msra.mxu0 0
        %428 = vmatprep.subr.bf16.mxu0 0
        %429 = vmatpush1.bf16.msra.mxu0 0
        %430 = vmatprep.subr.bf16.mxu0 0
        %431 = vmatpush1.bf16.msra.mxu0 0
        %432 = vmatprep.subr.bf16.mxu0 0
        %433 = vmatpush1.bf16.msra.mxu0 0
        %434 = vmatprep.subr.bf16.mxu0 0
        %435 = vmatpush1.bf16.msra.mxu0 0
        %436 = vmatprep.mubr.bf16.mxu0 0
        %437 = vmatmul.mubr.bf16.gmra.mrb[0].mxu0 %v340
        %v438 = vpop.f32.mrb[0].mxu0
        %v439 = vadd.f32 0.0, %v438
        %v440 = vpop.f32.mrb[0].mxu0
        %v441 = vpop.f32.mrb[0].mxu0
        %v442 = vadd.f32 0.0, %v441
        %v443 = vpop.f32.mrb[0].mxu0
        %444 = vmatprep.mubr.bf16.mxu0 0
        %445 = vmatmul.mubr.bf16.gmra.mrb[0].mxu0 %v341
        %v446 = vpop.f32.mrb[0].mxu0
        %v447 = vadd.f32 0.0, %v446
        %v448 = vpop.f32.mrb[0].mxu0
        %v449 = vpop.f32.mrb[0].mxu0
        %v450 = vadd.f32 0.0, %v449
        %v451 = vpop.f32.mrb[0].mxu0
        %452 = vmatprep.mubr.bf16.mxu0 0
        %453 = vmatmul.mubr.bf16.gmra.mrb[0].mxu0 %v342
        %v454 = vpop.f32.mrb[0].mxu0
        %v455 = vadd.f32 0.0, %v454
        %v456 = vpop.f32.mrb[0].mxu0
        %v457 = vpop.f32.mrb[0].mxu0
        %v458 = vadd.f32 0.0, %v457
        %v459 = vpop.f32.mrb[0].mxu0
        %460 = vmatprep.mubr.bf16.mxu0 0
        %461 = vmatmul.mubr.bf16.gmra.mrb[0].mxu0 %v343
        %v462 = vpop.f32.mrb[0].mxu0
        %v463 = vadd.f32 0.0, %v462
        %v464 = vpop.f32.mrb[0].mxu0
        %v465 = vpop.f32.mrb[0].mxu0
        %v466 = vadd.f32 0.0, %v465
        %v467 = vpop.f32.mrb[0].mxu0
        %468 = vmatprep.mubr.bf16.mxu0 0
        %469 = vmatmul.mubr.bf16.gmra.mrb[0].mxu0 %v344
        %v470 = vpop.f32.mrb[0].mxu0
        %v471 = vadd.f32 0.0, %v470
        %v472 = vpop.f32.mrb[0].mxu0
        %v473 = vpop.f32.mrb[0].mxu0
        %v474 = vadd.f32 0.0, %v473
        %v475 = vpop.f32.mrb[0].mxu0
        %476 = vmatprep.mubr.bf16.mxu0 0
        %477 = vmatmul.mubr.bf16.gmra.mrb[0].mxu0 %v345
        %v478 = vpop.f32.mrb[0].mxu0
        %v479 = vadd.f32 0.0, %v478
        %v480 = vpop.f32.mrb[0].mxu0
        %v481 = vpop.f32.mrb[0].mxu0
        %v482 = vadd.f32 0.0, %v481
        %v483 = vpop.f32.mrb[0].mxu0
        %484 = vmatprep.mubr.bf16.mxu0 0
        %485 = vmatmul.mubr.bf16.gmra.mrb[0].mxu0 %v346
        %v486 = vpop.f32.mrb[0].mxu0
        %v487 = vadd.f32 0.0, %v486
        %v488 = vpop.f32.mrb[0].mxu0
        %v489 = vpop.f32.mrb[0].mxu0
        %v490 = vadd.f32 0.0, %v489
        %v491 = vpop.f32.mrb[0].mxu0
        %492 = vmatprep.mubr.bf16.mxu0 0
        %493 = vmatmul.mubr.bf16.gmra.mrb[0].mxu0 %v347
        %v494 = vpop.f32.mrb[0].mxu0
        %v495 = vadd.f32 0.0, %v494
        %v496 = vpop.f32.mrb[0].mxu0
        %v497 = vpop.f32.mrb[0].mxu0
        %v498 = vadd.f32 0.0, %v497
        %v499 = vpop.f32.mrb[0].mxu0
        %500 = vdwg.mxu0
        %501 = vst [vmem:[#allocation2] sm:$0xff] %v439
        %502 = vst [vmem:[#allocation2 + $0x8] sm:$0xff] %v442
        %503 = vst [vmem:[#allocation2 + $0x10] sm:$0xff] %v447
        %504 = vst [vmem:[#allocation2 + $0x18] sm:$0xff] %v450
        %505 = vst [vmem:[#allocation2 + $0x20] sm:$0xff] %v455
        %506 = vst [vmem:[#allocation2 + $0x28] sm:$0xff] %v458
        %507 = vst [vmem:[#allocation2 + $0x30] sm:$0xff] %v463
        %508 = vst [vmem:[#allocation2 + $0x38] sm:$0xff] %v466
        %509 = vst [vmem:[#allocation2 + $0x40] sm:$0xff] %v471
        %510 = vst [vmem:[#allocation2 + $0x48] sm:$0xff] %v474
        %511 = vst [vmem:[#allocation2 + $0x50] sm:$0xff] %v479
        %512 = vst [vmem:[#allocation2 + $0x58] sm:$0xff] %v482
        %513 = vst [vmem:[#allocation2 + $0x60] sm:$0xff] %v487
        %514 = vst [vmem:[#allocation2 + $0x68] sm:$0xff] %v490
        %515 = vst [vmem:[#allocation2 + $0x70] sm:$0xff] %v495
        %516 = vst [vmem:[#allocation2 + $0x78] sm:$0xff] %v498
        %v517 = vld [vmem:[%s275] sm:$0xf]
        %v518 = vld [vmem:[%s275 + $0x4] sm:$0xf]
        %v519 = vld [vmem:[%s275 + $0x8] sm:$0x1]
        %v520 = vld [vmem:[%s275 + $0xc] sm:$0xf]
        %v521 = vld [vmem:[%s275 + $0x10] sm:$0xf]
        %v522 = vld [vmem:[%s275 + $0x14] sm:$0x1]
        %v523 = vld [vmem:[%s275 + $0x18] sm:$0xf]
        %v524 = vld [vmem:[%s275 + $0x1c] sm:$0xf]
        %v525 = vld [vmem:[%s275 + $0x20] sm:$0x1]
        %v526 = vld [vmem:[%s275 + $0x24] sm:$0xf]
        %v527 = vld [vmem:[%s275 + $0x28] sm:$0xf]
        %v528 = vld [vmem:[%s275 + $0x2c] sm:$0x1]
        %v529 = vld [vmem:[%s275 + $0x30] sm:$0xf]
        %v530 = vld [vmem:[%s275 + $0x34] sm:$0xf]
        %v531 = vld [vmem:[%s275 + $0x38] sm:$0x1]
        %v532 = vld [vmem:[%s275 + $0x3c] sm:$0xf]
        %v533 = vld [vmem:[%s275 + $0x40] sm:$0xf]
        %v534 = vld [vmem:[%s275 + $0x44] sm:$0x1]
        %v535 = vld [vmem:[%s275 + $0x48] sm:$0xf]
        %v536 = vld [vmem:[%s275 + $0x4c] sm:$0xf]
        %v537 = vld [vmem:[%s275 + $0x50] sm:$0x1]
        %v538 = vld [vmem:[%s275 + $0x54] sm:$0xf]
        %v539 = vld [vmem:[%s275 + $0x58] sm:$0xf]
        %v540 = vld [vmem:[%s275 + $0x5c] sm:$0x1]
        %vm541 = vsmask.f32 3328
        %vm542 = vsmask.f32 7440
        %vm543 = vmor %vm541, %vm542
        %v545 = vshrl.u32 %v517, 16
        %v547 = vrot.slane %v545, 4
        %v548 = vshll.u32 %v517, 16
        %v550 = vrot.slane %v548, 5
        %v551 = vor.u32 %v547, %v550
        %v552 = vrot.slane %v551, 4
        %v554 = vshll.u32 %v518, 16
        %v556 = vrot.slane %v554, 5
        %v557 = vsel %vm543, %v552, %v556
        %v558 = vshrl.u32 %v518, 16
        %v560 = vrot.slane %v558, 4
        %v561 = vor.u32 %v560, %v556
        %v562 = vrot.slane %v561, 4
        %v564 = vshll.u32 %v519, 16
        %v566 = vrot.slane %v564, 5
        %v567 = vsel %vm543, %v562, %v566
        %v569 = vshrl.u32 %v520, 16
        %v571 = vrot.slane %v569, 4
        %v572 = vshll.u32 %v520, 16
        %v574 = vrot.slane %v572, 5
        %v575 = vor.u32 %v571, %v574
        %v576 = vrot.slane %v575, 4
        %v578 = vshll.u32 %v521, 16
        %v580 = vrot.slane %v578, 5
        %v581 = vsel %vm543, %v576, %v580
        %v582 = vshrl.u32 %v521, 16
        %v584 = vrot.slane %v582, 4
        %v585 = vor.u32 %v584, %v580
        %v586 = vrot.slane %v585, 4
        %v588 = vshll.u32 %v522, 16
        %v590 = vrot.slane %v588, 5
        %v591 = vsel %vm543, %v586, %v590
        %v593 = vshrl.u32 %v523, 16
        %v595 = vrot.slane %v593, 4
        %v596 = vshll.u32 %v523, 16
        %v598 = vrot.slane %v596, 5
        %v599 = vor.u32 %v595, %v598
        %v600 = vrot.slane %v599, 4
        %v602 = vshll.u32 %v524, 16
        %v604 = vrot.slane %v602, 5
        %v605 = vsel %vm543, %v600, %v604
        %v606 = vshrl.u32 %v524, 16
        %v608 = vrot.slane %v606, 4
        %v609 = vor.u32 %v608, %v604
        %v610 = vrot.slane %v609, 4
        %v612 = vshll.u32 %v525, 16
        %v614 = vrot.slane %v612, 5
        %v615 = vsel %vm543, %v610, %v614
        %v617 = vshrl.u32 %v526, 16
        %v619 = vrot.slane %v617, 4
        %v620 = vshll.u32 %v526, 16
        %v622 = vrot.slane %v620, 5
        %v623 = vor.u32 %v619, %v622
        %v624 = vrot.slane %v623, 4
        %v626 = vshll.u32 %v527, 16
        %v628 = vrot.slane %v626, 5
        %v629 = vsel %vm543, %v624, %v628
        %v630 = vshrl.u32 %v527, 16
        %v632 = vrot.slane %v630, 4
        %v633 = vor.u32 %v632, %v628
        %v634 = vrot.slane %v633, 4
        %v636 = vshll.u32 %v528, 16
        %v638 = vrot.slane %v636, 5
        %v639 = vsel %vm543, %v634, %v638
        %v641 = vshrl.u32 %v529, 16
        %v643 = vrot.slane %v641, 4
        %v644 = vshll.u32 %v529, 16
        %v646 = vrot.slane %v644, 5
        %v647 = vor.u32 %v643, %v646
        %v648 = vrot.slane %v647, 4
        %v650 = vshll.u32 %v530, 16
        %v652 = vrot.slane %v650, 5
        %v653 = vsel %vm543, %v648, %v652
        %v654 = vshrl.u32 %v530, 16
        %v656 = vrot.slane %v654, 4
        %v657 = vor.u32 %v656, %v652
        %v658 = vrot.slane %v657, 4
        %v660 = vshll.u32 %v531, 16
        %v662 = vrot.slane %v660, 5
        %v663 = vsel %vm543, %v658, %v662
        %v665 = vshrl.u32 %v532, 16
        %v667 = vrot.slane %v665, 4
        %v668 = vshll.u32 %v532, 16
        %v670 = vrot.slane %v668, 5
        %v671 = vor.u32 %v667, %v670
        %v672 = vrot.slane %v671, 4
        %v674 = vshll.u32 %v533, 16
        %v676 = vrot.slane %v674, 5
        %v677 = vsel %vm543, %v672, %v676
        %v678 = vshrl.u32 %v533, 16
        %v680 = vrot.slane %v678, 4
        %v681 = vor.u32 %v680, %v676
        %v682 = vrot.slane %v681, 4
        %v684 = vshll.u32 %v534, 16
        %v686 = vrot.slane %v684, 5
        %v687 = vsel %vm543, %v682, %v686
        %v689 = vshrl.u32 %v535, 16
        %v691 = vrot.slane %v689, 4
        %v692 = vshll.u32 %v535, 16
        %v694 = vrot.slane %v692, 5
        %v695 = vor.u32 %v691, %v694
        %v696 = vrot.slane %v695, 4
        %v698 = vshll.u32 %v536, 16
        %v700 = vrot.slane %v698, 5
        %v701 = vsel %vm543, %v696, %v700
        %v702 = vshrl.u32 %v536, 16
        %v704 = vrot.slane %v702, 4
        %v705 = vor.u32 %v704, %v700
        %v706 = vrot.slane %v705, 4
        %v708 = vshll.u32 %v537, 16
        %v710 = vrot.slane %v708, 5
        %v711 = vsel %vm543, %v706, %v710
        %v713 = vshrl.u32 %v538, 16
        %v715 = vrot.slane %v713, 4
        %v716 = vshll.u32 %v538, 16
        %v718 = vrot.slane %v716, 5
        %v719 = vor.u32 %v715, %v718
        %v720 = vrot.slane %v719, 4
        %v722 = vshll.u32 %v539, 16
        %v724 = vrot.slane %v722, 5
        %v725 = vsel %vm543, %v720, %v724
        %v726 = vshrl.u32 %v539, 16
        %v728 = vrot.slane %v726, 4
        %v729 = vor.u32 %v728, %v724
        %v730 = vrot.slane %v729, 4
        %v732 = vshll.u32 %v540, 16
        %v734 = vrot.slane %v732, 5
        %v735 = vsel %vm543, %v730, %v734
        %s736 = scalar_lea.vmem [#allocation6], 64
        %v737 = vld [vmem:[%s736] sm:$0xf]
        %v738 = vld [vmem:[%s736 + $0x4] sm:$0xf]
        %v739 = vld [vmem:[%s736 + $0x8] sm:$0xf]
        %v740 = vld [vmem:[%s736 + $0xc] sm:$0xf]
        %v741 = vld [vmem:[%s736 + $0x10] sm:$0xf]
        %v742 = vld [vmem:[%s736 + $0x14] sm:$0xf]
        %v743 = vld [vmem:[%s736 + $0x18] sm:$0xf]
        %v744 = vld [vmem:[%s736 + $0x1c] sm:$0xf]
        %v745 = vld [vmem:[%s736 + $0x20] sm:$0xf]
        %v746 = vld [vmem:[%s736 + $0x24] sm:$0xf]
        %v747 = vld [vmem:[%s736 + $0x28] sm:$0xf]
        %v748 = vld [vmem:[%s736 + $0x2c] sm:$0xf]
        %v749 = vld [vmem:[%s736 + $0x30] sm:$0xf]
        %v750 = vld [vmem:[%s736 + $0x34] sm:$0xf]
        %v751 = vld [vmem:[%s736 + $0x38] sm:$0xf]
        %v752 = vld [vmem:[%s736 + $0x3c] sm:$0xf]
        %v753 = vunpack.c.l.b16 %v557
        %v754 = vunpack.c.l.b16 %v567
        %v755 = vunpack.c.l.b16 %v581
        %v756 = vunpack.c.l.b16 %v591
        %v757 = vunpack.c.l.b16 %v605
        %v758 = vunpack.c.l.b16 %v615
        %v759 = vunpack.c.l.b16 %v629
        %v760 = vunpack.c.l.b16 %v639
        %v761 = vunpack.c.l.b16 %v653
        %v762 = vunpack.c.l.b16 %v663
        %v763 = vunpack.c.l.b16 %v677
        %v764 = vunpack.c.l.b16 %v687
        %v765 = vunpack.c.l.b16 %v701
        %v766 = vunpack.c.l.b16 %v711
        %v767 = vunpack.c.l.b16 %v725
        %v768 = vunpack.c.l.b16 %v735
        %v769 = vpack.c.b16 %v754, %v753
        %v770 = vpack.c.b16 %v756, %v755
        %v771 = vpack.c.b16 %v758, %v757
        %v772 = vpack.c.b16 %v760, %v759
        %v773 = vpack.c.b16 %v762, %v761
        %v774 = vpack.c.b16 %v764, %v763
        %v775 = vpack.c.b16 %v766, %v765
        %v776 = vpack.c.b16 %v768, %v767
        %v801 = vunpack.c.l.b16 %v737
        %v802 = vunpack.c.l.b16 %v738
        %v803 = vunpack.c.l.b16 %v739
        %v804 = vunpack.c.l.b16 %v740
        %v805 = vunpack.c.l.b16 %v741
        %v806 = vunpack.c.l.b16 %v742
        %v807 = vunpack.c.l.b16 %v743
        %v808 = vunpack.c.l.b16 %v744
        %v809 = vunpack.c.l.b16 %v745
        %v810 = vunpack.c.l.b16 %v746
        %v811 = vunpack.c.l.b16 %v747
        %v812 = vunpack.c.l.b16 %v748
        %v813 = vunpack.c.l.b16 %v749
        %v814 = vunpack.c.l.b16 %v750
        %v815 = vunpack.c.l.b16 %v751
        %v816 = vunpack.c.l.b16 %v752
        %v817 = vpack.c.b16 %v802, %v801
        %v818 = vpack.c.b16 %v804, %v803
        %v819 = vpack.c.b16 %v806, %v805
        %v820 = vpack.c.b16 %v808, %v807
        %v821 = vpack.c.b16 %v810, %v809
        %v822 = vpack.c.b16 %v812, %v811
        %v823 = vpack.c.b16 %v814, %v813
        %v824 = vpack.c.b16 %v816, %v815
        %833 = vmatprep.subr.bf16.mxu0 0
        %834 = vmatpush1.bf16.msra.mxu0 %v817
        %835 = vmatprep.subr.bf16.mxu0 0
        %836 = vmatpush1.bf16.msra.mxu0 %v818
        %837 = vmatprep.subr.bf16.mxu0 0
        %838 = vmatpush1.bf16.msra.mxu0 %v819
        %839 = vmatprep.subr.bf16.mxu0 0
        %840 = vmatpush1.bf16.msra.mxu0 %v820
        %841 = vmatprep.subr.bf16.mxu0 0
        %842 = vmatpush1.bf16.msra.mxu0 %v821
        %843 = vmatprep.subr.bf16.mxu0 0
        %844 = vmatpush1.bf16.msra.mxu0 %v822
        %845 = vmatprep.subr.bf16.mxu0 0
        %846 = vmatpush1.bf16.msra.mxu0 %v823
        %847 = vmatprep.subr.bf16.mxu0 0
        %848 = vmatpush1.bf16.msra.mxu0 %v824
        %849 = vmatprep.subr.bf16.mxu0 0
        %850 = vmatpush1.bf16.msra.mxu0 0
        %851 = vmatprep.subr.bf16.mxu0 0
        %852 = vmatpush1.bf16.msra.mxu0 0
        %853 = vmatprep.subr.bf16.mxu0 0
        %854 = vmatpush1.bf16.msra.mxu0 0
        %855 = vmatprep.subr.bf16.mxu0 0
        %856 = vmatpush1.bf16.msra.mxu0 0
        %857 = vmatprep.subr.bf16.mxu0 0
        %858 = vmatpush1.bf16.msra.mxu0 0
        %859 = vmatprep.subr.bf16.mxu0 0
        %860 = vmatpush1.bf16.msra.mxu0 0
        %861 = vmatprep.subr.bf16.mxu0 0
        %862 = vmatpush1.bf16.msra.mxu0 0
        %863 = vmatprep.subr.bf16.mxu0 0
        %864 = vmatpush1.bf16.msra.mxu0 0
        %865 = vmatprep.mubr.bf16.mxu0 0
        %866 = vmatmul.mubr.bf16.gmra.mrb[0].mxu0 %v769
        %v867 = vpop.f32.mrb[0].mxu0
        %v868 = vadd.f32 0.0, %v867
        %v869 = vpop.f32.mrb[0].mxu0
        %v870 = vpop.f32.mrb[0].mxu0
        %v871 = vadd.f32 0.0, %v870
        %v872 = vpop.f32.mrb[0].mxu0
        %873 = vmatprep.mubr.bf16.mxu0 0
        %874 = vmatmul.mubr.bf16.gmra.mrb[0].mxu0 %v770
        %v875 = vpop.f32.mrb[0].mxu0
        %v876 = vadd.f32 0.0, %v875
        %v877 = vpop.f32.mrb[0].mxu0
        %v878 = vpop.f32.mrb[0].mxu0
        %v879 = vadd.f32 0.0, %v878
        %v880 = vpop.f32.mrb[0].mxu0
        %881 = vmatprep.mubr.bf16.mxu0 0
        %882 = vmatmul.mubr.bf16.gmra.mrb[0].mxu0 %v771
        %v883 = vpop.f32.mrb[0].mxu0
        %v884 = vadd.f32 0.0, %v883
        %v885 = vpop.f32.mrb[0].mxu0
        %v886 = vpop.f32.mrb[0].mxu0
        %v887 = vadd.f32 0.0, %v886
        %v888 = vpop.f32.mrb[0].mxu0
        %889 = vmatprep.mubr.bf16.mxu0 0
        %890 = vmatmul.mubr.bf16.gmra.mrb[0].mxu0 %v772
        %v891 = vpop.f32.mrb[0].mxu0
        %v892 = vadd.f32 0.0, %v891
        %v893 = vpop.f32.mrb[0].mxu0
        %v894 = vpop.f32.mrb[0].mxu0
        %v895 = vadd.f32 0.0, %v894
        %v896 = vpop.f32.mrb[0].mxu0
        %897 = vmatprep.mubr.bf16.mxu0 0
        %898 = vmatmul.mubr.bf16.gmra.mrb[0].mxu0 %v773
        %v899 = vpop.f32.mrb[0].mxu0
        %v900 = vadd.f32 0.0, %v899
        %v901 = vpop.f32.mrb[0].mxu0
        %v902 = vpop.f32.mrb[0].mxu0
        %v903 = vadd.f32 0.0, %v902
        %v904 = vpop.f32.mrb[0].mxu0
        %905 = vmatprep.mubr.bf16.mxu0 0
        %906 = vmatmul.mubr.bf16.gmra.mrb[0].mxu0 %v774
        %v907 = vpop.f32.mrb[0].mxu0
        %v908 = vadd.f32 0.0, %v907
        %v909 = vpop.f32.mrb[0].mxu0
        %v910 = vpop.f32.mrb[0].mxu0
        %v911 = vadd.f32 0.0, %v910
        %v912 = vpop.f32.mrb[0].mxu0
        %913 = vmatprep.mubr.bf16.mxu0 0
        %914 = vmatmul.mubr.bf16.gmra.mrb[0].mxu0 %v775
        %v915 = vpop.f32.mrb[0].mxu0
        %v916 = vadd.f32 0.0, %v915
        %v917 = vpop.f32.mrb[0].mxu0
        %v918 = vpop.f32.mrb[0].mxu0
        %v919 = vadd.f32 0.0, %v918
        %v920 = vpop.f32.mrb[0].mxu0
        %921 = vmatprep.mubr.bf16.mxu0 0
        %922 = vmatmul.mubr.bf16.gmra.mrb[0].mxu0 %v776
        %v923 = vpop.f32.mrb[0].mxu0
        %v924 = vadd.f32 0.0, %v923
        %v925 = vpop.f32.mrb[0].mxu0
        %v926 = vpop.f32.mrb[0].mxu0
        %v927 = vadd.f32 0.0, %v926
        %v928 = vpop.f32.mrb[0].mxu0
        %929 = vdwg.mxu0
        %v930 = vld [vmem:[#allocation2] sm:$0xff]
        %v931 = vld [vmem:[#allocation2 + $0x8] sm:$0xff]
        %v932 = vld [vmem:[#allocation2 + $0x10] sm:$0xff]
        %v933 = vld [vmem:[#allocation2 + $0x18] sm:$0xff]
        %v934 = vld [vmem:[#allocation2 + $0x20] sm:$0xff]
        %v935 = vld [vmem:[#allocation2 + $0x28] sm:$0xff]
        %v936 = vld [vmem:[#allocation2 + $0x30] sm:$0xff]
        %v937 = vld [vmem:[#allocation2 + $0x38] sm:$0xff]
        %v938 = vld [vmem:[#allocation2 + $0x40] sm:$0xff]
        %v939 = vld [vmem:[#allocation2 + $0x48] sm:$0xff]
        %v940 = vld [vmem:[#allocation2 + $0x50] sm:$0xff]
        %v941 = vld [vmem:[#allocation2 + $0x58] sm:$0xff]
        %v942 = vld [vmem:[#allocation2 + $0x60] sm:$0xff]
        %v943 = vld [vmem:[#allocation2 + $0x68] sm:$0xff]
        %v944 = vld [vmem:[#allocation2 + $0x70] sm:$0xff]
        %v945 = vld [vmem:[#allocation2 + $0x78] sm:$0xff]
        %v946 = vadd.f32 %v930, %v868
        %v947 = vadd.f32 %v931, %v871
        %v948 = vadd.f32 %v932, %v876
        %v949 = vadd.f32 %v933, %v879
        %v950 = vadd.f32 %v934, %v884
        %v951 = vadd.f32 %v935, %v887
        %v952 = vadd.f32 %v936, %v892
        %v953 = vadd.f32 %v937, %v895
        %v954 = vadd.f32 %v938, %v900
        %v955 = vadd.f32 %v939, %v903
        %v956 = vadd.f32 %v940, %v908
        %v957 = vadd.f32 %v941, %v911
        %v958 = vadd.f32 %v942, %v916
        %v959 = vadd.f32 %v943, %v919
        %v960 = vadd.f32 %v944, %v924
        %v961 = vadd.f32 %v945, %v927
        %962 = vst [vmem:[#allocation2] sm:$0xff] %v946
        %963 = vst [vmem:[#allocation2 + $0x8] sm:$0xff] %v947
        %964 = vst [vmem:[#allocation2 + $0x10] sm:$0xff] %v948
        %965 = vst [vmem:[#allocation2 + $0x18] sm:$0xff] %v949
        %966 = vst [vmem:[#allocation2 + $0x20] sm:$0xff] %v950
        %967 = vst [vmem:[#allocation2 + $0x28] sm:$0xff] %v951
        %968 = vst [vmem:[#allocation2 + $0x30] sm:$0xff] %v952
        %969 = vst [vmem:[#allocation2 + $0x38] sm:$0xff] %v953
        %970 = vst [vmem:[#allocation2 + $0x40] sm:$0xff] %v954
        %971 = vst [vmem:[#allocation2 + $0x48] sm:$0xff] %v955
        %972 = vst [vmem:[#allocation2 + $0x50] sm:$0xff] %v956
        %973 = vst [vmem:[#allocation2 + $0x58] sm:$0xff] %v957
        %974 = vst [vmem:[#allocation2 + $0x60] sm:$0xff] %v958
        %975 = vst [vmem:[#allocation2 + $0x68] sm:$0xff] %v959
        %976 = vst [vmem:[#allocation2 + $0x70] sm:$0xff] %v960
        %977 = vst [vmem:[#allocation2 + $0x78] sm:$0xff] %v961
        %v978 = vld [vmem:[%s275] sm:$0xe]
        %v979 = vld [vmem:[%s275 + $0x4] sm:$0xf]
        %v980 = vld [vmem:[%s275 + $0x8] sm:$0x1]
        %v981 = vld [vmem:[%s275 + $0xc] sm:$0xe]
        %v982 = vld [vmem:[%s275 + $0x10] sm:$0xf]
        %v983 = vld [vmem:[%s275 + $0x14] sm:$0x1]
        %v984 = vld [vmem:[%s275 + $0x18] sm:$0xe]
        %v985 = vld [vmem:[%s275 + $0x1c] sm:$0xf]
        %v986 = vld [vmem:[%s275 + $0x20] sm:$0x1]
        %v987 = vld [vmem:[%s275 + $0x24] sm:$0xe]
        %v988 = vld [vmem:[%s275 + $0x28] sm:$0xf]
        %v989 = vld [vmem:[%s275 + $0x2c] sm:$0x1]
        %v990 = vld [vmem:[%s275 + $0x30] sm:$0xe]
        %v991 = vld [vmem:[%s275 + $0x34] sm:$0xf]
        %v992 = vld [vmem:[%s275 + $0x38] sm:$0x1]
        %v993 = vld [vmem:[%s275 + $0x3c] sm:$0xe]
        %v994 = vld [vmem:[%s275 + $0x40] sm:$0xf]
        %v995 = vld [vmem:[%s275 + $0x44] sm:$0x1]
        %v996 = vld [vmem:[%s275 + $0x48] sm:$0xe]
        %v997 = vld [vmem:[%s275 + $0x4c] sm:$0xf]
        %v998 = vld [vmem:[%s275 + $0x50] sm:$0x1]
        %v999 = vld [vmem:[%s275 + $0x54] sm:$0xe]
        %v1000 = vld [vmem:[%s275 + $0x58] sm:$0xf]
        %v1001 = vld [vmem:[%s275 + $0x5c] sm:$0x1]
        %vm1026 = vcmask 1042432
        %vm1027 = vcmask 1046532
        %vm1028 = vmor %vm1026, %vm1027
        %v1029 = vrot.slane %v978, 5
        %v1030 = vrot.slane %v1029, 4
        %v1031 = vrot.slane %v979, 5
        %v1032 = vsel %vm1028, %v1030, %v1031
        %v1033 = vrot.slane %v1031, 4
        %v1034 = vrot.slane %v980, 5
        %v1035 = vsel %vm1028, %v1033, %v1034
        %v1036 = vrot.slane %v981, 5
        %v1037 = vrot.slane %v1036, 4
        %v1038 = vrot.slane %v982, 5
        %v1039 = vsel %vm1028, %v1037, %v1038
        %v1040 = vrot.slane %v1038, 4
        %v1041 = vrot.slane %v983, 5
        %v1042 = vsel %vm1028, %v1040, %v1041
        %v1043 = vrot.slane %v984, 5
        %v1044 = vrot.slane %v1043, 4
        %v1045 = vrot.slane %v985, 5
        %v1046 = vsel %vm1028, %v1044, %v1045
        %v1047 = vrot.slane %v1045, 4
        %v1048 = vrot.slane %v986, 5
        %v1049 = vsel %vm1028, %v1047, %v1048
        %v1050 = vrot.slane %v987, 5
        %v1051 = vrot.slane %v1050, 4
        %v1052 = vrot.slane %v988, 5
        %v1053 = vsel %vm1028, %v1051, %v1052
        %v1054 = vrot.slane %v1052, 4
        %v1055 = vrot.slane %v989, 5
        %v1056 = vsel %vm1028, %v1054, %v1055
        %v1057 = vrot.slane %v990, 5
        %v1058 = vrot.slane %v1057, 4
        %v1059 = vrot.slane %v991, 5
        %v1060 = vsel %vm1028, %v1058, %v1059
        %v1061 = vrot.slane %v1059, 4
        %v1062 = vrot.slane %v992, 5
        %v1063 = vsel %vm1028, %v1061, %v1062
        %v1064 = vrot.slane %v993, 5
        %v1065 = vrot.slane %v1064, 4
        %v1066 = vrot.slane %v994, 5
        %v1067 = vsel %vm1028, %v1065, %v1066
        %v1068 = vrot.slane %v1066, 4
        %v1069 = vrot.slane %v995, 5
        %v1070 = vsel %vm1028, %v1068, %v1069
        %v1071 = vrot.slane %v996, 5
        %v1072 = vrot.slane %v1071, 4
        %v1073 = vrot.slane %v997, 5
        %v1074 = vsel %vm1028, %v1072, %v1073
        %v1075 = vrot.slane %v1073, 4
        %v1076 = vrot.slane %v998, 5
        %v1077 = vsel %vm1028, %v1075, %v1076
        %v1078 = vrot.slane %v999, 5
        %v1079 = vrot.slane %v1078, 4
        %v1080 = vrot.slane %v1000, 5
        %v1081 = vsel %vm1028, %v1079, %v1080
        %v1082 = vrot.slane %v1080, 4
        %v1083 = vrot.slane %v1001, 5
        %v1084 = vsel %vm1028, %v1082, %v1083
        %s1085 = scalar_lea.vmem [#allocation6], 128
        %v1086 = vld [vmem:[%s1085] sm:$0xf]
        %v1087 = vld [vmem:[%s1085 + $0x4] sm:$0xf]
        %v1088 = vld [vmem:[%s1085 + $0x8] sm:$0xf]
        %v1089 = vld [vmem:[%s1085 + $0xc] sm:$0xf]
        %v1090 = vld [vmem:[%s1085 + $0x10] sm:$0xf]
        %v1091 = vld [vmem:[%s1085 + $0x14] sm:$0xf]
        %v1092 = vld [vmem:[%s1085 + $0x18] sm:$0xf]
        %v1093 = vld [vmem:[%s1085 + $0x1c] sm:$0xf]
        %v1094 = vld [vmem:[%s1085 + $0x20] sm:$0xf]
        %v1095 = vld [vmem:[%s1085 + $0x24] sm:$0xf]
        %v1096 = vld [vmem:[%s1085 + $0x28] sm:$0xf]
        %v1097 = vld [vmem:[%s1085 + $0x2c] sm:$0xf]
        %v1098 = vld [vmem:[%s1085 + $0x30] sm:$0xf]
        %v1099 = vld [vmem:[%s1085 + $0x34] sm:$0xf]
        %v1100 = vld [vmem:[%s1085 + $0x38] sm:$0xf]
        %v1101 = vld [vmem:[%s1085 + $0x3c] sm:$0xf]
        %v1102 = vunpack.c.l.b16 %v1032
        %v1103 = vunpack.c.l.b16 %v1035
        %v1104 = vunpack.c.l.b16 %v1039
        %v1105 = vunpack.c.l.b16 %v1042
        %v1106 = vunpack.c.l.b16 %v1046
        %v1107 = vunpack.c.l.b16 %v1049
        %v1108 = vunpack.c.l.b16 %v1053
        %v1109 = vunpack.c.l.b16 %v1056
        %v1110 = vunpack.c.l.b16 %v1060
        %v1111 = vunpack.c.l.b16 %v1063
        %v1112 = vunpack.c.l.b16 %v1067
        %v1113 = vunpack.c.l.b16 %v1070
        %v1114 = vunpack.c.l.b16 %v1074
        %v1115 = vunpack.c.l.b16 %v1077
        %v1116 = vunpack.c.l.b16 %v1081
        %v1117 = vunpack.c.l.b16 %v1084
        %v1118 = vpack.c.b16 %v1103, %v1102
        %v1119 = vpack.c.b16 %v1105, %v1104
        %v1120 = vpack.c.b16 %v1107, %v1106
        %v1121 = vpack.c.b16 %v1109, %v1108
        %v1122 = vpack.c.b16 %v1111, %v1110
        %v1123 = vpack.c.b16 %v1113, %v1112
        %v1124 = vpack.c.b16 %v1115, %v1114
        %v1125 = vpack.c.b16 %v1117, %v1116
        %v1150 = vunpack.c.l.b16 %v1086
        %v1151 = vunpack.c.l.b16 %v1087
        %v1152 = vunpack.c.l.b16 %v1088
        %v1153 = vunpack.c.l.b16 %v1089
        %v1154 = vunpack.c.l.b16 %v1090
        %v1155 = vunpack.c.l.b16 %v1091
        %v1156 = vunpack.c.l.b16 %v1092
        %v1157 = vunpack.c.l.b16 %v1093
        %v1158 = vunpack.c.l.b16 %v1094
        %v1159 = vunpack.c.l.b16 %v1095
        %v1160 = vunpack.c.l.b16 %v1096
        %v1161 = vunpack.c.l.b16 %v1097
        %v1162 = vunpack.c.l.b16 %v1098
        %v1163 = vunpack.c.l.b16 %v1099
        %v1164 = vunpack.c.l.b16 %v1100
        %v1165 = vunpack.c.l.b16 %v1101
        %v1166 = vpack.c.b16 %v1151, %v1150
        %v1167 = vpack.c.b16 %v1153, %v1152
        %v1168 = vpack.c.b16 %v1155, %v1154
        %v1169 = vpack.c.b16 %v1157, %v1156
        %v1170 = vpack.c.b16 %v1159, %v1158
        %v1171 = vpack.c.b16 %v1161, %v1160
        %v1172 = vpack.c.b16 %v1163, %v1162
        %v1173 = vpack.c.b16 %v1165, %v1164
        %1182 = vmatprep.subr.bf16.mxu0 0
        %1183 = vmatpush1.bf16.msra.mxu0 %v1166
        %1184 = vmatprep.subr.bf16.mxu0 0
        %1185 = vmatpush1.bf16.msra.mxu0 %v1167
        %1186 = vmatprep.subr.bf16.mxu0 0
        %1187 = vmatpush1.bf16.msra.mxu0 %v1168
        %1188 = vmatprep.subr.bf16.mxu0 0
        %1189 = vmatpush1.bf16.msra.mxu0 %v1169
        %1190 = vmatprep.subr.bf16.mxu0 0
        %1191 = vmatpush1.bf16.msra.mxu0 %v1170
        %1192 = vmatprep.subr.bf16.mxu0 0
        %1193 = vmatpush1.bf16.msra.mxu0 %v1171
        %1194 = vmatprep.subr.bf16.mxu0 0
        %1195 = vmatpush1.bf16.msra.mxu0 %v1172
        %1196 = vmatprep.subr.bf16.mxu0 0
        %1197 = vmatpush1.bf16.msra.mxu0 %v1173
        %1198 = vmatprep.subr.bf16.mxu0 0
        %1199 = vmatpush1.bf16.msra.mxu0 0
        %1200 = vmatprep.subr.bf16.mxu0 0
        %1201 = vmatpush1.bf16.msra.mxu0 0
        %1202 = vmatprep.subr.bf16.mxu0 0
        %1203 = vmatpush1.bf16.msra.mxu0 0
        %1204 = vmatprep.subr.bf16.mxu0 0
        %1205 = vmatpush1.bf16.msra.mxu0 0
        %1206 = vmatprep.subr.bf16.mxu0 0
        %1207 = vmatpush1.bf16.msra.mxu0 0
        %1208 = vmatprep.subr.bf16.mxu0 0
        %1209 = vmatpush1.bf16.msra.mxu0 0
        %1210 = vmatprep.subr.bf16.mxu0 0
        %1211 = vmatpush1.bf16.msra.mxu0 0
        %1212 = vmatprep.subr.bf16.mxu0 0
        %1213 = vmatpush1.bf16.msra.mxu0 0
        %1214 = vmatprep.mubr.bf16.mxu0 0
        %1215 = vmatmul.mubr.bf16.gmra.mrb[0].mxu0 %v1118
        %v1216 = vpop.f32.mrb[0].mxu0
        %v1217 = vadd.f32 0.0, %v1216
        %v1218 = vpop.f32.mrb[0].mxu0
        %v1219 = vpop.f32.mrb[0].mxu0
        %v1220 = vadd.f32 0.0, %v1219
        %v1221 = vpop.f32.mrb[0].mxu0
        %1222 = vmatprep.mubr.bf16.mxu0 0
        %1223 = vmatmul.mubr.bf16.gmra.mrb[0].mxu0 %v1119
        %v1224 = vpop.f32.mrb[0].mxu0
        %v1225 = vadd.f32 0.0, %v1224
        %v1226 = vpop.f32.mrb[0].mxu0
        %v1227 = vpop.f32.mrb[0].mxu0
        %v1228 = vadd.f32 0.0, %v1227
        %v1229 = vpop.f32.mrb[0].mxu0
        %1230 = vmatprep.mubr.bf16.mxu0 0
        %1231 = vmatmul.mubr.bf16.gmra.mrb[0].mxu0 %v1120
        %v1232 = vpop.f32.mrb[0].mxu0
        %v1233 = vadd.f32 0.0, %v1232
        %v1234 = vpop.f32.mrb[0].mxu0
        %v1235 = vpop.f32.mrb[0].mxu0
        %v1236 = vadd.f32 0.0, %v1235
        %v1237 = vpop.f32.mrb[0].mxu0
        %1238 = vmatprep.mubr.bf16.mxu0 0
        %1239 = vmatmul.mubr.bf16.gmra.mrb[0].mxu0 %v1121
        %v1240 = vpop.f32.mrb[0].mxu0
        %v1241 = vadd.f32 0.0, %v1240
        %v1242 = vpop.f32.mrb[0].mxu0
        %v1243 = vpop.f32.mrb[0].mxu0
        %v1244 = vadd.f32 0.0, %v1243
        %v1245 = vpop.f32.mrb[0].mxu0
        %1246 = vmatprep.mubr.bf16.mxu0 0
        %1247 = vmatmul.mubr.bf16.gmra.mrb[0].mxu0 %v1122
        %v1248 = vpop.f32.mrb[0].mxu0
        %v1249 = vadd.f32 0.0, %v1248
        %v1250 = vpop.f32.mrb[0].mxu0
        %v1251 = vpop.f32.mrb[0].mxu0
        %v1252 = vadd.f32 0.0, %v1251
        %v1253 = vpop.f32.mrb[0].mxu0
        %1254 = vmatprep.mubr.bf16.mxu0 0
        %1255 = vmatmul.mubr.bf16.gmra.mrb[0].mxu0 %v1123
        %v1256 = vpop.f32.mrb[0].mxu0
        %v1257 = vadd.f32 0.0, %v1256
        %v1258 = vpop.f32.mrb[0].mxu0
        %v1259 = vpop.f32.mrb[0].mxu0
        %v1260 = vadd.f32 0.0, %v1259
        %v1261 = vpop.f32.mrb[0].mxu0
        %1262 = vmatprep.mubr.bf16.mxu0 0
        %1263 = vmatmul.mubr.bf16.gmra.mrb[0].mxu0 %v1124
        %v1264 = vpop.f32.mrb[0].mxu0
        %v1265 = vadd.f32 0.0, %v1264
        %v1266 = vpop.f32.mrb[0].mxu0
        %v1267 = vpop.f32.mrb[0].mxu0
        %v1268 = vadd.f32 0.0, %v1267
        %v1269 = vpop.f32.mrb[0].mxu0
        %1270 = vmatprep.mubr.bf16.mxu0 0
        %1271 = vmatmul.mubr.bf16.gmra.mrb[0].mxu0 %v1125
        %v1272 = vpop.f32.mrb[0].mxu0
        %v1273 = vadd.f32 0.0, %v1272
        %v1274 = vpop.f32.mrb[0].mxu0
        %v1275 = vpop.f32.mrb[0].mxu0
        %v1276 = vadd.f32 0.0, %v1275
        %v1277 = vpop.f32.mrb[0].mxu0
        %1278 = vdwg.mxu0
        %v1279 = vld [vmem:[#allocation2] sm:$0xff]
        %v1280 = vld [vmem:[#allocation2 + $0x8] sm:$0xff]
        %v1281 = vld [vmem:[#allocation2 + $0x10] sm:$0xff]
        %v1282 = vld [vmem:[#allocation2 + $0x18] sm:$0xff]
        %v1283 = vld [vmem:[#allocation2 + $0x20] sm:$0xff]
        %v1284 = vld [vmem:[#allocation2 + $0x28] sm:$0xff]
        %v1285 = vld [vmem:[#allocation2 + $0x30] sm:$0xff]
        %v1286 = vld [vmem:[#allocation2 + $0x38] sm:$0xff]
        %v1287 = vld [vmem:[#allocation2 + $0x40] sm:$0xff]
        %v1288 = vld [vmem:[#allocation2 + $0x48] sm:$0xff]
        %v1289 = vld [vmem:[#allocation2 + $0x50] sm:$0xff]
        %v1290 = vld [vmem:[#allocation2 + $0x58] sm:$0xff]
        %v1291 = vld [vmem:[#allocation2 + $0x60] sm:$0xff]
        %v1292 = vld [vmem:[#allocation2 + $0x68] sm:$0xff]
        %v1293 = vld [vmem:[#allocation2 + $0x70] sm:$0xff]
        %v1294 = vld [vmem:[#allocation2 + $0x78] sm:$0xff]
        %v1295 = vadd.f32 %v1279, %v1217
        %v1296 = vadd.f32 %v1280, %v1220
        %v1297 = vadd.f32 %v1281, %v1225
        %v1298 = vadd.f32 %v1282, %v1228
        %v1299 = vadd.f32 %v1283, %v1233
        %v1300 = vadd.f32 %v1284, %v1236
        %v1301 = vadd.f32 %v1285, %v1241
        %v1302 = vadd.f32 %v1286, %v1244
        %v1303 = vadd.f32 %v1287, %v1249
        %v1304 = vadd.f32 %v1288, %v1252
        %v1305 = vadd.f32 %v1289, %v1257
        %v1306 = vadd.f32 %v1290, %v1260
        %v1307 = vadd.f32 %v1291, %v1265
        %v1308 = vadd.f32 %v1292, %v1268
        %v1309 = vadd.f32 %v1293, %v1273
        %v1310 = vadd.f32 %v1294, %v1276
        %1311 = vst [vmem:[#allocation2] sm:$0xff] %v1295
        %1312 = vst [vmem:[#allocation2 + $0x8] sm:$0xff] %v1296
        %1313 = vst [vmem:[#allocation2 + $0x10] sm:$0xff] %v1297
        %1314 = vst [vmem:[#allocation2 + $0x18] sm:$0xff] %v1298
        %1315 = vst [vmem:[#allocation2 + $0x20] sm:$0xff] %v1299
        %1316 = vst [vmem:[#allocation2 + $0x28] sm:$0xff] %v1300
        %1317 = vst [vmem:[#allocation2 + $0x30] sm:$0xff] %v1301
        %1318 = vst [vmem:[#allocation2 + $0x38] sm:$0xff] %v1302
        %1319 = vst [vmem:[#allocation2 + $0x40] sm:$0xff] %v1303
        %1320 = vst [vmem:[#allocation2 + $0x48] sm:$0xff] %v1304
        %1321 = vst [vmem:[#allocation2 + $0x50] sm:$0xff] %v1305
        %1322 = vst [vmem:[#allocation2 + $0x58] sm:$0xff] %v1306
        %1323 = vst [vmem:[#allocation2 + $0x60] sm:$0xff] %v1307
        %1324 = vst [vmem:[#allocation2 + $0x68] sm:$0xff] %v1308
        %1325 = vst [vmem:[#allocation2 + $0x70] sm:$0xff] %v1309
        %1326 = vst [vmem:[#allocation2 + $0x78] sm:$0xff] %v1310
        %s1327 = sadd.s32 %s272, 1
        %s1328 = smul.u32 %s1327, 3
        %s1329 = smul.addr %s1328, 4
        %s1330 = scalar_lea.vmem %s233, %s1329 [#allocation3]
        %v1331 = vld [vmem:[%s1330] sm:$0xf]
        %v1332 = vld [vmem:[%s1330 + $0x4] sm:$0xf]
        %v1333 = vld [vmem:[%s1330 + $0xc] sm:$0xf]
        %v1334 = vld [vmem:[%s1330 + $0x10] sm:$0xf]
        %v1335 = vld [vmem:[%s1330 + $0x18] sm:$0xf]
        %v1336 = vld [vmem:[%s1330 + $0x1c] sm:$0xf]
        %v1337 = vld [vmem:[%s1330 + $0x24] sm:$0xf]
        %v1338 = vld [vmem:[%s1330 + $0x28] sm:$0xf]
        %v1339 = vld [vmem:[%s1330 + $0x30] sm:$0xf]
        %v1340 = vld [vmem:[%s1330 + $0x34] sm:$0xf]
        %v1341 = vld [vmem:[%s1330 + $0x3c] sm:$0xf]
        %v1342 = vld [vmem:[%s1330 + $0x40] sm:$0xf]
        %v1343 = vld [vmem:[%s1330 + $0x48] sm:$0xf]
        %v1344 = vld [vmem:[%s1330 + $0x4c] sm:$0xf]
        %v1345 = vld [vmem:[%s1330 + $0x54] sm:$0xf]
        %v1346 = vld [vmem:[%s1330 + $0x58] sm:$0xf]
        %s1347 = scalar_lea.vmem [#allocation6], 192
        %v1348 = vld [vmem:[%s1347] sm:$0xf]
        %v1349 = vld [vmem:[%s1347 + $0x4] sm:$0xf]
        %v1350 = vld [vmem:[%s1347 + $0x8] sm:$0xf]
        %v1351 = vld [vmem:[%s1347 + $0xc] sm:$0xf]
        %v1352 = vld [vmem:[%s1347 + $0x10] sm:$0xf]
        %v1353 = vld [vmem:[%s1347 + $0x14] sm:$0xf]
        %v1354 = vld [vmem:[%s1347 + $0x18] sm:$0xf]
        %v1355 = vld [vmem:[%s1347 + $0x1c] sm:$0xf]
        %v1356 = vld [vmem:[%s1347 + $0x20] sm:$0xf]
        %v1357 = vld [vmem:[%s1347 + $0x24] sm:$0xf]
        %v1358 = vld [vmem:[%s1347 + $0x28] sm:$0xf]
        %v1359 = vld [vmem:[%s1347 + $0x2c] sm:$0xf]
        %v1360 = vld [vmem:[%s1347 + $0x30] sm:$0xf]
        %v1361 = vld [vmem:[%s1347 + $0x34] sm:$0xf]
        %v1362 = vld [vmem:[%s1347 + $0x38] sm:$0xf]
        %v1363 = vld [vmem:[%s1347 + $0x3c] sm:$0xf]
        %v1380 = vunpack.c.l.b16 %v1331
        %v1381 = vunpack.c.l.b16 %v1332
        %v1382 = vunpack.c.l.b16 %v1333
        %v1383 = vunpack.c.l.b16 %v1334
        %v1384 = vunpack.c.l.b16 %v1335
        %v1385 = vunpack.c.l.b16 %v1336
        %v1386 = vunpack.c.l.b16 %v1337
        %v1387 = vunpack.c.l.b16 %v1338
        %v1388 = vunpack.c.l.b16 %v1339
        %v1389 = vunpack.c.l.b16 %v1340
        %v1390 = vunpack.c.l.b16 %v1341
        %v1391 = vunpack.c.l.b16 %v1342
        %v1392 = vunpack.c.l.b16 %v1343
        %v1393 = vunpack.c.l.b16 %v1344
        %v1394 = vunpack.c.l.b16 %v1345
        %v1395 = vunpack.c.l.b16 %v1346
        %v1396 = vpack.c.b16 %v1381, %v1380
        %v1397 = vpack.c.b16 %v1383, %v1382
        %v1398 = vpack.c.b16 %v1385, %v1384
        %v1399 = vpack.c.b16 %v1387, %v1386
        %v1400 = vpack.c.b16 %v1389, %v1388
        %v1401 = vpack.c.b16 %v1391, %v1390
        %v1402 = vpack.c.b16 %v1393, %v1392
        %v1403 = vpack.c.b16 %v1395, %v1394
        %v1428 = vunpack.c.l.b16 %v1348
        %v1429 = vunpack.c.l.b16 %v1349
        %v1430 = vunpack.c.l.b16 %v1350
        %v1431 = vunpack.c.l.b16 %v1351
        %v1432 = vunpack.c.l.b16 %v1352
        %v1433 = vunpack.c.l.b16 %v1353
        %v1434 = vunpack.c.l.b16 %v1354
        %v1435 = vunpack.c.l.b16 %v1355
        %v1436 = vunpack.c.l.b16 %v1356
        %v1437 = vunpack.c.l.b16 %v1357
        %v1438 = vunpack.c.l.b16 %v1358
        %v1439 = vunpack.c.l.b16 %v1359
        %v1440 = vunpack.c.l.b16 %v1360
        %v1441 = vunpack.c.l.b16 %v1361
        %v1442 = vunpack.c.l.b16 %v1362
        %v1443 = vunpack.c.l.b16 %v1363
        %v1444 = vpack.c.b16 %v1429, %v1428
        %v1445 = vpack.c.b16 %v1431, %v1430
        %v1446 = vpack.c.b16 %v1433, %v1432
        %v1447 = vpack.c.b16 %v1435, %v1434
        %v1448 = vpack.c.b16 %v1437, %v1436
        %v1449 = vpack.c.b16 %v1439, %v1438
        %v1450 = vpack.c.b16 %v1441, %v1440
        %v1451 = vpack.c.b16 %v1443, %v1442
        %1460 = vmatprep.subr.bf16.mxu0 0
        %1461 = vmatpush1.bf16.msra.mxu0 %v1444
        %1462 = vmatprep.subr.bf16.mxu0 0
        %1463 = vmatpush1.bf16.msra.mxu0 %v1445
        %1464 = vmatprep.subr.bf16.mxu0 0
        %1465 = vmatpush1.bf16.msra.mxu0 %v1446
        %1466 = vmatprep.subr.bf16.mxu0 0
        %1467 = vmatpush1.bf16.msra.mxu0 %v1447
        %1468 = vmatprep.subr.bf16.mxu0 0
        %1469 = vmatpush1.bf16.msra.mxu0 %v1448
        %1470 = vmatprep.subr.bf16.mxu0 0
        %1471 = vmatpush1.bf16.msra.mxu0 %v1449
        %1472 = vmatprep.subr.bf16.mxu0 0
        %1473 = vmatpush1.bf16.msra.mxu0 %v1450
        %1474 = vmatprep.subr.bf16.mxu0 0
        %1475 = vmatpush1.bf16.msra.mxu0 %v1451
        %1476 = vmatprep.subr.bf16.mxu0 0
        %1477 = vmatpush1.bf16.msra.mxu0 0
        %1478 = vmatprep.subr.bf16.mxu0 0
        %1479 = vmatpush1.bf16.msra.mxu0 0
        %1480 = vmatprep.subr.bf16.mxu0 0
        %1481 = vmatpush1.bf16.msra.mxu0 0
        %1482 = vmatprep.subr.bf16.mxu0 0
        %1483 = vmatpush1.bf16.msra.mxu0 0
        %1484 = vmatprep.subr.bf16.mxu0 0
        %1485 = vmatpush1.bf16.msra.mxu0 0
        %1486 = vmatprep.subr.bf16.mxu0 0
        %1487 = vmatpush1.bf16.msra.mxu0 0
        %1488 = vmatprep.subr.bf16.mxu0 0
        %1489 = vmatpush1.bf16.msra.mxu0 0
        %1490 = vmatprep.subr.bf16.mxu0 0
        %1491 = vmatpush1.bf16.msra.mxu0 0
        %1492 = vmatprep.mubr.bf16.mxu0 0
        %1493 = vmatmul.mubr.bf16.gmra.mrb[0].mxu0 %v1396
        %v1494 = vpop.f32.mrb[0].mxu0
        %v1495 = vadd.f32 0.0, %v1494
        %v1496 = vpop.f32.mrb[0].mxu0
        %v1497 = vpop.f32.mrb[0].mxu0
        %v1498 = vadd.f32 0.0, %v1497
        %v1499 = vpop.f32.mrb[0].mxu0
        %1500 = vmatprep.mubr.bf16.mxu0 0
        %1501 = vmatmul.mubr.bf16.gmra.mrb[0].mxu0 %v1397
        %v1502 = vpop.f32.mrb[0].mxu0
        %v1503 = vadd.f32 0.0, %v1502
        %v1504 = vpop.f32.mrb[0].mxu0
        %v1505 = vpop.f32.mrb[0].mxu0
        %v1506 = vadd.f32 0.0, %v1505
        %v1507 = vpop.f32.mrb[0].mxu0
        %1508 = vmatprep.mubr.bf16.mxu0 0
        %1509 = vmatmul.mubr.bf16.gmra.mrb[0].mxu0 %v1398
        %v1510 = vpop.f32.mrb[0].mxu0
        %v1511 = vadd.f32 0.0, %v1510
        %v1512 = vpop.f32.mrb[0].mxu0
        %v1513 = vpop.f32.mrb[0].mxu0
        %v1514 = vadd.f32 0.0, %v1513
        %v1515 = vpop.f32.mrb[0].mxu0
        %1516 = vmatprep.mubr.bf16.mxu0 0
        %1517 = vmatmul.mubr.bf16.gmra.mrb[0].mxu0 %v1399
        %v1518 = vpop.f32.mrb[0].mxu0
        %v1519 = vadd.f32 0.0, %v1518
        %v1520 = vpop.f32.mrb[0].mxu0
        %v1521 = vpop.f32.mrb[0].mxu0
        %v1522 = vadd.f32 0.0, %v1521
        %v1523 = vpop.f32.mrb[0].mxu0
        %1524 = vmatprep.mubr.bf16.mxu0 0
        %1525 = vmatmul.mubr.bf16.gmra.mrb[0].mxu0 %v1400
        %v1526 = vpop.f32.mrb[0].mxu0
        %v1527 = vadd.f32 0.0, %v1526
        %v1528 = vpop.f32.mrb[0].mxu0
        %v1529 = vpop.f32.mrb[0].mxu0
        %v1530 = vadd.f32 0.0, %v1529
        %v1531 = vpop.f32.mrb[0].mxu0
        %1532 = vmatprep.mubr.bf16.mxu0 0
        %1533 = vmatmul.mubr.bf16.gmra.mrb[0].mxu0 %v1401
        %v1534 = vpop.f32.mrb[0].mxu0
        %v1535 = vadd.f32 0.0, %v1534
        %v1536 = vpop.f32.mrb[0].mxu0
        %v1537 = vpop.f32.mrb[0].mxu0
        %v1538 = vadd.f32 0.0, %v1537
        %v1539 = vpop.f32.mrb[0].mxu0
        %1540 = vmatprep.mubr.bf16.mxu0 0
        %1541 = vmatmul.mubr.bf16.gmra.mrb[0].mxu0 %v1402
        %v1542 = vpop.f32.mrb[0].mxu0
        %v1543 = vadd.f32 0.0, %v1542
        %v1544 = vpop.f32.mrb[0].mxu0
        %v1545 = vpop.f32.mrb[0].mxu0
        %v1546 = vadd.f32 0.0, %v1545
        %v1547 = vpop.f32.mrb[0].mxu0
        %1548 = vmatprep.mubr.bf16.mxu0 0
        %1549 = vmatmul.mubr.bf16.gmra.mrb[0].mxu0 %v1403
        %v1550 = vpop.f32.mrb[0].mxu0
        %v1551 = vadd.f32 0.0, %v1550
        %v1552 = vpop.f32.mrb[0].mxu0
        %v1553 = vpop.f32.mrb[0].mxu0
        %v1554 = vadd.f32 0.0, %v1553
        %v1555 = vpop.f32.mrb[0].mxu0
        %1556 = vdwg.mxu0
        %v1557 = vld [vmem:[#allocation2] sm:$0xff]
        %v1558 = vld [vmem:[#allocation2 + $0x8] sm:$0xff]
        %v1559 = vld [vmem:[#allocation2 + $0x10] sm:$0xff]
        %v1560 = vld [vmem:[#allocation2 + $0x18] sm:$0xff]
        %v1561 = vld [vmem:[#allocation2 + $0x20] sm:$0xff]
        %v1562 = vld [vmem:[#allocation2 + $0x28] sm:$0xff]
        %v1563 = vld [vmem:[#allocation2 + $0x30] sm:$0xff]
        %v1564 = vld [vmem:[#allocation2 + $0x38] sm:$0xff]
        %v1565 = vld [vmem:[#allocation2 + $0x40] sm:$0xff]
        %v1566 = vld [vmem:[#allocation2 + $0x48] sm:$0xff]
        %v1567 = vld [vmem:[#allocation2 + $0x50] sm:$0xff]
        %v1568 = vld [vmem:[#allocation2 + $0x58] sm:$0xff]
        %v1569 = vld [vmem:[#allocation2 + $0x60] sm:$0xff]
        %v1570 = vld [vmem:[#allocation2 + $0x68] sm:$0xff]
        %v1571 = vld [vmem:[#allocation2 + $0x70] sm:$0xff]
        %v1572 = vld [vmem:[#allocation2 + $0x78] sm:$0xff]
        %v1573 = vadd.f32 %v1557, %v1495
        %v1574 = vadd.f32 %v1558, %v1498
        %v1575 = vadd.f32 %v1559, %v1503
        %v1576 = vadd.f32 %v1560, %v1506
        %v1577 = vadd.f32 %v1561, %v1511
        %v1578 = vadd.f32 %v1562, %v1514
        %v1579 = vadd.f32 %v1563, %v1519
        %v1580 = vadd.f32 %v1564, %v1522
        %v1581 = vadd.f32 %v1565, %v1527
        %v1582 = vadd.f32 %v1566, %v1530
        %v1583 = vadd.f32 %v1567, %v1535
        %v1584 = vadd.f32 %v1568, %v1538
        %v1585 = vadd.f32 %v1569, %v1543
        %v1586 = vadd.f32 %v1570, %v1546
        %v1587 = vadd.f32 %v1571, %v1551
        %v1588 = vadd.f32 %v1572, %v1554
        %1589 = vst [vmem:[#allocation2] sm:$0xff] %v1573
        %1590 = vst [vmem:[#allocation2 + $0x8] sm:$0xff] %v1574
        %1591 = vst [vmem:[#allocation2 + $0x10] sm:$0xff] %v1575
        %1592 = vst [vmem:[#allocation2 + $0x18] sm:$0xff] %v1576
        %1593 = vst [vmem:[#allocation2 + $0x20] sm:$0xff] %v1577
        %1594 = vst [vmem:[#allocation2 + $0x28] sm:$0xff] %v1578
        %1595 = vst [vmem:[#allocation2 + $0x30] sm:$0xff] %v1579
        %1596 = vst [vmem:[#allocation2 + $0x38] sm:$0xff] %v1580
        %1597 = vst [vmem:[#allocation2 + $0x40] sm:$0xff] %v1581
        %1598 = vst [vmem:[#allocation2 + $0x48] sm:$0xff] %v1582
        %1599 = vst [vmem:[#allocation2 + $0x50] sm:$0xff] %v1583
        %1600 = vst [vmem:[#allocation2 + $0x58] sm:$0xff] %v1584
        %1601 = vst [vmem:[#allocation2 + $0x60] sm:$0xff] %v1585
        %1602 = vst [vmem:[#allocation2 + $0x68] sm:$0xff] %v1586
        %1603 = vst [vmem:[#allocation2 + $0x70] sm:$0xff] %v1587
        %1604 = vst [vmem:[#allocation2 + $0x78] sm:$0xff] %v1588
        %v1605 = vld [vmem:[%s1330] sm:$0xf]
        %v1606 = vld [vmem:[%s1330 + $0x4] sm:$0xf]
        %v1607 = vld [vmem:[%s1330 + $0x8] sm:$0x1]
        %v1608 = vld [vmem:[%s1330 + $0xc] sm:$0xf]
        %v1609 = vld [vmem:[%s1330 + $0x10] sm:$0xf]
        %v1610 = vld [vmem:[%s1330 + $0x14] sm:$0x1]
        %v1611 = vld [vmem:[%s1330 + $0x18] sm:$0xf]
        %v1612 = vld [vmem:[%s1330 + $0x1c] sm:$0xf]
        %v1613 = vld [vmem:[%s1330 + $0x20] sm:$0x1]
        %v1614 = vld [vmem:[%s1330 + $0x24] sm:$0xf]
        %v1615 = vld [vmem:[%s1330 + $0x28] sm:$0xf]
        %v1616 = vld [vmem:[%s1330 + $0x2c] sm:$0x1]
        %v1617 = vld [vmem:[%s1330 + $0x30] sm:$0xf]
        %v1618 = vld [vmem:[%s1330 + $0x34] sm:$0xf]
        %v1619 = vld [vmem:[%s1330 + $0x38] sm:$0x1]
        %v1620 = vld [vmem:[%s1330 + $0x3c] sm:$0xf]
        %v1621 = vld [vmem:[%s1330 + $0x40] sm:$0xf]
        %v1622 = vld [vmem:[%s1330 + $0x44] sm:$0x1]
        %v1623 = vld [vmem:[%s1330 + $0x48] sm:$0xf]
        %v1624 = vld [vmem:[%s1330 + $0x4c] sm:$0xf]
        %v1625 = vld [vmem:[%s1330 + $0x50] sm:$0x1]
        %v1626 = vld [vmem:[%s1330 + $0x54] sm:$0xf]
        %v1627 = vld [vmem:[%s1330 + $0x58] sm:$0xf]
        %v1628 = vld [vmem:[%s1330 + $0x5c] sm:$0x1]
        %v1630 = vshrl.u32 %v1605, 16
        %v1632 = vrot.slane %v1630, 4
        %v1633 = vshll.u32 %v1605, 16
        %v1635 = vrot.slane %v1633, 5
        %v1636 = vor.u32 %v1632, %v1635
        %v1637 = vrot.slane %v1636, 4
        %v1639 = vshll.u32 %v1606, 16
        %v1641 = vrot.slane %v1639, 5
        %v1642 = vsel %vm543, %v1637, %v1641
        %v1643 = vshrl.u32 %v1606, 16
        %v1645 = vrot.slane %v1643, 4
        %v1646 = vor.u32 %v1645, %v1641
        %v1647 = vrot.slane %v1646, 4
        %v1649 = vshll.u32 %v1607, 16
        %v1651 = vrot.slane %v1649, 5
        %v1652 = vsel %vm543, %v1647, %v1651
        %v1654 = vshrl.u32 %v1608, 16
        %v1656 = vrot.slane %v1654, 4
        %v1657 = vshll.u32 %v1608, 16
        %v1659 = vrot.slane %v1657, 5
        %v1660 = vor.u32 %v1656, %v1659
        %v1661 = vrot.slane %v1660, 4
        %v1663 = vshll.u32 %v1609, 16
        %v1665 = vrot.slane %v1663, 5
        %v1666 = vsel %vm543, %v1661, %v1665
        %v1667 = vshrl.u32 %v1609, 16
        %v1669 = vrot.slane %v1667, 4
        %v1670 = vor.u32 %v1669, %v1665
        %v1671 = vrot.slane %v1670, 4
        %v1673 = vshll.u32 %v1610, 16
        %v1675 = vrot.slane %v1673, 5
        %v1676 = vsel %vm543, %v1671, %v1675
        %v1678 = vshrl.u32 %v1611, 16
        %v1680 = vrot.slane %v1678, 4
        %v1681 = vshll.u32 %v1611, 16
        %v1683 = vrot.slane %v1681, 5
        %v1684 = vor.u32 %v1680, %v1683
        %v1685 = vrot.slane %v1684, 4
        %v1687 = vshll.u32 %v1612, 16
        %v1689 = vrot.slane %v1687, 5
        %v1690 = vsel %vm543, %v1685, %v1689
        %v1691 = vshrl.u32 %v1612, 16
        %v1693 = vrot.slane %v1691, 4
        %v1694 = vor.u32 %v1693, %v1689
        %v1695 = vrot.slane %v1694, 4
        %v1697 = vshll.u32 %v1613, 16
        %v1699 = vrot.slane %v1697, 5
        %v1700 = vsel %vm543, %v1695, %v1699
        %v1702 = vshrl.u32 %v1614, 16
        %v1704 = vrot.slane %v1702, 4
        %v1705 = vshll.u32 %v1614, 16
        %v1707 = vrot.slane %v1705, 5
        %v1708 = vor.u32 %v1704, %v1707
        %v1709 = vrot.slane %v1708, 4
        %v1711 = vshll.u32 %v1615, 16
        %v1713 = vrot.slane %v1711, 5
        %v1714 = vsel %vm543, %v1709, %v1713
        %v1715 = vshrl.u32 %v1615, 16
        %v1717 = vrot.slane %v1715, 4
        %v1718 = vor.u32 %v1717, %v1713
        %v1719 = vrot.slane %v1718, 4
        %v1721 = vshll.u32 %v1616, 16
        %v1723 = vrot.slane %v1721, 5
        %v1724 = vsel %vm543, %v1719, %v1723
        %v1726 = vshrl.u32 %v1617, 16
        %v1728 = vrot.slane %v1726, 4
        %v1729 = vshll.u32 %v1617, 16
        %v1731 = vrot.slane %v1729, 5
        %v1732 = vor.u32 %v1728, %v1731
        %v1733 = vrot.slane %v1732, 4
        %v1735 = vshll.u32 %v1618, 16
        %v1737 = vrot.slane %v1735, 5
        %v1738 = vsel %vm543, %v1733, %v1737
        %v1739 = vshrl.u32 %v1618, 16
        %v1741 = vrot.slane %v1739, 4
        %v1742 = vor.u32 %v1741, %v1737
        %v1743 = vrot.slane %v1742, 4
        %v1745 = vshll.u32 %v1619, 16
        %v1747 = vrot.slane %v1745, 5
        %v1748 = vsel %vm543, %v1743, %v1747
        %v1750 = vshrl.u32 %v1620, 16
        %v1752 = vrot.slane %v1750, 4
        %v1753 = vshll.u32 %v1620, 16
        %v1755 = vrot.slane %v1753, 5
        %v1756 = vor.u32 %v1752, %v1755
        %v1757 = vrot.slane %v1756, 4
        %v1759 = vshll.u32 %v1621, 16
        %v1761 = vrot.slane %v1759, 5
        %v1762 = vsel %vm543, %v1757, %v1761
        %v1763 = vshrl.u32 %v1621, 16
        %v1765 = vrot.slane %v1763, 4
        %v1766 = vor.u32 %v1765, %v1761
        %v1767 = vrot.slane %v1766, 4
        %v1769 = vshll.u32 %v1622, 16
        %v1771 = vrot.slane %v1769, 5
        %v1772 = vsel %vm543, %v1767, %v1771
        %v1774 = vshrl.u32 %v1623, 16
        %v1776 = vrot.slane %v1774, 4
        %v1777 = vshll.u32 %v1623, 16
        %v1779 = vrot.slane %v1777, 5
        %v1780 = vor.u32 %v1776, %v1779
        %v1781 = vrot.slane %v1780, 4
        %v1783 = vshll.u32 %v1624, 16
        %v1785 = vrot.slane %v1783, 5
        %v1786 = vsel %vm543, %v1781, %v1785
        %v1787 = vshrl.u32 %v1624, 16
        %v1789 = vrot.slane %v1787, 4
        %v1790 = vor.u32 %v1789, %v1785
        %v1791 = vrot.slane %v1790, 4
        %v1793 = vshll.u32 %v1625, 16
        %v1795 = vrot.slane %v1793, 5
        %v1796 = vsel %vm543, %v1791, %v1795
        %v1798 = vshrl.u32 %v1626, 16
        %v1800 = vrot.slane %v1798, 4
        %v1801 = vshll.u32 %v1626, 16
        %v1803 = vrot.slane %v1801, 5
        %v1804 = vor.u32 %v1800, %v1803
        %v1805 = vrot.slane %v1804, 4
        %v1807 = vshll.u32 %v1627, 16
        %v1809 = vrot.slane %v1807, 5
        %v1810 = vsel %vm543, %v1805, %v1809
        %v1811 = vshrl.u32 %v1627, 16
        %v1813 = vrot.slane %v1811, 4
        %v1814 = vor.u32 %v1813, %v1809
        %v1815 = vrot.slane %v1814, 4
        %v1817 = vshll.u32 %v1628, 16
        %v1819 = vrot.slane %v1817, 5
        %v1820 = vsel %vm543, %v1815, %v1819
        %s1821 = scalar_lea.vmem [#allocation6], 256
        %v1822 = vld [vmem:[%s1821] sm:$0xf]
        %v1823 = vld [vmem:[%s1821 + $0x4] sm:$0xf]
        %v1824 = vld [vmem:[%s1821 + $0x8] sm:$0xf]
        %v1825 = vld [vmem:[%s1821 + $0xc] sm:$0xf]
        %v1826 = vld [vmem:[%s1821 + $0x10] sm:$0xf]
        %v1827 = vld [vmem:[%s1821 + $0x14] sm:$0xf]
        %v1828 = vld [vmem:[%s1821 + $0x18] sm:$0xf]
        %v1829 = vld [vmem:[%s1821 + $0x1c] sm:$0xf]
        %v1830 = vld [vmem:[%s1821 + $0x20] sm:$0xf]
        %v1831 = vld [vmem:[%s1821 + $0x24] sm:$0xf]
        %v1832 = vld [vmem:[%s1821 + $0x28] sm:$0xf]
        %v1833 = vld [vmem:[%s1821 + $0x2c] sm:$0xf]
        %v1834 = vld [vmem:[%s1821 + $0x30] sm:$0xf]
        %v1835 = vld [vmem:[%s1821 + $0x34] sm:$0xf]
        %v1836 = vld [vmem:[%s1821 + $0x38] sm:$0xf]
        %v1837 = vld [vmem:[%s1821 + $0x3c] sm:$0xf]
        %v1838 = vunpack.c.l.b16 %v1642
        %v1839 = vunpack.c.l.b16 %v1652
        %v1840 = vunpack.c.l.b16 %v1666
        %v1841 = vunpack.c.l.b16 %v1676
        %v1842 = vunpack.c.l.b16 %v1690
        %v1843 = vunpack.c.l.b16 %v1700
        %v1844 = vunpack.c.l.b16 %v1714
        %v1845 = vunpack.c.l.b16 %v1724
        %v1846 = vunpack.c.l.b16 %v1738
        %v1847 = vunpack.c.l.b16 %v1748
        %v1848 = vunpack.c.l.b16 %v1762
        %v1849 = vunpack.c.l.b16 %v1772
        %v1850 = vunpack.c.l.b16 %v1786
        %v1851 = vunpack.c.l.b16 %v1796
        %v1852 = vunpack.c.l.b16 %v1810
        %v1853 = vunpack.c.l.b16 %v1820
        %v1854 = vpack.c.b16 %v1839, %v1838
        %v1855 = vpack.c.b16 %v1841, %v1840
        %v1856 = vpack.c.b16 %v1843, %v1842
        %v1857 = vpack.c.b16 %v1845, %v1844
        %v1858 = vpack.c.b16 %v1847, %v1846
        %v1859 = vpack.c.b16 %v1849, %v1848
        %v1860 = vpack.c.b16 %v1851, %v1850
        %v1861 = vpack.c.b16 %v1853, %v1852
        %v1886 = vunpack.c.l.b16 %v1822
        %v1887 = vunpack.c.l.b16 %v1823
        %v1888 = vunpack.c.l.b16 %v1824
        %v1889 = vunpack.c.l.b16 %v1825
        %v1890 = vunpack.c.l.b16 %v1826
        %v1891 = vunpack.c.l.b16 %v1827
        %v1892 = vunpack.c.l.b16 %v1828
        %v1893 = vunpack.c.l.b16 %v1829
        %v1894 = vunpack.c.l.b16 %v1830
        %v1895 = vunpack.c.l.b16 %v1831
        %v1896 = vunpack.c.l.b16 %v1832
        %v1897 = vunpack.c.l.b16 %v1833
        %v1898 = vunpack.c.l.b16 %v1834
        %v1899 = vunpack.c.l.b16 %v1835
        %v1900 = vunpack.c.l.b16 %v1836
        %v1901 = vunpack.c.l.b16 %v1837
        %v1902 = vpack.c.b16 %v1887, %v1886
        %v1903 = vpack.c.b16 %v1889, %v1888
        %v1904 = vpack.c.b16 %v1891, %v1890
        %v1905 = vpack.c.b16 %v1893, %v1892
        %v1906 = vpack.c.b16 %v1895, %v1894
        %v1907 = vpack.c.b16 %v1897, %v1896
        %v1908 = vpack.c.b16 %v1899, %v1898
        %v1909 = vpack.c.b16 %v1901, %v1900
        %1918 = vmatprep.subr.bf16.mxu0 0
        %1919 = vmatpush1.bf16.msra.mxu0 %v1902
        %1920 = vmatprep.subr.bf16.mxu0 0
        %1921 = vmatpush1.bf16.msra.mxu0 %v1903
        %1922 = vmatprep.subr.bf16.mxu0 0
        %1923 = vmatpush1.bf16.msra.mxu0 %v1904
        %1924 = vmatprep.subr.bf16.mxu0 0
        %1925 = vmatpush1.bf16.msra.mxu0 %v1905
        %1926 = vmatprep.subr.bf16.mxu0 0
        %1927 = vmatpush1.bf16.msra.mxu0 %v1906
        %1928 = vmatprep.subr.bf16.mxu0 0
        %1929 = vmatpush1.bf16.msra.mxu0 %v1907
        %1930 = vmatprep.subr.bf16.mxu0 0
        %1931 = vmatpush1.bf16.msra.mxu0 %v1908
        %1932 = vmatprep.subr.bf16.mxu0 0
        %1933 = vmatpush1.bf16.msra.mxu0 %v1909
        %1934 = vmatprep.subr.bf16.mxu0 0
        %1935 = vmatpush1.bf16.msra.mxu0 0
        %1936 = vmatprep.subr.bf16.mxu0 0
        %1937 = vmatpush1.bf16.msra.mxu0 0
        %1938 = vmatprep.subr.bf16.mxu0 0
        %1939 = vmatpush1.bf16.msra.mxu0 0
        %1940 = vmatprep.subr.bf16.mxu0 0
        %1941 = vmatpush1.bf16.msra.mxu0 0
        %1942 = vmatprep.subr.bf16.mxu0 0
        %1943 = vmatpush1.bf16.msra.mxu0 0
        %1944 = vmatprep.subr.bf16.mxu0 0
        %1945 = vmatpush1.bf16.msra.mxu0 0
        %1946 = vmatprep.subr.bf16.mxu0 0
        %1947 = vmatpush1.bf16.msra.mxu0 0
        %1948 = vmatprep.subr.bf16.mxu0 0
        %1949 = vmatpush1.bf16.msra.mxu0 0
        %1950 = vmatprep.mubr.bf16.mxu0 0
        %1951 = vmatmul.mubr.bf16.gmra.mrb[0].mxu0 %v1854
        %v1952 = vpop.f32.mrb[0].mxu0
        %v1953 = vadd.f32 0.0, %v1952
        %v1954 = vpop.f32.mrb[0].mxu0
        %v1955 = vpop.f32.mrb[0].mxu0
        %v1956 = vadd.f32 0.0, %v1955
        %v1957 = vpop.f32.mrb[0].mxu0
        %1958 = vmatprep.mubr.bf16.mxu0 0
        %1959 = vmatmul.mubr.bf16.gmra.mrb[0].mxu0 %v1855
        %v1960 = vpop.f32.mrb[0].mxu0
        %v1961 = vadd.f32 0.0, %v1960
        %v1962 = vpop.f32.mrb[0].mxu0
        %v1963 = vpop.f32.mrb[0].mxu0
        %v1964 = vadd.f32 0.0, %v1963
        %v1965 = vpop.f32.mrb[0].mxu0
        %1966 = vmatprep.mubr.bf16.mxu0 0
        %1967 = vmatmul.mubr.bf16.gmra.mrb[0].mxu0 %v1856
        %v1968 = vpop.f32.mrb[0].mxu0
        %v1969 = vadd.f32 0.0, %v1968
        %v1970 = vpop.f32.mrb[0].mxu0
        %v1971 = vpop.f32.mrb[0].mxu0
        %v1972 = vadd.f32 0.0, %v1971
        %v1973 = vpop.f32.mrb[0].mxu0
        %1974 = vmatprep.mubr.bf16.mxu0 0
        %1975 = vmatmul.mubr.bf16.gmra.mrb[0].mxu0 %v1857
        %v1976 = vpop.f32.mrb[0].mxu0
        %v1977 = vadd.f32 0.0, %v1976
        %v1978 = vpop.f32.mrb[0].mxu0
        %v1979 = vpop.f32.mrb[0].mxu0
        %v1980 = vadd.f32 0.0, %v1979
        %v1981 = vpop.f32.mrb[0].mxu0
        %1982 = vmatprep.mubr.bf16.mxu0 0
        %1983 = vmatmul.mubr.bf16.gmra.mrb[0].mxu0 %v1858
        %v1984 = vpop.f32.mrb[0].mxu0
        %v1985 = vadd.f32 0.0, %v1984
        %v1986 = vpop.f32.mrb[0].mxu0
        %v1987 = vpop.f32.mrb[0].mxu0
        %v1988 = vadd.f32 0.0, %v1987
        %v1989 = vpop.f32.mrb[0].mxu0
        %1990 = vmatprep.mubr.bf16.mxu0 0
        %1991 = vmatmul.mubr.bf16.gmra.mrb[0].mxu0 %v1859
        %v1992 = vpop.f32.mrb[0].mxu0
        %v1993 = vadd.f32 0.0, %v1992
        %v1994 = vpop.f32.mrb[0].mxu0
        %v1995 = vpop.f32.mrb[0].mxu0
        %v1996 = vadd.f32 0.0, %v1995
        %v1997 = vpop.f32.mrb[0].mxu0
        %1998 = vmatprep.mubr.bf16.mxu0 0
        %1999 = vmatmul.mubr.bf16.gmra.mrb[0].mxu0 %v1860
        %v2000 = vpop.f32.mrb[0].mxu0
        %v2001 = vadd.f32 0.0, %v2000
        %v2002 = vpop.f32.mrb[0].mxu0
        %v2003 = vpop.f32.mrb[0].mxu0
        %v2004 = vadd.f32 0.0, %v2003
        %v2005 = vpop.f32.mrb[0].mxu0
        %2006 = vmatprep.mubr.bf16.mxu0 0
        %2007 = vmatmul.mubr.bf16.gmra.mrb[0].mxu0 %v1861
        %v2008 = vpop.f32.mrb[0].mxu0
        %v2009 = vadd.f32 0.0, %v2008
        %v2010 = vpop.f32.mrb[0].mxu0
        %v2011 = vpop.f32.mrb[0].mxu0
        %v2012 = vadd.f32 0.0, %v2011
        %v2013 = vpop.f32.mrb[0].mxu0
        %2014 = vdwg.mxu0
        %v2015 = vld [vmem:[#allocation2] sm:$0xff]
        %v2016 = vld [vmem:[#allocation2 + $0x8] sm:$0xff]
        %v2017 = vld [vmem:[#allocation2 + $0x10] sm:$0xff]
        %v2018 = vld [vmem:[#allocation2 + $0x18] sm:$0xff]
        %v2019 = vld [vmem:[#allocation2 + $0x20] sm:$0xff]
        %v2020 = vld [vmem:[#allocation2 + $0x28] sm:$0xff]
        %v2021 = vld [vmem:[#allocation2 + $0x30] sm:$0xff]
        %v2022 = vld [vmem:[#allocation2 + $0x38] sm:$0xff]
        %v2023 = vld [vmem:[#allocation2 + $0x40] sm:$0xff]
        %v2024 = vld [vmem:[#allocation2 + $0x48] sm:$0xff]
        %v2025 = vld [vmem:[#allocation2 + $0x50] sm:$0xff]
        %v2026 = vld [vmem:[#allocation2 + $0x58] sm:$0xff]
        %v2027 = vld [vmem:[#allocation2 + $0x60] sm:$0xff]
        %v2028 = vld [vmem:[#allocation2 + $0x68] sm:$0xff]
        %v2029 = vld [vmem:[#allocation2 + $0x70] sm:$0xff]
        %v2030 = vld [vmem:[#allocation2 + $0x78] sm:$0xff]
        %v2031 = vadd.f32 %v2015, %v1953
        %v2032 = vadd.f32 %v2016, %v1956
        %v2033 = vadd.f32 %v2017, %v1961
        %v2034 = vadd.f32 %v2018, %v1964
        %v2035 = vadd.f32 %v2019, %v1969
        %v2036 = vadd.f32 %v2020, %v1972
        %v2037 = vadd.f32 %v2021, %v1977
        %v2038 = vadd.f32 %v2022, %v1980
        %v2039 = vadd.f32 %v2023, %v1985
        %v2040 = vadd.f32 %v2024, %v1988
        %v2041 = vadd.f32 %v2025, %v1993
        %v2042 = vadd.f32 %v2026, %v1996
        %v2043 = vadd.f32 %v2027, %v2001
        %v2044 = vadd.f32 %v2028, %v2004
        %v2045 = vadd.f32 %v2029, %v2009
        %v2046 = vadd.f32 %v2030, %v2012
        %2047 = vst [vmem:[#allocation2] sm:$0xff] %v2031
        %2048 = vst [vmem:[#allocation2 + $0x8] sm:$0xff] %v2032
        %2049 = vst [vmem:[#allocation2 + $0x10] sm:$0xff] %v2033
        %2050 = vst [vmem:[#allocation2 + $0x18] sm:$0xff] %v2034
        %2051 = vst [vmem:[#allocation2 + $0x20] sm:$0xff] %v2035
        %2052 = vst [vmem:[#allocation2 + $0x28] sm:$0xff] %v2036
        %2053 = vst [vmem:[#allocation2 + $0x30] sm:$0xff] %v2037
        %2054 = vst [vmem:[#allocation2 + $0x38] sm:$0xff] %v2038
        %2055 = vst [vmem:[#allocation2 + $0x40] sm:$0xff] %v2039
        %2056 = vst [vmem:[#allocation2 + $0x48] sm:$0xff] %v2040
        %2057 = vst [vmem:[#allocation2 + $0x50] sm:$0xff] %v2041
        %2058 = vst [vmem:[#allocation2 + $0x58] sm:$0xff] %v2042
        %2059 = vst [vmem:[#allocation2 + $0x60] sm:$0xff] %v2043
        %2060 = vst [vmem:[#allocation2 + $0x68] sm:$0xff] %v2044
        %2061 = vst [vmem:[#allocation2 + $0x70] sm:$0xff] %v2045
        %2062 = vst [vmem:[#allocation2 + $0x78] sm:$0xff] %v2046
        %v2063 = vld [vmem:[%s1330] sm:$0xe]
        %v2064 = vld [vmem:[%s1330 + $0x4] sm:$0xf]
        %v2065 = vld [vmem:[%s1330 + $0x8] sm:$0x1]
        %v2066 = vld [vmem:[%s1330 + $0xc] sm:$0xe]
        %v2067 = vld [vmem:[%s1330 + $0x10] sm:$0xf]
        %v2068 = vld [vmem:[%s1330 + $0x14] sm:$0x1]
        %v2069 = vld [vmem:[%s1330 + $0x18] sm:$0xe]
        %v2070 = vld [vmem:[%s1330 + $0x1c] sm:$0xf]
        %v2071 = vld [vmem:[%s1330 + $0x20] sm:$0x1]
        %v2072 = vld [vmem:[%s1330 + $0x24] sm:$0xe]
        %v2073 = vld [vmem:[%s1330 + $0x28] sm:$0xf]
        %v2074 = vld [vmem:[%s1330 + $0x2c] sm:$0x1]
        %v2075 = vld [vmem:[%s1330 + $0x30] sm:$0xe]
        %v2076 = vld [vmem:[%s1330 + $0x34] sm:$0xf]
        %v2077 = vld [vmem:[%s1330 + $0x38] sm:$0x1]
        %v2078 = vld [vmem:[%s1330 + $0x3c] sm:$0xe]
        %v2079 = vld [vmem:[%s1330 + $0x40] sm:$0xf]
        %v2080 = vld [vmem:[%s1330 + $0x44] sm:$0x1]
        %v2081 = vld [vmem:[%s1330 + $0x48] sm:$0xe]
        %v2082 = vld [vmem:[%s1330 + $0x4c] sm:$0xf]
        %v2083 = vld [vmem:[%s1330 + $0x50] sm:$0x1]
        %v2084 = vld [vmem:[%s1330 + $0x54] sm:$0xe]
        %v2085 = vld [vmem:[%s1330 + $0x58] sm:$0xf]
        %v2086 = vld [vmem:[%s1330 + $0x5c] sm:$0x1]
        %v2111 = vrot.slane %v2063, 5
        %v2112 = vrot.slane %v2111, 4
        %v2113 = vrot.slane %v2064, 5
        %v2114 = vsel %vm1028, %v2112, %v2113
        %v2115 = vrot.slane %v2113, 4
        %v2116 = vrot.slane %v2065, 5
        %v2117 = vsel %vm1028, %v2115, %v2116
        %v2118 = vrot.slane %v2066, 5
        %v2119 = vrot.slane %v2118, 4
        %v2120 = vrot.slane %v2067, 5
        %v2121 = vsel %vm1028, %v2119, %v2120
        %v2122 = vrot.slane %v2120, 4
        %v2123 = vrot.slane %v2068, 5
        %v2124 = vsel %vm1028, %v2122, %v2123
        %v2125 = vrot.slane %v2069, 5
        %v2126 = vrot.slane %v2125, 4
        %v2127 = vrot.slane %v2070, 5
        %v2128 = vsel %vm1028, %v2126, %v2127
        %v2129 = vrot.slane %v2127, 4
        %v2130 = vrot.slane %v2071, 5
        %v2131 = vsel %vm1028, %v2129, %v2130
        %v2132 = vrot.slane %v2072, 5
        %v2133 = vrot.slane %v2132, 4
        %v2134 = vrot.slane %v2073, 5
        %v2135 = vsel %vm1028, %v2133, %v2134
        %v2136 = vrot.slane %v2134, 4
        %v2137 = vrot.slane %v2074, 5
        %v2138 = vsel %vm1028, %v2136, %v2137
        %v2139 = vrot.slane %v2075, 5
        %v2140 = vrot.slane %v2139, 4
        %v2141 = vrot.slane %v2076, 5
        %v2142 = vsel %vm1028, %v2140, %v2141
        %v2143 = vrot.slane %v2141, 4
        %v2144 = vrot.slane %v2077, 5
        %v2145 = vsel %vm1028, %v2143, %v2144
        %v2146 = vrot.slane %v2078, 5
        %v2147 = vrot.slane %v2146, 4
        %v2148 = vrot.slane %v2079, 5
        %v2149 = vsel %vm1028, %v2147, %v2148
        %v2150 = vrot.slane %v2148, 4
        %v2151 = vrot.slane %v2080, 5
        %v2152 = vsel %vm1028, %v2150, %v2151
        %v2153 = vrot.slane %v2081, 5
        %v2154 = vrot.slane %v2153, 4
        %v2155 = vrot.slane %v2082, 5
        %v2156 = vsel %vm1028, %v2154, %v2155
        %v2157 = vrot.slane %v2155, 4
        %v2158 = vrot.slane %v2083, 5
        %v2159 = vsel %vm1028, %v2157, %v2158
        %v2160 = vrot.slane %v2084, 5
        %v2161 = vrot.slane %v2160, 4
        %v2162 = vrot.slane %v2085, 5
        %v2163 = vsel %vm1028, %v2161, %v2162
        %v2164 = vrot.slane %v2162, 4
        %v2165 = vrot.slane %v2086, 5
        %v2166 = vsel %vm1028, %v2164, %v2165
        %s2167 = scalar_lea.vmem [#allocation6], 320
        %v2168 = vld [vmem:[%s2167] sm:$0xf]
        %v2169 = vld [vmem:[%s2167 + $0x4] sm:$0xf]
        %v2170 = vld [vmem:[%s2167 + $0x8] sm:$0xf]
        %v2171 = vld [vmem:[%s2167 + $0xc] sm:$0xf]
        %v2172 = vld [vmem:[%s2167 + $0x10] sm:$0xf]
        %v2173 = vld [vmem:[%s2167 + $0x14] sm:$0xf]
        %v2174 = vld [vmem:[%s2167 + $0x18] sm:$0xf]
        %v2175 = vld [vmem:[%s2167 + $0x1c] sm:$0xf]
        %v2176 = vld [vmem:[%s2167 + $0x20] sm:$0xf]
        %v2177 = vld [vmem:[%s2167 + $0x24] sm:$0xf]
        %v2178 = vld [vmem:[%s2167 + $0x28] sm:$0xf]
        %v2179 = vld [vmem:[%s2167 + $0x2c] sm:$0xf]
        %v2180 = vld [vmem:[%s2167 + $0x30] sm:$0xf]
        %v2181 = vld [vmem:[%s2167 + $0x34] sm:$0xf]
        %v2182 = vld [vmem:[%s2167 + $0x38] sm:$0xf]
        %v2183 = vld [vmem:[%s2167 + $0x3c] sm:$0xf]
        %v2184 = vunpack.c.l.b16 %v2114
        %v2185 = vunpack.c.l.b16 %v2117
        %v2186 = vunpack.c.l.b16 %v2121
        %v2187 = vunpack.c.l.b16 %v2124
        %v2188 = vunpack.c.l.b16 %v2128
        %v2189 = vunpack.c.l.b16 %v2131
        %v2190 = vunpack.c.l.b16 %v2135
        %v2191 = vunpack.c.l.b16 %v2138
        %v2192 = vunpack.c.l.b16 %v2142
        %v2193 = vunpack.c.l.b16 %v2145
        %v2194 = vunpack.c.l.b16 %v2149
        %v2195 = vunpack.c.l.b16 %v2152
        %v2196 = vunpack.c.l.b16 %v2156
        %v2197 = vunpack.c.l.b16 %v2159
        %v2198 = vunpack.c.l.b16 %v2163
        %v2199 = vunpack.c.l.b16 %v2166
        %v2200 = vpack.c.b16 %v2185, %v2184
        %v2201 = vpack.c.b16 %v2187, %v2186
        %v2202 = vpack.c.b16 %v2189, %v2188
        %v2203 = vpack.c.b16 %v2191, %v2190
        %v2204 = vpack.c.b16 %v2193, %v2192
        %v2205 = vpack.c.b16 %v2195, %v2194
        %v2206 = vpack.c.b16 %v2197, %v2196
        %v2207 = vpack.c.b16 %v2199, %v2198
        %v2232 = vunpack.c.l.b16 %v2168
        %v2233 = vunpack.c.l.b16 %v2169
        %v2234 = vunpack.c.l.b16 %v2170
        %v2235 = vunpack.c.l.b16 %v2171
        %v2236 = vunpack.c.l.b16 %v2172
        %v2237 = vunpack.c.l.b16 %v2173
        %v2238 = vunpack.c.l.b16 %v2174
        %v2239 = vunpack.c.l.b16 %v2175
        %v2240 = vunpack.c.l.b16 %v2176
        %v2241 = vunpack.c.l.b16 %v2177
        %v2242 = vunpack.c.l.b16 %v2178
        %v2243 = vunpack.c.l.b16 %v2179
        %v2244 = vunpack.c.l.b16 %v2180
        %v2245 = vunpack.c.l.b16 %v2181
        %v2246 = vunpack.c.l.b16 %v2182
        %v2247 = vunpack.c.l.b16 %v2183
        %v2248 = vpack.c.b16 %v2233, %v2232
        %v2249 = vpack.c.b16 %v2235, %v2234
        %v2250 = vpack.c.b16 %v2237, %v2236
        %v2251 = vpack.c.b16 %v2239, %v2238
        %v2252 = vpack.c.b16 %v2241, %v2240
        %v2253 = vpack.c.b16 %v2243, %v2242
        %v2254 = vpack.c.b16 %v2245, %v2244
        %v2255 = vpack.c.b16 %v2247, %v2246
        %2264 = vmatprep.subr.bf16.mxu0 0
        %2265 = vmatpush1.bf16.msra.mxu0 %v2248
        %2266 = vmatprep.subr.bf16.mxu0 0
        %2267 = vmatpush1.bf16.msra.mxu0 %v2249
        %2268 = vmatprep.subr.bf16.mxu0 0
        %2269 = vmatpush1.bf16.msra.mxu0 %v2250
        %2270 = vmatprep.subr.bf16.mxu0 0
        %2271 = vmatpush1.bf16.msra.mxu0 %v2251
        %2272 = vmatprep.subr.bf16.mxu0 0
        %2273 = vmatpush1.bf16.msra.mxu0 %v2252
        %2274 = vmatprep.subr.bf16.mxu0 0
        %2275 = vmatpush1.bf16.msra.mxu0 %v2253
        %2276 = vmatprep.subr.bf16.mxu0 0
        %2277 = vmatpush1.bf16.msra.mxu0 %v2254
        %2278 = vmatprep.subr.bf16.mxu0 0
        %2279 = vmatpush1.bf16.msra.mxu0 %v2255
        %2280 = vmatprep.subr.bf16.mxu0 0
        %2281 = vmatpush1.bf16.msra.mxu0 0
        %2282 = vmatprep.subr.bf16.mxu0 0
        %2283 = vmatpush1.bf16.msra.mxu0 0
        %2284 = vmatprep.subr.bf16.mxu0 0
        %2285 = vmatpush1.bf16.msra.mxu0 0
        %2286 = vmatprep.subr.bf16.mxu0 0
        %2287 = vmatpush1.bf16.msra.mxu0 0
        %2288 = vmatprep.subr.bf16.mxu0 0
        %2289 = vmatpush1.bf16.msra.mxu0 0
        %2290 = vmatprep.subr.bf16.mxu0 0
        %2291 = vmatpush1.bf16.msra.mxu0 0
        %2292 = vmatprep.subr.bf16.mxu0 0
        %2293 = vmatpush1.bf16.msra.mxu0 0
        %2294 = vmatprep.subr.bf16.mxu0 0
        %2295 = vmatpush1.bf16.msra.mxu0 0
        %2296 = vmatprep.mubr.bf16.mxu0 0
        %2297 = vmatmul.mubr.bf16.gmra.mrb[0].mxu0 %v2200
        %v2298 = vpop.f32.mrb[0].mxu0
        %v2299 = vadd.f32 0.0, %v2298
        %v2300 = vpop.f32.mrb[0].mxu0
        %v2301 = vpop.f32.mrb[0].mxu0
        %v2302 = vadd.f32 0.0, %v2301
        %v2303 = vpop.f32.mrb[0].mxu0
        %2304 = vmatprep.mubr.bf16.mxu0 0
        %2305 = vmatmul.mubr.bf16.gmra.mrb[0].mxu0 %v2201
        %v2306 = vpop.f32.mrb[0].mxu0
        %v2307 = vadd.f32 0.0, %v2306
        %v2308 = vpop.f32.mrb[0].mxu0
        %v2309 = vpop.f32.mrb[0].mxu0
        %v2310 = vadd.f32 0.0, %v2309
        %v2311 = vpop.f32.mrb[0].mxu0
        %2312 = vmatprep.mubr.bf16.mxu0 0
        %2313 = vmatmul.mubr.bf16.gmra.mrb[0].mxu0 %v2202
        %v2314 = vpop.f32.mrb[0].mxu0
        %v2315 = vadd.f32 0.0, %v2314
        %v2316 = vpop.f32.mrb[0].mxu0
        %v2317 = vpop.f32.mrb[0].mxu0
        %v2318 = vadd.f32 0.0, %v2317
        %v2319 = vpop.f32.mrb[0].mxu0
        %2320 = vmatprep.mubr.bf16.mxu0 0
        %2321 = vmatmul.mubr.bf16.gmra.mrb[0].mxu0 %v2203
        %v2322 = vpop.f32.mrb[0].mxu0
        %v2323 = vadd.f32 0.0, %v2322
        %v2324 = vpop.f32.mrb[0].mxu0
        %v2325 = vpop.f32.mrb[0].mxu0
        %v2326 = vadd.f32 0.0, %v2325
        %v2327 = vpop.f32.mrb[0].mxu0
        %2328 = vmatprep.mubr.bf16.mxu0 0
        %2329 = vmatmul.mubr.bf16.gmra.mrb[0].mxu0 %v2204
        %v2330 = vpop.f32.mrb[0].mxu0
        %v2331 = vadd.f32 0.0, %v2330
        %v2332 = vpop.f32.mrb[0].mxu0
        %v2333 = vpop.f32.mrb[0].mxu0
        %v2334 = vadd.f32 0.0, %v2333
        %v2335 = vpop.f32.mrb[0].mxu0
        %2336 = vmatprep.mubr.bf16.mxu0 0
        %2337 = vmatmul.mubr.bf16.gmra.mrb[0].mxu0 %v2205
        %v2338 = vpop.f32.mrb[0].mxu0
        %v2339 = vadd.f32 0.0, %v2338
        %v2340 = vpop.f32.mrb[0].mxu0
        %v2341 = vpop.f32.mrb[0].mxu0
        %v2342 = vadd.f32 0.0, %v2341
        %v2343 = vpop.f32.mrb[0].mxu0
        %2344 = vmatprep.mubr.bf16.mxu0 0
        %2345 = vmatmul.mubr.bf16.gmra.mrb[0].mxu0 %v2206
        %v2346 = vpop.f32.mrb[0].mxu0
        %v2347 = vadd.f32 0.0, %v2346
        %v2348 = vpop.f32.mrb[0].mxu0
        %v2349 = vpop.f32.mrb[0].mxu0
        %v2350 = vadd.f32 0.0, %v2349
        %v2351 = vpop.f32.mrb[0].mxu0
        %2352 = vmatprep.mubr.bf16.mxu0 0
        %2353 = vmatmul.mubr.bf16.gmra.mrb[0].mxu0 %v2207
        %v2354 = vpop.f32.mrb[0].mxu0
        %v2355 = vadd.f32 0.0, %v2354
        %v2356 = vpop.f32.mrb[0].mxu0
        %v2357 = vpop.f32.mrb[0].mxu0
        %v2358 = vadd.f32 0.0, %v2357
        %v2359 = vpop.f32.mrb[0].mxu0
        %2360 = vdwg.mxu0
        %v2361 = vld [vmem:[#allocation2] sm:$0xff]
        %v2362 = vld [vmem:[#allocation2 + $0x8] sm:$0xff]
        %v2363 = vld [vmem:[#allocation2 + $0x10] sm:$0xff]
        %v2364 = vld [vmem:[#allocation2 + $0x18] sm:$0xff]
        %v2365 = vld [vmem:[#allocation2 + $0x20] sm:$0xff]
        %v2366 = vld [vmem:[#allocation2 + $0x28] sm:$0xff]
        %v2367 = vld [vmem:[#allocation2 + $0x30] sm:$0xff]
        %v2368 = vld [vmem:[#allocation2 + $0x38] sm:$0xff]
        %v2369 = vld [vmem:[#allocation2 + $0x40] sm:$0xff]
        %v2370 = vld [vmem:[#allocation2 + $0x48] sm:$0xff]
        %v2371 = vld [vmem:[#allocation2 + $0x50] sm:$0xff]
        %v2372 = vld [vmem:[#allocation2 + $0x58] sm:$0xff]
        %v2373 = vld [vmem:[#allocation2 + $0x60] sm:$0xff]
        %v2374 = vld [vmem:[#allocation2 + $0x68] sm:$0xff]
        %v2375 = vld [vmem:[#allocation2 + $0x70] sm:$0xff]
        %v2376 = vld [vmem:[#allocation2 + $0x78] sm:$0xff]
        %v2377 = vadd.f32 %v2361, %v2299
        %v2378 = vadd.f32 %v2362, %v2302
        %v2379 = vadd.f32 %v2363, %v2307
        %v2380 = vadd.f32 %v2364, %v2310
        %v2381 = vadd.f32 %v2365, %v2315
        %v2382 = vadd.f32 %v2366, %v2318
        %v2383 = vadd.f32 %v2367, %v2323
        %v2384 = vadd.f32 %v2368, %v2326
        %v2385 = vadd.f32 %v2369, %v2331
        %v2386 = vadd.f32 %v2370, %v2334
        %v2387 = vadd.f32 %v2371, %v2339
        %v2388 = vadd.f32 %v2372, %v2342
        %v2389 = vadd.f32 %v2373, %v2347
        %v2390 = vadd.f32 %v2374, %v2350
        %v2391 = vadd.f32 %v2375, %v2355
        %v2392 = vadd.f32 %v2376, %v2358
        %2393 = vst [vmem:[#allocation2] sm:$0xff] %v2377
        %2394 = vst [vmem:[#allocation2 + $0x8] sm:$0xff] %v2378
        %2395 = vst [vmem:[#allocation2 + $0x10] sm:$0xff] %v2379
        %2396 = vst [vmem:[#allocation2 + $0x18] sm:$0xff] %v2380
        %2397 = vst [vmem:[#allocation2 + $0x20] sm:$0xff] %v2381
        %2398 = vst [vmem:[#allocation2 + $0x28] sm:$0xff] %v2382
        %2399 = vst [vmem:[#allocation2 + $0x30] sm:$0xff] %v2383
        %2400 = vst [vmem:[#allocation2 + $0x38] sm:$0xff] %v2384
        %2401 = vst [vmem:[#allocation2 + $0x40] sm:$0xff] %v2385
        %2402 = vst [vmem:[#allocation2 + $0x48] sm:$0xff] %v2386
        %2403 = vst [vmem:[#allocation2 + $0x50] sm:$0xff] %v2387
        %2404 = vst [vmem:[#allocation2 + $0x58] sm:$0xff] %v2388
        %2405 = vst [vmem:[#allocation2 + $0x60] sm:$0xff] %v2389
        %2406 = vst [vmem:[#allocation2 + $0x68] sm:$0xff] %v2390
        %2407 = vst [vmem:[#allocation2 + $0x70] sm:$0xff] %v2391
        %2408 = vst [vmem:[#allocation2 + $0x78] sm:$0xff] %v2392
        %s2409 = sadd.s32 %s272, 2
        %s2410 = smul.u32 %s2409, 3
        %s2411 = smul.addr %s2410, 4
        %s2412 = scalar_lea.vmem %s233, %s2411 [#allocation3]
        %v2413 = vld [vmem:[%s2412] sm:$0xf]
        %v2414 = vld [vmem:[%s2412 + $0x4] sm:$0xf]
        %v2415 = vld [vmem:[%s2412 + $0xc] sm:$0xf]
        %v2416 = vld [vmem:[%s2412 + $0x10] sm:$0xf]
        %v2417 = vld [vmem:[%s2412 + $0x18] sm:$0xf]
        %v2418 = vld [vmem:[%s2412 + $0x1c] sm:$0xf]
        %v2419 = vld [vmem:[%s2412 + $0x24] sm:$0xf]
        %v2420 = vld [vmem:[%s2412 + $0x28] sm:$0xf]
        %v2421 = vld [vmem:[%s2412 + $0x30] sm:$0xf]
        %v2422 = vld [vmem:[%s2412 + $0x34] sm:$0xf]
        %v2423 = vld [vmem:[%s2412 + $0x3c] sm:$0xf]
        %v2424 = vld [vmem:[%s2412 + $0x40] sm:$0xf]
        %v2425 = vld [vmem:[%s2412 + $0x48] sm:$0xf]
        %v2426 = vld [vmem:[%s2412 + $0x4c] sm:$0xf]
        %v2427 = vld [vmem:[%s2412 + $0x54] sm:$0xf]
        %v2428 = vld [vmem:[%s2412 + $0x58] sm:$0xf]
        %s2429 = scalar_lea.vmem [#allocation6], 384
        %v2430 = vld [vmem:[%s2429] sm:$0xf]
        %v2431 = vld [vmem:[%s2429 + $0x4] sm:$0xf]
        %v2432 = vld [vmem:[%s2429 + $0x8] sm:$0xf]
        %v2433 = vld [vmem:[%s2429 + $0xc] sm:$0xf]
        %v2434 = vld [vmem:[%s2429 + $0x10] sm:$0xf]
        %v2435 = vld [vmem:[%s2429 + $0x14] sm:$0xf]
        %v2436 = vld [vmem:[%s2429 + $0x18] sm:$0xf]
        %v2437 = vld [vmem:[%s2429 + $0x1c] sm:$0xf]
        %v2438 = vld [vmem:[%s2429 + $0x20] sm:$0xf]
        %v2439 = vld [vmem:[%s2429 + $0x24] sm:$0xf]
        %v2440 = vld [vmem:[%s2429 + $0x28] sm:$0xf]
        %v2441 = vld [vmem:[%s2429 + $0x2c] sm:$0xf]
        %v2442 = vld [vmem:[%s2429 + $0x30] sm:$0xf]
        %v2443 = vld [vmem:[%s2429 + $0x34] sm:$0xf]
        %v2444 = vld [vmem:[%s2429 + $0x38] sm:$0xf]
        %v2445 = vld [vmem:[%s2429 + $0x3c] sm:$0xf]
        %v2462 = vunpack.c.l.b16 %v2413
        %v2463 = vunpack.c.l.b16 %v2414
        %v2464 = vunpack.c.l.b16 %v2415
        %v2465 = vunpack.c.l.b16 %v2416
        %v2466 = vunpack.c.l.b16 %v2417
        %v2467 = vunpack.c.l.b16 %v2418
        %v2468 = vunpack.c.l.b16 %v2419
        %v2469 = vunpack.c.l.b16 %v2420
        %v2470 = vunpack.c.l.b16 %v2421
        %v2471 = vunpack.c.l.b16 %v2422
        %v2472 = vunpack.c.l.b16 %v2423
        %v2473 = vunpack.c.l.b16 %v2424
        %v2474 = vunpack.c.l.b16 %v2425
        %v2475 = vunpack.c.l.b16 %v2426
        %v2476 = vunpack.c.l.b16 %v2427
        %v2477 = vunpack.c.l.b16 %v2428
        %v2478 = vpack.c.b16 %v2463, %v2462
        %v2479 = vpack.c.b16 %v2465, %v2464
        %v2480 = vpack.c.b16 %v2467, %v2466
        %v2481 = vpack.c.b16 %v2469, %v2468
        %v2482 = vpack.c.b16 %v2471, %v2470
        %v2483 = vpack.c.b16 %v2473, %v2472
        %v2484 = vpack.c.b16 %v2475, %v2474
        %v2485 = vpack.c.b16 %v2477, %v2476
        %v2510 = vunpack.c.l.b16 %v2430
        %v2511 = vunpack.c.l.b16 %v2431
        %v2512 = vunpack.c.l.b16 %v2432
        %v2513 = vunpack.c.l.b16 %v2433
        %v2514 = vunpack.c.l.b16 %v2434
        %v2515 = vunpack.c.l.b16 %v2435
        %v2516 = vunpack.c.l.b16 %v2436
        %v2517 = vunpack.c.l.b16 %v2437
        %v2518 = vunpack.c.l.b16 %v2438
        %v2519 = vunpack.c.l.b16 %v2439
        %v2520 = vunpack.c.l.b16 %v2440
        %v2521 = vunpack.c.l.b16 %v2441
        %v2522 = vunpack.c.l.b16 %v2442
        %v2523 = vunpack.c.l.b16 %v2443
        %v2524 = vunpack.c.l.b16 %v2444
        %v2525 = vunpack.c.l.b16 %v2445
        %v2526 = vpack.c.b16 %v2511, %v2510
        %v2527 = vpack.c.b16 %v2513, %v2512
        %v2528 = vpack.c.b16 %v2515, %v2514
        %v2529 = vpack.c.b16 %v2517, %v2516
        %v2530 = vpack.c.b16 %v2519, %v2518
        %v2531 = vpack.c.b16 %v2521, %v2520
        %v2532 = vpack.c.b16 %v2523, %v2522
        %v2533 = vpack.c.b16 %v2525, %v2524
        %2542 = vmatprep.subr.bf16.mxu0 0
        %2543 = vmatpush1.bf16.msra.mxu0 %v2526
        %2544 = vmatprep.subr.bf16.mxu0 0
        %2545 = vmatpush1.bf16.msra.mxu0 %v2527
        %2546 = vmatprep.subr.bf16.mxu0 0
        %2547 = vmatpush1.bf16.msra.mxu0 %v2528
        %2548 = vmatprep.subr.bf16.mxu0 0
        %2549 = vmatpush1.bf16.msra.mxu0 %v2529
        %2550 = vmatprep.subr.bf16.mxu0 0
        %2551 = vmatpush1.bf16.msra.mxu0 %v2530
        %2552 = vmatprep.subr.bf16.mxu0 0
        %2553 = vmatpush1.bf16.msra.mxu0 %v2531
        %2554 = vmatprep.subr.bf16.mxu0 0
        %2555 = vmatpush1.bf16.msra.mxu0 %v2532
        %2556 = vmatprep.subr.bf16.mxu0 0
        %2557 = vmatpush1.bf16.msra.mxu0 %v2533
        %2558 = vmatprep.subr.bf16.mxu0 0
        %2559 = vmatpush1.bf16.msra.mxu0 0
        %2560 = vmatprep.subr.bf16.mxu0 0
        %2561 = vmatpush1.bf16.msra.mxu0 0
        %2562 = vmatprep.subr.bf16.mxu0 0
        %2563 = vmatpush1.bf16.msra.mxu0 0
        %2564 = vmatprep.subr.bf16.mxu0 0
        %2565 = vmatpush1.bf16.msra.mxu0 0
        %2566 = vmatprep.subr.bf16.mxu0 0
        %2567 = vmatpush1.bf16.msra.mxu0 0
        %2568 = vmatprep.subr.bf16.mxu0 0
        %2569 = vmatpush1.bf16.msra.mxu0 0
        %2570 = vmatprep.subr.bf16.mxu0 0
        %2571 = vmatpush1.bf16.msra.mxu0 0
        %2572 = vmatprep.subr.bf16.mxu0 0
        %2573 = vmatpush1.bf16.msra.mxu0 0
        %2574 = vmatprep.mubr.bf16.mxu0 0
        %2575 = vmatmul.mubr.bf16.gmra.mrb[0].mxu0 %v2478
        %v2576 = vpop.f32.mrb[0].mxu0
        %v2577 = vadd.f32 0.0, %v2576
        %v2578 = vpop.f32.mrb[0].mxu0
        %v2579 = vpop.f32.mrb[0].mxu0
        %v2580 = vadd.f32 0.0, %v2579
        %v2581 = vpop.f32.mrb[0].mxu0
        %2582 = vmatprep.mubr.bf16.mxu0 0
        %2583 = vmatmul.mubr.bf16.gmra.mrb[0].mxu0 %v2479
        %v2584 = vpop.f32.mrb[0].mxu0
        %v2585 = vadd.f32 0.0, %v2584
        %v2586 = vpop.f32.mrb[0].mxu0
        %v2587 = vpop.f32.mrb[0].mxu0
        %v2588 = vadd.f32 0.0, %v2587
        %v2589 = vpop.f32.mrb[0].mxu0
        %2590 = vmatprep.mubr.bf16.mxu0 0
        %2591 = vmatmul.mubr.bf16.gmra.mrb[0].mxu0 %v2480
        %v2592 = vpop.f32.mrb[0].mxu0
        %v2593 = vadd.f32 0.0, %v2592
        %v2594 = vpop.f32.mrb[0].mxu0
        %v2595 = vpop.f32.mrb[0].mxu0
        %v2596 = vadd.f32 0.0, %v2595
        %v2597 = vpop.f32.mrb[0].mxu0
        %2598 = vmatprep.mubr.bf16.mxu0 0
        %2599 = vmatmul.mubr.bf16.gmra.mrb[0].mxu0 %v2481
        %v2600 = vpop.f32.mrb[0].mxu0
        %v2601 = vadd.f32 0.0, %v2600
        %v2602 = vpop.f32.mrb[0].mxu0
        %v2603 = vpop.f32.mrb[0].mxu0
        %v2604 = vadd.f32 0.0, %v2603
        %v2605 = vpop.f32.mrb[0].mxu0
        %2606 = vmatprep.mubr.bf16.mxu0 0
        %2607 = vmatmul.mubr.bf16.gmra.mrb[0].mxu0 %v2482
        %v2608 = vpop.f32.mrb[0].mxu0
        %v2609 = vadd.f32 0.0, %v2608
        %v2610 = vpop.f32.mrb[0].mxu0
        %v2611 = vpop.f32.mrb[0].mxu0
        %v2612 = vadd.f32 0.0, %v2611
        %v2613 = vpop.f32.mrb[0].mxu0
        %2614 = vmatprep.mubr.bf16.mxu0 0
        %2615 = vmatmul.mubr.bf16.gmra.mrb[0].mxu0 %v2483
        %v2616 = vpop.f32.mrb[0].mxu0
        %v2617 = vadd.f32 0.0, %v2616
        %v2618 = vpop.f32.mrb[0].mxu0
        %v2619 = vpop.f32.mrb[0].mxu0
        %v2620 = vadd.f32 0.0, %v2619
        %v2621 = vpop.f32.mrb[0].mxu0
        %2622 = vmatprep.mubr.bf16.mxu0 0
        %2623 = vmatmul.mubr.bf16.gmra.mrb[0].mxu0 %v2484
        %v2624 = vpop.f32.mrb[0].mxu0
        %v2625 = vadd.f32 0.0, %v2624
        %v2626 = vpop.f32.mrb[0].mxu0
        %v2627 = vpop.f32.mrb[0].mxu0
        %v2628 = vadd.f32 0.0, %v2627
        %v2629 = vpop.f32.mrb[0].mxu0
        %2630 = vmatprep.mubr.bf16.mxu0 0
        %2631 = vmatmul.mubr.bf16.gmra.mrb[0].mxu0 %v2485
        %v2632 = vpop.f32.mrb[0].mxu0
        %v2633 = vadd.f32 0.0, %v2632
        %v2634 = vpop.f32.mrb[0].mxu0
        %v2635 = vpop.f32.mrb[0].mxu0
        %v2636 = vadd.f32 0.0, %v2635
        %v2637 = vpop.f32.mrb[0].mxu0
        %2638 = vdwg.mxu0
        %v2639 = vld [vmem:[#allocation2] sm:$0xff]
        %v2640 = vld [vmem:[#allocation2 + $0x8] sm:$0xff]
        %v2641 = vld [vmem:[#allocation2 + $0x10] sm:$0xff]
        %v2642 = vld [vmem:[#allocation2 + $0x18] sm:$0xff]
        %v2643 = vld [vmem:[#allocation2 + $0x20] sm:$0xff]
        %v2644 = vld [vmem:[#allocation2 + $0x28] sm:$0xff]
        %v2645 = vld [vmem:[#allocation2 + $0x30] sm:$0xff]
        %v2646 = vld [vmem:[#allocation2 + $0x38] sm:$0xff]
        %v2647 = vld [vmem:[#allocation2 + $0x40] sm:$0xff]
        %v2648 = vld [vmem:[#allocation2 + $0x48] sm:$0xff]
        %v2649 = vld [vmem:[#allocation2 + $0x50] sm:$0xff]
        %v2650 = vld [vmem:[#allocation2 + $0x58] sm:$0xff]
        %v2651 = vld [vmem:[#allocation2 + $0x60] sm:$0xff]
        %v2652 = vld [vmem:[#allocation2 + $0x68] sm:$0xff]
        %v2653 = vld [vmem:[#allocation2 + $0x70] sm:$0xff]
        %v2654 = vld [vmem:[#allocation2 + $0x78] sm:$0xff]
        %v2655 = vadd.f32 %v2639, %v2577
        %v2656 = vadd.f32 %v2640, %v2580
        %v2657 = vadd.f32 %v2641, %v2585
        %v2658 = vadd.f32 %v2642, %v2588
        %v2659 = vadd.f32 %v2643, %v2593
        %v2660 = vadd.f32 %v2644, %v2596
        %v2661 = vadd.f32 %v2645, %v2601
        %v2662 = vadd.f32 %v2646, %v2604
        %v2663 = vadd.f32 %v2647, %v2609
        %v2664 = vadd.f32 %v2648, %v2612
        %v2665 = vadd.f32 %v2649, %v2617
        %v2666 = vadd.f32 %v2650, %v2620
        %v2667 = vadd.f32 %v2651, %v2625
        %v2668 = vadd.f32 %v2652, %v2628
        %v2669 = vadd.f32 %v2653, %v2633
        %v2670 = vadd.f32 %v2654, %v2636
        %2671 = vst [vmem:[#allocation2] sm:$0xff] %v2655
        %2672 = vst [vmem:[#allocation2 + $0x8] sm:$0xff] %v2656
        %2673 = vst [vmem:[#allocation2 + $0x10] sm:$0xff] %v2657
        %2674 = vst [vmem:[#allocation2 + $0x18] sm:$0xff] %v2658
        %2675 = vst [vmem:[#allocation2 + $0x20] sm:$0xff] %v2659
        %2676 = vst [vmem:[#allocation2 + $0x28] sm:$0xff] %v2660
        %2677 = vst [vmem:[#allocation2 + $0x30] sm:$0xff] %v2661
        %2678 = vst [vmem:[#allocation2 + $0x38] sm:$0xff] %v2662
        %2679 = vst [vmem:[#allocation2 + $0x40] sm:$0xff] %v2663
        %2680 = vst [vmem:[#allocation2 + $0x48] sm:$0xff] %v2664
        %2681 = vst [vmem:[#allocation2 + $0x50] sm:$0xff] %v2665
        %2682 = vst [vmem:[#allocation2 + $0x58] sm:$0xff] %v2666
        %2683 = vst [vmem:[#allocation2 + $0x60] sm:$0xff] %v2667
        %2684 = vst [vmem:[#allocation2 + $0x68] sm:$0xff] %v2668
        %2685 = vst [vmem:[#allocation2 + $0x70] sm:$0xff] %v2669
        %2686 = vst [vmem:[#allocation2 + $0x78] sm:$0xff] %v2670
        %v2687 = vld [vmem:[%s2412] sm:$0xf]
        %v2688 = vld [vmem:[%s2412 + $0x4] sm:$0xf]
        %v2689 = vld [vmem:[%s2412 + $0x8] sm:$0x1]
        %v2690 = vld [vmem:[%s2412 + $0xc] sm:$0xf]
        %v2691 = vld [vmem:[%s2412 + $0x10] sm:$0xf]
        %v2692 = vld [vmem:[%s2412 + $0x14] sm:$0x1]
        %v2693 = vld [vmem:[%s2412 + $0x18] sm:$0xf]
        %v2694 = vld [vmem:[%s2412 + $0x1c] sm:$0xf]
        %v2695 = vld [vmem:[%s2412 + $0x20] sm:$0x1]
        %v2696 = vld [vmem:[%s2412 + $0x24] sm:$0xf]
        %v2697 = vld [vmem:[%s2412 + $0x28] sm:$0xf]
        %v2698 = vld [vmem:[%s2412 + $0x2c] sm:$0x1]
        %v2699 = vld [vmem:[%s2412 + $0x30] sm:$0xf]
        %v2700 = vld [vmem:[%s2412 + $0x34] sm:$0xf]
        %v2701 = vld [vmem:[%s2412 + $0x38] sm:$0x1]
        %v2702 = vld [vmem:[%s2412 + $0x3c] sm:$0xf]
        %v2703 = vld [vmem:[%s2412 + $0x40] sm:$0xf]
        %v2704 = vld [vmem:[%s2412 + $0x44] sm:$0x1]
        %v2705 = vld [vmem:[%s2412 + $0x48] sm:$0xf]
        %v2706 = vld [vmem:[%s2412 + $0x4c] sm:$0xf]
        %v2707 = vld [vmem:[%s2412 + $0x50] sm:$0x1]
        %v2708 = vld [vmem:[%s2412 + $0x54] sm:$0xf]
        %v2709 = vld [vmem:[%s2412 + $0x58] sm:$0xf]
        %v2710 = vld [vmem:[%s2412 + $0x5c] sm:$0x1]
        %v2712 = vshrl.u32 %v2687, 16
        %v2714 = vrot.slane %v2712, 4
        %v2715 = vshll.u32 %v2687, 16
        %v2717 = vrot.slane %v2715, 5
        %v2718 = vor.u32 %v2714, %v2717
        %v2719 = vrot.slane %v2718, 4
        %v2721 = vshll.u32 %v2688, 16
        %v2723 = vrot.slane %v2721, 5
        %v2724 = vsel %vm543, %v2719, %v2723
        %v2725 = vshrl.u32 %v2688, 16
        %v2727 = vrot.slane %v2725, 4
        %v2728 = vor.u32 %v2727, %v2723
        %v2729 = vrot.slane %v2728, 4
        %v2731 = vshll.u32 %v2689, 16
        %v2733 = vrot.slane %v2731, 5
        %v2734 = vsel %vm543, %v2729, %v2733
        %v2736 = vshrl.u32 %v2690, 16
        %v2738 = vrot.slane %v2736, 4
        %v2739 = vshll.u32 %v2690, 16
        %v2741 = vrot.slane %v2739, 5
        %v2742 = vor.u32 %v2738, %v2741
        %v2743 = vrot.slane %v2742, 4
        %v2745 = vshll.u32 %v2691, 16
        %v2747 = vrot.slane %v2745, 5
        %v2748 = vsel %vm543, %v2743, %v2747
        %v2749 = vshrl.u32 %v2691, 16
        %v2751 = vrot.slane %v2749, 4
        %v2752 = vor.u32 %v2751, %v2747
        %v2753 = vrot.slane %v2752, 4
        %v2755 = vshll.u32 %v2692, 16
        %v2757 = vrot.slane %v2755, 5
        %v2758 = vsel %vm543, %v2753, %v2757
        %v2760 = vshrl.u32 %v2693, 16
        %v2762 = vrot.slane %v2760, 4
        %v2763 = vshll.u32 %v2693, 16
        %v2765 = vrot.slane %v2763, 5
        %v2766 = vor.u32 %v2762, %v2765
        %v2767 = vrot.slane %v2766, 4
        %v2769 = vshll.u32 %v2694, 16
        %v2771 = vrot.slane %v2769, 5
        %v2772 = vsel %vm543, %v2767, %v2771
        %v2773 = vshrl.u32 %v2694, 16
        %v2775 = vrot.slane %v2773, 4
        %v2776 = vor.u32 %v2775, %v2771
        %v2777 = vrot.slane %v2776, 4
        %v2779 = vshll.u32 %v2695, 16
        %v2781 = vrot.slane %v2779, 5
        %v2782 = vsel %vm543, %v2777, %v2781
        %v2784 = vshrl.u32 %v2696, 16
        %v2786 = vrot.slane %v2784, 4
        %v2787 = vshll.u32 %v2696, 16
        %v2789 = vrot.slane %v2787, 5
        %v2790 = vor.u32 %v2786, %v2789
        %v2791 = vrot.slane %v2790, 4
        %v2793 = vshll.u32 %v2697, 16
        %v2795 = vrot.slane %v2793, 5
        %v2796 = vsel %vm543, %v2791, %v2795
        %v2797 = vshrl.u32 %v2697, 16
        %v2799 = vrot.slane %v2797, 4
        %v2800 = vor.u32 %v2799, %v2795
        %v2801 = vrot.slane %v2800, 4
        %v2803 = vshll.u32 %v2698, 16
        %v2805 = vrot.slane %v2803, 5
        %v2806 = vsel %vm543, %v2801, %v2805
        %v2808 = vshrl.u32 %v2699, 16
        %v2810 = vrot.slane %v2808, 4
        %v2811 = vshll.u32 %v2699, 16
        %v2813 = vrot.slane %v2811, 5
        %v2814 = vor.u32 %v2810, %v2813
        %v2815 = vrot.slane %v2814, 4
        %v2817 = vshll.u32 %v2700, 16
        %v2819 = vrot.slane %v2817, 5
        %v2820 = vsel %vm543, %v2815, %v2819
        %v2821 = vshrl.u32 %v2700, 16
        %v2823 = vrot.slane %v2821, 4
        %v2824 = vor.u32 %v2823, %v2819
        %v2825 = vrot.slane %v2824, 4
        %v2827 = vshll.u32 %v2701, 16
        %v2829 = vrot.slane %v2827, 5
        %v2830 = vsel %vm543, %v2825, %v2829
        %v2832 = vshrl.u32 %v2702, 16
        %v2834 = vrot.slane %v2832, 4
        %v2835 = vshll.u32 %v2702, 16
        %v2837 = vrot.slane %v2835, 5
        %v2838 = vor.u32 %v2834, %v2837
        %v2839 = vrot.slane %v2838, 4
        %v2841 = vshll.u32 %v2703, 16
        %v2843 = vrot.slane %v2841, 5
        %v2844 = vsel %vm543, %v2839, %v2843
        %v2845 = vshrl.u32 %v2703, 16
        %v2847 = vrot.slane %v2845, 4
        %v2848 = vor.u32 %v2847, %v2843
        %v2849 = vrot.slane %v2848, 4
        %v2851 = vshll.u32 %v2704, 16
        %v2853 = vrot.slane %v2851, 5
        %v2854 = vsel %vm543, %v2849, %v2853
        %v2856 = vshrl.u32 %v2705, 16
        %v2858 = vrot.slane %v2856, 4
        %v2859 = vshll.u32 %v2705, 16
        %v2861 = vrot.slane %v2859, 5
        %v2862 = vor.u32 %v2858, %v2861
        %v2863 = vrot.slane %v2862, 4
        %v2865 = vshll.u32 %v2706, 16
        %v2867 = vrot.slane %v2865, 5
        %v2868 = vsel %vm543, %v2863, %v2867
        %v2869 = vshrl.u32 %v2706, 16
        %v2871 = vrot.slane %v2869, 4
        %v2872 = vor.u32 %v2871, %v2867
        %v2873 = vrot.slane %v2872, 4
        %v2875 = vshll.u32 %v2707, 16
        %v2877 = vrot.slane %v2875, 5
        %v2878 = vsel %vm543, %v2873, %v2877
        %v2880 = vshrl.u32 %v2708, 16
        %v2882 = vrot.slane %v2880, 4
        %v2883 = vshll.u32 %v2708, 16
        %v2885 = vrot.slane %v2883, 5
        %v2886 = vor.u32 %v2882, %v2885
        %v2887 = vrot.slane %v2886, 4
        %v2889 = vshll.u32 %v2709, 16
        %v2891 = vrot.slane %v2889, 5
        %v2892 = vsel %vm543, %v2887, %v2891
        %v2893 = vshrl.u32 %v2709, 16
        %v2895 = vrot.slane %v2893, 4
        %v2896 = vor.u32 %v2895, %v2891
        %v2897 = vrot.slane %v2896, 4
        %v2899 = vshll.u32 %v2710, 16
        %v2901 = vrot.slane %v2899, 5
        %v2902 = vsel %vm543, %v2897, %v2901
        %s2903 = scalar_lea.vmem [#allocation6], 448
        %v2904 = vld [vmem:[%s2903] sm:$0xf]
        %v2905 = vld [vmem:[%s2903 + $0x4] sm:$0xf]
        %v2906 = vld [vmem:[%s2903 + $0x8] sm:$0xf]
        %v2907 = vld [vmem:[%s2903 + $0xc] sm:$0xf]
        %v2908 = vld [vmem:[%s2903 + $0x10] sm:$0xf]
        %v2909 = vld [vmem:[%s2903 + $0x14] sm:$0xf]
        %v2910 = vld [vmem:[%s2903 + $0x18] sm:$0xf]
        %v2911 = vld [vmem:[%s2903 + $0x1c] sm:$0xf]
        %v2912 = vld [vmem:[%s2903 + $0x20] sm:$0xf]
        %v2913 = vld [vmem:[%s2903 + $0x24] sm:$0xf]
        %v2914 = vld [vmem:[%s2903 + $0x28] sm:$0xf]
        %v2915 = vld [vmem:[%s2903 + $0x2c] sm:$0xf]
        %v2916 = vld [vmem:[%s2903 + $0x30] sm:$0xf]
        %v2917 = vld [vmem:[%s2903 + $0x34] sm:$0xf]
        %v2918 = vld [vmem:[%s2903 + $0x38] sm:$0xf]
        %v2919 = vld [vmem:[%s2903 + $0x3c] sm:$0xf]
        %v2920 = vunpack.c.l.b16 %v2724
        %v2921 = vunpack.c.l.b16 %v2734
        %v2922 = vunpack.c.l.b16 %v2748
        %v2923 = vunpack.c.l.b16 %v2758
        %v2924 = vunpack.c.l.b16 %v2772
        %v2925 = vunpack.c.l.b16 %v2782
        %v2926 = vunpack.c.l.b16 %v2796
        %v2927 = vunpack.c.l.b16 %v2806
        %v2928 = vunpack.c.l.b16 %v2820
        %v2929 = vunpack.c.l.b16 %v2830
        %v2930 = vunpack.c.l.b16 %v2844
        %v2931 = vunpack.c.l.b16 %v2854
        %v2932 = vunpack.c.l.b16 %v2868
        %v2933 = vunpack.c.l.b16 %v2878
        %v2934 = vunpack.c.l.b16 %v2892
        %v2935 = vunpack.c.l.b16 %v2902
        %v2936 = vpack.c.b16 %v2921, %v2920
        %v2937 = vpack.c.b16 %v2923, %v2922
        %v2938 = vpack.c.b16 %v2925, %v2924
        %v2939 = vpack.c.b16 %v2927, %v2926
        %v2940 = vpack.c.b16 %v2929, %v2928
        %v2941 = vpack.c.b16 %v2931, %v2930
        %v2942 = vpack.c.b16 %v2933, %v2932
        %v2943 = vpack.c.b16 %v2935, %v2934
        %v2968 = vunpack.c.l.b16 %v2904
        %v2969 = vunpack.c.l.b16 %v2905
        %v2970 = vunpack.c.l.b16 %v2906
        %v2971 = vunpack.c.l.b16 %v2907
        %v2972 = vunpack.c.l.b16 %v2908
        %v2973 = vunpack.c.l.b16 %v2909
        %v2974 = vunpack.c.l.b16 %v2910
        %v2975 = vunpack.c.l.b16 %v2911
        %v2976 = vunpack.c.l.b16 %v2912
        %v2977 = vunpack.c.l.b16 %v2913
        %v2978 = vunpack.c.l.b16 %v2914
        %v2979 = vunpack.c.l.b16 %v2915
        %v2980 = vunpack.c.l.b16 %v2916
        %v2981 = vunpack.c.l.b16 %v2917
        %v2982 = vunpack.c.l.b16 %v2918
        %v2983 = vunpack.c.l.b16 %v2919
        %v2984 = vpack.c.b16 %v2969, %v2968
        %v2985 = vpack.c.b16 %v2971, %v2970
        %v2986 = vpack.c.b16 %v2973, %v2972
        %v2987 = vpack.c.b16 %v2975, %v2974
        %v2988 = vpack.c.b16 %v2977, %v2976
        %v2989 = vpack.c.b16 %v2979, %v2978
        %v2990 = vpack.c.b16 %v2981, %v2980
        %v2991 = vpack.c.b16 %v2983, %v2982
        %3000 = vmatprep.subr.bf16.mxu0 0
        %3001 = vmatpush1.bf16.msra.mxu0 %v2984
        %3002 = vmatprep.subr.bf16.mxu0 0
        %3003 = vmatpush1.bf16.msra.mxu0 %v2985
        %3004 = vmatprep.subr.bf16.mxu0 0
        %3005 = vmatpush1.bf16.msra.mxu0 %v2986
        %3006 = vmatprep.subr.bf16.mxu0 0
        %3007 = vmatpush1.bf16.msra.mxu0 %v2987
        %3008 = vmatprep.subr.bf16.mxu0 0
        %3009 = vmatpush1.bf16.msra.mxu0 %v2988
        %3010 = vmatprep.subr.bf16.mxu0 0
        %3011 = vmatpush1.bf16.msra.mxu0 %v2989
        %3012 = vmatprep.subr.bf16.mxu0 0
        %3013 = vmatpush1.bf16.msra.mxu0 %v2990
        %3014 = vmatprep.subr.bf16.mxu0 0
        %3015 = vmatpush1.bf16.msra.mxu0 %v2991
        %3016 = vmatprep.subr.bf16.mxu0 0
        %3017 = vmatpush1.bf16.msra.mxu0 0
        %3018 = vmatprep.subr.bf16.mxu0 0
        %3019 = vmatpush1.bf16.msra.mxu0 0
        %3020 = vmatprep.subr.bf16.mxu0 0
        %3021 = vmatpush1.bf16.msra.mxu0 0
        %3022 = vmatprep.subr.bf16.mxu0 0
        %3023 = vmatpush1.bf16.msra.mxu0 0
        %3024 = vmatprep.subr.bf16.mxu0 0
        %3025 = vmatpush1.bf16.msra.mxu0 0
        %3026 = vmatprep.subr.bf16.mxu0 0
        %3027 = vmatpush1.bf16.msra.mxu0 0
        %3028 = vmatprep.subr.bf16.mxu0 0
        %3029 = vmatpush1.bf16.msra.mxu0 0
        %3030 = vmatprep.subr.bf16.mxu0 0
        %3031 = vmatpush1.bf16.msra.mxu0 0
        %3032 = vmatprep.mubr.bf16.mxu0 0
        %3033 = vmatmul.mubr.bf16.gmra.mrb[0].mxu0 %v2936
        %v3034 = vpop.f32.mrb[0].mxu0
        %v3035 = vadd.f32 0.0, %v3034
        %v3036 = vpop.f32.mrb[0].mxu0
        %v3037 = vpop.f32.mrb[0].mxu0
        %v3038 = vadd.f32 0.0, %v3037
        %v3039 = vpop.f32.mrb[0].mxu0
        %3040 = vmatprep.mubr.bf16.mxu0 0
        %3041 = vmatmul.mubr.bf16.gmra.mrb[0].mxu0 %v2937
        %v3042 = vpop.f32.mrb[0].mxu0
        %v3043 = vadd.f32 0.0, %v3042
        %v3044 = vpop.f32.mrb[0].mxu0
        %v3045 = vpop.f32.mrb[0].mxu0
        %v3046 = vadd.f32 0.0, %v3045
        %v3047 = vpop.f32.mrb[0].mxu0
        %3048 = vmatprep.mubr.bf16.mxu0 0
        %3049 = vmatmul.mubr.bf16.gmra.mrb[0].mxu0 %v2938
        %v3050 = vpop.f32.mrb[0].mxu0
        %v3051 = vadd.f32 0.0, %v3050
        %v3052 = vpop.f32.mrb[0].mxu0
        %v3053 = vpop.f32.mrb[0].mxu0
        %v3054 = vadd.f32 0.0, %v3053
        %v3055 = vpop.f32.mrb[0].mxu0
        %3056 = vmatprep.mubr.bf16.mxu0 0
        %3057 = vmatmul.mubr.bf16.gmra.mrb[0].mxu0 %v2939
        %v3058 = vpop.f32.mrb[0].mxu0
        %v3059 = vadd.f32 0.0, %v3058
        %v3060 = vpop.f32.mrb[0].mxu0
        %v3061 = vpop.f32.mrb[0].mxu0
        %v3062 = vadd.f32 0.0, %v3061
        %v3063 = vpop.f32.mrb[0].mxu0
        %3064 = vmatprep.mubr.bf16.mxu0 0
        %3065 = vmatmul.mubr.bf16.gmra.mrb[0].mxu0 %v2940
        %v3066 = vpop.f32.mrb[0].mxu0
        %v3067 = vadd.f32 0.0, %v3066
        %v3068 = vpop.f32.mrb[0].mxu0
        %v3069 = vpop.f32.mrb[0].mxu0
        %v3070 = vadd.f32 0.0, %v3069
        %v3071 = vpop.f32.mrb[0].mxu0
        %3072 = vmatprep.mubr.bf16.mxu0 0
        %3073 = vmatmul.mubr.bf16.gmra.mrb[0].mxu0 %v2941
        %v3074 = vpop.f32.mrb[0].mxu0
        %v3075 = vadd.f32 0.0, %v3074
        %v3076 = vpop.f32.mrb[0].mxu0
        %v3077 = vpop.f32.mrb[0].mxu0
        %v3078 = vadd.f32 0.0, %v3077
        %v3079 = vpop.f32.mrb[0].mxu0
        %3080 = vmatprep.mubr.bf16.mxu0 0
        %3081 = vmatmul.mubr.bf16.gmra.mrb[0].mxu0 %v2942
        %v3082 = vpop.f32.mrb[0].mxu0
        %v3083 = vadd.f32 0.0, %v3082
        %v3084 = vpop.f32.mrb[0].mxu0
        %v3085 = vpop.f32.mrb[0].mxu0
        %v3086 = vadd.f32 0.0, %v3085
        %v3087 = vpop.f32.mrb[0].mxu0
        %3088 = vmatprep.mubr.bf16.mxu0 0
        %3089 = vmatmul.mubr.bf16.gmra.mrb[0].mxu0 %v2943
        %v3090 = vpop.f32.mrb[0].mxu0
        %v3091 = vadd.f32 0.0, %v3090
        %v3092 = vpop.f32.mrb[0].mxu0
        %v3093 = vpop.f32.mrb[0].mxu0
        %v3094 = vadd.f32 0.0, %v3093
        %v3095 = vpop.f32.mrb[0].mxu0
        %3096 = vdwg.mxu0
        %v3097 = vld [vmem:[#allocation2] sm:$0xff]
        %v3098 = vld [vmem:[#allocation2 + $0x8] sm:$0xff]
        %v3099 = vld [vmem:[#allocation2 + $0x10] sm:$0xff]
        %v3100 = vld [vmem:[#allocation2 + $0x18] sm:$0xff]
        %v3101 = vld [vmem:[#allocation2 + $0x20] sm:$0xff]
        %v3102 = vld [vmem:[#allocation2 + $0x28] sm:$0xff]
        %v3103 = vld [vmem:[#allocation2 + $0x30] sm:$0xff]
        %v3104 = vld [vmem:[#allocation2 + $0x38] sm:$0xff]
        %v3105 = vld [vmem:[#allocation2 + $0x40] sm:$0xff]
        %v3106 = vld [vmem:[#allocation2 + $0x48] sm:$0xff]
        %v3107 = vld [vmem:[#allocation2 + $0x50] sm:$0xff]
        %v3108 = vld [vmem:[#allocation2 + $0x58] sm:$0xff]
        %v3109 = vld [vmem:[#allocation2 + $0x60] sm:$0xff]
        %v3110 = vld [vmem:[#allocation2 + $0x68] sm:$0xff]
        %v3111 = vld [vmem:[#allocation2 + $0x70] sm:$0xff]
        %v3112 = vld [vmem:[#allocation2 + $0x78] sm:$0xff]
        %v3113 = vadd.f32 %v3097, %v3035
        %v3114 = vadd.f32 %v3098, %v3038
        %v3115 = vadd.f32 %v3099, %v3043
        %v3116 = vadd.f32 %v3100, %v3046
        %v3117 = vadd.f32 %v3101, %v3051
        %v3118 = vadd.f32 %v3102, %v3054
        %v3119 = vadd.f32 %v3103, %v3059
        %v3120 = vadd.f32 %v3104, %v3062
        %v3121 = vadd.f32 %v3105, %v3067
        %v3122 = vadd.f32 %v3106, %v3070
        %v3123 = vadd.f32 %v3107, %v3075
        %v3124 = vadd.f32 %v3108, %v3078
        %v3125 = vadd.f32 %v3109, %v3083
        %v3126 = vadd.f32 %v3110, %v3086
        %v3127 = vadd.f32 %v3111, %v3091
        %v3128 = vadd.f32 %v3112, %v3094
        %3129 = vst [vmem:[#allocation2] sm:$0xff] %v3113
        %3130 = vst [vmem:[#allocation2 + $0x8] sm:$0xff] %v3114
        %3131 = vst [vmem:[#allocation2 + $0x10] sm:$0xff] %v3115
        %3132 = vst [vmem:[#allocation2 + $0x18] sm:$0xff] %v3116
        %3133 = vst [vmem:[#allocation2 + $0x20] sm:$0xff] %v3117
        %3134 = vst [vmem:[#allocation2 + $0x28] sm:$0xff] %v3118
        %3135 = vst [vmem:[#allocation2 + $0x30] sm:$0xff] %v3119
        %3136 = vst [vmem:[#allocation2 + $0x38] sm:$0xff] %v3120
        %3137 = vst [vmem:[#allocation2 + $0x40] sm:$0xff] %v3121
        %3138 = vst [vmem:[#allocation2 + $0x48] sm:$0xff] %v3122
        %3139 = vst [vmem:[#allocation2 + $0x50] sm:$0xff] %v3123
        %3140 = vst [vmem:[#allocation2 + $0x58] sm:$0xff] %v3124
        %3141 = vst [vmem:[#allocation2 + $0x60] sm:$0xff] %v3125
        %3142 = vst [vmem:[#allocation2 + $0x68] sm:$0xff] %v3126
        %3143 = vst [vmem:[#allocation2 + $0x70] sm:$0xff] %v3127
        %3144 = vst [vmem:[#allocation2 + $0x78] sm:$0xff] %v3128
        %v3145 = vld [vmem:[%s2412] sm:$0xe]
        %v3146 = vld [vmem:[%s2412 + $0x4] sm:$0xf]
        %v3147 = vld [vmem:[%s2412 + $0x8] sm:$0x1]
        %v3148 = vld [vmem:[%s2412 + $0xc] sm:$0xe]
        %v3149 = vld [vmem:[%s2412 + $0x10] sm:$0xf]
        %v3150 = vld [vmem:[%s2412 + $0x14] sm:$0x1]
        %v3151 = vld [vmem:[%s2412 + $0x18] sm:$0xe]
        %v3152 = vld [vmem:[%s2412 + $0x1c] sm:$0xf]
        %v3153 = vld [vmem:[%s2412 + $0x20] sm:$0x1]
        %v3154 = vld [vmem:[%s2412 + $0x24] sm:$0xe]
        %v3155 = vld [vmem:[%s2412 + $0x28] sm:$0xf]
        %v3156 = vld [vmem:[%s2412 + $0x2c] sm:$0x1]
        %v3157 = vld [vmem:[%s2412 + $0x30] sm:$0xe]
        %v3158 = vld [vmem:[%s2412 + $0x34] sm:$0xf]
        %v3159 = vld [vmem:[%s2412 + $0x38] sm:$0x1]
        %v3160 = vld [vmem:[%s2412 + $0x3c] sm:$0xe]
        %v3161 = vld [vmem:[%s2412 + $0x40] sm:$0xf]
        %v3162 = vld [vmem:[%s2412 + $0x44] sm:$0x1]
        %v3163 = vld [vmem:[%s2412 + $0x48] sm:$0xe]
        %v3164 = vld [vmem:[%s2412 + $0x4c] sm:$0xf]
        %v3165 = vld [vmem:[%s2412 + $0x50] sm:$0x1]
        %v3166 = vld [vmem:[%s2412 + $0x54] sm:$0xe]
        %v3167 = vld [vmem:[%s2412 + $0x58] sm:$0xf]
        %v3168 = vld [vmem:[%s2412 + $0x5c] sm:$0x1]
        %v3193 = vrot.slane %v3145, 5
        %v3194 = vrot.slane %v3193, 4
        %v3195 = vrot.slane %v3146, 5
        %v3196 = vsel %vm1028, %v3194, %v3195
        %v3197 = vrot.slane %v3195, 4
        %v3198 = vrot.slane %v3147, 5
        %v3199 = vsel %vm1028, %v3197, %v3198
        %v3200 = vrot.slane %v3148, 5
        %v3201 = vrot.slane %v3200, 4
        %v3202 = vrot.slane %v3149, 5
        %v3203 = vsel %vm1028, %v3201, %v3202
        %v3204 = vrot.slane %v3202, 4
        %v3205 = vrot.slane %v3150, 5
        %v3206 = vsel %vm1028, %v3204, %v3205
        %v3207 = vrot.slane %v3151, 5
        %v3208 = vrot.slane %v3207, 4
        %v3209 = vrot.slane %v3152, 5
        %v3210 = vsel %vm1028, %v3208, %v3209
        %v3211 = vrot.slane %v3209, 4
        %v3212 = vrot.slane %v3153, 5
        %v3213 = vsel %vm1028, %v3211, %v3212
        %v3214 = vrot.slane %v3154, 5
        %v3215 = vrot.slane %v3214, 4
        %v3216 = vrot.slane %v3155, 5
        %v3217 = vsel %vm1028, %v3215, %v3216
        %v3218 = vrot.slane %v3216, 4
        %v3219 = vrot.slane %v3156, 5
        %v3220 = vsel %vm1028, %v3218, %v3219
        %v3221 = vrot.slane %v3157, 5
        %v3222 = vrot.slane %v3221, 4
        %v3223 = vrot.slane %v3158, 5
        %v3224 = vsel %vm1028, %v3222, %v3223
        %v3225 = vrot.slane %v3223, 4
        %v3226 = vrot.slane %v3159, 5
        %v3227 = vsel %vm1028, %v3225, %v3226
        %v3228 = vrot.slane %v3160, 5
        %v3229 = vrot.slane %v3228, 4
        %v3230 = vrot.slane %v3161, 5
        %v3231 = vsel %vm1028, %v3229, %v3230
        %v3232 = vrot.slane %v3230, 4
        %v3233 = vrot.slane %v3162, 5
        %v3234 = vsel %vm1028, %v3232, %v3233
        %v3235 = vrot.slane %v3163, 5
        %v3236 = vrot.slane %v3235, 4
        %v3237 = vrot.slane %v3164, 5
        %v3238 = vsel %vm1028, %v3236, %v3237
        %v3239 = vrot.slane %v3237, 4
        %v3240 = vrot.slane %v3165, 5
        %v3241 = vsel %vm1028, %v3239, %v3240
        %v3242 = vrot.slane %v3166, 5
        %v3243 = vrot.slane %v3242, 4
        %v3244 = vrot.slane %v3167, 5
        %v3245 = vsel %vm1028, %v3243, %v3244
        %v3246 = vrot.slane %v3244, 4
        %v3247 = vrot.slane %v3168, 5
        %v3248 = vsel %vm1028, %v3246, %v3247
        %s3249 = scalar_lea.vmem [#allocation6], 512
        %v3250 = vld [vmem:[%s3249] sm:$0xf]
        %v3251 = vld [vmem:[%s3249 + $0x4] sm:$0xf]
        %v3252 = vld [vmem:[%s3249 + $0x8] sm:$0xf]
        %v3253 = vld [vmem:[%s3249 + $0xc] sm:$0xf]
        %v3254 = vld [vmem:[%s3249 + $0x10] sm:$0xf]
        %v3255 = vld [vmem:[%s3249 + $0x14] sm:$0xf]
        %v3256 = vld [vmem:[%s3249 + $0x18] sm:$0xf]
        %v3257 = vld [vmem:[%s3249 + $0x1c] sm:$0xf]
        %v3258 = vld [vmem:[%s3249 + $0x20] sm:$0xf]
        %v3259 = vld [vmem:[%s3249 + $0x24] sm:$0xf]
        %v3260 = vld [vmem:[%s3249 + $0x28] sm:$0xf]
        %v3261 = vld [vmem:[%s3249 + $0x2c] sm:$0xf]
        %v3262 = vld [vmem:[%s3249 + $0x30] sm:$0xf]
        %v3263 = vld [vmem:[%s3249 + $0x34] sm:$0xf]
        %v3264 = vld [vmem:[%s3249 + $0x38] sm:$0xf]
        %v3265 = vld [vmem:[%s3249 + $0x3c] sm:$0xf]
        %v3266 = vunpack.c.l.b16 %v3196
        %v3267 = vunpack.c.l.b16 %v3199
        %v3268 = vunpack.c.l.b16 %v3203
        %v3269 = vunpack.c.l.b16 %v3206
        %v3270 = vunpack.c.l.b16 %v3210
        %v3271 = vunpack.c.l.b16 %v3213
        %v3272 = vunpack.c.l.b16 %v3217
        %v3273 = vunpack.c.l.b16 %v3220
        %v3274 = vunpack.c.l.b16 %v3224
        %v3275 = vunpack.c.l.b16 %v3227
        %v3276 = vunpack.c.l.b16 %v3231
        %v3277 = vunpack.c.l.b16 %v3234
        %v3278 = vunpack.c.l.b16 %v3238
        %v3279 = vunpack.c.l.b16 %v3241
        %v3280 = vunpack.c.l.b16 %v3245
        %v3281 = vunpack.c.l.b16 %v3248
        %v3282 = vpack.c.b16 %v3267, %v3266
        %v3283 = vpack.c.b16 %v3269, %v3268
        %v3284 = vpack.c.b16 %v3271, %v3270
        %v3285 = vpack.c.b16 %v3273, %v3272
        %v3286 = vpack.c.b16 %v3275, %v3274
        %v3287 = vpack.c.b16 %v3277, %v3276
        %v3288 = vpack.c.b16 %v3279, %v3278
        %v3289 = vpack.c.b16 %v3281, %v3280
        %v3314 = vunpack.c.l.b16 %v3250
        %v3315 = vunpack.c.l.b16 %v3251
        %v3316 = vunpack.c.l.b16 %v3252
        %v3317 = vunpack.c.l.b16 %v3253
        %v3318 = vunpack.c.l.b16 %v3254
        %v3319 = vunpack.c.l.b16 %v3255
        %v3320 = vunpack.c.l.b16 %v3256
        %v3321 = vunpack.c.l.b16 %v3257
        %v3322 = vunpack.c.l.b16 %v3258
        %v3323 = vunpack.c.l.b16 %v3259
        %v3324 = vunpack.c.l.b16 %v3260
        %v3325 = vunpack.c.l.b16 %v3261
        %v3326 = vunpack.c.l.b16 %v3262
        %v3327 = vunpack.c.l.b16 %v3263
        %v3328 = vunpack.c.l.b16 %v3264
        %v3329 = vunpack.c.l.b16 %v3265
        %v3330 = vpack.c.b16 %v3315, %v3314
        %v3331 = vpack.c.b16 %v3317, %v3316
        %v3332 = vpack.c.b16 %v3319, %v3318
        %v3333 = vpack.c.b16 %v3321, %v3320
        %v3334 = vpack.c.b16 %v3323, %v3322
        %v3335 = vpack.c.b16 %v3325, %v3324
        %v3336 = vpack.c.b16 %v3327, %v3326
        %v3337 = vpack.c.b16 %v3329, %v3328
        %3346 = vmatprep.subr.bf16.mxu0 0
        %3347 = vmatpush1.bf16.msra.mxu0 %v3330
        %3348 = vmatprep.subr.bf16.mxu0 0
        %3349 = vmatpush1.bf16.msra.mxu0 %v3331
        %3350 = vmatprep.subr.bf16.mxu0 0
        %3351 = vmatpush1.bf16.msra.mxu0 %v3332
        %3352 = vmatprep.subr.bf16.mxu0 0
        %3353 = vmatpush1.bf16.msra.mxu0 %v3333
        %3354 = vmatprep.subr.bf16.mxu0 0
        %3355 = vmatpush1.bf16.msra.mxu0 %v3334
        %3356 = vmatprep.subr.bf16.mxu0 0
        %3357 = vmatpush1.bf16.msra.mxu0 %v3335
        %3358 = vmatprep.subr.bf16.mxu0 0
        %3359 = vmatpush1.bf16.msra.mxu0 %v3336
        %3360 = vmatprep.subr.bf16.mxu0 0
        %3361 = vmatpush1.bf16.msra.mxu0 %v3337
        %3362 = vmatprep.subr.bf16.mxu0 0
        %3363 = vmatpush1.bf16.msra.mxu0 0
        %3364 = vmatprep.subr.bf16.mxu0 0
        %3365 = vmatpush1.bf16.msra.mxu0 0
        %3366 = vmatprep.subr.bf16.mxu0 0
        %3367 = vmatpush1.bf16.msra.mxu0 0
        %3368 = vmatprep.subr.bf16.mxu0 0
        %3369 = vmatpush1.bf16.msra.mxu0 0
        %3370 = vmatprep.subr.bf16.mxu0 0
        %3371 = vmatpush1.bf16.msra.mxu0 0
        %3372 = vmatprep.subr.bf16.mxu0 0
        %3373 = vmatpush1.bf16.msra.mxu0 0
        %3374 = vmatprep.subr.bf16.mxu0 0
        %3375 = vmatpush1.bf16.msra.mxu0 0
        %3376 = vmatprep.subr.bf16.mxu0 0
        %3377 = vmatpush1.bf16.msra.mxu0 0
        %3378 = vmatprep.mubr.bf16.mxu0 0
        %3379 = vmatmul.mubr.bf16.gmra.mrb[0].mxu0 %v3282
        %v3380 = vpop.f32.mrb[0].mxu0
        %v3381 = vadd.f32 0.0, %v3380
        %v3382 = vpop.f32.mrb[0].mxu0
        %v3383 = vpop.f32.mrb[0].mxu0
        %v3384 = vadd.f32 0.0, %v3383
        %v3385 = vpop.f32.mrb[0].mxu0
        %3386 = vmatprep.mubr.bf16.mxu0 0
        %3387 = vmatmul.mubr.bf16.gmra.mrb[0].mxu0 %v3283
        %v3388 = vpop.f32.mrb[0].mxu0
        %v3389 = vadd.f32 0.0, %v3388
        %v3390 = vpop.f32.mrb[0].mxu0
        %v3391 = vpop.f32.mrb[0].mxu0
        %v3392 = vadd.f32 0.0, %v3391
        %v3393 = vpop.f32.mrb[0].mxu0
        %3394 = vmatprep.mubr.bf16.mxu0 0
        %3395 = vmatmul.mubr.bf16.gmra.mrb[0].mxu0 %v3284
        %v3396 = vpop.f32.mrb[0].mxu0
        %v3397 = vadd.f32 0.0, %v3396
        %v3398 = vpop.f32.mrb[0].mxu0
        %v3399 = vpop.f32.mrb[0].mxu0
        %v3400 = vadd.f32 0.0, %v3399
        %v3401 = vpop.f32.mrb[0].mxu0
        %3402 = vmatprep.mubr.bf16.mxu0 0
        %3403 = vmatmul.mubr.bf16.gmra.mrb[0].mxu0 %v3285
        %v3404 = vpop.f32.mrb[0].mxu0
        %v3405 = vadd.f32 0.0, %v3404
        %v3406 = vpop.f32.mrb[0].mxu0
        %v3407 = vpop.f32.mrb[0].mxu0
        %v3408 = vadd.f32 0.0, %v3407
        %v3409 = vpop.f32.mrb[0].mxu0
        %3410 = vmatprep.mubr.bf16.mxu0 0
        %3411 = vmatmul.mubr.bf16.gmra.mrb[0].mxu0 %v3286
        %v3412 = vpop.f32.mrb[0].mxu0
        %v3413 = vadd.f32 0.0, %v3412
        %v3414 = vpop.f32.mrb[0].mxu0
        %v3415 = vpop.f32.mrb[0].mxu0
        %v3416 = vadd.f32 0.0, %v3415
        %v3417 = vpop.f32.mrb[0].mxu0
        %3418 = vmatprep.mubr.bf16.mxu0 0
        %3419 = vmatmul.mubr.bf16.gmra.mrb[0].mxu0 %v3287
        %v3420 = vpop.f32.mrb[0].mxu0
        %v3421 = vadd.f32 0.0, %v3420
        %v3422 = vpop.f32.mrb[0].mxu0
        %v3423 = vpop.f32.mrb[0].mxu0
        %v3424 = vadd.f32 0.0, %v3423
        %v3425 = vpop.f32.mrb[0].mxu0
        %3426 = vmatprep.mubr.bf16.mxu0 0
        %3427 = vmatmul.mubr.bf16.gmra.mrb[0].mxu0 %v3288
        %v3428 = vpop.f32.mrb[0].mxu0
        %v3429 = vadd.f32 0.0, %v3428
        %v3430 = vpop.f32.mrb[0].mxu0
        %v3431 = vpop.f32.mrb[0].mxu0
        %v3432 = vadd.f32 0.0, %v3431
        %v3433 = vpop.f32.mrb[0].mxu0
        %3434 = vmatprep.mubr.bf16.mxu0 0
        %3435 = vmatmul.mubr.bf16.gmra.mrb[0].mxu0 %v3289
        %v3436 = vpop.f32.mrb[0].mxu0
        %v3437 = vadd.f32 0.0, %v3436
        %v3438 = vpop.f32.mrb[0].mxu0
        %v3439 = vpop.f32.mrb[0].mxu0
        %v3440 = vadd.f32 0.0, %v3439
        %v3441 = vpop.f32.mrb[0].mxu0
        %3442 = vdwg.mxu0
        %v3443 = vld [vmem:[#allocation2] sm:$0xff]
        %v3444 = vld [vmem:[#allocation2 + $0x8] sm:$0xff]
        %v3445 = vld [vmem:[#allocation2 + $0x10] sm:$0xff]
        %v3446 = vld [vmem:[#allocation2 + $0x18] sm:$0xff]
        %v3447 = vld [vmem:[#allocation2 + $0x20] sm:$0xff]
        %v3448 = vld [vmem:[#allocation2 + $0x28] sm:$0xff]
        %v3449 = vld [vmem:[#allocation2 + $0x30] sm:$0xff]
        %v3450 = vld [vmem:[#allocation2 + $0x38] sm:$0xff]
        %v3451 = vld [vmem:[#allocation2 + $0x40] sm:$0xff]
        %v3452 = vld [vmem:[#allocation2 + $0x48] sm:$0xff]
        %v3453 = vld [vmem:[#allocation2 + $0x50] sm:$0xff]
        %v3454 = vld [vmem:[#allocation2 + $0x58] sm:$0xff]
        %v3455 = vld [vmem:[#allocation2 + $0x60] sm:$0xff]
        %v3456 = vld [vmem:[#allocation2 + $0x68] sm:$0xff]
        %v3457 = vld [vmem:[#allocation2 + $0x70] sm:$0xff]
        %v3458 = vld [vmem:[#allocation2 + $0x78] sm:$0xff]
        %v3459 = vadd.f32 %v3443, %v3381
        %v3460 = vadd.f32 %v3444, %v3384
        %v3461 = vadd.f32 %v3445, %v3389
        %v3462 = vadd.f32 %v3446, %v3392
        %v3463 = vadd.f32 %v3447, %v3397
        %v3464 = vadd.f32 %v3448, %v3400
        %v3465 = vadd.f32 %v3449, %v3405
        %v3466 = vadd.f32 %v3450, %v3408
        %v3467 = vadd.f32 %v3451, %v3413
        %v3468 = vadd.f32 %v3452, %v3416
        %v3469 = vadd.f32 %v3453, %v3421
        %v3470 = vadd.f32 %v3454, %v3424
        %v3471 = vadd.f32 %v3455, %v3429
        %v3472 = vadd.f32 %v3456, %v3432
        %v3473 = vadd.f32 %v3457, %v3437
        %v3474 = vadd.f32 %v3458, %v3440
        %3475 = vst [vmem:[#allocation2] sm:$0xff] %v3459
        %3476 = vst [vmem:[#allocation2 + $0x8] sm:$0xff] %v3460
        %3477 = vst [vmem:[#allocation2 + $0x10] sm:$0xff] %v3461
        %3478 = vst [vmem:[#allocation2 + $0x18] sm:$0xff] %v3462
        %3479 = vst [vmem:[#allocation2 + $0x20] sm:$0xff] %v3463
        %3480 = vst [vmem:[#allocation2 + $0x28] sm:$0xff] %v3464
        %3481 = vst [vmem:[#allocation2 + $0x30] sm:$0xff] %v3465
        %3482 = vst [vmem:[#allocation2 + $0x38] sm:$0xff] %v3466
        %3483 = vst [vmem:[#allocation2 + $0x40] sm:$0xff] %v3467
        %3484 = vst [vmem:[#allocation2 + $0x48] sm:$0xff] %v3468
        %3485 = vst [vmem:[#allocation2 + $0x50] sm:$0xff] %v3469
        %3486 = vst [vmem:[#allocation2 + $0x58] sm:$0xff] %v3470
        %3487 = vst [vmem:[#allocation2 + $0x60] sm:$0xff] %v3471
        %3488 = vst [vmem:[#allocation2 + $0x68] sm:$0xff] %v3472
        %3489 = vst [vmem:[#allocation2 + $0x70] sm:$0xff] %v3473
        %3490 = vst [vmem:[#allocation2 + $0x78] sm:$0xff] %v3474
        %v3491 = vld [vmem:[#allocation2] sm:$0xff]
        %v3492 = vld [vmem:[#allocation2 + $0x8] sm:$0xff]
        %v3493 = vld [vmem:[#allocation2 + $0x10] sm:$0xff]
        %v3494 = vld [vmem:[#allocation2 + $0x18] sm:$0xff]
        %v3495 = vld [vmem:[#allocation2 + $0x20] sm:$0xff]
        %v3496 = vld [vmem:[#allocation2 + $0x28] sm:$0xff]
        %v3497 = vld [vmem:[#allocation2 + $0x30] sm:$0xff]
        %v3498 = vld [vmem:[#allocation2 + $0x38] sm:$0xff]
        %v3499 = vld [vmem:[#allocation2 + $0x40] sm:$0xff]
        %v3500 = vld [vmem:[#allocation2 + $0x48] sm:$0xff]
        %v3501 = vld [vmem:[#allocation2 + $0x50] sm:$0xff]
        %v3502 = vld [vmem:[#allocation2 + $0x58] sm:$0xff]
        %v3503 = vld [vmem:[#allocation2 + $0x60] sm:$0xff]
        %v3504 = vld [vmem:[#allocation2 + $0x68] sm:$0xff]
        %v3505 = vld [vmem:[#allocation2 + $0x70] sm:$0xff]
        %v3506 = vld [vmem:[#allocation2 + $0x78] sm:$0xff]
        %v3507 = vld [vmem:[#allocation8] sm:$0x1]
        %v3509 = vlaneseq
        %v3510 = vshrl.u32 %v3509, 7
        %v3511 = vsub.s32 0, %v3510
        %v3512 = vrot.slane %v3507, %v3511
        %v3514 = vmul.f32 %v3491, %v3512
        %v3515 = vmul.f32 %v3492, %v3512
        %v3516 = vmul.f32 %v3493, %v3512
        %v3517 = vmul.f32 %v3494, %v3512
        %v3518 = vmul.f32 %v3495, %v3512
        %v3519 = vmul.f32 %v3496, %v3512
        %v3520 = vmul.f32 %v3497, %v3512
        %v3521 = vmul.f32 %v3498, %v3512
        %v3522 = vmul.f32 %v3499, %v3512
        %v3523 = vmul.f32 %v3500, %v3512
        %v3524 = vmul.f32 %v3501, %v3512
        %v3525 = vmul.f32 %v3502, %v3512
        %v3526 = vmul.f32 %v3503, %v3512
        %v3527 = vmul.f32 %v3504, %v3512
        %v3528 = vmul.f32 %v3505, %v3512
        %v3529 = vmul.f32 %v3506, %v3512
        %v3530 = vld [vmem:[#allocation9] sm:$0x1]
        %v3532 = vlaneseq
        %v3533 = vshrl.u32 %v3532, 7
        %v3534 = vsub.s32 0, %v3533
        %v3535 = vrot.slane %v3530, %v3534
        %v3537 = vadd.f32 %v3514, %v3535
        %v3538 = vadd.f32 %v3515, %v3535
        %v3539 = vadd.f32 %v3516, %v3535
        %v3540 = vadd.f32 %v3517, %v3535
        %v3541 = vadd.f32 %v3518, %v3535
        %v3542 = vadd.f32 %v3519, %v3535
        %v3543 = vadd.f32 %v3520, %v3535
        %v3544 = vadd.f32 %v3521, %v3535
        %v3545 = vadd.f32 %v3522, %v3535
        %v3546 = vadd.f32 %v3523, %v3535
        %v3547 = vadd.f32 %v3524, %v3535
        %v3548 = vadd.f32 %v3525, %v3535
        %v3549 = vadd.f32 %v3526, %v3535
        %v3550 = vadd.f32 %v3527, %v3535
        %v3551 = vadd.f32 %v3528, %v3535
        %v3552 = vadd.f32 %v3529, %v3535
        %v3553 = vmax.f32 %v3537, 0.0
        %v3554 = vmax.f32 %v3538, 0.0
        %v3555 = vmax.f32 %v3539, 0.0
        %v3556 = vmax.f32 %v3540, 0.0
        %v3557 = vmax.f32 %v3541, 0.0
        %v3558 = vmax.f32 %v3542, 0.0
        %v3559 = vmax.f32 %v3543, 0.0
        %v3560 = vmax.f32 %v3544, 0.0
        %v3561 = vmax.f32 %v3545, 0.0
        %v3562 = vmax.f32 %v3546, 0.0
        %v3563 = vmax.f32 %v3547, 0.0
        %v3564 = vmax.f32 %v3548, 0.0
        %v3565 = vmax.f32 %v3549, 0.0
        %v3566 = vmax.f32 %v3550, 0.0
        %v3567 = vmax.f32 %v3551, 0.0
        %v3568 = vmax.f32 %v3552, 0.0
        %v3569 = vmax.f32 %v3553, %v3555
        %v3570 = vmax.f32 %v3554, %v3556
        %v3571 = vmax.f32 %v3557, %v3559
        %v3572 = vmax.f32 %v3558, %v3560
        %v3573 = vmax.f32 %v3561, %v3563
        %v3574 = vmax.f32 %v3562, %v3564
        %v3575 = vmax.f32 %v3565, %v3567
        %v3576 = vmax.f32 %v3566, %v3568
        %v3581 = vrot.slane %v3569, 1
        %v3582 = vrot.slane %v3571, 1
        %v3583 = vrot.slane %v3573, 1
        %v3584 = vrot.slane %v3575, 1
        %v3589 = vmax.f32 %v3569, %v3581
        %v3590 = vmax.f32 %v3571, %v3582
        %v3591 = vmax.f32 %v3573, %v3583
        %v3592 = vmax.f32 %v3575, %v3584
        %v3593 = vpack.c.bf16 %v3589, %v3589
        %v3594 = vpack.c.bf16 %v3590, %v3590
        %v3595 = vpack.c.bf16 %v3591, %v3591
        %v3596 = vpack.c.bf16 %v3592, %v3592
        %vm3597 = vcmask 1040384
        %vm3598 = vsmask.f32 256
        %vm3599 = vmand %vm3597, %vm3598
        %v3600 = vld [vmem:[%s269] sm:$0x1]
        %v3601 = vsel %vm3599, %v3593, %v3600
        %3602 = vst [vmem:[%s269] sm:$0x1] %v3601
        %v3603 = vld [vmem:[%s269 + $0x4] sm:$0x1]
        %v3604 = vsel %vm3599, %v3594, %v3603
        %3605 = vst [vmem:[%s269 + $0x4] sm:$0x1] %v3604
        %v3606 = vld [vmem:[%s269 + $0x8] sm:$0x1]
        %v3607 = vsel %vm3599, %v3595, %v3606
        %3608 = vst [vmem:[%s269 + $0x8] sm:$0x1] %v3607
        %v3609 = vld [vmem:[%s269 + $0xc] sm:$0x1]
        %v3610 = vsel %vm3599, %v3596, %v3609
        %3611 = vst [vmem:[%s269 + $0xc] sm:$0x1] %v3610
        %v3616 = vunpack.c.l.b16 %v3593
        %v3617 = vunpack.c.l.b16 %v3594
        %v3618 = vunpack.c.l.b16 %v3595
        %v3619 = vunpack.c.l.b16 %v3596
        %v3620 = vpack.c.b16 %v3616, %v3616
        %v3621 = vpack.c.b16 %v3617, %v3617
        %v3622 = vpack.c.b16 %v3618, %v3618
        %v3623 = vpack.c.b16 %v3619, %v3619
        %v3625 = vshll.u32 %v3620, 16
        %v3627 = vrot.slane %v3625, 5
        %v3628 = vrot.slane %v3627, 4
        %v3630 = vshll.u32 %v3621, 16
        %v3632 = vrot.slane %v3630, 5
        %v3633 = vrot.slane %v3632, 4
        %v3635 = vshll.u32 %v3622, 16
        %v3637 = vrot.slane %v3635, 5
        %v3638 = vrot.slane %v3637, 4
        %v3640 = vshll.u32 %v3623, 16
        %v3642 = vrot.slane %v3640, 5
        %v3643 = vrot.slane %v3642, 4
        %vm3648 = vsmask.f32 7938
        %vm3649 = vmand %vm3597, %vm3648
        %v3650 = vld [vmem:[%s269] sm:$0x1]
        %v3651 = vsel %vm3649, %v3628, %v3650
        %3652 = vst [vmem:[%s269] sm:$0x1] %v3651
        %v3653 = vld [vmem:[%s269 + $0x4] sm:$0x1]
        %v3654 = vsel %vm3649, %v3633, %v3653
        %3655 = vst [vmem:[%s269 + $0x4] sm:$0x1] %v3654
        %v3656 = vld [vmem:[%s269 + $0x8] sm:$0x1]
        %v3657 = vsel %vm3649, %v3638, %v3656
        %3658 = vst [vmem:[%s269 + $0x8] sm:$0x1] %v3657
        %v3659 = vld [vmem:[%s269 + $0xc] sm:$0x1]
        %v3660 = vsel %vm3649, %v3643, %v3659
        %3661 = vst [vmem:[%s269 + $0xc] sm:$0x1] %v3660
        %v3662 = vrot.slane %v3620, 5
        %v3663 = vrot.slane %v3662, 4
        %v3664 = vrot.slane %v3621, 5
        %v3665 = vrot.slane %v3664, 4
        %v3666 = vrot.slane %v3622, 5
        %v3667 = vrot.slane %v3666, 4
        %v3668 = vrot.slane %v3623, 5
        %v3669 = vrot.slane %v3668, 4
        %vm3674 = vcmask 1041409
        %vm3675 = vsmask.f32 1280
        %vm3676 = vmand %vm3674, %vm3675
        %v3677 = vld [vmem:[%s269] sm:$0x2]
        %v3678 = vsel %vm3676, %v3663, %v3677
        %3679 = vst [vmem:[%s269] sm:$0x2] %v3678
        %v3680 = vld [vmem:[%s269 + $0x4] sm:$0x2]
        %v3681 = vsel %vm3676, %v3665, %v3680
        %3682 = vst [vmem:[%s269 + $0x4] sm:$0x2] %v3681
        %v3683 = vld [vmem:[%s269 + $0x8] sm:$0x2]
        %v3684 = vsel %vm3676, %v3667, %v3683
        %3685 = vst [vmem:[%s269 + $0x8] sm:$0x2] %v3684
        %v3686 = vld [vmem:[%s269 + $0xc] sm:$0x2]
        %v3687 = vsel %vm3676, %v3669, %v3686
        %3688 = vst [vmem:[%s269 + $0xc] sm:$0x2] %v3687
        %v3689 = vrot.slane %v3625, 6
        %v3690 = vrot.slane %v3689, 4
        %v3691 = vrot.slane %v3630, 6
        %v3692 = vrot.slane %v3691, 4
        %v3693 = vrot.slane %v3635, 6
        %v3694 = vrot.slane %v3693, 4
        %v3695 = vrot.slane %v3640, 6
        %v3696 = vrot.slane %v3695, 4
        %vm3701 = vsmask.f32 7942
        %vm3702 = vmand %vm3674, %vm3701
        %v3703 = vld [vmem:[%s269] sm:$0x2]
        %v3704 = vsel %vm3702, %v3690, %v3703
        %3705 = vst [vmem:[%s269] sm:$0x2] %v3704
        %v3706 = vld [vmem:[%s269 + $0x4] sm:$0x2]
        %v3707 = vsel %vm3702, %v3692, %v3706
        %3708 = vst [vmem:[%s269 + $0x4] sm:$0x2] %v3707
        %v3709 = vld [vmem:[%s269 + $0x8] sm:$0x2]
        %v3710 = vsel %vm3702, %v3694, %v3709
        %3711 = vst [vmem:[%s269 + $0x8] sm:$0x2] %v3710
        %v3712 = vld [vmem:[%s269 + $0xc] sm:$0x2]
        %v3713 = vsel %vm3702, %v3696, %v3712
        %3714 = vst [vmem:[%s269 + $0xc] sm:$0x2] %v3713
        %v3719 = vrot.slane %v3570, 1
        %v3720 = vrot.slane %v3572, 1
        %v3721 = vrot.slane %v3574, 1
        %v3722 = vrot.slane %v3576, 1
        %v3727 = vmax.f32 %v3570, %v3719
        %v3728 = vmax.f32 %v3572, %v3720
        %v3729 = vmax.f32 %v3574, %v3721
        %v3730 = vmax.f32 %v3576, %v3722
        %v3731 = vpack.c.bf16 %v3727, %v3727
        %v3732 = vpack.c.bf16 %v3728, %v3728
        %v3733 = vpack.c.bf16 %v3729, %v3729
        %v3734 = vpack.c.bf16 %v3730, %v3730
        %v3739 = vunpack.c.l.b16 %v3731
        %v3740 = vunpack.c.l.b16 %v3732
        %v3741 = vunpack.c.l.b16 %v3733
        %v3742 = vunpack.c.l.b16 %v3734
        %v3743 = vpack.c.b16 %v3739, %v3739
        %v3744 = vpack.c.b16 %v3740, %v3740
        %v3745 = vpack.c.b16 %v3741, %v3741
        %v3746 = vpack.c.b16 %v3742, %v3742
        %v3747 = vrot.slane %v3743, 6
        %v3748 = vrot.slane %v3744, 6
        %v3749 = vrot.slane %v3745, 6
        %v3750 = vrot.slane %v3746, 6
        %vm3755 = vcmask 1042434
        %vm3756 = vsmask.f32 2304
        %vm3757 = vmand %vm3755, %vm3756
        %v3758 = vld [vmem:[%s269] sm:$0x4]
        %v3759 = vsel %vm3757, %v3747, %v3758
        %3760 = vst [vmem:[%s269] sm:$0x4] %v3759
        %v3761 = vld [vmem:[%s269 + $0x4] sm:$0x4]
        %v3762 = vsel %vm3757, %v3748, %v3761
        %3763 = vst [vmem:[%s269 + $0x4] sm:$0x4] %v3762
        %v3764 = vld [vmem:[%s269 + $0x8] sm:$0x4]
        %v3765 = vsel %vm3757, %v3749, %v3764
        %3766 = vst [vmem:[%s269 + $0x8] sm:$0x4] %v3765
        %v3767 = vld [vmem:[%s269 + $0xc] sm:$0x4]
        %v3768 = vsel %vm3757, %v3750, %v3767
        %3769 = vst [vmem:[%s269 + $0xc] sm:$0x4] %v3768
        %v3771 = vshll.u32 %v3743, 16
        %v3773 = vrot.slane %v3771, 7
        %v3775 = vshll.u32 %v3744, 16
        %v3777 = vrot.slane %v3775, 7
        %v3779 = vshll.u32 %v3745, 16
        %v3781 = vrot.slane %v3779, 7
        %v3783 = vshll.u32 %v3746, 16
        %v3785 = vrot.slane %v3783, 7
        %vm3790 = vsmask.f32 7946
        %vm3791 = vmand %vm3755, %vm3790
        %v3792 = vld [vmem:[%s269] sm:$0x4]
        %v3793 = vsel %vm3791, %v3773, %v3792
        %3794 = vst [vmem:[%s269] sm:$0x4] %v3793
        %v3795 = vld [vmem:[%s269 + $0x4] sm:$0x4]
        %v3796 = vsel %vm3791, %v3777, %v3795
        %3797 = vst [vmem:[%s269 + $0x4] sm:$0x4] %v3796
        %v3798 = vld [vmem:[%s269 + $0x8] sm:$0x4]
        %v3799 = vsel %vm3791, %v3781, %v3798
        %3800 = vst [vmem:[%s269 + $0x8] sm:$0x4] %v3799
        %v3801 = vld [vmem:[%s269 + $0xc] sm:$0x4]
        %v3802 = vsel %vm3791, %v3785, %v3801
        %3803 = vst [vmem:[%s269 + $0xc] sm:$0x4] %v3802
        %v3804 = vrot.slane %v3743, 7
        %v3805 = vrot.slane %v3744, 7
        %v3806 = vrot.slane %v3745, 7
        %v3807 = vrot.slane %v3746, 7
        %vm3812 = vcmask 1043459
        %vm3813 = vmand %vm3812, %vm541
        %v3814 = vld [vmem:[%s269] sm:$0x8]
        %v3815 = vsel %vm3813, %v3804, %v3814
        %3816 = vst [vmem:[%s269] sm:$0x8] %v3815
        %v3817 = vld [vmem:[%s269 + $0x4] sm:$0x8]
        %v3818 = vsel %vm3813, %v3805, %v3817
        %3819 = vst [vmem:[%s269 + $0x4] sm:$0x8] %v3818
        %v3820 = vld [vmem:[%s269 + $0x8] sm:$0x8]
        %v3821 = vsel %vm3813, %v3806, %v3820
        %3822 = vst [vmem:[%s269 + $0x8] sm:$0x8] %v3821
        %v3823 = vld [vmem:[%s269 + $0xc] sm:$0x8]
        %v3824 = vsel %vm3813, %v3807, %v3823
        %3825 = vst [vmem:[%s269 + $0xc] sm:$0x8] %v3824
        %vm3830 = vsmask.f32 7950
        %vm3831 = vmand %vm3812, %vm3830
        %v3832 = vld [vmem:[%s269] sm:$0x8]
        %v3833 = vsel %vm3831, %v3771, %v3832
        %3834 = vst [vmem:[%s269] sm:$0x8] %v3833
        %v3835 = vld [vmem:[%s269 + $0x4] sm:$0x8]
        %v3836 = vsel %vm3831, %v3775, %v3835
        %3837 = vst [vmem:[%s269 + $0x4] sm:$0x8] %v3836
        %v3838 = vld [vmem:[%s269 + $0x8] sm:$0x8]
        %v3839 = vsel %vm3831, %v3779, %v3838
        %3840 = vst [vmem:[%s269 + $0x8] sm:$0x8] %v3839
        %v3841 = vld [vmem:[%s269 + $0xc] sm:$0x8]
        %v3842 = vsel %vm3831, %v3783, %v3841
        %3843 = vst [vmem:[%s269 + $0xc] sm:$0x8] %v3842
        %s3844 = sand.u32 %s134, 1
        %s3845 = scalar_lea.sflag [#allocation5], %s3844
        %s3846 = sand.u32 %s134, 1
        %s3847 = smul.addr %s3846, 16
        %s3848 = scalar_lea.vmem [#allocation11], %s3847
        // Predicated region
        $region53: #{vgg_forward_pallas.3} parent=35 // pred_check
          %p3849 = pneg %p144
        $region54: #{vgg_forward_pallas.3} parent=35 // pred_check_branch
          %3851 = sbr.rel (%p3849) target = $region56
        $region55: #{vgg_forward_pallas.3} parent=35 // pred_region
          %s3852 = smul.u32 4, %s28
          %s3854 = ssub.s32 256, 256
          %3855 = vsyncadd %s3845, %s3854
          %s3856 = smul.addr %s27, 8
          %s3857 = sadd.s32 %s3852, %s3856
          %s3858 = smul.addr %s3857, 64
          %s3859 = scalar_lea.hbm %s4, %s3858
          %s3860 = sshll.u32 %s3848, 4
          %s3861 = int_to_ptr.vmem [resolvable:$true] %s3860
          %3866 = dma.vmem_to_hbm [thread:$0]  %s3861, 256, %s3859, %s3845, 64, 64, 4
        $region56: #{vgg_forward_pallas.3} parent=35 // pred_fallthru
          _
      $region36: #{vgg_forward_pallas.3} parent=5 // pred_fallthru
        _
      %p3867 = scmp.le.s32.totalorder 2, %s18
      // Predicated region
      $region57: #{vgg_forward_pallas.3} parent=5 // pred_check
        %p3868 = pneg %p3867
      $region58: #{vgg_forward_pallas.3} parent=5 // pred_check_branch
        %3870 = sbr.rel (%p3868) target = $region60
      $region59: #{vgg_forward_pallas.3} parent=5 // pred_region
        %s3871 = ssub.s32 %s18, 2
        // Predicated region
        $region61: #{vgg_forward_pallas.3} parent=59 // pred_check
          %p3872 = pneg %p150
        $region62: #{vgg_forward_pallas.3} parent=59 // pred_check_branch
          %3874 = sbr.rel (%p3872) target = $region64
        $region63: #{vgg_forward_pallas.3} parent=59 // pred_region
          %s3875 = sand.u32 %s135, 1
          %s3876 = scalar_lea.sflag [#allocation5], %s3875
          %s3877 = sand.u32 %s135, 1
          %s3878 = smul.addr %s3877, 16
          %s3879 = scalar_lea.vmem [#allocation11], %s3878
          %3880 = dma.done %s3876, 256
        $region64: #{vgg_forward_pallas.3} parent=59 // pred_fallthru
          _
      $region60: #{vgg_forward_pallas.3} parent=5 // pred_fallthru
        _
    $region6: #{vgg_forward_pallas.3} parent=1 // loop_footer
      %s22 = sadd.s32 1, %s18
    $region7: #{vgg_forward_pallas.3} parent=1 // loop_footer_branch
      %17 = sbr.rel target = $region3
    $region8: #{vgg_forward_pallas.3} parent=1 // loop_exit
      _
    %3881 = vsyncpa [#allocation4], 1
    %s3882 = scalar_lea.sflag [#allocation4], 1
    %3883 = vsyncpa %s3882, 1
    %3884 = vsyncpa [#allocation7], 1
    %3885 = vsyncpa [#allocation10], 1
    %3886 = vsyncpa [#allocation5], 1
    %s3887 = scalar_lea.sflag [#allocation5], 1
    %3888 = vsyncpa %s3887, 1

</llo_original>
